<compile_context>
chip_gen: v6e
topology: v6e:2x2x1
jax: 0.10.0
libtpu: 0.0.40
codegen_flags: <defaults>
</compile_context>

<pallas_src>
import functools
import math

import jax
import jax.numpy as jnp
from jax.experimental import pallas as pl
from jax.experimental.pallas import tpu as pltpu


# ---------------------------------------------------------------------------
# Pallas kernels (channel-major / lane-dense orientation)
#   W : (Cout, K) bf16    P : (K, M) bf16    b : (Cout, 1) f32
#   out = act(W @ P + b)  -> (Cout, M), M (= N*OH*OW) on the lane axis.
# ---------------------------------------------------------------------------
def _conv_kernel(w_ref, b_ref, p_ref, o_ref, *, act):
    acc = jnp.dot(w_ref[...], p_ref[...], preferred_element_type=jnp.float32)
    acc = acc + b_ref[...]                     # (Cout,1) lane-broadcast, f32
    if act:
        acc = acc * jax.nn.sigmoid(acc)        # SiLU, f32 epilogue
    o_ref[...] = acc.astype(o_ref.dtype)


def _conv_chain_kernel(w1_ref, b1_ref, w2_ref, b2_ref, p_ref, *out_refs,
                       act2, emit_first):
    # conv1 (3x3, SiLU) followed by conv2 (1x1); intermediate stays in vregs.
    acc1 = jnp.dot(w1_ref[...], p_ref[...],
                   preferred_element_type=jnp.float32) + b1_ref[...]
    acc1 = acc1 * jax.nn.sigmoid(acc1)         # first conv always SiLU here
    h = acc1.astype(jnp.bfloat16)
    acc2 = jnp.dot(w2_ref[...], h,
                   preferred_element_type=jnp.float32) + b2_ref[...]
    if act2:
        acc2 = acc2 * jax.nn.sigmoid(acc2)
    if emit_first:
        out_refs[0][...] = acc1.astype(out_refs[0].dtype)
        out_refs[1][...] = acc2.astype(out_refs[1].dtype)
    else:
        out_refs[0][...] = acc2.astype(out_refs[0].dtype)


def _full_spec(shape):
    return pl.BlockSpec(shape, lambda i: (0,) * len(shape))


def pallas_conv(patches, wb, *, act=True, out_dtype=jnp.bfloat16):
    """patches (K, M) bf16, wb = (W (Cout,K) bf16, b (Cout,1) f32)."""
    w, b = wb
    K, M = patches.shape
    cout = w.shape[0]
    # Only split the lane axis for genuinely large layers (2 parallel steps so
    # both v7x TensorCores get work); everything else runs as a single step.
    tm = 1024 if (M >= 2048 and M % 1024 == 0) else M
    grid = (M // tm,)

    cost = pl.CostEstimate(
        flops=int(2 * M * K * cout),
        transcendentals=int(M * cout) if act else 0,
        bytes_accessed=int(K * M * 2 + cout * K * 2 + cout * 4 + cout * M * 2))

    return pl.pallas_call(
        functools.partial(_conv_kernel, act=act),
        out_shape=jax.ShapeDtypeStruct((cout, M), out_dtype),
        grid=grid,
        in_specs=[
            pl.BlockSpec((cout, K), lambda i: (0, 0)),   # weight (resident)
            pl.BlockSpec((cout, 1), lambda i: (0, 0)),   # bias
            pl.BlockSpec((K, tm), lambda i: (0, i)),     # patches, lane split
        ],
        out_specs=pl.BlockSpec((cout, tm), lambda i: (0, i)),
        compiler_params=pltpu.CompilerParams(
            dimension_semantics=("parallel",)),
        cost_estimate=cost,
    )(w, b, patches)


def pallas_conv_chain(patches, wb1, wb2, *, act2=True, emit_first=False,
                      out1_dtype=jnp.bfloat16, out2_dtype=jnp.bfloat16):
    """Fused conv(3x3) -> conv(1x1) on one VMEM-resident tile.  grid = (1,)."""
    w1, b1 = wb1
    w2, b2 = wb2
    K, M = patches.shape
    c1, c2 = w1.shape[0], w2.shape[0]

    if emit_first:
        out_shape = (jax.ShapeDtypeStruct((c1, M), out1_dtype),
                     jax.ShapeDtypeStruct((c2, M), out2_dtype))
        out_specs = (_full_spec((c1, M)), _full_spec((c2, M)))
    else:
        out_shape = jax.ShapeDtypeStruct((c2, M), out2_dtype)
        out_specs = _full_spec((c2, M))

    cost = pl.CostEstimate(
        flops=int(2 * M * (c1 * K + c2 * c1)),
        transcendentals=int(M * (c1 + (c2 if act2 else 0))),
        bytes_accessed=int(K * M * 2 + c1 * K * 2 + c2 * c1 * 2
                           + (c1 + c2) * 4 + (c1 + c2) * M * 2))

    return pl.pallas_call(
        functools.partial(_conv_chain_kernel, act2=act2,
                          emit_first=emit_first),
        out_shape=out_shape,
        grid=(1,),
        in_specs=[_full_spec((c1, K)), _full_spec((c1, 1)),
                  _full_spec((c2, c1)), _full_spec((c2, 1)),
                  _full_spec((K, M))],
        out_specs=out_specs,
        compiler_params=pltpu.CompilerParams(
            dimension_semantics=("arbitrary",)),
        cost_estimate=cost,
    )(w1, b1, w2, b2, patches)


# ---------------------------------------------------------------------------
# Wrapper glue: channel-major im2col (XLA side) + Pallas matmuls.
# Activations flow as (C, N, H, W) bf16.
# ---------------------------------------------------------------------------
def im2col(x_cnhw, k, stride):
    c, n, h, w = x_cnhw.shape
    if k == 1 and stride == 1:
        return x_cnhw.reshape(c, n * h * w), (h, w)
    pad = k // 2
    xp = jnp.pad(x_cnhw, ((0, 0), (0, 0), (pad, pad), (pad, pad)))
    oh = (h + 2 * pad - k) // stride + 1
    ow = (w + 2 * pad - k) // stride + 1
    taps = [xp[:, :, i:i + stride * oh:stride, j:j + stride * ow:stride]
            for i in range(k) for j in range(k)]
    patches = jnp.concatenate(taps, axis=0).reshape(k * k * c, n * oh * ow)
    return patches, (oh, ow)


def conv(x_cnhw, wb, k, stride=1, act=True, out_dtype=jnp.bfloat16):
    n = x_cnhw.shape[1]
    patches, (oh, ow) = im2col(x_cnhw, k, stride)
    out = pallas_conv(patches, wb, act=act, out_dtype=out_dtype)
    return out.reshape(wb[0].shape[0], n, oh, ow)


def conv_chain(x_cnhw, wb1, wb2, k, stride=1, *, act2=True, emit_first=False,
               out2_dtype=jnp.bfloat16):
    n = x_cnhw.shape[1]
    patches, (oh, ow) = im2col(x_cnhw, k, stride)
    res = pallas_conv_chain(patches, wb1, wb2, act2=act2,
                            emit_first=emit_first, out2_dtype=out2_dtype)
    c1, c2 = wb1[0].shape[0], wb2[0].shape[0]
    if emit_first:
        o1, o2 = res
        return o1.reshape(c1, n, oh, ow), o2.reshape(c2, n, oh, ow)
    return res.reshape(c2, n, oh, ow)


def upsample2x(x_cnhw):
    # TODO(synk): could be folded into the following conv via an index_map
    # that maps output spatial tile -> tile//2; kept wrapper-side (tiny maps).
    return jnp.repeat(jnp.repeat(x_cnhw, 2, axis=2), 2, axis=3)


# ---------------------------------------------------------------------------
# Parameters (deterministic, synthetic; PyTorch-style OIHW + bias)
# ---------------------------------------------------------------------------
NC = 4            # num_classes
REG_MAX = 0       # use_dfl=False -> reg head outputs 4 channels
HEAD_CHANNELS = [16, 24, 32]


def init_params(key):
    keys = iter(jax.random.split(key, 64))

    def conv_p(cin, cout, k, bias_init=0.0):
        kk = next(keys)
        w = jax.random.normal(kk, (cout, cin, k, k), jnp.float32) / math.sqrt(
            cin * k * k)
        b = jnp.full((cout,), bias_init, jnp.float32)
        return (w, b)

    backbone = {
        "stem": conv_p(3, 8, 3),
        "er2_0": conv_p(8, 16, 3), "er2_1": conv_p(16, 16, 3),
        "er3_0": conv_p(16, 24, 3), "er3_1": conv_p(24, 24, 3),
        "er4_0": conv_p(24, 32, 3), "er4_1": conv_p(32, 32, 3),
        "er5_0": conv_p(32, 48, 3), "er5_1": conv_p(48, 48, 3),
    }
    neck = {
        "reduce5": conv_p(48, 32, 1),
        "rep_p4": conv_p(64, 24, 3),
        "reduce4": conv_p(24, 16, 1),
        "rep_p3": conv_p(40, 16, 3),
        "down3": conv_p(16, 16, 3),
        "rep_n4": conv_p(32, 24, 3),
        "down4": conv_p(24, 32, 3),
        "rep_n5": conv_p(64, 32, 3),
    }
    cls_bias = -math.log((1.0 - 0.01) / 0.01)   # Detect.initialize_biases
    head = []
    for ch in HEAD_CHANNELS:
        head.append({
            "stem": conv_p(ch, ch, 1),
            "cls_conv": conv_p(ch, ch, 3),
            "cls_pred": conv_p(ch, NC, 1, bias_init=cls_bias),
            "reg_conv": conv_p(ch, ch, 3),
            "reg_pred": conv_p(ch, 4 * (REG_MAX + 1), 1, bias_init=1.0),
        })
    return {"backbone": backbone, "neck": neck, "head": head}


# ---------------------------------------------------------------------------
# One-time parameter preparation: OIHW f32 -> (Cout, K) bf16 + (Cout, 1) f32,
# with detect-head branch fusion and block-diagonal pred fusion.
# ---------------------------------------------------------------------------
def _prep_conv(wb):
    w, b = wb
    cout, cin, kh, kw = w.shape
    wm = jnp.transpose(w, (0, 2, 3, 1)).reshape(cout, kh * kw * cin)
    return (wm.astype(jnp.bfloat16), b.reshape(cout, 1).astype(jnp.float32))


def _prep_head_level(p):
    # cls_conv + reg_conv fused along Cout (same input feature map).
    wcc, bcc = p["cls_conv"]
    wrc, brc = p["reg_conv"]
    branch = _prep_conv((jnp.concatenate([wcc, wrc], axis=0),
                         jnp.concatenate([bcc, brc], axis=0)))
    # cls_pred + reg_pred fused as one block-diagonal 1x1 conv.
    wcp, bcp = p["cls_pred"]
    wrp, brp = p["reg_pred"]
    ncls, ch = wcp.shape[0], wcp.shape[1]
    nreg = wrp.shape[0]
    w_pred = jnp.zeros((ncls + nreg, 2 * ch, 1, 1), jnp.float32)
    w_pred = w_pred.at[:ncls, :ch].set(wcp)
    w_pred = w_pred.at[ncls:, ch:].set(wrp)
    b_pred = jnp.concatenate([bcp, brp], axis=0)
    pred = _prep_conv((w_pred, b_pred))
    return {"branch": branch, "pred": pred}


def prepare_params(params):
    bb = {k: _prep_conv(v) for k, v in params["backbone"].items()}
    bb["reduce5"] = _prep_conv(params["neck"]["reduce5"])   # fused w/ er5_1
    neck = {k: _prep_conv(v) for k, v in params["neck"].items()
            if k != "reduce5"}
    for l in range(3):                                       # head stems fused
        neck[f"head_stem{l}"] = _prep_conv(params["head"][l]["stem"])
    head = [_prep_head_level(p) for p in params["head"]]
    return {"backbone": bb, "neck": neck, "head": head}


# ---------------------------------------------------------------------------
# Forward passes (activations are (C, N, H, W) bf16 internally)
# ---------------------------------------------------------------------------
def backbone_forward(p, x):
    x = conv(x, p["stem"], 3, stride=2)
    x = conv(x, p["er2_0"], 3, stride=2)
    x = conv(x, p["er2_1"], 3, stride=1)
    x = conv(x, p["er3_0"], 3, stride=2)
    c3 = conv(x, p["er3_1"], 3, stride=1)                    # stride 8
    x = conv(c3, p["er4_0"], 3, stride=2)
    c4 = conv(x, p["er4_1"], 3, stride=1)                    # stride 16
    x = conv(c4, p["er5_0"], 3, stride=2)
    r5 = conv_chain(x, p["er5_1"], p["reduce5"], 3, stride=1)  # c5 + reduce5
    return c3, c4, r5


def neck_forward(p, c3, c4, r5):                              # Rep-PAN style
    p4_in = jnp.concatenate([upsample2x(r5), c4], axis=0)
    r4 = conv_chain(p4_in, p["rep_p4"], p["reduce4"], 3)      # rep_p4+reduce4
    p3_in = jnp.concatenate([upsample2x(r4), c3], axis=0)
    out3, s0 = conv_chain(p3_in, p["rep_p3"], p["head_stem0"], 3,
                          emit_first=True)                    # + head stem 0
    d3 = conv(out3, p["down3"], 3, stride=2)
    n4_in = jnp.concatenate([d3, r4], axis=0)
    out4, s1 = conv_chain(n4_in, p["rep_n4"], p["head_stem1"], 3,
                          emit_first=True)                    # + head stem 1
    d4 = conv(out4, p["down4"], 3, stride=2)
    n5_in = jnp.concatenate([d4, r5], axis=0)
    out5, s2 = conv_chain(n5_in, p["rep_n5"], p["head_stem2"], 3,
                          emit_first=True)                    # + head stem 2
    return (out3, out4, out5), (s0, s1, s2)


def detect_forward(head_prep, stems):
    x_out, cls_list, reg_list = [], [], []
    for p, s in zip(head_prep, stems):
        # fused (cls_conv|reg_conv) 3x3  ->  block-diag (cls|reg) pred 1x1
        pred = conv_chain(s, p["branch"], p["pred"], 3,
                          act2=False, out2_dtype=jnp.float32)
        x_out.append(jnp.transpose(s, (1, 0, 2, 3)).astype(jnp.float32))
        nco, n, h, w = pred.shape
        flat = jnp.transpose(pred, (1, 2, 3, 0)).reshape(n, h * w, nco)
        cls_list.append(flat[..., :NC])
        reg_list.append(flat[..., NC:])
    cls_cat = jnp.concatenate(cls_list, axis=1)
    reg_cat = jnp.concatenate(reg_list, axis=1)
    return x_out, cls_cat, reg_cat


def model_forward(prep, x_nchw):
    x = jnp.transpose(x_nchw, (1, 0, 2, 3)).astype(jnp.bfloat16)  # (C,N,H,W)
    c3, c4, r5 = backbone_forward(prep["backbone"], x)
    (n3, n4, n5), stems = neck_forward(prep["neck"], c3, c4, r5)
    featmaps = [jnp.transpose(t, (1, 0, 2, 3)).astype(jnp.float32)
                for t in (n3, n4, n5)]
    det = detect_forward(prep["head"], stems)
    # non-export branch of Model.forward: [detect_output, featmaps]
    return [det, featmaps]


# ---------------------------------------------------------------------------
if __name__ == "__main__":
    key = jax.random.PRNGKey(0)
    pkey, xkey = jax.random.split(key)
    params = init_params(pkey)
    prep = prepare_params(params)          # one-time weight prep (bf16, fused)
    x = jax.random.normal(xkey, (2, 3, 64, 64), jnp.float32)   # NCHW

    fwd = jax.jit(model_forward)
    (x_levels, cls_scores, reg_distri), featmaps = fwd(prep, x)
    jax.block_until_ready((x_levels, cls_scores, reg_distri, featmaps))

    # sanity: 8x8 + 4x4 + 2x2 anchors per image
    assert cls_scores.shape == (2, 64 + 16 + 4, NC)
    assert reg_distri.shape == (2, 64 + 16 + 4, 4 * (REG_MAX + 1))
    assert [f.shape for f in featmaps] == [(2, 16, 8, 8), (2, 24, 4, 4),
                                           (2, 32, 2, 2)]
    assert [f.shape for f in x_levels] == [(2, 16, 8, 8), (2, 24, 4, 4),
                                           (2, 32, 2, 2)]
    print("KERNEL_OK")
</pallas_src>

<mosaic_0001>
module attributes {stable_mosaic.version = 11 : i64} {
  func.func @_conv_kernel(%arg0: i32, %arg1: memref<8x27xbf16, #tpu.memory_space<vmem>>, %arg2: memref<8x1xf32, #tpu.memory_space<vmem>>, %arg3: memref<27x1024xbf16, #tpu.memory_space<vmem>>, %arg4: memref<8x1024xbf16, #tpu.memory_space<vmem>>) attributes {dimension_semantics = [#tpu.dimension_semantics<parallel>], iteration_bounds = array<i64: 2>, scalar_prefetch = 0 : i64, scratch_operands = 0 : i64, tpu.core_type = #tpu.core_type<tc>, window_params = [{pipeline_mode = #tpu.pipeline_mode<synchronous>, transform_indices = @transform_0, window_bounds = array<i64: 8, 27>}, {pipeline_mode = #tpu.pipeline_mode<synchronous>, transform_indices = @transform_1, window_bounds = array<i64: 8, 1>}, {transform_indices = @transform_2, window_bounds = array<i64: 27, 1024>}, {transform_indices = @transform_3, window_bounds = array<i64: 8, 1024>}]} {
    %c0 = arith.constant 0 : index
    %c0_0 = arith.constant 0 : index
    %0 = vector.load %arg1[%c0, %c0_0] : memref<8x27xbf16, #tpu.memory_space<vmem>>, vector<8x27xbf16>
    %c0_1 = arith.constant 0 : index
    %c0_2 = arith.constant 0 : index
    %1 = vector.load %arg3[%c0_1, %c0_2] : memref<27x1024xbf16, #tpu.memory_space<vmem>>, vector<27x1024xbf16>
    %cst = arith.constant dense<0.000000e+00> : vector<8x1024xf32>
    %2 = tpu.matmul %0, %1, %cst {dimension_numbers = #tpu.dot_dimension_numbers<[1], [0], [0], [1], [0, 0, 1, 1], [], []>} : vector<8x27xbf16>, vector<27x1024xbf16>, vector<8x1024xf32> -> vector<8x1024xf32>
    %c0_3 = arith.constant 0 : index
    %c0_4 = arith.constant 0 : index
    %3 = vector.load %arg2[%c0_3, %c0_4] : memref<8x1xf32, #tpu.memory_space<vmem>>, vector<8x1xf32>
    %4 = vector.broadcast %3 : vector<8x1xf32> to vector<8x1024xf32>
    %5 = arith.addf %2, %4 : vector<8x1024xf32>
    %6 = arith.negf %5 : vector<8x1024xf32>
    %7 = math.exp %6 : vector<8x1024xf32>
    %cst_5 = arith.constant 1.000000e+00 : f32
    %8 = vector.broadcast %cst_5 : f32 to vector<8x1024xf32>
    %9 = arith.addf %8, %7 : vector<8x1024xf32>
    %10 = arith.divf %8, %9 : vector<8x1024xf32>
    %11 = arith.mulf %5, %10 : vector<8x1024xf32>
    %12 = arith.truncf %11 : vector<8x1024xf32> to vector<8x1024xbf16>
    %c0_6 = arith.constant 0 : index
    %c0_7 = arith.constant 0 : index
    %13 = vector.load %arg4[%c0_6, %c0_7] : memref<8x1024xbf16, #tpu.memory_space<vmem>>, vector<8x1024xbf16>
    tpu.vector_store %arg4[%c0_6, %c0_7], %12 {strides = array<i32>} : memref<8x1024xbf16, #tpu.memory_space<vmem>>, vector<8x1024xbf16>,
    return
  }
  func.func @transform_0(%arg0: i32) -> (i32, i32) {
    %c0_i32 = arith.constant 0 : i32
    %c0_i32_0 = arith.constant 0 : i32
    %c0_i32_1 = arith.constant 0 : i32
    return %c0_i32, %c0_i32_0 : i32, i32
  }
  func.func @transform_1(%arg0: i32) -> (i32, i32) {
    %c0_i32 = arith.constant 0 : i32
    %c0_i32_0 = arith.constant 0 : i32
    %c0_i32_1 = arith.constant 0 : i32
    return %c0_i32, %c0_i32_0 : i32, i32
  }
  func.func @transform_2(%arg0: i32) -> (i32, i32) {
    %c0_i32 = arith.constant 0 : i32
    %c0_i32_0 = arith.constant 0 : i32
    return %c0_i32, %arg0 : i32, i32
  }
  func.func @transform_3(%arg0: i32) -> (i32, i32) {
    %c0_i32 = arith.constant 0 : i32
    %c0_i32_0 = arith.constant 0 : i32
    return %c0_i32, %arg0 : i32, i32
  }
}

module attributes {stable_mosaic.version = 11 : i64} {
  func.func @_conv_kernel(%arg0: i32, %arg1: memref<16x72xbf16, #tpu.memory_space<vmem>>, %arg2: memref<16x1xf32, #tpu.memory_space<vmem>>, %arg3: memref<72x512xbf16, #tpu.memory_space<vmem>>, %arg4: memref<16x512xbf16, #tpu.memory_space<vmem>>) attributes {dimension_semantics = [#tpu.dimension_semantics<parallel>], iteration_bounds = array<i64: 1>, scalar_prefetch = 0 : i64, scratch_operands = 0 : i64, tpu.core_type = #tpu.core_type<tc>, window_params = [{pipeline_mode = #tpu.pipeline_mode<synchronous>, transform_indices = @transform_0, window_bounds = array<i64: 16, 72>}, {pipeline_mode = #tpu.pipeline_mode<synchronous>, transform_indices = @transform_1, window_bounds = array<i64: 16, 1>}, {transform_indices = @transform_2, window_bounds = array<i64: 72, 512>}, {transform_indices = @transform_3, window_bounds = array<i64: 16, 512>}]} {
    %c0 = arith.constant 0 : index
    %c0_0 = arith.constant 0 : index
    %0 = vector.load %arg1[%c0, %c0_0] : memref<16x72xbf16, #tpu.memory_space<vmem>>, vector<16x72xbf16>
    %c0_1 = arith.constant 0 : index
    %c0_2 = arith.constant 0 : index
    %1 = vector.load %arg3[%c0_1, %c0_2] : memref<72x512xbf16, #tpu.memory_space<vmem>>, vector<72x512xbf16>
    %cst = arith.constant dense<0.000000e+00> : vector<16x512xf32>
    %2 = tpu.matmul %0, %1, %cst {dimension_numbers = #tpu.dot_dimension_numbers<[1], [0], [0], [1], [0, 0, 1, 1], [], []>} : vector<16x72xbf16>, vector<72x512xbf16>, vector<16x512xf32> -> vector<16x512xf32>
    %c0_3 = arith.constant 0 : index
    %c0_4 = arith.constant 0 : index
    %3 = vector.load %arg2[%c0_3, %c0_4] : memref<16x1xf32, #tpu.memory_space<vmem>>, vector<16x1xf32>
    %4 = vector.broadcast %3 : vector<16x1xf32> to vector<16x512xf32>
    %5 = arith.addf %2, %4 : vector<16x512xf32>
    %6 = arith.negf %5 : vector<16x512xf32>
    %7 = math.exp %6 : vector<16x512xf32>
    %cst_5 = arith.constant 1.000000e+00 : f32
    %8 = vector.broadcast %cst_5 : f32 to vector<16x512xf32>
    %9 = arith.addf %8, %7 : vector<16x512xf32>
    %10 = arith.divf %8, %9 : vector<16x512xf32>
    %11 = arith.mulf %5, %10 : vector<16x512xf32>
    %12 = arith.truncf %11 : vector<16x512xf32> to vector<16x512xbf16>
    %c0_6 = arith.constant 0 : index
    %c0_7 = arith.constant 0 : index
    %13 = vector.load %arg4[%c0_6, %c0_7] : memref<16x512xbf16, #tpu.memory_space<vmem>>, vector<16x512xbf16>
    tpu.vector_store %arg4[%c0_6, %c0_7], %12 {strides = array<i32>} : memref<16x512xbf16, #tpu.memory_space<vmem>>, vector<16x512xbf16>,
    return
  }
  func.func @transform_0(%arg0: i32) -> (i32, i32) {
    %c0_i32 = arith.constant 0 : i32
    %c0_i32_0 = arith.constant 0 : i32
    %c0_i32_1 = arith.constant 0 : i32
    return %c0_i32, %c0_i32_0 : i32, i32
  }
  func.func @transform_1(%arg0: i32) -> (i32, i32) {
    %c0_i32 = arith.constant 0 : i32
    %c0_i32_0 = arith.constant 0 : i32
    %c0_i32_1 = arith.constant 0 : i32
    return %c0_i32, %c0_i32_0 : i32, i32
  }
  func.func @transform_2(%arg0: i32) -> (i32, i32) {
    %c0_i32 = arith.constant 0 : i32
    %c0_i32_0 = arith.constant 0 : i32
    return %c0_i32, %arg0 : i32, i32
  }
  func.func @transform_3(%arg0: i32) -> (i32, i32) {
    %c0_i32 = arith.constant 0 : i32
    %c0_i32_0 = arith.constant 0 : i32
    return %c0_i32, %arg0 : i32, i32
  }
}

module attributes {stable_mosaic.version = 11 : i64} {
  func.func @_conv_kernel(%arg0: i32, %arg1: memref<16x144xbf16, #tpu.memory_space<vmem>>, %arg2: memref<16x1xf32, #tpu.memory_space<vmem>>, %arg3: memref<144x512xbf16, #tpu.memory_space<vmem>>, %arg4: memref<16x512xbf16, #tpu.memory_space<vmem>>) attributes {dimension_semantics = [#tpu.dimension_semantics<parallel>], iteration_bounds = array<i64: 1>, scalar_prefetch = 0 : i64, scratch_operands = 0 : i64, tpu.core_type = #tpu.core_type<tc>, window_params = [{pipeline_mode = #tpu.pipeline_mode<synchronous>, transform_indices = @transform_0, window_bounds = array<i64: 16, 144>}, {pipeline_mode = #tpu.pipeline_mode<synchronous>, transform_indices = @transform_1, window_bounds = array<i64: 16, 1>}, {transform_indices = @transform_2, window_bounds = array<i64: 144, 512>}, {transform_indices = @transform_3, window_bounds = array<i64: 16, 512>}]} {
    %c0 = arith.constant 0 : index
    %c0_0 = arith.constant 0 : index
    %0 = vector.load %arg1[%c0, %c0_0] : memref<16x144xbf16, #tpu.memory_space<vmem>>, vector<16x144xbf16>
    %c0_1 = arith.constant 0 : index
    %c0_2 = arith.constant 0 : index
    %1 = vector.load %arg3[%c0_1, %c0_2] : memref<144x512xbf16, #tpu.memory_space<vmem>>, vector<144x512xbf16>
    %cst = arith.constant dense<0.000000e+00> : vector<16x512xf32>
    %2 = tpu.matmul %0, %1, %cst {dimension_numbers = #tpu.dot_dimension_numbers<[1], [0], [0], [1], [0, 0, 1, 1], [], []>} : vector<16x144xbf16>, vector<144x512xbf16>, vector<16x512xf32> -> vector<16x512xf32>
    %c0_3 = arith.constant 0 : index
    %c0_4 = arith.constant 0 : index
    %3 = vector.load %arg2[%c0_3, %c0_4] : memref<16x1xf32, #tpu.memory_space<vmem>>, vector<16x1xf32>
    %4 = vector.broadcast %3 : vector<16x1xf32> to vector<16x512xf32>
    %5 = arith.addf %2, %4 : vector<16x512xf32>
    %6 = arith.negf %5 : vector<16x512xf32>
    %7 = math.exp %6 : vector<16x512xf32>
    %cst_5 = arith.constant 1.000000e+00 : f32
    %8 = vector.broadcast %cst_5 : f32 to vector<16x512xf32>
    %9 = arith.addf %8, %7 : vector<16x512xf32>
    %10 = arith.divf %8, %9 : vector<16x512xf32>
    %11 = arith.mulf %5, %10 : vector<16x512xf32>
    %12 = arith.truncf %11 : vector<16x512xf32> to vector<16x512xbf16>
    %c0_6 = arith.constant 0 : index
    %c0_7 = arith.constant 0 : index
    %13 = vector.load %arg4[%c0_6, %c0_7] : memref<16x512xbf16, #tpu.memory_space<vmem>>, vector<16x512xbf16>
    tpu.vector_store %arg4[%c0_6, %c0_7], %12 {strides = array<i32>} : memref<16x512xbf16, #tpu.memory_space<vmem>>, vector<16x512xbf16>,
    return
  }
  func.func @transform_0(%arg0: i32) -> (i32, i32) {
    %c0_i32 = arith.constant 0 : i32
    %c0_i32_0 = arith.constant 0 : i32
    %c0_i32_1 = arith.constant 0 : i32
    return %c0_i32, %c0_i32_0 : i32, i32
  }
  func.func @transform_1(%arg0: i32) -> (i32, i32) {
    %c0_i32 = arith.constant 0 : i32
    %c0_i32_0 = arith.constant 0 : i32
    %c0_i32_1 = arith.constant 0 : i32
    return %c0_i32, %c0_i32_0 : i32, i32
  }
  func.func @transform_2(%arg0: i32) -> (i32, i32) {
    %c0_i32 = arith.constant 0 : i32
    %c0_i32_0 = arith.constant 0 : i32
    return %c0_i32, %arg0 : i32, i32
  }
  func.func @transform_3(%arg0: i32) -> (i32, i32) {
    %c0_i32 = arith.constant 0 : i32
    %c0_i32_0 = arith.constant 0 : i32
    return %c0_i32, %arg0 : i32, i32
  }
}

module attributes {stable_mosaic.version = 11 : i64} {
  func.func @_conv_kernel(%arg0: i32, %arg1: memref<24x144xbf16, #tpu.memory_space<vmem>>, %arg2: memref<24x1xf32, #tpu.memory_space<vmem>>, %arg3: memref<144x128xbf16, #tpu.memory_space<vmem>>, %arg4: memref<24x128xbf16, #tpu.memory_space<vmem>>) attributes {dimension_semantics = [#tpu.dimension_semantics<parallel>], iteration_bounds = array<i64: 1>, scalar_prefetch = 0 : i64, scratch_operands = 0 : i64, tpu.core_type = #tpu.core_type<tc>, window_params = [{pipeline_mode = #tpu.pipeline_mode<synchronous>, transform_indices = @transform_0, window_bounds = array<i64: 24, 144>}, {pipeline_mode = #tpu.pipeline_mode<synchronous>, transform_indices = @transform_1, window_bounds = array<i64: 24, 1>}, {transform_indices = @transform_2, window_bounds = array<i64: 144, 128>}, {transform_indices = @transform_3, window_bounds = array<i64: 24, 128>}]} {
    %c0 = arith.constant 0 : index
    %c0_0 = arith.constant 0 : index
    %0 = vector.load %arg1[%c0, %c0_0] : memref<24x144xbf16, #tpu.memory_space<vmem>>, vector<24x144xbf16>
    %c0_1 = arith.constant 0 : index
    %c0_2 = arith.constant 0 : index
    %1 = vector.load %arg3[%c0_1, %c0_2] : memref<144x128xbf16, #tpu.memory_space<vmem>>, vector<144x128xbf16>
    %cst = arith.constant dense<0.000000e+00> : vector<24x128xf32>
    %2 = tpu.matmul %0, %1, %cst {dimension_numbers = #tpu.dot_dimension_numbers<[1], [0], [0], [1], [0, 0, 1, 1], [], []>} : vector<24x144xbf16>, vector<144x128xbf16>, vector<24x128xf32> -> vector<24x128xf32>
    %c0_3 = arith.constant 0 : index
    %c0_4 = arith.constant 0 : index
    %3 = vector.load %arg2[%c0_3, %c0_4] : memref<24x1xf32, #tpu.memory_space<vmem>>, vector<24x1xf32>
    %4 = vector.broadcast %3 : vector<24x1xf32> to vector<24x128xf32>
    %5 = arith.addf %2, %4 : vector<24x128xf32>
    %6 = arith.negf %5 : vector<24x128xf32>
    %7 = math.exp %6 : vector<24x128xf32>
    %cst_5 = arith.constant 1.000000e+00 : f32
    %8 = vector.broadcast %cst_5 : f32 to vector<24x128xf32>
    %9 = arith.addf %8, %7 : vector<24x128xf32>
    %10 = arith.divf %8, %9 : vector<24x128xf32>
    %11 = arith.mulf %5, %10 : vector<24x128xf32>
    %12 = arith.truncf %11 : vector<24x128xf32> to vector<24x128xbf16>
    %c0_6 = arith.constant 0 : index
    %c0_7 = arith.constant 0 : index
    %13 = vector.load %arg4[%c0_6, %c0_7] : memref<24x128xbf16, #tpu.memory_space<vmem>>, vector<24x128xbf16>
    tpu.vector_store %arg4[%c0_6, %c0_7], %12 {strides = array<i32>} : memref<24x128xbf16, #tpu.memory_space<vmem>>, vector<24x128xbf16>,
    return
  }
  func.func @transform_0(%arg0: i32) -> (i32, i32) {
    %c0_i32 = arith.constant 0 : i32
    %c0_i32_0 = arith.constant 0 : i32
    %c0_i32_1 = arith.constant 0 : i32
    return %c0_i32, %c0_i32_0 : i32, i32
  }
  func.func @transform_1(%arg0: i32) -> (i32, i32) {
    %c0_i32 = arith.constant 0 : i32
    %c0_i32_0 = arith.constant 0 : i32
    %c0_i32_1 = arith.constant 0 : i32
    return %c0_i32, %c0_i32_0 : i32, i32
  }
  func.func @transform_2(%arg0: i32) -> (i32, i32) {
    %c0_i32 = arith.constant 0 : i32
    %c0_i32_0 = arith.constant 0 : i32
    return %c0_i32, %arg0 : i32, i32
  }
  func.func @transform_3(%arg0: i32) -> (i32, i32) {
    %c0_i32 = arith.constant 0 : i32
    %c0_i32_0 = arith.constant 0 : i32
    return %c0_i32, %arg0 : i32, i32
  }
}

module attributes {stable_mosaic.version = 11 : i64} {
  func.func @_conv_kernel(%arg0: i32, %arg1: memref<24x216xbf16, #tpu.memory_space<vmem>>, %arg2: memref<24x1xf32, #tpu.memory_space<vmem>>, %arg3: memref<216x128xbf16, #tpu.memory_space<vmem>>, %arg4: memref<24x128xbf16, #tpu.memory_space<vmem>>) attributes {dimension_semantics = [#tpu.dimension_semantics<parallel>], iteration_bounds = array<i64: 1>, scalar_prefetch = 0 : i64, scratch_operands = 0 : i64, tpu.core_type = #tpu.core_type<tc>, window_params = [{pipeline_mode = #tpu.pipeline_mode<synchronous>, transform_indices = @transform_0, window_bounds = array<i64: 24, 216>}, {pipeline_mode = #tpu.pipeline_mode<synchronous>, transform_indices = @transform_1, window_bounds = array<i64: 24, 1>}, {transform_indices = @transform_2, window_bounds = array<i64: 216, 128>}, {transform_indices = @transform_3, window_bounds = array<i64: 24, 128>}]} {
    %c0 = arith.constant 0 : index
    %c0_0 = arith.constant 0 : index
    %0 = vector.load %arg1[%c0, %c0_0] : memref<24x216xbf16, #tpu.memory_space<vmem>>, vector<24x216xbf16>
    %c0_1 = arith.constant 0 : index
    %c0_2 = arith.constant 0 : index
    %1 = vector.load %arg3[%c0_1, %c0_2] : memref<216x128xbf16, #tpu.memory_space<vmem>>, vector<216x128xbf16>
    %cst = arith.constant dense<0.000000e+00> : vector<24x128xf32>
    %2 = tpu.matmul %0, %1, %cst {dimension_numbers = #tpu.dot_dimension_numbers<[1], [0], [0], [1], [0, 0, 1, 1], [], []>} : vector<24x216xbf16>, vector<216x128xbf16>, vector<24x128xf32> -> vector<24x128xf32>
    %c0_3 = arith.constant 0 : index
    %c0_4 = arith.constant 0 : index
    %3 = vector.load %arg2[%c0_3, %c0_4] : memref<24x1xf32, #tpu.memory_space<vmem>>, vector<24x1xf32>
    %4 = vector.broadcast %3 : vector<24x1xf32> to vector<24x128xf32>
    %5 = arith.addf %2, %4 : vector<24x128xf32>
    %6 = arith.negf %5 : vector<24x128xf32>
    %7 = math.exp %6 : vector<24x128xf32>
    %cst_5 = arith.constant 1.000000e+00 : f32
    %8 = vector.broadcast %cst_5 : f32 to vector<24x128xf32>
    %9 = arith.addf %8, %7 : vector<24x128xf32>
    %10 = arith.divf %8, %9 : vector<24x128xf32>
    %11 = arith.mulf %5, %10 : vector<24x128xf32>
    %12 = arith.truncf %11 : vector<24x128xf32> to vector<24x128xbf16>
    %c0_6 = arith.constant 0 : index
    %c0_7 = arith.constant 0 : index
    %13 = vector.load %arg4[%c0_6, %c0_7] : memref<24x128xbf16, #tpu.memory_space<vmem>>, vector<24x128xbf16>
    tpu.vector_store %arg4[%c0_6, %c0_7], %12 {strides = array<i32>} : memref<24x128xbf16, #tpu.memory_space<vmem>>, vector<24x128xbf16>,
    return
  }
  func.func @transform_0(%arg0: i32) -> (i32, i32) {
    %c0_i32 = arith.constant 0 : i32
    %c0_i32_0 = arith.constant 0 : i32
    %c0_i32_1 = arith.constant 0 : i32
    return %c0_i32, %c0_i32_0 : i32, i32
  }
  func.func @transform_1(%arg0: i32) -> (i32, i32) {
    %c0_i32 = arith.constant 0 : i32
    %c0_i32_0 = arith.constant 0 : i32
    %c0_i32_1 = arith.constant 0 : i32
    return %c0_i32, %c0_i32_0 : i32, i32
  }
  func.func @transform_2(%arg0: i32) -> (i32, i32) {
    %c0_i32 = arith.constant 0 : i32
    %c0_i32_0 = arith.constant 0 : i32
    return %c0_i32, %arg0 : i32, i32
  }
  func.func @transform_3(%arg0: i32) -> (i32, i32) {
    %c0_i32 = arith.constant 0 : i32
    %c0_i32_0 = arith.constant 0 : i32
    return %c0_i32, %arg0 : i32, i32
  }
}

module attributes {stable_mosaic.version = 11 : i64} {
  func.func @_conv_kernel(%arg0: i32, %arg1: memref<32x216xbf16, #tpu.memory_space<vmem>>, %arg2: memref<32x1xf32, #tpu.memory_space<vmem>>, %arg3: memref<216x32xbf16, #tpu.memory_space<vmem>>, %arg4: memref<32x32xbf16, #tpu.memory_space<vmem>>) attributes {dimension_semantics = [#tpu.dimension_semantics<parallel>], iteration_bounds = array<i64: 1>, scalar_prefetch = 0 : i64, scratch_operands = 0 : i64, tpu.core_type = #tpu.core_type<tc>, window_params = [{pipeline_mode = #tpu.pipeline_mode<synchronous>, transform_indices = @transform_0, window_bounds = array<i64: 32, 216>}, {pipeline_mode = #tpu.pipeline_mode<synchronous>, transform_indices = @transform_1, window_bounds = array<i64: 32, 1>}, {transform_indices = @transform_2, window_bounds = array<i64: 216, 32>}, {transform_indices = @transform_3, window_bounds = array<i64: 32, 32>}]} {
    %c0 = arith.constant 0 : index
    %c0_0 = arith.constant 0 : index
    %0 = vector.load %arg1[%c0, %c0_0] : memref<32x216xbf16, #tpu.memory_space<vmem>>, vector<32x216xbf16>
    %c0_1 = arith.constant 0 : index
    %c0_2 = arith.constant 0 : index
    %1 = vector.load %arg3[%c0_1, %c0_2] : memref<216x32xbf16, #tpu.memory_space<vmem>>, vector<216x32xbf16>
    %cst = arith.constant dense<0.000000e+00> : vector<32x32xf32>
    %2 = tpu.matmul %0, %1, %cst {dimension_numbers = #tpu.dot_dimension_numbers<[1], [0], [0], [1], [0, 0, 1, 1], [], []>} : vector<32x216xbf16>, vector<216x32xbf16>, vector<32x32xf32> -> vector<32x32xf32>
    %c0_3 = arith.constant 0 : index
    %c0_4 = arith.constant 0 : index
    %3 = vector.load %arg2[%c0_3, %c0_4] : memref<32x1xf32, #tpu.memory_space<vmem>>, vector<32x1xf32>
    %4 = vector.broadcast %3 : vector<32x1xf32> to vector<32x32xf32>
    %5 = arith.addf %2, %4 : vector<32x32xf32>
    %6 = arith.negf %5 : vector<32x32xf32>
    %7 = math.exp %6 : vector<32x32xf32>
    %cst_5 = arith.constant 1.000000e+00 : f32
    %8 = vector.broadcast %cst_5 : f32 to vector<32x32xf32>
    %9 = arith.addf %8, %7 : vector<32x32xf32>
    %10 = arith.divf %8, %9 : vector<32x32xf32>
    %11 = arith.mulf %5, %10 : vector<32x32xf32>
    %12 = arith.truncf %11 : vector<32x32xf32> to vector<32x32xbf16>
    %c0_6 = arith.constant 0 : index
    %c0_7 = arith.constant 0 : index
    %13 = vector.load %arg4[%c0_6, %c0_7] : memref<32x32xbf16, #tpu.memory_space<vmem>>, vector<32x32xbf16>
    tpu.vector_store %arg4[%c0_6, %c0_7], %12 {strides = array<i32>} : memref<32x32xbf16, #tpu.memory_space<vmem>>, vector<32x32xbf16>,
    return
  }
  func.func @transform_0(%arg0: i32) -> (i32, i32) {
    %c0_i32 = arith.constant 0 : i32
    %c0_i32_0 = arith.constant 0 : i32
    %c0_i32_1 = arith.constant 0 : i32
    return %c0_i32, %c0_i32_0 : i32, i32
  }
  func.func @transform_1(%arg0: i32) -> (i32, i32) {
    %c0_i32 = arith.constant 0 : i32
    %c0_i32_0 = arith.constant 0 : i32
    %c0_i32_1 = arith.constant 0 : i32
    return %c0_i32, %c0_i32_0 : i32, i32
  }
  func.func @transform_2(%arg0: i32) -> (i32, i32) {
    %c0_i32 = arith.constant 0 : i32
    %c0_i32_0 = arith.constant 0 : i32
    return %c0_i32, %arg0 : i32, i32
  }
  func.func @transform_3(%arg0: i32) -> (i32, i32) {
    %c0_i32 = arith.constant 0 : i32
    %c0_i32_0 = arith.constant 0 : i32
    return %c0_i32, %arg0 : i32, i32
  }
}

module attributes {stable_mosaic.version = 11 : i64} {
  func.func @_conv_kernel(%arg0: i32, %arg1: memref<32x288xbf16, #tpu.memory_space<vmem>>, %arg2: memref<32x1xf32, #tpu.memory_space<vmem>>, %arg3: memref<288x32xbf16, #tpu.memory_space<vmem>>, %arg4: memref<32x32xbf16, #tpu.memory_space<vmem>>) attributes {dimension_semantics = [#tpu.dimension_semantics<parallel>], iteration_bounds = array<i64: 1>, scalar_prefetch = 0 : i64, scratch_operands = 0 : i64, tpu.core_type = #tpu.core_type<tc>, window_params = [{pipeline_mode = #tpu.pipeline_mode<synchronous>, transform_indices = @transform_0, window_bounds = array<i64: 32, 288>}, {pipeline_mode = #tpu.pipeline_mode<synchronous>, transform_indices = @transform_1, window_bounds = array<i64: 32, 1>}, {transform_indices = @transform_2, window_bounds = array<i64: 288, 32>}, {transform_indices = @transform_3, window_bounds = array<i64: 32, 32>}]} {
    %c0 = arith.constant 0 : index
    %c0_0 = arith.constant 0 : index
    %0 = vector.load %arg1[%c0, %c0_0] : memref<32x288xbf16, #tpu.memory_space<vmem>>, vector<32x288xbf16>
    %c0_1 = arith.constant 0 : index
    %c0_2 = arith.constant 0 : index
    %1 = vector.load %arg3[%c0_1, %c0_2] : memref<288x32xbf16, #tpu.memory_space<vmem>>, vector<288x32xbf16>
    %cst = arith.constant dense<0.000000e+00> : vector<32x32xf32>
    %2 = tpu.matmul %0, %1, %cst {dimension_numbers = #tpu.dot_dimension_numbers<[1], [0], [0], [1], [0, 0, 1, 1], [], []>} : vector<32x288xbf16>, vector<288x32xbf16>, vector<32x32xf32> -> vector<32x32xf32>
    %c0_3 = arith.constant 0 : index
    %c0_4 = arith.constant 0 : index
    %3 = vector.load %arg2[%c0_3, %c0_4] : memref<32x1xf32, #tpu.memory_space<vmem>>, vector<32x1xf32>
    %4 = vector.broadcast %3 : vector<32x1xf32> to vector<32x32xf32>
    %5 = arith.addf %2, %4 : vector<32x32xf32>
    %6 = arith.negf %5 : vector<32x32xf32>
    %7 = math.exp %6 : vector<32x32xf32>
    %cst_5 = arith.constant 1.000000e+00 : f32
    %8 = vector.broadcast %cst_5 : f32 to vector<32x32xf32>
    %9 = arith.addf %8, %7 : vector<32x32xf32>
    %10 = arith.divf %8, %9 : vector<32x32xf32>
    %11 = arith.mulf %5, %10 : vector<32x32xf32>
    %12 = arith.truncf %11 : vector<32x32xf32> to vector<32x32xbf16>
    %c0_6 = arith.constant 0 : index
    %c0_7 = arith.constant 0 : index
    %13 = vector.load %arg4[%c0_6, %c0_7] : memref<32x32xbf16, #tpu.memory_space<vmem>>, vector<32x32xbf16>
    tpu.vector_store %arg4[%c0_6, %c0_7], %12 {strides = array<i32>} : memref<32x32xbf16, #tpu.memory_space<vmem>>, vector<32x32xbf16>,
    return
  }
  func.func @transform_0(%arg0: i32) -> (i32, i32) {
    %c0_i32 = arith.constant 0 : i32
    %c0_i32_0 = arith.constant 0 : i32
    %c0_i32_1 = arith.constant 0 : i32
    return %c0_i32, %c0_i32_0 : i32, i32
  }
  func.func @transform_1(%arg0: i32) -> (i32, i32) {
    %c0_i32 = arith.constant 0 : i32
    %c0_i32_0 = arith.constant 0 : i32
    %c0_i32_1 = arith.constant 0 : i32
    return %c0_i32, %c0_i32_0 : i32, i32
  }
  func.func @transform_2(%arg0: i32) -> (i32, i32) {
    %c0_i32 = arith.constant 0 : i32
    %c0_i32_0 = arith.constant 0 : i32
    return %c0_i32, %arg0 : i32, i32
  }
  func.func @transform_3(%arg0: i32) -> (i32, i32) {
    %c0_i32 = arith.constant 0 : i32
    %c0_i32_0 = arith.constant 0 : i32
    return %c0_i32, %arg0 : i32, i32
  }
}

module attributes {stable_mosaic.version = 11 : i64} {
  func.func @_conv_kernel(%arg0: i32, %arg1: memref<48x288xbf16, #tpu.memory_space<vmem>>, %arg2: memref<48x1xf32, #tpu.memory_space<vmem>>, %arg3: memref<288x8xbf16, #tpu.memory_space<vmem>>, %arg4: memref<48x8xbf16, #tpu.memory_space<vmem>>) attributes {dimension_semantics = [#tpu.dimension_semantics<parallel>], iteration_bounds = array<i64: 1>, scalar_prefetch = 0 : i64, scratch_operands = 0 : i64, tpu.core_type = #tpu.core_type<tc>, window_params = [{pipeline_mode = #tpu.pipeline_mode<synchronous>, transform_indices = @transform_0, window_bounds = array<i64: 48, 288>}, {pipeline_mode = #tpu.pipeline_mode<synchronous>, transform_indices = @transform_1, window_bounds = array<i64: 48, 1>}, {transform_indices = @transform_2, window_bounds = array<i64: 288, 8>}, {transform_indices = @transform_3, window_bounds = array<i64: 48, 8>}]} {
    %c0 = arith.constant 0 : index
    %c0_0 = arith.constant 0 : index
    %0 = vector.load %arg1[%c0, %c0_0] : memref<48x288xbf16, #tpu.memory_space<vmem>>, vector<48x288xbf16>
    %c0_1 = arith.constant 0 : index
    %c0_2 = arith.constant 0 : index
    %1 = vector.load %arg3[%c0_1, %c0_2] : memref<288x8xbf16, #tpu.memory_space<vmem>>, vector<288x8xbf16>
    %cst = arith.constant dense<0.000000e+00> : vector<48x8xf32>
    %2 = tpu.matmul %0, %1, %cst {dimension_numbers = #tpu.dot_dimension_numbers<[1], [0], [0], [1], [0, 0, 1, 1], [], []>} : vector<48x288xbf16>, vector<288x8xbf16>, vector<48x8xf32> -> vector<48x8xf32>
    %c0_3 = arith.constant 0 : index
    %c0_4 = arith.constant 0 : index
    %3 = vector.load %arg2[%c0_3, %c0_4] : memref<48x1xf32, #tpu.memory_space<vmem>>, vector<48x1xf32>
    %4 = vector.broadcast %3 : vector<48x1xf32> to vector<48x8xf32>
    %5 = arith.addf %2, %4 : vector<48x8xf32>
    %6 = arith.negf %5 : vector<48x8xf32>
    %7 = math.exp %6 : vector<48x8xf32>
    %cst_5 = arith.constant 1.000000e+00 : f32
    %8 = vector.broadcast %cst_5 : f32 to vector<48x8xf32>
    %9 = arith.addf %8, %7 : vector<48x8xf32>
    %10 = arith.divf %8, %9 : vector<48x8xf32>
    %11 = arith.mulf %5, %10 : vector<48x8xf32>
    %12 = arith.truncf %11 : vector<48x8xf32> to vector<48x8xbf16>
    %c0_6 = arith.constant 0 : index
    %c0_7 = arith.constant 0 : index
    %13 = vector.load %arg4[%c0_6, %c0_7] : memref<48x8xbf16, #tpu.memory_space<vmem>>, vector<48x8xbf16>
    tpu.vector_store %arg4[%c0_6, %c0_7], %12 {strides = array<i32>} : memref<48x8xbf16, #tpu.memory_space<vmem>>, vector<48x8xbf16>,
    return
  }
  func.func @transform_0(%arg0: i32) -> (i32, i32) {
    %c0_i32 = arith.constant 0 : i32
    %c0_i32_0 = arith.constant 0 : i32
    %c0_i32_1 = arith.constant 0 : i32
    return %c0_i32, %c0_i32_0 : i32, i32
  }
  func.func @transform_1(%arg0: i32) -> (i32, i32) {
    %c0_i32 = arith.constant 0 : i32
    %c0_i32_0 = arith.constant 0 : i32
    %c0_i32_1 = arith.constant 0 : i32
    return %c0_i32, %c0_i32_0 : i32, i32
  }
  func.func @transform_2(%arg0: i32) -> (i32, i32) {
    %c0_i32 = arith.constant 0 : i32
    %c0_i32_0 = arith.constant 0 : i32
    return %c0_i32, %arg0 : i32, i32
  }
  func.func @transform_3(%arg0: i32) -> (i32, i32) {
    %c0_i32 = arith.constant 0 : i32
    %c0_i32_0 = arith.constant 0 : i32
    return %c0_i32, %arg0 : i32, i32
  }
}

module attributes {stable_mosaic.version = 11 : i64} {
  func.func @_conv_chain_kernel(%arg0: i32, %arg1: memref<48x432xbf16, #tpu.memory_space<vmem>>, %arg2: memref<48x1xf32, #tpu.memory_space<vmem>>, %arg3: memref<32x48xbf16, #tpu.memory_space<vmem>>, %arg4: memref<32x1xf32, #tpu.memory_space<vmem>>, %arg5: memref<432x8xbf16, #tpu.memory_space<vmem>>, %arg6: memref<32x8xbf16, #tpu.memory_space<vmem>>) attributes {dimension_semantics = [#tpu.dimension_semantics<arbitrary>], iteration_bounds = array<i64: 1>, scalar_prefetch = 0 : i64, scratch_operands = 0 : i64, tpu.core_type = #tpu.core_type<tc>, window_params = [{pipeline_mode = #tpu.pipeline_mode<synchronous>, transform_indices = @transform_0, window_bounds = array<i64: 48, 432>}, {pipeline_mode = #tpu.pipeline_mode<synchronous>, transform_indices = @transform_1, window_bounds = array<i64: 48, 1>}, {pipeline_mode = #tpu.pipeline_mode<synchronous>, transform_indices = @transform_2, window_bounds = array<i64: 32, 48>}, {pipeline_mode = #tpu.pipeline_mode<synchronous>, transform_indices = @transform_3, window_bounds = array<i64: 32, 1>}, {pipeline_mode = #tpu.pipeline_mode<synchronous>, transform_indices = @transform_4, window_bounds = array<i64: 432, 8>}, {pipeline_mode = #tpu.pipeline_mode<synchronous>, transform_indices = @transform_5, window_bounds = array<i64: 32, 8>}]} {
    %c0 = arith.constant 0 : index
    %c0_0 = arith.constant 0 : index
    %0 = vector.load %arg1[%c0, %c0_0] : memref<48x432xbf16, #tpu.memory_space<vmem>>, vector<48x432xbf16>
    %c0_1 = arith.constant 0 : index
    %c0_2 = arith.constant 0 : index
    %1 = vector.load %arg5[%c0_1, %c0_2] : memref<432x8xbf16, #tpu.memory_space<vmem>>, vector<432x8xbf16>
    %cst = arith.constant dense<0.000000e+00> : vector<48x8xf32>
    %2 = tpu.matmul %0, %1, %cst {dimension_numbers = #tpu.dot_dimension_numbers<[1], [0], [0], [1], [0, 0, 1, 1], [], []>} : vector<48x432xbf16>, vector<432x8xbf16>, vector<48x8xf32> -> vector<48x8xf32>
    %c0_3 = arith.constant 0 : index
    %c0_4 = arith.constant 0 : index
    %3 = vector.load %arg2[%c0_3, %c0_4] : memref<48x1xf32, #tpu.memory_space<vmem>>, vector<48x1xf32>
    %4 = vector.broadcast %3 : vector<48x1xf32> to vector<48x8xf32>
    %5 = arith.addf %2, %4 : vector<48x8xf32>
    %6 = arith.negf %5 : vector<48x8xf32>
    %7 = math.exp %6 : vector<48x8xf32>
    %cst_5 = arith.constant 1.000000e+00 : f32
    %8 = vector.broadcast %cst_5 : f32 to vector<48x8xf32>
    %9 = arith.addf %8, %7 : vector<48x8xf32>
    %10 = arith.divf %8, %9 : vector<48x8xf32>
    %11 = arith.mulf %5, %10 : vector<48x8xf32>
    %12 = arith.truncf %11 : vector<48x8xf32> to vector<48x8xbf16>
    %c0_6 = arith.constant 0 : index
    %c0_7 = arith.constant 0 : index
    %13 = vector.load %arg3[%c0_6, %c0_7] : memref<32x48xbf16, #tpu.memory_space<vmem>>, vector<32x48xbf16>
    %cst_8 = arith.constant dense<0.000000e+00> : vector<32x8xf32>
    %14 = tpu.matmul %13, %12, %cst_8 {dimension_numbers = #tpu.dot_dimension_numbers<[1], [0], [0], [1], [0, 0, 1, 1], [], []>} : vector<32x48xbf16>, vector<48x8xbf16>, vector<32x8xf32> -> vector<32x8xf32>
    %c0_9 = arith.constant 0 : index
    %c0_10 = arith.constant 0 : index
    %15 = vector.load %arg4[%c0_9, %c0_10] : memref<32x1xf32, #tpu.memory_space<vmem>>, vector<32x1xf32>
    %16 = vector.broadcast %15 : vector<32x1xf32> to vector<32x8xf32>
    %17 = arith.addf %14, %16 : vector<32x8xf32>
    %18 = arith.negf %17 : vector<32x8xf32>
    %19 = math.exp %18 : vector<32x8xf32>
    %cst_11 = arith.constant 1.000000e+00 : f32
    %20 = vector.broadcast %cst_11 : f32 to vector<32x8xf32>
    %21 = arith.addf %20, %19 : vector<32x8xf32>
    %22 = arith.divf %20, %21 : vector<32x8xf32>
    %23 = arith.mulf %17, %22 : vector<32x8xf32>
    %24 = arith.truncf %23 : vector<32x8xf32> to vector<32x8xbf16>
    %c0_12 = arith.constant 0 : index
    %c0_13 = arith.constant 0 : index
    %25 = vector.load %arg6[%c0_12, %c0_13] : memref<32x8xbf16, #tpu.memory_space<vmem>>, vector<32x8xbf16>
    tpu.vector_store %arg6[%c0_12, %c0_13], %24 {strides = array<i32>} : memref<32x8xbf16, #tpu.memory_space<vmem>>, vector<32x8xbf16>,
    return
  }
  func.func @transform_0(%arg0: i32) -> (i32, i32) {
    %c0_i32 = arith.constant 0 : i32
    %c0_i32_0 = arith.constant 0 : i32
    %c0_i32_1 = arith.constant 0 : i32
    return %c0_i32, %c0_i32_0 : i32, i32
  }
  func.func @transform_1(%arg0: i32) -> (i32, i32) {
    %c0_i32 = arith.constant 0 : i32
    %c0_i32_0 = arith.constant 0 : i32
    %c0_i32_1 = arith.constant 0 : i32
    return %c0_i32, %c0_i32_0 : i32, i32
  }
  func.func @transform_2(%arg0: i32) -> (i32, i32) {
    %c0_i32 = arith.constant 0 : i32
    %c0_i32_0 = arith.constant 0 : i32
    %c0_i32_1 = arith.constant 0 : i32
    return %c0_i32, %c0_i32_0 : i32, i32
  }
  func.func @transform_3(%arg0: i32) -> (i32, i32) {
    %c0_i32 = arith.constant 0 : i32
    %c0_i32_0 = arith.constant 0 : i32
    %c0_i32_1 = arith.constant 0 : i32
    return %c0_i32, %c0_i32_0 : i32, i32
  }
  func.func @transform_4(%arg0: i32) -> (i32, i32) {
    %c0_i32 = arith.constant 0 : i32
    %c0_i32_0 = arith.constant 0 : i32
    %c0_i32_1 = arith.constant 0 : i32
    return %c0_i32, %c0_i32_0 : i32, i32
  }
  func.func @transform_5(%arg0: i32) -> (i32, i32) {
    %c0_i32 = arith.constant 0 : i32
    %c0_i32_0 = arith.constant 0 : i32
    %c0_i32_1 = arith.constant 0 : i32
    return %c0_i32, %c0_i32_0 : i32, i32
  }
}

module attributes {stable_mosaic.version = 11 : i64} {
  func.func @_conv_chain_kernel(%arg0: i32, %arg1: memref<24x576xbf16, #tpu.memory_space<vmem>>, %arg2: memref<24x1xf32, #tpu.memory_space<vmem>>, %arg3: memref<16x24xbf16, #tpu.memory_space<vmem>>, %arg4: memref<16x1xf32, #tpu.memory_space<vmem>>, %arg5: memref<576x32xbf16, #tpu.memory_space<vmem>>, %arg6: memref<16x32xbf16, #tpu.memory_space<vmem>>) attributes {dimension_semantics = [#tpu.dimension_semantics<arbitrary>], iteration_bounds = array<i64: 1>, scalar_prefetch = 0 : i64, scratch_operands = 0 : i64, tpu.core_type = #tpu.core_type<tc>, window_params = [{pipeline_mode = #tpu.pipeline_mode<synchronous>, transform_indices = @transform_0, window_bounds = array<i64: 24, 576>}, {pipeline_mode = #tpu.pipeline_mode<synchronous>, transform_indices = @transform_1, window_bounds = array<i64: 24, 1>}, {pipeline_mode = #tpu.pipeline_mode<synchronous>, transform_indices = @transform_2, window_bounds = array<i64: 16, 24>}, {pipeline_mode = #tpu.pipeline_mode<synchronous>, transform_indices = @transform_3, window_bounds = array<i64: 16, 1>}, {pipeline_mode = #tpu.pipeline_mode<synchronous>, transform_indices = @transform_4, window_bounds = array<i64: 576, 32>}, {pipeline_mode = #tpu.pipeline_mode<synchronous>, transform_indices = @transform_5, window_bounds = array<i64: 16, 32>}]} {
    %c0 = arith.constant 0 : index
    %c0_0 = arith.constant 0 : index
    %0 = vector.load %arg1[%c0, %c0_0] : memref<24x576xbf16, #tpu.memory_space<vmem>>, vector<24x576xbf16>
    %c0_1 = arith.constant 0 : index
    %c0_2 = arith.constant 0 : index
    %1 = vector.load %arg5[%c0_1, %c0_2] : memref<576x32xbf16, #tpu.memory_space<vmem>>, vector<576x32xbf16>
    %cst = arith.constant dense<0.000000e+00> : vector<24x32xf32>
    %2 = tpu.matmul %0, %1, %cst {dimension_numbers = #tpu.dot_dimension_numbers<[1], [0], [0], [1], [0, 0, 1, 1], [], []>} : vector<24x576xbf16>, vector<576x32xbf16>, vector<24x32xf32> -> vector<24x32xf32>
    %c0_3 = arith.constant 0 : index
    %c0_4 = arith.constant 0 : index
    %3 = vector.load %arg2[%c0_3, %c0_4] : memref<24x1xf32, #tpu.memory_space<vmem>>, vector<24x1xf32>
    %4 = vector.broadcast %3 : vector<24x1xf32> to vector<24x32xf32>
    %5 = arith.addf %2, %4 : vector<24x32xf32>
    %6 = arith.negf %5 : vector<24x32xf32>
    %7 = math.exp %6 : vector<24x32xf32>
    %cst_5 = arith.constant 1.000000e+00 : f32
    %8 = vector.broadcast %cst_5 : f32 to vector<24x32xf32>
    %9 = arith.addf %8, %7 : vector<24x32xf32>
    %10 = arith.divf %8, %9 : vector<24x32xf32>
    %11 = arith.mulf %5, %10 : vector<24x32xf32>
    %12 = arith.truncf %11 : vector<24x32xf32> to vector<24x32xbf16>
    %c0_6 = arith.constant 0 : index
    %c0_7 = arith.constant 0 : index
    %13 = vector.load %arg3[%c0_6, %c0_7] : memref<16x24xbf16, #tpu.memory_space<vmem>>, vector<16x24xbf16>
    %cst_8 = arith.constant dense<0.000000e+00> : vector<16x32xf32>
    %14 = tpu.matmul %13, %12, %cst_8 {dimension_numbers = #tpu.dot_dimension_numbers<[1], [0], [0], [1], [0, 0, 1, 1], [], []>} : vector<16x24xbf16>, vector<24x32xbf16>, vector<16x32xf32> -> vector<16x32xf32>
    %c0_9 = arith.constant 0 : index
    %c0_10 = arith.constant 0 : index
    %15 = vector.load %arg4[%c0_9, %c0_10] : memref<16x1xf32, #tpu.memory_space<vmem>>, vector<16x1xf32>
    %16 = vector.broadcast %15 : vector<16x1xf32> to vector<16x32xf32>
    %17 = arith.addf %14, %16 : vector<16x32xf32>
    %18 = arith.negf %17 : vector<16x32xf32>
    %19 = math.exp %18 : vector<16x32xf32>
    %cst_11 = arith.constant 1.000000e+00 : f32
    %20 = vector.broadcast %cst_11 : f32 to vector<16x32xf32>
    %21 = arith.addf %20, %19 : vector<16x32xf32>
    %22 = arith.divf %20, %21 : vector<16x32xf32>
    %23 = arith.mulf %17, %22 : vector<16x32xf32>
    %24 = arith.truncf %23 : vector<16x32xf32> to vector<16x32xbf16>
    %c0_12 = arith.constant 0 : index
    %c0_13 = arith.constant 0 : index
    %25 = vector.load %arg6[%c0_12, %c0_13] : memref<16x32xbf16, #tpu.memory_space<vmem>>, vector<16x32xbf16>
    tpu.vector_store %arg6[%c0_12, %c0_13], %24 {strides = array<i32>} : memref<16x32xbf16, #tpu.memory_space<vmem>>, vector<16x32xbf16>,
    return
  }
  func.func @transform_0(%arg0: i32) -> (i32, i32) {
    %c0_i32 = arith.constant 0 : i32
    %c0_i32_0 = arith.constant 0 : i32
    %c0_i32_1 = arith.constant 0 : i32
    return %c0_i32, %c0_i32_0 : i32, i32
  }
  func.func @transform_1(%arg0: i32) -> (i32, i32) {
    %c0_i32 = arith.constant 0 : i32
    %c0_i32_0 = arith.constant 0 : i32
    %c0_i32_1 = arith.constant 0 : i32
    return %c0_i32, %c0_i32_0 : i32, i32
  }
  func.func @transform_2(%arg0: i32) -> (i32, i32) {
    %c0_i32 = arith.constant 0 : i32
    %c0_i32_0 = arith.constant 0 : i32
    %c0_i32_1 = arith.constant 0 : i32
    return %c0_i32, %c0_i32_0 : i32, i32
  }
  func.func @transform_3(%arg0: i32) -> (i32, i32) {
    %c0_i32 = arith.constant 0 : i32
    %c0_i32_0 = arith.constant 0 : i32
    %c0_i32_1 = arith.constant 0 : i32
    return %c0_i32, %c0_i32_0 : i32, i32
  }
  func.func @transform_4(%arg0: i32) -> (i32, i32) {
    %c0_i32 = arith.constant 0 : i32
    %c0_i32_0 = arith.constant 0 : i32
    %c0_i32_1 = arith.constant 0 : i32
    return %c0_i32, %c0_i32_0 : i32, i32
  }
  func.func @transform_5(%arg0: i32) -> (i32, i32) {
    %c0_i32 = arith.constant 0 : i32
    %c0_i32_0 = arith.constant 0 : i32
    %c0_i32_1 = arith.constant 0 : i32
    return %c0_i32, %c0_i32_0 : i32, i32
  }
}

module attributes {stable_mosaic.version = 11 : i64} {
  func.func @_conv_chain_kernel(%arg0: i32, %arg1: memref<16x360xbf16, #tpu.memory_space<vmem>>, %arg2: memref<16x1xf32, #tpu.memory_space<vmem>>, %arg3: memref<16x16xbf16, #tpu.memory_space<vmem>>, %arg4: memref<16x1xf32, #tpu.memory_space<vmem>>, %arg5: memref<360x128xbf16, #tpu.memory_space<vmem>>, %arg6: memref<16x128xbf16, #tpu.memory_space<vmem>>, %arg7: memref<16x128xbf16, #tpu.memory_space<vmem>>) attributes {dimension_semantics = [#tpu.dimension_semantics<arbitrary>], iteration_bounds = array<i64: 1>, scalar_prefetch = 0 : i64, scratch_operands = 0 : i64, tpu.core_type = #tpu.core_type<tc>, window_params = [{pipeline_mode = #tpu.pipeline_mode<synchronous>, transform_indices = @transform_0, window_bounds = array<i64: 16, 360>}, {pipeline_mode = #tpu.pipeline_mode<synchronous>, transform_indices = @transform_1, window_bounds = array<i64: 16, 1>}, {pipeline_mode = #tpu.pipeline_mode<synchronous>, transform_indices = @transform_2, window_bounds = array<i64: 16, 16>}, {pipeline_mode = #tpu.pipeline_mode<synchronous>, transform_indices = @transform_3, window_bounds = array<i64: 16, 1>}, {pipeline_mode = #tpu.pipeline_mode<synchronous>, transform_indices = @transform_4, window_bounds = array<i64: 360, 128>}, {pipeline_mode = #tpu.pipeline_mode<synchronous>, transform_indices = @transform_5, window_bounds = array<i64: 16, 128>}, {pipeline_mode = #tpu.pipeline_mode<synchronous>, transform_indices = @transform_6, window_bounds = array<i64: 16, 128>}]} {
    %c0 = arith.constant 0 : index
    %c0_0 = arith.constant 0 : index
    %0 = vector.load %arg1[%c0, %c0_0] : memref<16x360xbf16, #tpu.memory_space<vmem>>, vector<16x360xbf16>
    %c0_1 = arith.constant 0 : index
    %c0_2 = arith.constant 0 : index
    %1 = vector.load %arg5[%c0_1, %c0_2] : memref<360x128xbf16, #tpu.memory_space<vmem>>, vector<360x128xbf16>
    %cst = arith.constant dense<0.000000e+00> : vector<16x128xf32>
    %2 = tpu.matmul %0, %1, %cst {dimension_numbers = #tpu.dot_dimension_numbers<[1], [0], [0], [1], [0, 0, 1, 1], [], []>} : vector<16x360xbf16>, vector<360x128xbf16>, vector<16x128xf32> -> vector<16x128xf32>
    %c0_3 = arith.constant 0 : index
    %c0_4 = arith.constant 0 : index
    %3 = vector.load %arg2[%c0_3, %c0_4] : memref<16x1xf32, #tpu.memory_space<vmem>>, vector<16x1xf32>
    %4 = vector.broadcast %3 : vector<16x1xf32> to vector<16x128xf32>
    %5 = arith.addf %2, %4 : vector<16x128xf32>
    %6 = arith.negf %5 : vector<16x128xf32>
    %7 = math.exp %6 : vector<16x128xf32>
    %cst_5 = arith.constant 1.000000e+00 : f32
    %8 = vector.broadcast %cst_5 : f32 to vector<16x128xf32>
    %9 = arith.addf %8, %7 : vector<16x128xf32>
    %10 = arith.divf %8, %9 : vector<16x128xf32>
    %11 = arith.mulf %5, %10 : vector<16x128xf32>
    %12 = arith.truncf %11 : vector<16x128xf32> to vector<16x128xbf16>
    %c0_6 = arith.constant 0 : index
    %c0_7 = arith.constant 0 : index
    %13 = vector.load %arg3[%c0_6, %c0_7] : memref<16x16xbf16, #tpu.memory_space<vmem>>, vector<16x16xbf16>
    %cst_8 = arith.constant dense<0.000000e+00> : vector<16x128xf32>
    %14 = tpu.matmul %13, %12, %cst_8 {dimension_numbers = #tpu.dot_dimension_numbers<[1], [0], [0], [1], [0, 0, 1, 1], [], []>} : vector<16x16xbf16>, vector<16x128xbf16>, vector<16x128xf32> -> vector<16x128xf32>
    %c0_9 = arith.constant 0 : index
    %c0_10 = arith.constant 0 : index
    %15 = vector.load %arg4[%c0_9, %c0_10] : memref<16x1xf32, #tpu.memory_space<vmem>>, vector<16x1xf32>
    %16 = vector.broadcast %15 : vector<16x1xf32> to vector<16x128xf32>
    %17 = arith.addf %14, %16 : vector<16x128xf32>
    %18 = arith.negf %17 : vector<16x128xf32>
    %19 = math.exp %18 : vector<16x128xf32>
    %cst_11 = arith.constant 1.000000e+00 : f32
    %20 = vector.broadcast %cst_11 : f32 to vector<16x128xf32>
    %21 = arith.addf %20, %19 : vector<16x128xf32>
    %22 = arith.divf %20, %21 : vector<16x128xf32>
    %23 = arith.mulf %17, %22 : vector<16x128xf32>
    %24 = arith.truncf %11 : vector<16x128xf32> to vector<16x128xbf16>
    %c0_12 = arith.constant 0 : index
    %c0_13 = arith.constant 0 : index
    %25 = vector.load %arg6[%c0_12, %c0_13] : memref<16x128xbf16, #tpu.memory_space<vmem>>, vector<16x128xbf16>
    tpu.vector_store %arg6[%c0_12, %c0_13], %24 {strides = array<i32>} : memref<16x128xbf16, #tpu.memory_space<vmem>>, vector<16x128xbf16>,
    %26 = arith.truncf %23 : vector<16x128xf32> to vector<16x128xbf16>
    %c0_14 = arith.constant 0 : index
    %c0_15 = arith.constant 0 : index
    %27 = vector.load %arg7[%c0_14, %c0_15] : memref<16x128xbf16, #tpu.memory_space<vmem>>, vector<16x128xbf16>
    tpu.vector_store %arg7[%c0_14, %c0_15], %26 {strides = array<i32>} : memref<16x128xbf16, #tpu.memory_space<vmem>>, vector<16x128xbf16>,
    return
  }
  func.func @transform_0(%arg0: i32) -> (i32, i32) {
    %c0_i32 = arith.constant 0 : i32
    %c0_i32_0 = arith.constant 0 : i32
    %c0_i32_1 = arith.constant 0 : i32
    return %c0_i32, %c0_i32_0 : i32, i32
  }
  func.func @transform_1(%arg0: i32) -> (i32, i32) {
    %c0_i32 = arith.constant 0 : i32
    %c0_i32_0 = arith.constant 0 : i32
    %c0_i32_1 = arith.constant 0 : i32
    return %c0_i32, %c0_i32_0 : i32, i32
  }
  func.func @transform_2(%arg0: i32) -> (i32, i32) {
    %c0_i32 = arith.constant 0 : i32
    %c0_i32_0 = arith.constant 0 : i32
    %c0_i32_1 = arith.constant 0 : i32
    return %c0_i32, %c0_i32_0 : i32, i32
  }
  func.func @transform_3(%arg0: i32) -> (i32, i32) {
    %c0_i32 = arith.constant 0 : i32
    %c0_i32_0 = arith.constant 0 : i32
    %c0_i32_1 = arith.constant 0 : i32
    return %c0_i32, %c0_i32_0 : i32, i32
  }
  func.func @transform_4(%arg0: i32) -> (i32, i32) {
    %c0_i32 = arith.constant 0 : i32
    %c0_i32_0 = arith.constant 0 : i32
    %c0_i32_1 = arith.constant 0 : i32
    return %c0_i32, %c0_i32_0 : i32, i32
  }
  func.func @transform_5(%arg0: i32) -> (i32, i32) {
    %c0_i32 = arith.constant 0 : i32
    %c0_i32_0 = arith.constant 0 : i32
    %c0_i32_1 = arith.constant 0 : i32
    return %c0_i32, %c0_i32_0 : i32, i32
  }
  func.func @transform_6(%arg0: i32) -> (i32, i32) {
    %c0_i32 = arith.constant 0 : i32
    %c0_i32_0 = arith.constant 0 : i32
    %c0_i32_1 = arith.constant 0 : i32
    return %c0_i32, %c0_i32_0 : i32, i32
  }
}

module attributes {stable_mosaic.version = 11 : i64} {
  func.func @_conv_chain_kernel(%arg0: i32, %arg1: memref<32x144xbf16, #tpu.memory_space<vmem>>, %arg2: memref<32x1xf32, #tpu.memory_space<vmem>>, %arg3: memref<8x32xbf16, #tpu.memory_space<vmem>>, %arg4: memref<8x1xf32, #tpu.memory_space<vmem>>, %arg5: memref<144x128xbf16, #tpu.memory_space<vmem>>, %arg6: memref<8x128xf32, #tpu.memory_space<vmem>>) attributes {dimension_semantics = [#tpu.dimension_semantics<arbitrary>], iteration_bounds = array<i64: 1>, scalar_prefetch = 0 : i64, scratch_operands = 0 : i64, tpu.core_type = #tpu.core_type<tc>, window_params = [{pipeline_mode = #tpu.pipeline_mode<synchronous>, transform_indices = @transform_0, window_bounds = array<i64: 32, 144>}, {pipeline_mode = #tpu.pipeline_mode<synchronous>, transform_indices = @transform_1, window_bounds = array<i64: 32, 1>}, {pipeline_mode = #tpu.pipeline_mode<synchronous>, transform_indices = @transform_2, window_bounds = array<i64: 8, 32>}, {pipeline_mode = #tpu.pipeline_mode<synchronous>, transform_indices = @transform_3, window_bounds = array<i64: 8, 1>}, {pipeline_mode = #tpu.pipeline_mode<synchronous>, transform_indices = @transform_4, window_bounds = array<i64: 144, 128>}, {pipeline_mode = #tpu.pipeline_mode<synchronous>, transform_indices = @transform_5, window_bounds = array<i64: 8, 128>}]} {
    %c0 = arith.constant 0 : index
    %c0_0 = arith.constant 0 : index
    %0 = vector.load %arg1[%c0, %c0_0] : memref<32x144xbf16, #tpu.memory_space<vmem>>, vector<32x144xbf16>
    %c0_1 = arith.constant 0 : index
    %c0_2 = arith.constant 0 : index
    %1 = vector.load %arg5[%c0_1, %c0_2] : memref<144x128xbf16, #tpu.memory_space<vmem>>, vector<144x128xbf16>
    %cst = arith.constant dense<0.000000e+00> : vector<32x128xf32>
    %2 = tpu.matmul %0, %1, %cst {dimension_numbers = #tpu.dot_dimension_numbers<[1], [0], [0], [1], [0, 0, 1, 1], [], []>} : vector<32x144xbf16>, vector<144x128xbf16>, vector<32x128xf32> -> vector<32x128xf32>
    %c0_3 = arith.constant 0 : index
    %c0_4 = arith.constant 0 : index
    %3 = vector.load %arg2[%c0_3, %c0_4] : memref<32x1xf32, #tpu.memory_space<vmem>>, vector<32x1xf32>
    %4 = vector.broadcast %3 : vector<32x1xf32> to vector<32x128xf32>
    %5 = arith.addf %2, %4 : vector<32x128xf32>
    %6 = arith.negf %5 : vector<32x128xf32>
    %7 = math.exp %6 : vector<32x128xf32>
    %cst_5 = arith.constant 1.000000e+00 : f32
    %8 = vector.broadcast %cst_5 : f32 to vector<32x128xf32>
    %9 = arith.addf %8, %7 : vector<32x128xf32>
    %10 = arith.divf %8, %9 : vector<32x128xf32>
    %11 = arith.mulf %5, %10 : vector<32x128xf32>
    %12 = arith.truncf %11 : vector<32x128xf32> to vector<32x128xbf16>
    %c0_6 = arith.constant 0 : index
    %c0_7 = arith.constant 0 : index
    %13 = vector.load %arg3[%c0_6, %c0_7] : memref<8x32xbf16, #tpu.memory_space<vmem>>, vector<8x32xbf16>
    %cst_8 = arith.constant dense<0.000000e+00> : vector<8x128xf32>
    %14 = tpu.matmul %13, %12, %cst_8 {dimension_numbers = #tpu.dot_dimension_numbers<[1], [0], [0], [1], [0, 0, 1, 1], [], []>} : vector<8x32xbf16>, vector<32x128xbf16>, vector<8x128xf32> -> vector<8x128xf32>
    %c0_9 = arith.constant 0 : index
    %c0_10 = arith.constant 0 : index
    %15 = vector.load %arg4[%c0_9, %c0_10] : memref<8x1xf32, #tpu.memory_space<vmem>>, vector<8x1xf32>
    %16 = vector.broadcast %15 : vector<8x1xf32> to vector<8x128xf32>
    %17 = arith.addf %14, %16 : vector<8x128xf32>
    %c0_11 = arith.constant 0 : index
    %c0_12 = arith.constant 0 : index
    %18 = vector.load %arg6[%c0_11, %c0_12] : memref<8x128xf32, #tpu.memory_space<vmem>>, vector<8x128xf32>
    tpu.vector_store %arg6[%c0_11, %c0_12], %17 {strides = array<i32>} : memref<8x128xf32, #tpu.memory_space<vmem>>, vector<8x128xf32>,
    return
  }
  func.func @transform_0(%arg0: i32) -> (i32, i32) {
    %c0_i32 = arith.constant 0 : i32
    %c0_i32_0 = arith.constant 0 : i32
    %c0_i32_1 = arith.constant 0 : i32
    return %c0_i32, %c0_i32_0 : i32, i32
  }
  func.func @transform_1(%arg0: i32) -> (i32, i32) {
    %c0_i32 = arith.constant 0 : i32
    %c0_i32_0 = arith.constant 0 : i32
    %c0_i32_1 = arith.constant 0 : i32
    return %c0_i32, %c0_i32_0 : i32, i32
  }
  func.func @transform_2(%arg0: i32) -> (i32, i32) {
    %c0_i32 = arith.constant 0 : i32
    %c0_i32_0 = arith.constant 0 : i32
    %c0_i32_1 = arith.constant 0 : i32
    return %c0_i32, %c0_i32_0 : i32, i32
  }
  func.func @transform_3(%arg0: i32) -> (i32, i32) {
    %c0_i32 = arith.constant 0 : i32
    %c0_i32_0 = arith.constant 0 : i32
    %c0_i32_1 = arith.constant 0 : i32
    return %c0_i32, %c0_i32_0 : i32, i32
  }
  func.func @transform_4(%arg0: i32) -> (i32, i32) {
    %c0_i32 = arith.constant 0 : i32
    %c0_i32_0 = arith.constant 0 : i32
    %c0_i32_1 = arith.constant 0 : i32
    return %c0_i32, %c0_i32_0 : i32, i32
  }
  func.func @transform_5(%arg0: i32) -> (i32, i32) {
    %c0_i32 = arith.constant 0 : i32
    %c0_i32_0 = arith.constant 0 : i32
    %c0_i32_1 = arith.constant 0 : i32
    return %c0_i32, %c0_i32_0 : i32, i32
  }
}

module attributes {stable_mosaic.version = 11 : i64} {
  func.func @_conv_kernel(%arg0: i32, %arg1: memref<16x144xbf16, #tpu.memory_space<vmem>>, %arg2: memref<16x1xf32, #tpu.memory_space<vmem>>, %arg3: memref<144x32xbf16, #tpu.memory_space<vmem>>, %arg4: memref<16x32xbf16, #tpu.memory_space<vmem>>) attributes {dimension_semantics = [#tpu.dimension_semantics<parallel>], iteration_bounds = array<i64: 1>, scalar_prefetch = 0 : i64, scratch_operands = 0 : i64, tpu.core_type = #tpu.core_type<tc>, window_params = [{pipeline_mode = #tpu.pipeline_mode<synchronous>, transform_indices = @transform_0, window_bounds = array<i64: 16, 144>}, {pipeline_mode = #tpu.pipeline_mode<synchronous>, transform_indices = @transform_1, window_bounds = array<i64: 16, 1>}, {transform_indices = @transform_2, window_bounds = array<i64: 144, 32>}, {transform_indices = @transform_3, window_bounds = array<i64: 16, 32>}]} {
    %c0 = arith.constant 0 : index
    %c0_0 = arith.constant 0 : index
    %0 = vector.load %arg1[%c0, %c0_0] : memref<16x144xbf16, #tpu.memory_space<vmem>>, vector<16x144xbf16>
    %c0_1 = arith.constant 0 : index
    %c0_2 = arith.constant 0 : index
    %1 = vector.load %arg3[%c0_1, %c0_2] : memref<144x32xbf16, #tpu.memory_space<vmem>>, vector<144x32xbf16>
    %cst = arith.constant dense<0.000000e+00> : vector<16x32xf32>
    %2 = tpu.matmul %0, %1, %cst {dimension_numbers = #tpu.dot_dimension_numbers<[1], [0], [0], [1], [0, 0, 1, 1], [], []>} : vector<16x144xbf16>, vector<144x32xbf16>, vector<16x32xf32> -> vector<16x32xf32>
    %c0_3 = arith.constant 0 : index
    %c0_4 = arith.constant 0 : index
    %3 = vector.load %arg2[%c0_3, %c0_4] : memref<16x1xf32, #tpu.memory_space<vmem>>, vector<16x1xf32>
    %4 = vector.broadcast %3 : vector<16x1xf32> to vector<16x32xf32>
    %5 = arith.addf %2, %4 : vector<16x32xf32>
    %6 = arith.negf %5 : vector<16x32xf32>
    %7 = math.exp %6 : vector<16x32xf32>
    %cst_5 = arith.constant 1.000000e+00 : f32
    %8 = vector.broadcast %cst_5 : f32 to vector<16x32xf32>
    %9 = arith.addf %8, %7 : vector<16x32xf32>
    %10 = arith.divf %8, %9 : vector<16x32xf32>
    %11 = arith.mulf %5, %10 : vector<16x32xf32>
    %12 = arith.truncf %11 : vector<16x32xf32> to vector<16x32xbf16>
    %c0_6 = arith.constant 0 : index
    %c0_7 = arith.constant 0 : index
    %13 = vector.load %arg4[%c0_6, %c0_7] : memref<16x32xbf16, #tpu.memory_space<vmem>>, vector<16x32xbf16>
    tpu.vector_store %arg4[%c0_6, %c0_7], %12 {strides = array<i32>} : memref<16x32xbf16, #tpu.memory_space<vmem>>, vector<16x32xbf16>,
    return
  }
  func.func @transform_0(%arg0: i32) -> (i32, i32) {
    %c0_i32 = arith.constant 0 : i32
    %c0_i32_0 = arith.constant 0 : i32
    %c0_i32_1 = arith.constant 0 : i32
    return %c0_i32, %c0_i32_0 : i32, i32
  }
  func.func @transform_1(%arg0: i32) -> (i32, i32) {
    %c0_i32 = arith.constant 0 : i32
    %c0_i32_0 = arith.constant 0 : i32
    %c0_i32_1 = arith.constant 0 : i32
    return %c0_i32, %c0_i32_0 : i32, i32
  }
  func.func @transform_2(%arg0: i32) -> (i32, i32) {
    %c0_i32 = arith.constant 0 : i32
    %c0_i32_0 = arith.constant 0 : i32
    return %c0_i32, %arg0 : i32, i32
  }
  func.func @transform_3(%arg0: i32) -> (i32, i32) {
    %c0_i32 = arith.constant 0 : i32
    %c0_i32_0 = arith.constant 0 : i32
    return %c0_i32, %arg0 : i32, i32
  }
}

module attributes {stable_mosaic.version = 11 : i64} {
  func.func @_conv_chain_kernel(%arg0: i32, %arg1: memref<24x288xbf16, #tpu.memory_space<vmem>>, %arg2: memref<24x1xf32, #tpu.memory_space<vmem>>, %arg3: memref<24x24xbf16, #tpu.memory_space<vmem>>, %arg4: memref<24x1xf32, #tpu.memory_space<vmem>>, %arg5: memref<288x32xbf16, #tpu.memory_space<vmem>>, %arg6: memref<24x32xbf16, #tpu.memory_space<vmem>>, %arg7: memref<24x32xbf16, #tpu.memory_space<vmem>>) attributes {dimension_semantics = [#tpu.dimension_semantics<arbitrary>], iteration_bounds = array<i64: 1>, scalar_prefetch = 0 : i64, scratch_operands = 0 : i64, tpu.core_type = #tpu.core_type<tc>, window_params = [{pipeline_mode = #tpu.pipeline_mode<synchronous>, transform_indices = @transform_0, window_bounds = array<i64: 24, 288>}, {pipeline_mode = #tpu.pipeline_mode<synchronous>, transform_indices = @transform_1, window_bounds = array<i64: 24, 1>}, {pipeline_mode = #tpu.pipeline_mode<synchronous>, transform_indices = @transform_2, window_bounds = array<i64: 24, 24>}, {pipeline_mode = #tpu.pipeline_mode<synchronous>, transform_indices = @transform_3, window_bounds = array<i64: 24, 1>}, {pipeline_mode = #tpu.pipeline_mode<synchronous>, transform_indices = @transform_4, window_bounds = array<i64: 288, 32>}, {pipeline_mode = #tpu.pipeline_mode<synchronous>, transform_indices = @transform_5, window_bounds = array<i64: 24, 32>}, {pipeline_mode = #tpu.pipeline_mode<synchronous>, transform_indices = @transform_6, window_bounds = array<i64: 24, 32>}]} {
    %c0 = arith.constant 0 : index
    %c0_0 = arith.constant 0 : index
    %0 = vector.load %arg1[%c0, %c0_0] : memref<24x288xbf16, #tpu.memory_space<vmem>>, vector<24x288xbf16>
    %c0_1 = arith.constant 0 : index
    %c0_2 = arith.constant 0 : index
    %1 = vector.load %arg5[%c0_1, %c0_2] : memref<288x32xbf16, #tpu.memory_space<vmem>>, vector<288x32xbf16>
    %cst = arith.constant dense<0.000000e+00> : vector<24x32xf32>
    %2 = tpu.matmul %0, %1, %cst {dimension_numbers = #tpu.dot_dimension_numbers<[1], [0], [0], [1], [0, 0, 1, 1], [], []>} : vector<24x288xbf16>, vector<288x32xbf16>, vector<24x32xf32> -> vector<24x32xf32>
    %c0_3 = arith.constant 0 : index
    %c0_4 = arith.constant 0 : index
    %3 = vector.load %arg2[%c0_3, %c0_4] : memref<24x1xf32, #tpu.memory_space<vmem>>, vector<24x1xf32>
    %4 = vector.broadcast %3 : vector<24x1xf32> to vector<24x32xf32>
    %5 = arith.addf %2, %4 : vector<24x32xf32>
    %6 = arith.negf %5 : vector<24x32xf32>
    %7 = math.exp %6 : vector<24x32xf32>
    %cst_5 = arith.constant 1.000000e+00 : f32
    %8 = vector.broadcast %cst_5 : f32 to vector<24x32xf32>
    %9 = arith.addf %8, %7 : vector<24x32xf32>
    %10 = arith.divf %8, %9 : vector<24x32xf32>
    %11 = arith.mulf %5, %10 : vector<24x32xf32>
    %12 = arith.truncf %11 : vector<24x32xf32> to vector<24x32xbf16>
    %c0_6 = arith.constant 0 : index
    %c0_7 = arith.constant 0 : index
    %13 = vector.load %arg3[%c0_6, %c0_7] : memref<24x24xbf16, #tpu.memory_space<vmem>>, vector<24x24xbf16>
    %cst_8 = arith.constant dense<0.000000e+00> : vector<24x32xf32>
    %14 = tpu.matmul %13, %12, %cst_8 {dimension_numbers = #tpu.dot_dimension_numbers<[1], [0], [0], [1], [0, 0, 1, 1], [], []>} : vector<24x24xbf16>, vector<24x32xbf16>, vector<24x32xf32> -> vector<24x32xf32>
    %c0_9 = arith.constant 0 : index
    %c0_10 = arith.constant 0 : index
    %15 = vector.load %arg4[%c0_9, %c0_10] : memref<24x1xf32, #tpu.memory_space<vmem>>, vector<24x1xf32>
    %16 = vector.broadcast %15 : vector<24x1xf32> to vector<24x32xf32>
    %17 = arith.addf %14, %16 : vector<24x32xf32>
    %18 = arith.negf %17 : vector<24x32xf32>
    %19 = math.exp %18 : vector<24x32xf32>
    %cst_11 = arith.constant 1.000000e+00 : f32
    %20 = vector.broadcast %cst_11 : f32 to vector<24x32xf32>
    %21 = arith.addf %20, %19 : vector<24x32xf32>
    %22 = arith.divf %20, %21 : vector<24x32xf32>
    %23 = arith.mulf %17, %22 : vector<24x32xf32>
    %24 = arith.truncf %11 : vector<24x32xf32> to vector<24x32xbf16>
    %c0_12 = arith.constant 0 : index
    %c0_13 = arith.constant 0 : index
    %25 = vector.load %arg6[%c0_12, %c0_13] : memref<24x32xbf16, #tpu.memory_space<vmem>>, vector<24x32xbf16>
    tpu.vector_store %arg6[%c0_12, %c0_13], %24 {strides = array<i32>} : memref<24x32xbf16, #tpu.memory_space<vmem>>, vector<24x32xbf16>,
    %26 = arith.truncf %23 : vector<24x32xf32> to vector<24x32xbf16>
    %c0_14 = arith.constant 0 : index
    %c0_15 = arith.constant 0 : index
    %27 = vector.load %arg7[%c0_14, %c0_15] : memref<24x32xbf16, #tpu.memory_space<vmem>>, vector<24x32xbf16>
    tpu.vector_store %arg7[%c0_14, %c0_15], %26 {strides = array<i32>} : memref<24x32xbf16, #tpu.memory_space<vmem>>, vector<24x32xbf16>,
    return
  }
  func.func @transform_0(%arg0: i32) -> (i32, i32) {
    %c0_i32 = arith.constant 0 : i32
    %c0_i32_0 = arith.constant 0 : i32
    %c0_i32_1 = arith.constant 0 : i32
    return %c0_i32, %c0_i32_0 : i32, i32
  }
  func.func @transform_1(%arg0: i32) -> (i32, i32) {
    %c0_i32 = arith.constant 0 : i32
    %c0_i32_0 = arith.constant 0 : i32
    %c0_i32_1 = arith.constant 0 : i32
    return %c0_i32, %c0_i32_0 : i32, i32
  }
  func.func @transform_2(%arg0: i32) -> (i32, i32) {
    %c0_i32 = arith.constant 0 : i32
    %c0_i32_0 = arith.constant 0 : i32
    %c0_i32_1 = arith.constant 0 : i32
    return %c0_i32, %c0_i32_0 : i32, i32
  }
  func.func @transform_3(%arg0: i32) -> (i32, i32) {
    %c0_i32 = arith.constant 0 : i32
    %c0_i32_0 = arith.constant 0 : i32
    %c0_i32_1 = arith.constant 0 : i32
    return %c0_i32, %c0_i32_0 : i32, i32
  }
  func.func @transform_4(%arg0: i32) -> (i32, i32) {
    %c0_i32 = arith.constant 0 : i32
    %c0_i32_0 = arith.constant 0 : i32
    %c0_i32_1 = arith.constant 0 : i32
    return %c0_i32, %c0_i32_0 : i32, i32
  }
  func.func @transform_5(%arg0: i32) -> (i32, i32) {
    %c0_i32 = arith.constant 0 : i32
    %c0_i32_0 = arith.constant 0 : i32
    %c0_i32_1 = arith.constant 0 : i32
    return %c0_i32, %c0_i32_0 : i32, i32
  }
  func.func @transform_6(%arg0: i32) -> (i32, i32) {
    %c0_i32 = arith.constant 0 : i32
    %c0_i32_0 = arith.constant 0 : i32
    %c0_i32_1 = arith.constant 0 : i32
    return %c0_i32, %c0_i32_0 : i32, i32
  }
}

module attributes {stable_mosaic.version = 11 : i64} {
  func.func @_conv_chain_kernel(%arg0: i32, %arg1: memref<48x216xbf16, #tpu.memory_space<vmem>>, %arg2: memref<48x1xf32, #tpu.memory_space<vmem>>, %arg3: memref<8x48xbf16, #tpu.memory_space<vmem>>, %arg4: memref<8x1xf32, #tpu.memory_space<vmem>>, %arg5: memref<216x32xbf16, #tpu.memory_space<vmem>>, %arg6: memref<8x32xf32, #tpu.memory_space<vmem>>) attributes {dimension_semantics = [#tpu.dimension_semantics<arbitrary>], iteration_bounds = array<i64: 1>, scalar_prefetch = 0 : i64, scratch_operands = 0 : i64, tpu.core_type = #tpu.core_type<tc>, window_params = [{pipeline_mode = #tpu.pipeline_mode<synchronous>, transform_indices = @transform_0, window_bounds = array<i64: 48, 216>}, {pipeline_mode = #tpu.pipeline_mode<synchronous>, transform_indices = @transform_1, window_bounds = array<i64: 48, 1>}, {pipeline_mode = #tpu.pipeline_mode<synchronous>, transform_indices = @transform_2, window_bounds = array<i64: 8, 48>}, {pipeline_mode = #tpu.pipeline_mode<synchronous>, transform_indices = @transform_3, window_bounds = array<i64: 8, 1>}, {pipeline_mode = #tpu.pipeline_mode<synchronous>, transform_indices = @transform_4, window_bounds = array<i64: 216, 32>}, {pipeline_mode = #tpu.pipeline_mode<synchronous>, transform_indices = @transform_5, window_bounds = array<i64: 8, 32>}]} {
    %c0 = arith.constant 0 : index
    %c0_0 = arith.constant 0 : index
    %0 = vector.load %arg1[%c0, %c0_0] : memref<48x216xbf16, #tpu.memory_space<vmem>>, vector<48x216xbf16>
    %c0_1 = arith.constant 0 : index
    %c0_2 = arith.constant 0 : index
    %1 = vector.load %arg5[%c0_1, %c0_2] : memref<216x32xbf16, #tpu.memory_space<vmem>>, vector<216x32xbf16>
    %cst = arith.constant dense<0.000000e+00> : vector<48x32xf32>
    %2 = tpu.matmul %0, %1, %cst {dimension_numbers = #tpu.dot_dimension_numbers<[1], [0], [0], [1], [0, 0, 1, 1], [], []>} : vector<48x216xbf16>, vector<216x32xbf16>, vector<48x32xf32> -> vector<48x32xf32>
    %c0_3 = arith.constant 0 : index
    %c0_4 = arith.constant 0 : index
    %3 = vector.load %arg2[%c0_3, %c0_4] : memref<48x1xf32, #tpu.memory_space<vmem>>, vector<48x1xf32>
    %4 = vector.broadcast %3 : vector<48x1xf32> to vector<48x32xf32>
    %5 = arith.addf %2, %4 : vector<48x32xf32>
    %6 = arith.negf %5 : vector<48x32xf32>
    %7 = math.exp %6 : vector<48x32xf32>
    %cst_5 = arith.constant 1.000000e+00 : f32
    %8 = vector.broadcast %cst_5 : f32 to vector<48x32xf32>
    %9 = arith.addf %8, %7 : vector<48x32xf32>
    %10 = arith.divf %8, %9 : vector<48x32xf32>
    %11 = arith.mulf %5, %10 : vector<48x32xf32>
    %12 = arith.truncf %11 : vector<48x32xf32> to vector<48x32xbf16>
    %c0_6 = arith.constant 0 : index
    %c0_7 = arith.constant 0 : index
    %13 = vector.load %arg3[%c0_6, %c0_7] : memref<8x48xbf16, #tpu.memory_space<vmem>>, vector<8x48xbf16>
    %cst_8 = arith.constant dense<0.000000e+00> : vector<8x32xf32>
    %14 = tpu.matmul %13, %12, %cst_8 {dimension_numbers = #tpu.dot_dimension_numbers<[1], [0], [0], [1], [0, 0, 1, 1], [], []>} : vector<8x48xbf16>, vector<48x32xbf16>, vector<8x32xf32> -> vector<8x32xf32>
    %c0_9 = arith.constant 0 : index
    %c0_10 = arith.constant 0 : index
    %15 = vector.load %arg4[%c0_9, %c0_10] : memref<8x1xf32, #tpu.memory_space<vmem>>, vector<8x1xf32>
    %16 = vector.broadcast %15 : vector<8x1xf32> to vector<8x32xf32>
    %17 = arith.addf %14, %16 : vector<8x32xf32>
    %c0_11 = arith.constant 0 : index
    %c0_12 = arith.constant 0 : index
    %18 = vector.load %arg6[%c0_11, %c0_12] : memref<8x32xf32, #tpu.memory_space<vmem>>, vector<8x32xf32>
    tpu.vector_store %arg6[%c0_11, %c0_12], %17 {strides = array<i32>} : memref<8x32xf32, #tpu.memory_space<vmem>>, vector<8x32xf32>,
    return
  }
  func.func @transform_0(%arg0: i32) -> (i32, i32) {
    %c0_i32 = arith.constant 0 : i32
    %c0_i32_0 = arith.constant 0 : i32
    %c0_i32_1 = arith.constant 0 : i32
    return %c0_i32, %c0_i32_0 : i32, i32
  }
  func.func @transform_1(%arg0: i32) -> (i32, i32) {
    %c0_i32 = arith.constant 0 : i32
    %c0_i32_0 = arith.constant 0 : i32
    %c0_i32_1 = arith.constant 0 : i32
    return %c0_i32, %c0_i32_0 : i32, i32
  }
  func.func @transform_2(%arg0: i32) -> (i32, i32) {
    %c0_i32 = arith.constant 0 : i32
    %c0_i32_0 = arith.constant 0 : i32
    %c0_i32_1 = arith.constant 0 : i32
    return %c0_i32, %c0_i32_0 : i32, i32
  }
  func.func @transform_3(%arg0: i32) -> (i32, i32) {
    %c0_i32 = arith.constant 0 : i32
    %c0_i32_0 = arith.constant 0 : i32
    %c0_i32_1 = arith.constant 0 : i32
    return %c0_i32, %c0_i32_0 : i32, i32
  }
  func.func @transform_4(%arg0: i32) -> (i32, i32) {
    %c0_i32 = arith.constant 0 : i32
    %c0_i32_0 = arith.constant 0 : i32
    %c0_i32_1 = arith.constant 0 : i32
    return %c0_i32, %c0_i32_0 : i32, i32
  }
  func.func @transform_5(%arg0: i32) -> (i32, i32) {
    %c0_i32 = arith.constant 0 : i32
    %c0_i32_0 = arith.constant 0 : i32
    %c0_i32_1 = arith.constant 0 : i32
    return %c0_i32, %c0_i32_0 : i32, i32
  }
}

module attributes {stable_mosaic.version = 11 : i64} {
  func.func @_conv_kernel(%arg0: i32, %arg1: memref<32x216xbf16, #tpu.memory_space<vmem>>, %arg2: memref<32x1xf32, #tpu.memory_space<vmem>>, %arg3: memref<216x8xbf16, #tpu.memory_space<vmem>>, %arg4: memref<32x8xbf16, #tpu.memory_space<vmem>>) attributes {dimension_semantics = [#tpu.dimension_semantics<parallel>], iteration_bounds = array<i64: 1>, scalar_prefetch = 0 : i64, scratch_operands = 0 : i64, tpu.core_type = #tpu.core_type<tc>, window_params = [{pipeline_mode = #tpu.pipeline_mode<synchronous>, transform_indices = @transform_0, window_bounds = array<i64: 32, 216>}, {pipeline_mode = #tpu.pipeline_mode<synchronous>, transform_indices = @transform_1, window_bounds = array<i64: 32, 1>}, {transform_indices = @transform_2, window_bounds = array<i64: 216, 8>}, {transform_indices = @transform_3, window_bounds = array<i64: 32, 8>}]} {
    %c0 = arith.constant 0 : index
    %c0_0 = arith.constant 0 : index
    %0 = vector.load %arg1[%c0, %c0_0] : memref<32x216xbf16, #tpu.memory_space<vmem>>, vector<32x216xbf16>
    %c0_1 = arith.constant 0 : index
    %c0_2 = arith.constant 0 : index
    %1 = vector.load %arg3[%c0_1, %c0_2] : memref<216x8xbf16, #tpu.memory_space<vmem>>, vector<216x8xbf16>
    %cst = arith.constant dense<0.000000e+00> : vector<32x8xf32>
    %2 = tpu.matmul %0, %1, %cst {dimension_numbers = #tpu.dot_dimension_numbers<[1], [0], [0], [1], [0, 0, 1, 1], [], []>} : vector<32x216xbf16>, vector<216x8xbf16>, vector<32x8xf32> -> vector<32x8xf32>
    %c0_3 = arith.constant 0 : index
    %c0_4 = arith.constant 0 : index
    %3 = vector.load %arg2[%c0_3, %c0_4] : memref<32x1xf32, #tpu.memory_space<vmem>>, vector<32x1xf32>
    %4 = vector.broadcast %3 : vector<32x1xf32> to vector<32x8xf32>
    %5 = arith.addf %2, %4 : vector<32x8xf32>
    %6 = arith.negf %5 : vector<32x8xf32>
    %7 = math.exp %6 : vector<32x8xf32>
    %cst_5 = arith.constant 1.000000e+00 : f32
    %8 = vector.broadcast %cst_5 : f32 to vector<32x8xf32>
    %9 = arith.addf %8, %7 : vector<32x8xf32>
    %10 = arith.divf %8, %9 : vector<32x8xf32>
    %11 = arith.mulf %5, %10 : vector<32x8xf32>
    %12 = arith.truncf %11 : vector<32x8xf32> to vector<32x8xbf16>
    %c0_6 = arith.constant 0 : index
    %c0_7 = arith.constant 0 : index
    %13 = vector.load %arg4[%c0_6, %c0_7] : memref<32x8xbf16, #tpu.memory_space<vmem>>, vector<32x8xbf16>
    tpu.vector_store %arg4[%c0_6, %c0_7], %12 {strides = array<i32>} : memref<32x8xbf16, #tpu.memory_space<vmem>>, vector<32x8xbf16>,
    return
  }
  func.func @transform_0(%arg0: i32) -> (i32, i32) {
    %c0_i32 = arith.constant 0 : i32
    %c0_i32_0 = arith.constant 0 : i32
    %c0_i32_1 = arith.constant 0 : i32
    return %c0_i32, %c0_i32_0 : i32, i32
  }
  func.func @transform_1(%arg0: i32) -> (i32, i32) {
    %c0_i32 = arith.constant 0 : i32
    %c0_i32_0 = arith.constant 0 : i32
    %c0_i32_1 = arith.constant 0 : i32
    return %c0_i32, %c0_i32_0 : i32, i32
  }
  func.func @transform_2(%arg0: i32) -> (i32, i32) {
    %c0_i32 = arith.constant 0 : i32
    %c0_i32_0 = arith.constant 0 : i32
    return %c0_i32, %arg0 : i32, i32
  }
  func.func @transform_3(%arg0: i32) -> (i32, i32) {
    %c0_i32 = arith.constant 0 : i32
    %c0_i32_0 = arith.constant 0 : i32
    return %c0_i32, %arg0 : i32, i32
  }
}

module attributes {stable_mosaic.version = 11 : i64} {
  func.func @_conv_chain_kernel(%arg0: i32, %arg1: memref<32x576xbf16, #tpu.memory_space<vmem>>, %arg2: memref<32x1xf32, #tpu.memory_space<vmem>>, %arg3: memref<32x32xbf16, #tpu.memory_space<vmem>>, %arg4: memref<32x1xf32, #tpu.memory_space<vmem>>, %arg5: memref<576x8xbf16, #tpu.memory_space<vmem>>, %arg6: memref<32x8xbf16, #tpu.memory_space<vmem>>, %arg7: memref<32x8xbf16, #tpu.memory_space<vmem>>) attributes {dimension_semantics = [#tpu.dimension_semantics<arbitrary>], iteration_bounds = array<i64: 1>, scalar_prefetch = 0 : i64, scratch_operands = 0 : i64, tpu.core_type = #tpu.core_type<tc>, window_params = [{pipeline_mode = #tpu.pipeline_mode<synchronous>, transform_indices = @transform_0, window_bounds = array<i64: 32, 576>}, {pipeline_mode = #tpu.pipeline_mode<synchronous>, transform_indices = @transform_1, window_bounds = array<i64: 32, 1>}, {pipeline_mode = #tpu.pipeline_mode<synchronous>, transform_indices = @transform_2, window_bounds = array<i64: 32, 32>}, {pipeline_mode = #tpu.pipeline_mode<synchronous>, transform_indices = @transform_3, window_bounds = array<i64: 32, 1>}, {pipeline_mode = #tpu.pipeline_mode<synchronous>, transform_indices = @transform_4, window_bounds = array<i64: 576, 8>}, {pipeline_mode = #tpu.pipeline_mode<synchronous>, transform_indices = @transform_5, window_bounds = array<i64: 32, 8>}, {pipeline_mode = #tpu.pipeline_mode<synchronous>, transform_indices = @transform_6, window_bounds = array<i64: 32, 8>}]} {
    %c0 = arith.constant 0 : index
    %c0_0 = arith.constant 0 : index
    %0 = vector.load %arg1[%c0, %c0_0] : memref<32x576xbf16, #tpu.memory_space<vmem>>, vector<32x576xbf16>
    %c0_1 = arith.constant 0 : index
    %c0_2 = arith.constant 0 : index
    %1 = vector.load %arg5[%c0_1, %c0_2] : memref<576x8xbf16, #tpu.memory_space<vmem>>, vector<576x8xbf16>
    %cst = arith.constant dense<0.000000e+00> : vector<32x8xf32>
    %2 = tpu.matmul %0, %1, %cst {dimension_numbers = #tpu.dot_dimension_numbers<[1], [0], [0], [1], [0, 0, 1, 1], [], []>} : vector<32x576xbf16>, vector<576x8xbf16>, vector<32x8xf32> -> vector<32x8xf32>
    %c0_3 = arith.constant 0 : index
    %c0_4 = arith.constant 0 : index
    %3 = vector.load %arg2[%c0_3, %c0_4] : memref<32x1xf32, #tpu.memory_space<vmem>>, vector<32x1xf32>
    %4 = vector.broadcast %3 : vector<32x1xf32> to vector<32x8xf32>
    %5 = arith.addf %2, %4 : vector<32x8xf32>
    %6 = arith.negf %5 : vector<32x8xf32>
    %7 = math.exp %6 : vector<32x8xf32>
    %cst_5 = arith.constant 1.000000e+00 : f32
    %8 = vector.broadcast %cst_5 : f32 to vector<32x8xf32>
    %9 = arith.addf %8, %7 : vector<32x8xf32>
    %10 = arith.divf %8, %9 : vector<32x8xf32>
    %11 = arith.mulf %5, %10 : vector<32x8xf32>
    %12 = arith.truncf %11 : vector<32x8xf32> to vector<32x8xbf16>
    %c0_6 = arith.constant 0 : index
    %c0_7 = arith.constant 0 : index
    %13 = vector.load %arg3[%c0_6, %c0_7] : memref<32x32xbf16, #tpu.memory_space<vmem>>, vector<32x32xbf16>
    %cst_8 = arith.constant dense<0.000000e+00> : vector<32x8xf32>
    %14 = tpu.matmul %13, %12, %cst_8 {dimension_numbers = #tpu.dot_dimension_numbers<[1], [0], [0], [1], [0, 0, 1, 1], [], []>} : vector<32x32xbf16>, vector<32x8xbf16>, vector<32x8xf32> -> vector<32x8xf32>
    %c0_9 = arith.constant 0 : index
    %c0_10 = arith.constant 0 : index
    %15 = vector.load %arg4[%c0_9, %c0_10] : memref<32x1xf32, #tpu.memory_space<vmem>>, vector<32x1xf32>
    %16 = vector.broadcast %15 : vector<32x1xf32> to vector<32x8xf32>
    %17 = arith.addf %14, %16 : vector<32x8xf32>
    %18 = arith.negf %17 : vector<32x8xf32>
    %19 = math.exp %18 : vector<32x8xf32>
    %cst_11 = arith.constant 1.000000e+00 : f32
    %20 = vector.broadcast %cst_11 : f32 to vector<32x8xf32>
    %21 = arith.addf %20, %19 : vector<32x8xf32>
    %22 = arith.divf %20, %21 : vector<32x8xf32>
    %23 = arith.mulf %17, %22 : vector<32x8xf32>
    %24 = arith.truncf %11 : vector<32x8xf32> to vector<32x8xbf16>
    %c0_12 = arith.constant 0 : index
    %c0_13 = arith.constant 0 : index
    %25 = vector.load %arg6[%c0_12, %c0_13] : memref<32x8xbf16, #tpu.memory_space<vmem>>, vector<32x8xbf16>
    tpu.vector_store %arg6[%c0_12, %c0_13], %24 {strides = array<i32>} : memref<32x8xbf16, #tpu.memory_space<vmem>>, vector<32x8xbf16>,
    %26 = arith.truncf %23 : vector<32x8xf32> to vector<32x8xbf16>
    %c0_14 = arith.constant 0 : index
    %c0_15 = arith.constant 0 : index
    %27 = vector.load %arg7[%c0_14, %c0_15] : memref<32x8xbf16, #tpu.memory_space<vmem>>, vector<32x8xbf16>
    tpu.vector_store %arg7[%c0_14, %c0_15], %26 {strides = array<i32>} : memref<32x8xbf16, #tpu.memory_space<vmem>>, vector<32x8xbf16>,
    return
  }
  func.func @transform_0(%arg0: i32) -> (i32, i32) {
    %c0_i32 = arith.constant 0 : i32
    %c0_i32_0 = arith.constant 0 : i32
    %c0_i32_1 = arith.constant 0 : i32
    return %c0_i32, %c0_i32_0 : i32, i32
  }
  func.func @transform_1(%arg0: i32) -> (i32, i32) {
    %c0_i32 = arith.constant 0 : i32
    %c0_i32_0 = arith.constant 0 : i32
    %c0_i32_1 = arith.constant 0 : i32
    return %c0_i32, %c0_i32_0 : i32, i32
  }
  func.func @transform_2(%arg0: i32) -> (i32, i32) {
    %c0_i32 = arith.constant 0 : i32
    %c0_i32_0 = arith.constant 0 : i32
    %c0_i32_1 = arith.constant 0 : i32
    return %c0_i32, %c0_i32_0 : i32, i32
  }
  func.func @transform_3(%arg0: i32) -> (i32, i32) {
    %c0_i32 = arith.constant 0 : i32
    %c0_i32_0 = arith.constant 0 : i32
    %c0_i32_1 = arith.constant 0 : i32
    return %c0_i32, %c0_i32_0 : i32, i32
  }
  func.func @transform_4(%arg0: i32) -> (i32, i32) {
    %c0_i32 = arith.constant 0 : i32
    %c0_i32_0 = arith.constant 0 : i32
    %c0_i32_1 = arith.constant 0 : i32
    return %c0_i32, %c0_i32_0 : i32, i32
  }
  func.func @transform_5(%arg0: i32) -> (i32, i32) {
    %c0_i32 = arith.constant 0 : i32
    %c0_i32_0 = arith.constant 0 : i32
    %c0_i32_1 = arith.constant 0 : i32
    return %c0_i32, %c0_i32_0 : i32, i32
  }
  func.func @transform_6(%arg0: i32) -> (i32, i32) {
    %c0_i32 = arith.constant 0 : i32
    %c0_i32_0 = arith.constant 0 : i32
    %c0_i32_1 = arith.constant 0 : i32
    return %c0_i32, %c0_i32_0 : i32, i32
  }
}

module attributes {stable_mosaic.version = 11 : i64} {
  func.func @_conv_chain_kernel(%arg0: i32, %arg1: memref<64x288xbf16, #tpu.memory_space<vmem>>, %arg2: memref<64x1xf32, #tpu.memory_space<vmem>>, %arg3: memref<8x64xbf16, #tpu.memory_space<vmem>>, %arg4: memref<8x1xf32, #tpu.memory_space<vmem>>, %arg5: memref<288x8xbf16, #tpu.memory_space<vmem>>, %arg6: memref<8x8xf32, #tpu.memory_space<vmem>>) attributes {dimension_semantics = [#tpu.dimension_semantics<arbitrary>], iteration_bounds = array<i64: 1>, scalar_prefetch = 0 : i64, scratch_operands = 0 : i64, tpu.core_type = #tpu.core_type<tc>, window_params = [{pipeline_mode = #tpu.pipeline_mode<synchronous>, transform_indices = @transform_0, window_bounds = array<i64: 64, 288>}, {pipeline_mode = #tpu.pipeline_mode<synchronous>, transform_indices = @transform_1, window_bounds = array<i64: 64, 1>}, {pipeline_mode = #tpu.pipeline_mode<synchronous>, transform_indices = @transform_2, window_bounds = array<i64: 8, 64>}, {pipeline_mode = #tpu.pipeline_mode<synchronous>, transform_indices = @transform_3, window_bounds = array<i64: 8, 1>}, {pipeline_mode = #tpu.pipeline_mode<synchronous>, transform_indices = @transform_4, window_bounds = array<i64: 288, 8>}, {pipeline_mode = #tpu.pipeline_mode<synchronous>, transform_indices = @transform_5, window_bounds = array<i64: 8, 8>}]} {
    %c0 = arith.constant 0 : index
    %c0_0 = arith.constant 0 : index
    %0 = vector.load %arg1[%c0, %c0_0] : memref<64x288xbf16, #tpu.memory_space<vmem>>, vector<64x288xbf16>
    %c0_1 = arith.constant 0 : index
    %c0_2 = arith.constant 0 : index
    %1 = vector.load %arg5[%c0_1, %c0_2] : memref<288x8xbf16, #tpu.memory_space<vmem>>, vector<288x8xbf16>
    %cst = arith.constant dense<0.000000e+00> : vector<64x8xf32>
    %2 = tpu.matmul %0, %1, %cst {dimension_numbers = #tpu.dot_dimension_numbers<[1], [0], [0], [1], [0, 0, 1, 1], [], []>} : vector<64x288xbf16>, vector<288x8xbf16>, vector<64x8xf32> -> vector<64x8xf32>
    %c0_3 = arith.constant 0 : index
    %c0_4 = arith.constant 0 : index
    %3 = vector.load %arg2[%c0_3, %c0_4] : memref<64x1xf32, #tpu.memory_space<vmem>>, vector<64x1xf32>
    %4 = vector.broadcast %3 : vector<64x1xf32> to vector<64x8xf32>
    %5 = arith.addf %2, %4 : vector<64x8xf32>
    %6 = arith.negf %5 : vector<64x8xf32>
    %7 = math.exp %6 : vector<64x8xf32>
    %cst_5 = arith.constant 1.000000e+00 : f32
    %8 = vector.broadcast %cst_5 : f32 to vector<64x8xf32>
    %9 = arith.addf %8, %7 : vector<64x8xf32>
    %10 = arith.divf %8, %9 : vector<64x8xf32>
    %11 = arith.mulf %5, %10 : vector<64x8xf32>
    %12 = arith.truncf %11 : vector<64x8xf32> to vector<64x8xbf16>
    %c0_6 = arith.constant 0 : index
    %c0_7 = arith.constant 0 : index
    %13 = vector.load %arg3[%c0_6, %c0_7] : memref<8x64xbf16, #tpu.memory_space<vmem>>, vector<8x64xbf16>
    %cst_8 = arith.constant dense<0.000000e+00> : vector<8x8xf32>
    %14 = tpu.matmul %13, %12, %cst_8 {dimension_numbers = #tpu.dot_dimension_numbers<[1], [0], [0], [1], [0, 0, 1, 1], [], []>} : vector<8x64xbf16>, vector<64x8xbf16>, vector<8x8xf32> -> vector<8x8xf32>
    %c0_9 = arith.constant 0 : index
    %c0_10 = arith.constant 0 : index
    %15 = vector.load %arg4[%c0_9, %c0_10] : memref<8x1xf32, #tpu.memory_space<vmem>>, vector<8x1xf32>
    %16 = vector.broadcast %15 : vector<8x1xf32> to vector<8x8xf32>
    %17 = arith.addf %14, %16 : vector<8x8xf32>
    %c0_11 = arith.constant 0 : index
    %c0_12 = arith.constant 0 : index
    %18 = vector.load %arg6[%c0_11, %c0_12] : memref<8x8xf32, #tpu.memory_space<vmem>>, vector<8x8xf32>
    tpu.vector_store %arg6[%c0_11, %c0_12], %17 {strides = array<i32>} : memref<8x8xf32, #tpu.memory_space<vmem>>, vector<8x8xf32>,
    return
  }
  func.func @transform_0(%arg0: i32) -> (i32, i32) {
    %c0_i32 = arith.constant 0 : i32
    %c0_i32_0 = arith.constant 0 : i32
    %c0_i32_1 = arith.constant 0 : i32
    return %c0_i32, %c0_i32_0 : i32, i32
  }
  func.func @transform_1(%arg0: i32) -> (i32, i32) {
    %c0_i32 = arith.constant 0 : i32
    %c0_i32_0 = arith.constant 0 : i32
    %c0_i32_1 = arith.constant 0 : i32
    return %c0_i32, %c0_i32_0 : i32, i32
  }
  func.func @transform_2(%arg0: i32) -> (i32, i32) {
    %c0_i32 = arith.constant 0 : i32
    %c0_i32_0 = arith.constant 0 : i32
    %c0_i32_1 = arith.constant 0 : i32
    return %c0_i32, %c0_i32_0 : i32, i32
  }
  func.func @transform_3(%arg0: i32) -> (i32, i32) {
    %c0_i32 = arith.constant 0 : i32
    %c0_i32_0 = arith.constant 0 : i32
    %c0_i32_1 = arith.constant 0 : i32
    return %c0_i32, %c0_i32_0 : i32, i32
  }
  func.func @transform_4(%arg0: i32) -> (i32, i32) {
    %c0_i32 = arith.constant 0 : i32
    %c0_i32_0 = arith.constant 0 : i32
    %c0_i32_1 = arith.constant 0 : i32
    return %c0_i32, %c0_i32_0 : i32, i32
  }
  func.func @transform_5(%arg0: i32) -> (i32, i32) {
    %c0_i32 = arith.constant 0 : i32
    %c0_i32_0 = arith.constant 0 : i32
    %c0_i32_1 = arith.constant 0 : i32
    return %c0_i32, %c0_i32_0 : i32, i32
  }
}

</mosaic_0001>

<llo_original>
// kernel: model_forward.18
$region0: #{model_forward.18}
  #allocation0 [shape = 'u32[]', space=smem, size = 0x4, offset = 0x4, fixed_abs, tag = 'smem constant byte address 0x4 - core index']
  #allocation1 [shape = 'u32[144,128]{1,0:T(1,128)}', space=vmem, size = 0x12000, scoped, tag = 'internal scratch']
  %s0 = inlined_call_operand.vmem [shape: bf16[8,27], index: 0, kind: input, shape index: {}]
  %s1 = inlined_call_operand.vmem [shape: f32[8,1], index: 1, kind: input, shape index: {}]
  %s2 = inlined_call_operand.vmem [shape: bf16[27,2048], index: 2, kind: input, shape index: {}]
  %s3 = inlined_call_operand.vmem [shape: bf16[8,2048], index: 3, kind: output, shape index: {}]
  %s4 = sld [smem:[#allocation0]]
  $region68: #{model_forward.18} parent=0
    _
  %s6 = ssub.s32 1, %s4
  %s7 = scalar_select 0, %s6, %s4
  $region1: #{model_forward.18} parent=0
    #allocation2 [shape = 'u8[131072]{0}', space=vmem, size = 0x20000, scoped, tag = 'input window, operand 2']
    loop: start=0, step=1, limit=4
    $region2: #{model_forward.18} parent=1 // loop_pre_header
      _
    $region3: #{model_forward.18} parent=1 // loop_header
      %s9 = sphi 0, %s13
      %p10 = scmp.ge.s32.totalorder %s9, 4
      %s17 = sphi 0, %s17
      %s19 = sphi 0, %s17
      %s20 = sphi 0, %s19
      %s34 = sphi 0, %s20
      %s38 = sphi 0, %s38
      %s40 = sphi 0, %s38
      %s41 = sphi 0, %s40
      %s55 = sphi 0, %s41
      %s61 = sphi 0, %s63
      %s64 = sphi 0, %s61
      %s65 = sphi 0, %s64
      %s81 = sphi 0, %s65
      %s87 = sphi 0, %s89
      %s90 = sphi 0, %s87
      %s91 = sphi 0, %s90
      %s107 = sphi 0, %s91
    $region4: #{model_forward.18} parent=1 // loop_header_branch
      %12 = sbr.rel (%p10) target = $region8
    $region5: #{model_forward.18} parent=1 // loop_body
      %s14 = ssub.s32 %s9, 1
      %s15 = ssub.s32 %s9, 2
      %s16 = sadd.s32 %s9, 1
      %s18 = sadd.s32 %s17, 1
      %p21 = scmp.eq.s32.totalorder %s9, 1
      %p22 = scmp.ne.s32.totalorder %s17, %s19
      %p23 = scmp.eq.s32.totalorder %s9, 0
      %p24 = por %p22, %p23
      %p25 = scmp.ne.s32.totalorder %s17, %s19
      %p26 = scmp.eq.s32.totalorder %s14, 1
      %p27 = por %p25, %p26
      %p28 = scmp.ne.s32.totalorder %s19, %s20
      %p29 = scmp.eq.s32.totalorder %s14, 0
      %p30 = por %p28, %p29
      %p31 = scmp.ne.s32.totalorder %s19, %s20
      %p32 = scmp.eq.s32.totalorder %s15, 1
      %p33 = por %p31, %p32
      %p35 = scmp.ne.s32.totalorder %s20, %s34
      %p36 = scmp.eq.s32.totalorder %s15, 0
      %p37 = por %p35, %p36
      %s39 = sadd.s32 %s38, 1
      %p42 = scmp.eq.s32.totalorder %s9, 1
      %p43 = scmp.ne.s32.totalorder %s38, %s40
      %p44 = scmp.eq.s32.totalorder %s9, 0
      %p45 = por %p43, %p44
      %p46 = scmp.ne.s32.totalorder %s38, %s40
      %p47 = scmp.eq.s32.totalorder %s14, 1
      %p48 = por %p46, %p47
      %p49 = scmp.ne.s32.totalorder %s40, %s41
      %p50 = scmp.eq.s32.totalorder %s14, 0
      %p51 = por %p49, %p50
      %p52 = scmp.ne.s32.totalorder %s40, %s41
      %p53 = scmp.eq.s32.totalorder %s15, 1
      %p54 = por %p52, %p53
      %p56 = scmp.ne.s32.totalorder %s41, %s55
      %p57 = scmp.eq.s32.totalorder %s15, 0
      %p58 = por %p56, %p57
      %s59 = ssub.s32 %s9, %s16
      %p60 = scmp.eq.s32.totalorder %s59, 0
      %s62 = sadd.s32 %s61, 1
      %s63 = scalar_select %p60, %s61, %s62
      %p66 = pneg %p60
      %p67 = scmp.eq.s32.totalorder %s9, 1
      %p68 = por %p66, %p67
      %p69 = scmp.ne.s32.totalorder %s61, %s64
      %p70 = scmp.eq.s32.totalorder %s9, 0
      %p71 = por %p69, %p70
      %p72 = scmp.ne.s32.totalorder %s61, %s64
      %p73 = scmp.eq.s32.totalorder %s14, 1
      %p74 = por %p72, %p73
      %p75 = scmp.ne.s32.totalorder %s64, %s65
      %p76 = scmp.eq.s32.totalorder %s14, 0
      %p77 = por %p75, %p76
      %p78 = scmp.ne.s32.totalorder %s64, %s65
      %p79 = scmp.eq.s32.totalorder %s15, 1
      %p80 = por %p78, %p79
      %p82 = scmp.ne.s32.totalorder %s65, %s81
      %p83 = scmp.eq.s32.totalorder %s15, 0
      %p84 = por %p82, %p83
      %s85 = ssub.s32 %s9, %s16
      %p86 = scmp.eq.s32.totalorder %s85, 0
      %s88 = sadd.s32 %s87, 1
      %s89 = scalar_select %p86, %s87, %s88
      %p92 = pneg %p86
      %p93 = scmp.eq.s32.totalorder %s9, 1
      %p94 = por %p92, %p93
      %p95 = scmp.ne.s32.totalorder %s87, %s90
      %p96 = scmp.eq.s32.totalorder %s9, 0
      %p97 = por %p95, %p96
      %p98 = scmp.ne.s32.totalorder %s87, %s90
      %p99 = scmp.eq.s32.totalorder %s14, 1
      %p100 = por %p98, %p99
      %p101 = scmp.ne.s32.totalorder %s90, %s91
      %p102 = scmp.eq.s32.totalorder %s14, 0
      %p103 = por %p101, %p102
      %p104 = scmp.ne.s32.totalorder %s90, %s91
      %p105 = scmp.eq.s32.totalorder %s15, 1
      %p106 = por %p104, %p105
      %p108 = scmp.ne.s32.totalorder %s91, %s107
      %p109 = scmp.eq.s32.totalorder %s15, 0
      %p110 = por %p108, %p109
      %p111 = scmp.le.s32.totalorder 1, %s9
      %p112 = scmp.lt.s32.totalorder %s9, 3
      %p113 = pnand %p111, %p112
      %p114 = pneg %p113
      // Predicated region
      $region9: #{model_forward.18} parent=5 // pred_check
        _
      $region10: #{model_forward.18} parent=5 // pred_check_branch
        %116 = sbr.rel (%p113) target = $region12
      $region11: #{model_forward.18} parent=5 // pred_region
        %s117 = ssub.s32 %s9, 1
        // Predicated region
        $region13: #{model_forward.18} parent=11 // pred_check
          %p118 = pneg %p30
        $region14: #{model_forward.18} parent=11 // pred_check_branch
          %120 = sbr.rel (%p118) target = $region16
        $region15: #{model_forward.18} parent=11 // pred_region
          _
        $region16: #{model_forward.18} parent=11 // pred_fallthru
          _
        // Predicated region
        $region17: #{model_forward.18} parent=11 // pred_check
          %p121 = pneg %p51
        $region18: #{model_forward.18} parent=11 // pred_check_branch
          %123 = sbr.rel (%p121) target = $region20
        $region19: #{model_forward.18} parent=11 // pred_region
          _
        $region20: #{model_forward.18} parent=11 // pred_fallthru
          _
      $region12: #{model_forward.18} parent=5 // pred_fallthru
        _
      %p124 = scmp.lt.s32.totalorder %s9, 2
      // Predicated region
      $region21: #{model_forward.18} parent=5 // pred_check
        %p125 = pneg %p124
      $region22: #{model_forward.18} parent=5 // pred_check_branch
        %127 = sbr.rel (%p125) target = $region24
      $region23: #{model_forward.18} parent=5 // pred_region
        // Predicated region
        $region25: #{model_forward.18} parent=23 // pred_check
          %p128 = pneg %p71
        $region26: #{model_forward.18} parent=23 // pred_check_branch
          %130 = sbr.rel (%p128) target = $region28
        $region27: #{model_forward.18} parent=23 // pred_region
          %s131 = sand.u32 %s61, 1
          %s132 = sand.u32 %s61, 1
          %s133 = smul.addr %s132, 128
          %s134 = scalar_lea.vmem [#allocation2], %s133
          %s135 = smul.u32 8, %s9
          %s136 = smul.addr %s135, 4
          %s137 = scalar_lea.vmem %s2, %s136
          // Predicated region
          $region29: #{model_forward.18} parent=27 // pred_check
            _
          $region30: #{model_forward.18} parent=27 // pred_check_branch
            %139 = sbr.rel (0) target = $region32
          $region31: #{model_forward.18} parent=27 // pred_region
            // Predicated region
            $region33: #{model_forward.18} parent=31 // pred_check
              _
            $region34: #{model_forward.18} parent=31 // pred_check_branch
              %141 = sbr.rel (0) target = $region36
            $region35: #{model_forward.18} parent=31 // pred_region
              loop: start=0, step=1, limit=1
              $region37: #{model_forward.18} parent=35 // loop_pre_header
                _
              $region38: #{model_forward.18} parent=35 // loop_header
                %s143 = sphi 0, %s147
                %p144 = scmp.ge.s32.totalorder %s143, 1
                %s148 = sphi %s137, %s137
                %s149 = sphi %s134, %s134
              $region39: #{model_forward.18} parent=35 // loop_header_branch
                %146 = sbr.rel (%p144) target = $region43
              $region40: #{model_forward.18} parent=35 // loop_body
                %v150 = vld [vmem:[%s148] sm:$0xff]
                %151 = vst [vmem:[%s149] sm:$0xff] %v150
                %v152 = vld [vmem:[%s148 + $0x8] sm:$0xff]
                %153 = vst [vmem:[%s149 + $0x8] sm:$0xff] %v152
                %v154 = vld [vmem:[%s148 + $0x10] sm:$0xff]
                %155 = vst [vmem:[%s149 + $0x10] sm:$0xff] %v154
                %v156 = vld [vmem:[%s148 + $0x18] sm:$0xff]
                %157 = vst [vmem:[%s149 + $0x18] sm:$0xff] %v156
                %v158 = vld [vmem:[%s148 + $0x40] sm:$0xff]
                %159 = vst [vmem:[%s149 + $0x20] sm:$0xff] %v158
                %v160 = vld [vmem:[%s148 + $0x48] sm:$0xff]
                %161 = vst [vmem:[%s149 + $0x28] sm:$0xff] %v160
                %v162 = vld [vmem:[%s148 + $0x50] sm:$0xff]
                %163 = vst [vmem:[%s149 + $0x30] sm:$0xff] %v162
                %v164 = vld [vmem:[%s148 + $0x58] sm:$0xff]
                %165 = vst [vmem:[%s149 + $0x38] sm:$0xff] %v164
                %v166 = vld [vmem:[%s148 + $0x80] sm:$0xff]
                %167 = vst [vmem:[%s149 + $0x40] sm:$0xff] %v166
                %v168 = vld [vmem:[%s148 + $0x88] sm:$0xff]
                %169 = vst [vmem:[%s149 + $0x48] sm:$0xff] %v168
                %v170 = vld [vmem:[%s148 + $0x90] sm:$0xff]
                %171 = vst [vmem:[%s149 + $0x50] sm:$0xff] %v170
                %v172 = vld [vmem:[%s148 + $0x98] sm:$0xff]
                %173 = vst [vmem:[%s149 + $0x58] sm:$0xff] %v172
                %v174 = vld [vmem:[%s148 + $0xc0] sm:$0xff]
                %175 = vst [vmem:[%s149 + $0x60] sm:$0xff] %v174
                %v176 = vld [vmem:[%s148 + $0xc8] sm:$0xff]
                %177 = vst [vmem:[%s149 + $0x68] sm:$0xff] %v176
                %v178 = vld [vmem:[%s148 + $0xd0] sm:$0xff]
                %179 = vst [vmem:[%s149 + $0x70] sm:$0xff] %v178
                %v180 = vld [vmem:[%s148 + $0xd8] sm:$0xff]
                %181 = vst [vmem:[%s149 + $0x78] sm:$0xff] %v180
              $region41: #{model_forward.18} parent=35 // loop_footer
                %s147 = sadd.s32 1, %s143
              $region42: #{model_forward.18} parent=35 // loop_footer_branch
                %142 = sbr.rel target = $region38
              $region43: #{model_forward.18} parent=35 // loop_exit
                _
            $region36: #{model_forward.18} parent=31 // pred_fallthru
              _
            // Predicated region
            $region44: #{model_forward.18} parent=31 // pred_check
              _
            $region45: #{model_forward.18} parent=31 // pred_check_branch
              %183 = sbr.rel target = $region47
            $region46: #{model_forward.18} parent=31 // pred_region
              _
            $region47: #{model_forward.18} parent=31 // pred_fallthru
              _
          $region32: #{model_forward.18} parent=27 // pred_fallthru
            _
          %184 = vnop
        $region28: #{model_forward.18} parent=23 // pred_fallthru
          _
      $region24: #{model_forward.18} parent=5 // pred_fallthru
        _
      %p185 = scmp.le.s32.totalorder 1, %s9
      %p186 = scmp.lt.s32.totalorder %s9, 3
      %p187 = pnand %p185, %p186
      %p188 = pneg %p187
      // Predicated region
      $region48: #{model_forward.18} parent=5 // pred_check
        _
      $region49: #{model_forward.18} parent=5 // pred_check_branch
        %190 = sbr.rel (%p187) target = $region51
      $region50: #{model_forward.18} parent=5 // pred_region
        %s191 = ssub.s32 %s9, 1
        %s192 = sand.u32 %s64, 1
        %s193 = sand.u32 %s64, 1
        %s194 = smul.addr %s193, 128
        %s195 = scalar_lea.vmem [#allocation2], %s194
        // Predicated region
        $region52: #{model_forward.18} parent=50 // pred_check
          %p196 = pneg %p77
        $region53: #{model_forward.18} parent=50 // pred_check_branch
          %198 = sbr.rel (%p196) target = $region55
        $region54: #{model_forward.18} parent=50 // pred_region
          _
        $region55: #{model_forward.18} parent=50 // pred_fallthru
          _
        %p199 = pneg %p30
        %p200 = pneg %p27
        %p201 = pneg %p51
        %p202 = pneg %p48
        %s203 = sand.u32 %s64, 1
        %s204 = sand.u32 %s64, 1
        %s205 = smul.addr %s204, 128
        %s206 = scalar_lea.vmem [#allocation2], %s205
        %p207 = pneg %p77
        %p208 = pneg %p74
        %p209 = pneg %p103
        %p210 = pneg %p100
        %s211 = smul.u32 8, %s14
        %p212 = scmp.lt.s32.totalorder %s211, 15
        %s213 = scalar_select %p212, %s211, 15
        %s214 = smul.addr %s213, 4
        %s215 = scalar_lea.vmem %s3, %s214
        %s216 = smul.u32 8, %s14
        %s217 = smul.u32 8, %s14
        %p218 = scmp.lt.s32.totalorder %s217, 15
        %s219 = scalar_select %p218, %s217, 15
        %s220 = smul.addr %s219, 4
        %s221 = scalar_lea.vmem %s3, %s220
        %s222 = smul.u32 8, %s14
        %v224 = vld [vmem:[%s0] sm:$0xf]
        %v225 = vld [vmem:[%s195] sm:$0xff]
        %v226 = vld [vmem:[%s195 + $0x8] sm:$0xff]
        %v227 = vld [vmem:[%s195 + $0x10] sm:$0xff]
        %v228 = vld [vmem:[%s195 + $0x18] sm:$0xff]
        %v229 = vld [vmem:[%s195 + $0x20] sm:$0xff]
        %v230 = vld [vmem:[%s195 + $0x28] sm:$0xff]
        %v231 = vld [vmem:[%s195 + $0x30] sm:$0xff]
        %v232 = vld [vmem:[%s195 + $0x38] sm:$0xff]
        %v233 = vld [vmem:[%s195 + $0x40] sm:$0xff]
        %v234 = vld [vmem:[%s195 + $0x48] sm:$0xff]
        %v235 = vld [vmem:[%s195 + $0x50] sm:$0xff]
        %v236 = vld [vmem:[%s195 + $0x58] sm:$0xff]
        %v237 = vld [vmem:[%s195 + $0x60] sm:$0x33]
        %v238 = vld [vmem:[%s195 + $0x68] sm:$0x33]
        %v239 = vld [vmem:[%s195 + $0x70] sm:$0x33]
        %v240 = vld [vmem:[%s195 + $0x78] sm:$0x33]
        %v241 = vld [vmem:[%s1] sm:$0xff]
        %243 = vset.pattern.permute.xlu0 0
        %244 = vperm.xlu0 %243, %v241
        %v245 = vpop.permute.xlu0 %244
        %v263 = vunpack.c.l.b16 %v225
        %v264 = vunpack.c.h.b16 %v225
        %v265 = vunpack.c.l.b16 %v226
        %v266 = vunpack.c.h.b16 %v226
        %v267 = vunpack.c.l.b16 %v227
        %v268 = vunpack.c.h.b16 %v227
        %v269 = vunpack.c.l.b16 %v228
        %v270 = vunpack.c.h.b16 %v228
        %v271 = vunpack.c.l.b16 %v229
        %v272 = vunpack.c.h.b16 %v229
        %v273 = vunpack.c.l.b16 %v230
        %v274 = vunpack.c.h.b16 %v230
        %v275 = vunpack.c.l.b16 %v231
        %v276 = vunpack.c.h.b16 %v231
        %v277 = vunpack.c.l.b16 %v232
        %v278 = vunpack.c.h.b16 %v232
        %v279 = vunpack.c.l.b16 %v233
        %v280 = vunpack.c.h.b16 %v233
        %v281 = vunpack.c.l.b16 %v234
        %v282 = vunpack.c.h.b16 %v234
        %v283 = vunpack.c.l.b16 %v235
        %v284 = vunpack.c.h.b16 %v235
        %v285 = vunpack.c.l.b16 %v236
        %v286 = vunpack.c.h.b16 %v236
        %v287 = vunpack.c.l.b16 %v237
        %v288 = vunpack.c.h.b16 %v237
        %v289 = vunpack.c.l.b16 %v238
        %v290 = vunpack.c.h.b16 %v238
        %v291 = vunpack.c.l.b16 %v239
        %v292 = vunpack.c.h.b16 %v239
        %v293 = vunpack.c.l.b16 %v240
        %v294 = vunpack.c.h.b16 %v240
        %v295 = vpack.c.b16 %v271, %v263
        %v296 = vpack.c.b16 %v272, %v264
        %v297 = vpack.c.b16 %v273, %v265
        %v298 = vpack.c.b16 %v274, %v266
        %v299 = vpack.c.b16 %v275, %v267
        %v300 = vpack.c.b16 %v276, %v268
        %v301 = vpack.c.b16 %v277, %v269
        %v302 = vpack.c.b16 %v278, %v270
        %v303 = vpack.c.b16 %v287, %v279
        %v304 = vpack.c.b16 %v288, %v280
        %v305 = vpack.c.b16 %v289, %v281
        %v306 = vpack.c.b16 %v290, %v282
        %v307 = vpack.c.b16 %v291, %v283
        %v308 = vpack.c.b16 %v292, %v284
        %v309 = vpack.c.b16 %v293, %v285
        %v310 = vpack.c.b16 %v294, %v286
        %vm319 = vcmask 220160
        %v321 = vsel %vm319, %v224, 0
        %vm323 = vcmask 1044480
        %vm324 = vcmask 1045504
        %v325 = vsel %vm323, 4294967295, 65535
        %v326 = vsel %vm324, %v325, 0
        %v328 = vand.u32 %v303, %v326
        %v331 = vand.u32 %v304, %v326
        %v334 = vand.u32 %v305, %v326
        %v337 = vand.u32 %v306, %v326
        %v340 = vand.u32 %v307, %v326
        %v343 = vand.u32 %v308, %v326
        %v346 = vand.u32 %v309, %v326
        %v349 = vand.u32 %v310, %v326
        %351 = vmatprep.subr.bf16.mxu0 0
        %352 = vmatpush1.bf16.msra.mxu0 0
        %353 = vmatprep.subr.bf16.mxu0 0
        %354 = vmatpush1.bf16.msra.mxu0 0
        %355 = vmatprep.subr.bf16.mxu0 0
        %356 = vmatpush1.bf16.msra.mxu0 0
        %357 = vmatprep.subr.bf16.mxu0 0
        %358 = vmatpush1.bf16.msra.mxu0 0
        %359 = vmatprep.subr.bf16.mxu0 0
        %360 = vmatpush1.bf16.msra.mxu0 0
        %361 = vmatprep.subr.bf16.mxu0 0
        %362 = vmatpush1.bf16.msra.mxu0 0
        %363 = vmatprep.subr.bf16.mxu0 %v331
        %364 = vmatpush1.bf16.msra.mxu0 %v328
        %365 = vmatprep.subr.bf16.mxu0 %v296
        %366 = vmatpush1.bf16.msra.mxu0 %v295
        %367 = vmatprep.subr.bf16.mxu0 0
        %368 = vmatpush2.bf16.msra.mxu0 0
        %369 = vmatprep.subr.bf16.mxu0 0
        %370 = vmatpush2.bf16.msra.mxu0 0
        %371 = vmatprep.subr.bf16.mxu0 0
        %372 = vmatpush2.bf16.msra.mxu0 0
        %373 = vmatprep.subr.bf16.mxu0 0
        %374 = vmatpush2.bf16.msra.mxu0 0
        %375 = vmatprep.subr.bf16.mxu0 0
        %376 = vmatpush2.bf16.msra.mxu0 0
        %377 = vmatprep.subr.bf16.mxu0 0
        %378 = vmatpush2.bf16.msra.mxu0 0
        %379 = vmatprep.subr.bf16.mxu0 0
        %380 = vmatpush2.bf16.msra.mxu0 0
        %381 = vmatprep.subr.bf16.mxu0 0
        %382 = vmatpush2.bf16.msra.mxu0 0
        %383 = vmatprep.mubr.bf16.mxu0 0
        %384 = vmatmul.mubr.bf16.gmra.mxu0 %v321
        %v385 = vpop.f32.mrf.mxu0
        %v386 = vadd.f32 %v245, %v385
        %v387 = vpop.f32.mrf.mxu0
        %v388 = vadd.f32 %v245, %v387
        %v389 = vpop.f32.mrf.mxu0
        %v390 = vpop.f32.mrf.mxu0
        %391 = vdwg.mxu0
        %392 = vmatprep.subr.bf16.mxu0 0
        %393 = vmatpush1.bf16.msra.mxu0 0
        %394 = vmatprep.subr.bf16.mxu0 0
        %395 = vmatpush1.bf16.msra.mxu0 0
        %396 = vmatprep.subr.bf16.mxu0 0
        %397 = vmatpush1.bf16.msra.mxu0 0
        %398 = vmatprep.subr.bf16.mxu0 0
        %399 = vmatpush1.bf16.msra.mxu0 0
        %400 = vmatprep.subr.bf16.mxu0 0
        %401 = vmatpush1.bf16.msra.mxu0 0
        %402 = vmatprep.subr.bf16.mxu0 0
        %403 = vmatpush1.bf16.msra.mxu0 0
        %404 = vmatprep.subr.bf16.mxu0 %v337
        %405 = vmatpush1.bf16.msra.mxu0 %v334
        %406 = vmatprep.subr.bf16.mxu0 %v298
        %407 = vmatpush1.bf16.msra.mxu0 %v297
        %408 = vmatprep.subr.bf16.mxu0 0
        %409 = vmatpush2.bf16.msra.mxu0 0
        %410 = vmatprep.subr.bf16.mxu0 0
        %411 = vmatpush2.bf16.msra.mxu0 0
        %412 = vmatprep.subr.bf16.mxu0 0
        %413 = vmatpush2.bf16.msra.mxu0 0
        %414 = vmatprep.subr.bf16.mxu0 0
        %415 = vmatpush2.bf16.msra.mxu0 0
        %416 = vmatprep.subr.bf16.mxu0 0
        %417 = vmatpush2.bf16.msra.mxu0 0
        %418 = vmatprep.subr.bf16.mxu0 0
        %419 = vmatpush2.bf16.msra.mxu0 0
        %420 = vmatprep.subr.bf16.mxu0 0
        %421 = vmatpush2.bf16.msra.mxu0 0
        %422 = vmatprep.subr.bf16.mxu0 0
        %423 = vmatpush2.bf16.msra.mxu0 0
        %424 = vmatprep.mubr.bf16.mxu0 0
        %425 = vmatmul.mubr.bf16.gmra.mxu0 %v321
        %v426 = vpop.f32.mrf.mxu0
        %v427 = vadd.f32 %v245, %v426
        %v428 = vpop.f32.mrf.mxu0
        %v429 = vadd.f32 %v245, %v428
        %v430 = vpop.f32.mrf.mxu0
        %v431 = vpop.f32.mrf.mxu0
        %432 = vdwg.mxu0
        %433 = vmatprep.subr.bf16.mxu0 0
        %434 = vmatpush1.bf16.msra.mxu0 0
        %435 = vmatprep.subr.bf16.mxu0 0
        %436 = vmatpush1.bf16.msra.mxu0 0
        %437 = vmatprep.subr.bf16.mxu0 0
        %438 = vmatpush1.bf16.msra.mxu0 0
        %439 = vmatprep.subr.bf16.mxu0 0
        %440 = vmatpush1.bf16.msra.mxu0 0
        %441 = vmatprep.subr.bf16.mxu0 0
        %442 = vmatpush1.bf16.msra.mxu0 0
        %443 = vmatprep.subr.bf16.mxu0 0
        %444 = vmatpush1.bf16.msra.mxu0 0
        %445 = vmatprep.subr.bf16.mxu0 %v343
        %446 = vmatpush1.bf16.msra.mxu0 %v340
        %447 = vmatprep.subr.bf16.mxu0 %v300
        %448 = vmatpush1.bf16.msra.mxu0 %v299
        %449 = vmatprep.subr.bf16.mxu0 0
        %450 = vmatpush2.bf16.msra.mxu0 0
        %451 = vmatprep.subr.bf16.mxu0 0
        %452 = vmatpush2.bf16.msra.mxu0 0
        %453 = vmatprep.subr.bf16.mxu0 0
        %454 = vmatpush2.bf16.msra.mxu0 0
        %455 = vmatprep.subr.bf16.mxu0 0
        %456 = vmatpush2.bf16.msra.mxu0 0
        %457 = vmatprep.subr.bf16.mxu0 0
        %458 = vmatpush2.bf16.msra.mxu0 0
        %459 = vmatprep.subr.bf16.mxu0 0
        %460 = vmatpush2.bf16.msra.mxu0 0
        %461 = vmatprep.subr.bf16.mxu0 0
        %462 = vmatpush2.bf16.msra.mxu0 0
        %463 = vmatprep.subr.bf16.mxu0 0
        %464 = vmatpush2.bf16.msra.mxu0 0
        %465 = vmatprep.mubr.bf16.mxu0 0
        %466 = vmatmul.mubr.bf16.gmra.mxu0 %v321
        %v467 = vpop.f32.mrf.mxu0
        %v468 = vadd.f32 %v245, %v467
        %v469 = vpop.f32.mrf.mxu0
        %v470 = vadd.f32 %v245, %v469
        %v471 = vpop.f32.mrf.mxu0
        %v472 = vpop.f32.mrf.mxu0
        %473 = vdwg.mxu0
        %474 = vmatprep.subr.bf16.mxu0 0
        %475 = vmatpush1.bf16.msra.mxu0 0
        %476 = vmatprep.subr.bf16.mxu0 0
        %477 = vmatpush1.bf16.msra.mxu0 0
        %478 = vmatprep.subr.bf16.mxu0 0
        %479 = vmatpush1.bf16.msra.mxu0 0
        %480 = vmatprep.subr.bf16.mxu0 0
        %481 = vmatpush1.bf16.msra.mxu0 0
        %482 = vmatprep.subr.bf16.mxu0 0
        %483 = vmatpush1.bf16.msra.mxu0 0
        %484 = vmatprep.subr.bf16.mxu0 0
        %485 = vmatpush1.bf16.msra.mxu0 0
        %486 = vmatprep.subr.bf16.mxu0 %v349
        %487 = vmatpush1.bf16.msra.mxu0 %v346
        %488 = vmatprep.subr.bf16.mxu0 %v302
        %489 = vmatpush1.bf16.msra.mxu0 %v301
        %490 = vmatprep.subr.bf16.mxu0 0
        %491 = vmatpush2.bf16.msra.mxu0 0
        %492 = vmatprep.subr.bf16.mxu0 0
        %493 = vmatpush2.bf16.msra.mxu0 0
        %494 = vmatprep.subr.bf16.mxu0 0
        %495 = vmatpush2.bf16.msra.mxu0 0
        %496 = vmatprep.subr.bf16.mxu0 0
        %497 = vmatpush2.bf16.msra.mxu0 0
        %498 = vmatprep.subr.bf16.mxu0 0
        %499 = vmatpush2.bf16.msra.mxu0 0
        %500 = vmatprep.subr.bf16.mxu0 0
        %501 = vmatpush2.bf16.msra.mxu0 0
        %502 = vmatprep.subr.bf16.mxu0 0
        %503 = vmatpush2.bf16.msra.mxu0 0
        %504 = vmatprep.subr.bf16.mxu0 0
        %505 = vmatpush2.bf16.msra.mxu0 0
        %506 = vmatprep.mubr.bf16.mxu0 0
        %507 = vmatmul.mubr.bf16.gmra.mxu0 %v321
        %v508 = vpop.f32.mrf.mxu0
        %v509 = vadd.f32 %v245, %v508
        %v510 = vpop.f32.mrf.mxu0
        %v511 = vadd.f32 %v245, %v510
        %v512 = vpop.f32.mrf.mxu0
        %v513 = vpop.f32.mrf.mxu0
        %514 = vdwg.mxu0
        %v515 = vxor.u32 %v386, 2147483648
        %v516 = vxor.u32 %v388, 2147483648
        %v517 = vxor.u32 %v427, 2147483648
        %v518 = vxor.u32 %v429, 2147483648
        %v519 = vxor.u32 %v468, 2147483648
        %v520 = vxor.u32 %v470, 2147483648
        %v521 = vxor.u32 %v509, 2147483648
        %v522 = vxor.u32 %v511, 2147483648
        %v523 = vmul.f32 %v515, 1.442695
        %v524 = vpow.pop %v523
        %v525 = vmul.f32 %v516, 1.442695
        %v526 = vpow.pop %v525
        %v527 = vmul.f32 %v517, 1.442695
        %v528 = vpow.pop %v527
        %v529 = vmul.f32 %v518, 1.442695
        %v530 = vpow.pop %v529
        %v531 = vmul.f32 %v519, 1.442695
        %v532 = vpow.pop %v531
        %v533 = vmul.f32 %v520, 1.442695
        %v534 = vpow.pop %v533
        %v535 = vmul.f32 %v521, 1.442695
        %v536 = vpow.pop %v535
        %v537 = vmul.f32 %v522, 1.442695
        %v538 = vpow.pop %v537
        %v539 = vadd.f32 %v524, 1.0
        %v540 = vadd.f32 %v526, 1.0
        %v541 = vadd.f32 %v528, 1.0
        %v542 = vadd.f32 %v530, 1.0
        %v543 = vadd.f32 %v532, 1.0
        %v544 = vadd.f32 %v534, 1.0
        %v545 = vadd.f32 %v536, 1.0
        %v546 = vadd.f32 %v538, 1.0
        %v547 = vrcp.pop %v539
        %v548 = vmul.f32 1.0, %v547
        %v549 = vrcp.pop %v540
        %v550 = vmul.f32 1.0, %v549
        %v551 = vrcp.pop %v541
        %v552 = vmul.f32 1.0, %v551
        %v553 = vrcp.pop %v542
        %v554 = vmul.f32 1.0, %v553
        %v555 = vrcp.pop %v543
        %v556 = vmul.f32 1.0, %v555
        %v557 = vrcp.pop %v544
        %v558 = vmul.f32 1.0, %v557
        %v559 = vrcp.pop %v545
        %v560 = vmul.f32 1.0, %v559
        %v561 = vrcp.pop %v546
        %v562 = vmul.f32 1.0, %v561
        %v563 = vmul.f32 %v386, %v548
        %v564 = vmul.f32 %v388, %v550
        %v565 = vmul.f32 %v427, %v552
        %v566 = vmul.f32 %v429, %v554
        %v567 = vmul.f32 %v468, %v556
        %v568 = vmul.f32 %v470, %v558
        %v569 = vmul.f32 %v509, %v560
        %v570 = vmul.f32 %v511, %v562
        %v571 = vpack.c.bf16 %v563, %v563
        %v572 = vpack.c.bf16 %v564, %v564
        %v573 = vpack.c.bf16 %v565, %v565
        %v574 = vpack.c.bf16 %v566, %v566
        %v575 = vpack.c.bf16 %v567, %v567
        %v576 = vpack.c.bf16 %v568, %v568
        %v577 = vpack.c.bf16 %v569, %v569
        %v578 = vpack.c.bf16 %v570, %v570
        %v587 = vunpack.c.l.b16 %v571
        %v588 = vunpack.c.l.b16 %v572
        %v589 = vunpack.c.l.b16 %v573
        %v590 = vunpack.c.l.b16 %v574
        %v591 = vunpack.c.l.b16 %v575
        %v592 = vunpack.c.l.b16 %v576
        %v593 = vunpack.c.l.b16 %v577
        %v594 = vunpack.c.l.b16 %v578
        %v595 = vpack.c.b16 %v588, %v587
        %v596 = vpack.c.b16 %v590, %v589
        %v597 = vpack.c.b16 %v592, %v591
        %v598 = vpack.c.b16 %v594, %v593
        %603 = vst [vmem:[%s221] sm:$0xff] %v595
        %604 = vst [vmem:[%s221 + $0x8] sm:$0xff] %v596
        %605 = vst [vmem:[%s221 + $0x10] sm:$0xff] %v597
        %606 = vst [vmem:[%s221 + $0x18] sm:$0xff] %v598
        %s607 = smul.u32 8, %s14
        %p608 = scmp.lt.s32.totalorder %s607, 15
        %s609 = scalar_select %p608, %s607, 15
        %s610 = smul.addr %s609, 4
        %s611 = scalar_lea.vmem %s3, %s610
        // Predicated region
        $region56: #{model_forward.18} parent=50 // pred_check
          %p612 = pneg %p100
        $region57: #{model_forward.18} parent=50 // pred_check_branch
          %614 = sbr.rel (%p612) target = $region59
        $region58: #{model_forward.18} parent=50 // pred_region
          %s615 = smul.u32 8, %s14
        $region59: #{model_forward.18} parent=50 // pred_fallthru
          _
      $region51: #{model_forward.18} parent=5 // pred_fallthru
        _
      %p616 = scmp.le.s32.totalorder 2, %s9
      // Predicated region
      $region60: #{model_forward.18} parent=5 // pred_check
        %p617 = pneg %p616
      $region61: #{model_forward.18} parent=5 // pred_check_branch
        %619 = sbr.rel (%p617) target = $region63
      $region62: #{model_forward.18} parent=5 // pred_region
        %s620 = ssub.s32 %s9, 2
        // Predicated region
        $region64: #{model_forward.18} parent=62 // pred_check
          %p621 = pneg %p106
        $region65: #{model_forward.18} parent=62 // pred_check_branch
          %623 = sbr.rel (%p621) target = $region67
        $region66: #{model_forward.18} parent=62 // pred_region
          %s624 = smul.u32 8, %s15
          %p625 = scmp.lt.s32.totalorder %s624, 15
          %s626 = scalar_select %p625, %s624, 15
          %s627 = smul.addr %s626, 4
          %s628 = scalar_lea.vmem %s3, %s627
        $region67: #{model_forward.18} parent=62 // pred_fallthru
          _
      $region63: #{model_forward.18} parent=5 // pred_fallthru
        _
    $region6: #{model_forward.18} parent=1 // loop_footer
      %s13 = sadd.s32 1, %s9
    $region7: #{model_forward.18} parent=1 // loop_footer_branch
      %8 = sbr.rel target = $region3
    $region8: #{model_forward.18} parent=1 // loop_exit
      _

// kernel: model_forward.19
$region0: #{model_forward.19}
  #allocation0 [shape = 'u32[]', space=smem, size = 0x4, offset = 0x4, fixed_abs, tag = 'smem constant byte address 0x4 - core index']
  #allocation1 [shape = 'u32[144,128]{1,0:T(1,128)}', space=vmem, size = 0x12000, scoped, tag = 'internal scratch']
  %s0 = inlined_call_operand.vmem [shape: bf16[16,72], index: 0, kind: input, shape index: {}]
  %s1 = inlined_call_operand.vmem [shape: f32[16,1], index: 1, kind: input, shape index: {}]
  %s2 = inlined_call_operand.vmem [shape: bf16[72,512], index: 2, kind: input, shape index: {}]
  %s3 = inlined_call_operand.vmem [shape: bf16[16,512], index: 3, kind: output, shape index: {}]
  %s4 = sld [smem:[#allocation0]]
  $region22: #{model_forward.19} parent=0
    _
  %s6 = ssub.s32 1, %s4
  %s7 = scalar_select 0, %s6, %s4
  // Predicated region
  $region2: #{model_forward.19} parent=0 // pred_check
    _
  $region3: #{model_forward.19} parent=0 // pred_check_branch
    %9 = sbr.rel (0) target = $region5
  $region4: #{model_forward.19} parent=0 // pred_region
    _
  $region5: #{model_forward.19} parent=0 // pred_fallthru
    _
  // Predicated region
  $region6: #{model_forward.19} parent=0 // pred_check
    _
  $region7: #{model_forward.19} parent=0 // pred_check_branch
    %11 = sbr.rel (0) target = $region9
  $region8: #{model_forward.19} parent=0 // pred_region
    _
  $region9: #{model_forward.19} parent=0 // pred_fallthru
    _
  // Predicated region
  $region10: #{model_forward.19} parent=0 // pred_check
    _
  $region11: #{model_forward.19} parent=0 // pred_check_branch
    %13 = sbr.rel (0) target = $region13
  $region12: #{model_forward.19} parent=0 // pred_region
    _
  $region13: #{model_forward.19} parent=0 // pred_fallthru
    _
  %v15 = vld [vmem:[%s0] sm:$0xf]
  %v16 = vld [vmem:[%s0 + $0x4] sm:$0xf]
  %v17 = vld [vmem:[%s2] sm:$0xff]
  %v18 = vld [vmem:[%s2 + $0x8] sm:$0xff]
  %v19 = vld [vmem:[%s2 + $0x10] sm:$0xff]
  %v20 = vld [vmem:[%s2 + $0x18] sm:$0xff]
  %v21 = vld [vmem:[%s2 + $0x20] sm:$0xff]
  %v22 = vld [vmem:[%s2 + $0x28] sm:$0xff]
  %v23 = vld [vmem:[%s2 + $0x30] sm:$0xff]
  %v24 = vld [vmem:[%s2 + $0x38] sm:$0xff]
  %v25 = vld [vmem:[%s2 + $0x40] sm:$0xff]
  %v26 = vld [vmem:[%s2 + $0x48] sm:$0xff]
  %v27 = vld [vmem:[%s2 + $0x50] sm:$0xff]
  %v28 = vld [vmem:[%s2 + $0x58] sm:$0xff]
  %v29 = vld [vmem:[%s2 + $0x60] sm:$0xff]
  %v30 = vld [vmem:[%s2 + $0x68] sm:$0xff]
  %v31 = vld [vmem:[%s2 + $0x70] sm:$0xff]
  %v32 = vld [vmem:[%s2 + $0x78] sm:$0xff]
  %v33 = vld [vmem:[%s2 + $0x80] sm:$0xff]
  %v34 = vld [vmem:[%s2 + $0x88] sm:$0xff]
  %v35 = vld [vmem:[%s1] sm:$0xff]
  %v36 = vld [vmem:[%s1 + $0x8] sm:$0xff]
  %38 = vset.pattern.permute.xlu0 0
  %39 = vperm.xlu0 %38, %v35
  %v40 = vpop.permute.xlu0 %39
  %43 = vset.pattern.permute.xlu0 0
  %44 = vperm.xlu0 %43, %v36
  %v45 = vpop.permute.xlu0 %44
  %v49 = vunpack.c.l.b16 %v15
  %v50 = vunpack.c.l.b16 %v16
  %v51 = vpack.c.b16 %v50, %v49
  %v70 = vunpack.c.l.b16 %v17
  %v71 = vunpack.c.h.b16 %v17
  %v72 = vunpack.c.l.b16 %v18
  %v73 = vunpack.c.h.b16 %v18
  %v74 = vunpack.c.l.b16 %v19
  %v75 = vunpack.c.h.b16 %v19
  %v76 = vunpack.c.l.b16 %v20
  %v77 = vunpack.c.h.b16 %v20
  %v78 = vunpack.c.l.b16 %v21
  %v79 = vunpack.c.h.b16 %v21
  %v80 = vunpack.c.l.b16 %v22
  %v81 = vunpack.c.h.b16 %v22
  %v82 = vunpack.c.l.b16 %v23
  %v83 = vunpack.c.h.b16 %v23
  %v84 = vunpack.c.l.b16 %v24
  %v85 = vunpack.c.h.b16 %v24
  %v86 = vunpack.c.l.b16 %v25
  %v87 = vunpack.c.h.b16 %v25
  %v88 = vunpack.c.l.b16 %v26
  %v89 = vunpack.c.h.b16 %v26
  %v90 = vunpack.c.l.b16 %v27
  %v91 = vunpack.c.h.b16 %v27
  %v92 = vunpack.c.l.b16 %v28
  %v93 = vunpack.c.h.b16 %v28
  %v94 = vunpack.c.l.b16 %v29
  %v95 = vunpack.c.h.b16 %v29
  %v96 = vunpack.c.l.b16 %v30
  %v97 = vunpack.c.h.b16 %v30
  %v98 = vunpack.c.l.b16 %v31
  %v99 = vunpack.c.h.b16 %v31
  %v100 = vunpack.c.l.b16 %v32
  %v101 = vunpack.c.h.b16 %v32
  %v102 = vunpack.c.l.b16 %v33
  %v103 = vunpack.c.h.b16 %v33
  %v104 = vunpack.c.l.b16 %v34
  %v105 = vunpack.c.h.b16 %v34
  %v106 = vpack.c.b16 %v74, %v70
  %v107 = vpack.c.b16 %v75, %v71
  %v108 = vpack.c.b16 %v76, %v72
  %v109 = vpack.c.b16 %v77, %v73
  %v110 = vpack.c.b16 %v82, %v78
  %v111 = vpack.c.b16 %v83, %v79
  %v112 = vpack.c.b16 %v84, %v80
  %v113 = vpack.c.b16 %v85, %v81
  %v114 = vpack.c.b16 %v90, %v86
  %v115 = vpack.c.b16 %v91, %v87
  %v116 = vpack.c.b16 %v92, %v88
  %v117 = vpack.c.b16 %v93, %v89
  %v118 = vpack.c.b16 %v98, %v94
  %v119 = vpack.c.b16 %v99, %v95
  %v120 = vpack.c.b16 %v100, %v96
  %v121 = vpack.c.b16 %v101, %v97
  %v122 = vpack.c.b16 %v102, %v102
  %v123 = vpack.c.b16 %v103, %v103
  %v124 = vpack.c.b16 %v104, %v104
  %v125 = vpack.c.b16 %v105, %v105
  %vm142 = vcmask 588800
  %v144 = vsel %vm142, %v51, 0
  %vm146 = vcmask 1043456
  %v148 = vsel %vm146, %v122, 0
  %v151 = vsel %vm146, %v123, 0
  %v154 = vsel %vm146, %v124, 0
  %v157 = vsel %vm146, %v125, 0
  %159 = vmatprep.subr.bf16.mxu0 0
  %160 = vmatpush1.bf16.msra.mxu0 0
  %161 = vmatprep.subr.bf16.mxu0 0
  %162 = vmatpush1.bf16.msra.mxu0 0
  %163 = vmatprep.subr.bf16.mxu0 0
  %164 = vmatpush1.bf16.msra.mxu0 0
  %165 = vmatprep.subr.bf16.mxu0 %v151
  %166 = vmatpush1.bf16.msra.mxu0 %v148
  %167 = vmatprep.subr.bf16.mxu0 %v119
  %168 = vmatpush1.bf16.msra.mxu0 %v118
  %169 = vmatprep.subr.bf16.mxu0 %v115
  %170 = vmatpush1.bf16.msra.mxu0 %v114
  %171 = vmatprep.subr.bf16.mxu0 %v111
  %172 = vmatpush1.bf16.msra.mxu0 %v110
  %173 = vmatprep.subr.bf16.mxu0 %v107
  %174 = vmatpush1.bf16.msra.mxu0 %v106
  %175 = vmatprep.subr.bf16.mxu0 0
  %176 = vmatpush2.bf16.msra.mxu0 0
  %177 = vmatprep.subr.bf16.mxu0 0
  %178 = vmatpush2.bf16.msra.mxu0 0
  %179 = vmatprep.subr.bf16.mxu0 0
  %180 = vmatpush2.bf16.msra.mxu0 0
  %181 = vmatprep.subr.bf16.mxu0 0
  %182 = vmatpush2.bf16.msra.mxu0 0
  %183 = vmatprep.subr.bf16.mxu0 0
  %184 = vmatpush2.bf16.msra.mxu0 0
  %185 = vmatprep.subr.bf16.mxu0 0
  %186 = vmatpush2.bf16.msra.mxu0 0
  %187 = vmatprep.subr.bf16.mxu0 0
  %188 = vmatpush2.bf16.msra.mxu0 0
  %189 = vmatprep.subr.bf16.mxu0 0
  %190 = vmatpush2.bf16.msra.mxu0 0
  %191 = vmatprep.mubr.bf16.mxu0 0
  %192 = vmatmul.mubr.bf16.gmra.mxu0 %v144
  %v193 = vpop.f32.mrf.mxu0
  %v194 = vadd.f32 %v40, %v193
  %v195 = vpop.f32.mrf.mxu0
  %v196 = vadd.f32 %v40, %v195
  %v197 = vpop.f32.mrf.mxu0
  %v198 = vadd.f32 %v45, %v197
  %v199 = vpop.f32.mrf.mxu0
  %v200 = vadd.f32 %v45, %v199
  %201 = vdwg.mxu0
  %202 = vmatprep.subr.bf16.mxu0 0
  %203 = vmatpush1.bf16.msra.mxu0 0
  %204 = vmatprep.subr.bf16.mxu0 0
  %205 = vmatpush1.bf16.msra.mxu0 0
  %206 = vmatprep.subr.bf16.mxu0 0
  %207 = vmatpush1.bf16.msra.mxu0 0
  %208 = vmatprep.subr.bf16.mxu0 %v157
  %209 = vmatpush1.bf16.msra.mxu0 %v154
  %210 = vmatprep.subr.bf16.mxu0 %v121
  %211 = vmatpush1.bf16.msra.mxu0 %v120
  %212 = vmatprep.subr.bf16.mxu0 %v117
  %213 = vmatpush1.bf16.msra.mxu0 %v116
  %214 = vmatprep.subr.bf16.mxu0 %v113
  %215 = vmatpush1.bf16.msra.mxu0 %v112
  %216 = vmatprep.subr.bf16.mxu0 %v109
  %217 = vmatpush1.bf16.msra.mxu0 %v108
  %218 = vmatprep.subr.bf16.mxu0 0
  %219 = vmatpush2.bf16.msra.mxu0 0
  %220 = vmatprep.subr.bf16.mxu0 0
  %221 = vmatpush2.bf16.msra.mxu0 0
  %222 = vmatprep.subr.bf16.mxu0 0
  %223 = vmatpush2.bf16.msra.mxu0 0
  %224 = vmatprep.subr.bf16.mxu0 0
  %225 = vmatpush2.bf16.msra.mxu0 0
  %226 = vmatprep.subr.bf16.mxu0 0
  %227 = vmatpush2.bf16.msra.mxu0 0
  %228 = vmatprep.subr.bf16.mxu0 0
  %229 = vmatpush2.bf16.msra.mxu0 0
  %230 = vmatprep.subr.bf16.mxu0 0
  %231 = vmatpush2.bf16.msra.mxu0 0
  %232 = vmatprep.subr.bf16.mxu0 0
  %233 = vmatpush2.bf16.msra.mxu0 0
  %234 = vmatprep.mubr.bf16.mxu0 0
  %235 = vmatmul.mubr.bf16.gmra.mxu0 %v144
  %v236 = vpop.f32.mrf.mxu0
  %v237 = vadd.f32 %v40, %v236
  %v238 = vpop.f32.mrf.mxu0
  %v239 = vadd.f32 %v40, %v238
  %v240 = vpop.f32.mrf.mxu0
  %v241 = vadd.f32 %v45, %v240
  %v242 = vpop.f32.mrf.mxu0
  %v243 = vadd.f32 %v45, %v242
  %244 = vdwg.mxu0
  %v245 = vxor.u32 %v194, 2147483648
  %v246 = vxor.u32 %v196, 2147483648
  %v247 = vxor.u32 %v237, 2147483648
  %v248 = vxor.u32 %v239, 2147483648
  %v249 = vxor.u32 %v198, 2147483648
  %v250 = vxor.u32 %v200, 2147483648
  %v251 = vxor.u32 %v241, 2147483648
  %v252 = vxor.u32 %v243, 2147483648
  %v253 = vmul.f32 %v245, 1.442695
  %v254 = vpow.pop %v253
  %v255 = vmul.f32 %v246, 1.442695
  %v256 = vpow.pop %v255
  %v257 = vmul.f32 %v247, 1.442695
  %v258 = vpow.pop %v257
  %v259 = vmul.f32 %v248, 1.442695
  %v260 = vpow.pop %v259
  %v261 = vmul.f32 %v249, 1.442695
  %v262 = vpow.pop %v261
  %v263 = vmul.f32 %v250, 1.442695
  %v264 = vpow.pop %v263
  %v265 = vmul.f32 %v251, 1.442695
  %v266 = vpow.pop %v265
  %v267 = vmul.f32 %v252, 1.442695
  %v268 = vpow.pop %v267
  %v269 = vadd.f32 %v254, 1.0
  %v270 = vadd.f32 %v256, 1.0
  %v271 = vadd.f32 %v258, 1.0
  %v272 = vadd.f32 %v260, 1.0
  %v273 = vadd.f32 %v262, 1.0
  %v274 = vadd.f32 %v264, 1.0
  %v275 = vadd.f32 %v266, 1.0
  %v276 = vadd.f32 %v268, 1.0
  %v277 = vrcp.pop %v269
  %v278 = vmul.f32 1.0, %v277
  %v279 = vrcp.pop %v270
  %v280 = vmul.f32 1.0, %v279
  %v281 = vrcp.pop %v271
  %v282 = vmul.f32 1.0, %v281
  %v283 = vrcp.pop %v272
  %v284 = vmul.f32 1.0, %v283
  %v285 = vrcp.pop %v273
  %v286 = vmul.f32 1.0, %v285
  %v287 = vrcp.pop %v274
  %v288 = vmul.f32 1.0, %v287
  %v289 = vrcp.pop %v275
  %v290 = vmul.f32 1.0, %v289
  %v291 = vrcp.pop %v276
  %v292 = vmul.f32 1.0, %v291
  %v293 = vmul.f32 %v194, %v278
  %v294 = vmul.f32 %v196, %v280
  %v295 = vmul.f32 %v237, %v282
  %v296 = vmul.f32 %v239, %v284
  %v297 = vmul.f32 %v198, %v286
  %v298 = vmul.f32 %v200, %v288
  %v299 = vmul.f32 %v241, %v290
  %v300 = vmul.f32 %v243, %v292
  %v301 = vpack.c.bf16 %v297, %v293
  %v302 = vpack.c.bf16 %v298, %v294
  %v303 = vpack.c.bf16 %v299, %v295
  %v304 = vpack.c.bf16 %v300, %v296
  %v309 = vunpack.c.l.b16 %v301
  %v310 = vunpack.c.l.b16 %v302
  %v311 = vunpack.c.l.b16 %v303
  %v312 = vunpack.c.l.b16 %v304
  %v313 = vunpack.c.h.b16 %v301
  %v314 = vunpack.c.h.b16 %v302
  %v315 = vunpack.c.h.b16 %v303
  %v316 = vunpack.c.h.b16 %v304
  %v317 = vpack.c.b16 %v310, %v309
  %v318 = vpack.c.b16 %v312, %v311
  %v319 = vpack.c.b16 %v314, %v313
  %v320 = vpack.c.b16 %v316, %v315
  %325 = vst [vmem:[%s3] sm:$0xff] %v317
  %326 = vst [vmem:[%s3 + $0x8] sm:$0xff] %v318
  %327 = vst [vmem:[%s3 + $0x10] sm:$0xff] %v319
  %328 = vst [vmem:[%s3 + $0x18] sm:$0xff] %v320
  // Predicated region
  $region14: #{model_forward.19} parent=0 // pred_check
    _
  $region15: #{model_forward.19} parent=0 // pred_check_branch
    %330 = sbr.rel (0) target = $region17
  $region16: #{model_forward.19} parent=0 // pred_region
    _
  $region17: #{model_forward.19} parent=0 // pred_fallthru
    _
  // Predicated region
  $region18: #{model_forward.19} parent=0 // pred_check
    _
  $region19: #{model_forward.19} parent=0 // pred_check_branch
    %332 = sbr.rel (0) target = $region21
  $region20: #{model_forward.19} parent=0 // pred_region
    _
  $region21: #{model_forward.19} parent=0 // pred_fallthru
    _

// kernel: model_forward.20
$region0: #{model_forward.20}
  #allocation0 [shape = 'u32[]', space=smem, size = 0x4, offset = 0x4, fixed_abs, tag = 'smem constant byte address 0x4 - core index']
  #allocation1 [shape = 'u32[144,128]{1,0:T(1,128)}', space=vmem, size = 0x12000, scoped, tag = 'internal scratch']
  %s0 = inlined_call_operand.vmem [shape: bf16[16,144], index: 0, kind: input, shape index: {}]
  %s1 = inlined_call_operand.vmem [shape: f32[16,1], index: 1, kind: input, shape index: {}]
  %s2 = inlined_call_operand.vmem [shape: bf16[144,512], index: 2, kind: input, shape index: {}]
  %s3 = inlined_call_operand.vmem [shape: bf16[16,512], index: 3, kind: output, shape index: {}]
  %s4 = sld [smem:[#allocation0]]
  $region22: #{model_forward.20} parent=0
    _
  %s6 = ssub.s32 1, %s4
  %s7 = scalar_select 0, %s6, %s4
  // Predicated region
  $region2: #{model_forward.20} parent=0 // pred_check
    _
  $region3: #{model_forward.20} parent=0 // pred_check_branch
    %9 = sbr.rel (0) target = $region5
  $region4: #{model_forward.20} parent=0 // pred_region
    _
  $region5: #{model_forward.20} parent=0 // pred_fallthru
    _
  // Predicated region
  $region6: #{model_forward.20} parent=0 // pred_check
    _
  $region7: #{model_forward.20} parent=0 // pred_check_branch
    %11 = sbr.rel (0) target = $region9
  $region8: #{model_forward.20} parent=0 // pred_region
    _
  $region9: #{model_forward.20} parent=0 // pred_fallthru
    _
  // Predicated region
  $region10: #{model_forward.20} parent=0 // pred_check
    _
  $region11: #{model_forward.20} parent=0 // pred_check_branch
    %13 = sbr.rel (0) target = $region13
  $region12: #{model_forward.20} parent=0 // pred_region
    _
  $region13: #{model_forward.20} parent=0 // pred_fallthru
    _
  %v15 = vld [vmem:[%s0] sm:$0xff]
  %v16 = vld [vmem:[%s0 + $0x8] sm:$0xff]
  %v17 = vld [vmem:[%s2] sm:$0xff]
  %v18 = vld [vmem:[%s2 + $0x8] sm:$0xff]
  %v19 = vld [vmem:[%s2 + $0x10] sm:$0xff]
  %v20 = vld [vmem:[%s2 + $0x18] sm:$0xff]
  %v21 = vld [vmem:[%s2 + $0x20] sm:$0xff]
  %v22 = vld [vmem:[%s2 + $0x28] sm:$0xff]
  %v23 = vld [vmem:[%s2 + $0x30] sm:$0xff]
  %v24 = vld [vmem:[%s2 + $0x38] sm:$0xff]
  %v25 = vld [vmem:[%s2 + $0x40] sm:$0xff]
  %v26 = vld [vmem:[%s2 + $0x48] sm:$0xff]
  %v27 = vld [vmem:[%s2 + $0x50] sm:$0xff]
  %v28 = vld [vmem:[%s2 + $0x58] sm:$0xff]
  %v29 = vld [vmem:[%s2 + $0x60] sm:$0xff]
  %v30 = vld [vmem:[%s2 + $0x68] sm:$0xff]
  %v31 = vld [vmem:[%s2 + $0x70] sm:$0xff]
  %v32 = vld [vmem:[%s2 + $0x78] sm:$0xff]
  %v33 = vld [vmem:[%s2 + $0x80] sm:$0xff]
  %v34 = vld [vmem:[%s2 + $0x88] sm:$0xff]
  %v35 = vld [vmem:[%s2 + $0x90] sm:$0xff]
  %v36 = vld [vmem:[%s2 + $0x98] sm:$0xff]
  %v37 = vld [vmem:[%s2 + $0xa0] sm:$0xff]
  %v38 = vld [vmem:[%s2 + $0xa8] sm:$0xff]
  %v39 = vld [vmem:[%s2 + $0xb0] sm:$0xff]
  %v40 = vld [vmem:[%s2 + $0xb8] sm:$0xff]
  %v41 = vld [vmem:[%s2 + $0xc0] sm:$0xff]
  %v42 = vld [vmem:[%s2 + $0xc8] sm:$0xff]
  %v43 = vld [vmem:[%s2 + $0xd0] sm:$0xff]
  %v44 = vld [vmem:[%s2 + $0xd8] sm:$0xff]
  %v45 = vld [vmem:[%s2 + $0xe0] sm:$0xff]
  %v46 = vld [vmem:[%s2 + $0xe8] sm:$0xff]
  %v47 = vld [vmem:[%s2 + $0xf0] sm:$0xff]
  %v48 = vld [vmem:[%s2 + $0xf8] sm:$0xff]
  %v49 = vld [vmem:[%s2 + $0x100] sm:$0xff]
  %v50 = vld [vmem:[%s2 + $0x108] sm:$0xff]
  %v51 = vld [vmem:[%s2 + $0x110] sm:$0xff]
  %v52 = vld [vmem:[%s2 + $0x118] sm:$0xff]
  %v53 = vld [vmem:[%s1] sm:$0xff]
  %v54 = vld [vmem:[%s1 + $0x8] sm:$0xff]
  %56 = vset.pattern.permute.xlu0 0
  %57 = vperm.xlu0 %56, %v53
  %v58 = vpop.permute.xlu0 %57
  %61 = vset.pattern.permute.xlu0 0
  %62 = vperm.xlu0 %61, %v54
  %v63 = vpop.permute.xlu0 %62
  %v67 = vunpack.c.l.b16 %v15
  %v68 = vunpack.c.h.b16 %v15
  %v69 = vunpack.c.l.b16 %v16
  %v70 = vunpack.c.h.b16 %v16
  %v71 = vpack.c.b16 %v69, %v67
  %v72 = vpack.c.b16 %v70, %v68
  %v110 = vunpack.c.l.b16 %v17
  %v111 = vunpack.c.h.b16 %v17
  %v112 = vunpack.c.l.b16 %v18
  %v113 = vunpack.c.h.b16 %v18
  %v114 = vunpack.c.l.b16 %v19
  %v115 = vunpack.c.h.b16 %v19
  %v116 = vunpack.c.l.b16 %v20
  %v117 = vunpack.c.h.b16 %v20
  %v118 = vunpack.c.l.b16 %v21
  %v119 = vunpack.c.h.b16 %v21
  %v120 = vunpack.c.l.b16 %v22
  %v121 = vunpack.c.h.b16 %v22
  %v122 = vunpack.c.l.b16 %v23
  %v123 = vunpack.c.h.b16 %v23
  %v124 = vunpack.c.l.b16 %v24
  %v125 = vunpack.c.h.b16 %v24
  %v126 = vunpack.c.l.b16 %v25
  %v127 = vunpack.c.h.b16 %v25
  %v128 = vunpack.c.l.b16 %v26
  %v129 = vunpack.c.h.b16 %v26
  %v130 = vunpack.c.l.b16 %v27
  %v131 = vunpack.c.h.b16 %v27
  %v132 = vunpack.c.l.b16 %v28
  %v133 = vunpack.c.h.b16 %v28
  %v134 = vunpack.c.l.b16 %v29
  %v135 = vunpack.c.h.b16 %v29
  %v136 = vunpack.c.l.b16 %v30
  %v137 = vunpack.c.h.b16 %v30
  %v138 = vunpack.c.l.b16 %v31
  %v139 = vunpack.c.h.b16 %v31
  %v140 = vunpack.c.l.b16 %v32
  %v141 = vunpack.c.h.b16 %v32
  %v142 = vunpack.c.l.b16 %v33
  %v143 = vunpack.c.h.b16 %v33
  %v144 = vunpack.c.l.b16 %v34
  %v145 = vunpack.c.h.b16 %v34
  %v146 = vunpack.c.l.b16 %v35
  %v147 = vunpack.c.h.b16 %v35
  %v148 = vunpack.c.l.b16 %v36
  %v149 = vunpack.c.h.b16 %v36
  %v150 = vunpack.c.l.b16 %v37
  %v151 = vunpack.c.h.b16 %v37
  %v152 = vunpack.c.l.b16 %v38
  %v153 = vunpack.c.h.b16 %v38
  %v154 = vunpack.c.l.b16 %v39
  %v155 = vunpack.c.h.b16 %v39
  %v156 = vunpack.c.l.b16 %v40
  %v157 = vunpack.c.h.b16 %v40
  %v158 = vunpack.c.l.b16 %v41
  %v159 = vunpack.c.h.b16 %v41
  %v160 = vunpack.c.l.b16 %v42
  %v161 = vunpack.c.h.b16 %v42
  %v162 = vunpack.c.l.b16 %v43
  %v163 = vunpack.c.h.b16 %v43
  %v164 = vunpack.c.l.b16 %v44
  %v165 = vunpack.c.h.b16 %v44
  %v166 = vunpack.c.l.b16 %v45
  %v167 = vunpack.c.h.b16 %v45
  %v168 = vunpack.c.l.b16 %v46
  %v169 = vunpack.c.h.b16 %v46
  %v170 = vunpack.c.l.b16 %v47
  %v171 = vunpack.c.h.b16 %v47
  %v172 = vunpack.c.l.b16 %v48
  %v173 = vunpack.c.h.b16 %v48
  %v174 = vunpack.c.l.b16 %v49
  %v175 = vunpack.c.h.b16 %v49
  %v176 = vunpack.c.l.b16 %v50
  %v177 = vunpack.c.h.b16 %v50
  %v178 = vunpack.c.l.b16 %v51
  %v179 = vunpack.c.h.b16 %v51
  %v180 = vunpack.c.l.b16 %v52
  %v181 = vunpack.c.h.b16 %v52
  %v182 = vpack.c.b16 %v114, %v110
  %v183 = vpack.c.b16 %v115, %v111
  %v184 = vpack.c.b16 %v116, %v112
  %v185 = vpack.c.b16 %v117, %v113
  %v186 = vpack.c.b16 %v122, %v118
  %v187 = vpack.c.b16 %v123, %v119
  %v188 = vpack.c.b16 %v124, %v120
  %v189 = vpack.c.b16 %v125, %v121
  %v190 = vpack.c.b16 %v130, %v126
  %v191 = vpack.c.b16 %v131, %v127
  %v192 = vpack.c.b16 %v132, %v128
  %v193 = vpack.c.b16 %v133, %v129
  %v194 = vpack.c.b16 %v138, %v134
  %v195 = vpack.c.b16 %v139, %v135
  %v196 = vpack.c.b16 %v140, %v136
  %v197 = vpack.c.b16 %v141, %v137
  %v198 = vpack.c.b16 %v146, %v142
  %v199 = vpack.c.b16 %v147, %v143
  %v200 = vpack.c.b16 %v148, %v144
  %v201 = vpack.c.b16 %v149, %v145
  %v202 = vpack.c.b16 %v154, %v150
  %v203 = vpack.c.b16 %v155, %v151
  %v204 = vpack.c.b16 %v156, %v152
  %v205 = vpack.c.b16 %v157, %v153
  %v206 = vpack.c.b16 %v162, %v158
  %v207 = vpack.c.b16 %v163, %v159
  %v208 = vpack.c.b16 %v164, %v160
  %v209 = vpack.c.b16 %v165, %v161
  %v210 = vpack.c.b16 %v170, %v166
  %v211 = vpack.c.b16 %v171, %v167
  %v212 = vpack.c.b16 %v172, %v168
  %v213 = vpack.c.b16 %v173, %v169
  %v214 = vpack.c.b16 %v178, %v174
  %v215 = vpack.c.b16 %v179, %v175
  %v216 = vpack.c.b16 %v180, %v176
  %v217 = vpack.c.b16 %v181, %v177
  %vm254 = vcmask 130048
  %v256 = vsel %vm254, %v72, 0
  %258 = vmatprep.subr.bf16.mxu0 %v211
  %259 = vmatpush1.bf16.msra.mxu0 %v210
  %260 = vmatprep.subr.bf16.mxu0 %v207
  %261 = vmatpush1.bf16.msra.mxu0 %v206
  %262 = vmatprep.subr.bf16.mxu0 %v203
  %263 = vmatpush1.bf16.msra.mxu0 %v202
  %264 = vmatprep.subr.bf16.mxu0 %v199
  %265 = vmatpush1.bf16.msra.mxu0 %v198
  %266 = vmatprep.subr.bf16.mxu0 %v195
  %267 = vmatpush1.bf16.msra.mxu0 %v194
  %268 = vmatprep.subr.bf16.mxu0 %v191
  %269 = vmatpush1.bf16.msra.mxu0 %v190
  %270 = vmatprep.subr.bf16.mxu0 %v187
  %271 = vmatpush1.bf16.msra.mxu0 %v186
  %272 = vmatprep.subr.bf16.mxu0 %v183
  %273 = vmatpush1.bf16.msra.mxu0 %v182
  %274 = vmatprep.subr.bf16.mxu0 0
  %275 = vmatpush2.bf16.msra.mxu0 0
  %276 = vmatprep.subr.bf16.mxu0 0
  %277 = vmatpush2.bf16.msra.mxu0 0
  %278 = vmatprep.subr.bf16.mxu0 0
  %279 = vmatpush2.bf16.msra.mxu0 0
  %280 = vmatprep.subr.bf16.mxu0 0
  %281 = vmatpush2.bf16.msra.mxu0 0
  %282 = vmatprep.subr.bf16.mxu0 0
  %283 = vmatpush2.bf16.msra.mxu0 0
  %284 = vmatprep.subr.bf16.mxu0 0
  %285 = vmatpush2.bf16.msra.mxu0 0
  %286 = vmatprep.subr.bf16.mxu0 0
  %287 = vmatpush2.bf16.msra.mxu0 0
  %288 = vmatprep.subr.bf16.mxu0 %v215
  %289 = vmatpush2.bf16.msra.mxu0 %v214
  %290 = vmatprep.mubr.bf16.mxu0 %v256
  %291 = vmatmul.mubr.bf16.gmra.mxu0 %v71
  %v292 = vpop.f32.mrf.mxu0
  %v293 = vadd.f32 %v58, %v292
  %v294 = vpop.f32.mrf.mxu0
  %v295 = vadd.f32 %v58, %v294
  %v296 = vpop.f32.mrf.mxu0
  %v297 = vadd.f32 %v63, %v296
  %v298 = vpop.f32.mrf.mxu0
  %v299 = vadd.f32 %v63, %v298
  %300 = vdwg.mxu0
  %301 = vmatprep.subr.bf16.mxu0 %v213
  %302 = vmatpush1.bf16.msra.mxu0 %v212
  %303 = vmatprep.subr.bf16.mxu0 %v209
  %304 = vmatpush1.bf16.msra.mxu0 %v208
  %305 = vmatprep.subr.bf16.mxu0 %v205
  %306 = vmatpush1.bf16.msra.mxu0 %v204
  %307 = vmatprep.subr.bf16.mxu0 %v201
  %308 = vmatpush1.bf16.msra.mxu0 %v200
  %309 = vmatprep.subr.bf16.mxu0 %v197
  %310 = vmatpush1.bf16.msra.mxu0 %v196
  %311 = vmatprep.subr.bf16.mxu0 %v193
  %312 = vmatpush1.bf16.msra.mxu0 %v192
  %313 = vmatprep.subr.bf16.mxu0 %v189
  %314 = vmatpush1.bf16.msra.mxu0 %v188
  %315 = vmatprep.subr.bf16.mxu0 %v185
  %316 = vmatpush1.bf16.msra.mxu0 %v184
  %317 = vmatprep.subr.bf16.mxu0 0
  %318 = vmatpush2.bf16.msra.mxu0 0
  %319 = vmatprep.subr.bf16.mxu0 0
  %320 = vmatpush2.bf16.msra.mxu0 0
  %321 = vmatprep.subr.bf16.mxu0 0
  %322 = vmatpush2.bf16.msra.mxu0 0
  %323 = vmatprep.subr.bf16.mxu0 0
  %324 = vmatpush2.bf16.msra.mxu0 0
  %325 = vmatprep.subr.bf16.mxu0 0
  %326 = vmatpush2.bf16.msra.mxu0 0
  %327 = vmatprep.subr.bf16.mxu0 0
  %328 = vmatpush2.bf16.msra.mxu0 0
  %329 = vmatprep.subr.bf16.mxu0 0
  %330 = vmatpush2.bf16.msra.mxu0 0
  %331 = vmatprep.subr.bf16.mxu0 %v217
  %332 = vmatpush2.bf16.msra.mxu0 %v216
  %333 = vmatprep.mubr.bf16.mxu0 %v256
  %334 = vmatmul.mubr.bf16.gmra.mxu0 %v71
  %v335 = vpop.f32.mrf.mxu0
  %v336 = vadd.f32 %v58, %v335
  %v337 = vpop.f32.mrf.mxu0
  %v338 = vadd.f32 %v58, %v337
  %v339 = vpop.f32.mrf.mxu0
  %v340 = vadd.f32 %v63, %v339
  %v341 = vpop.f32.mrf.mxu0
  %v342 = vadd.f32 %v63, %v341
  %343 = vdwg.mxu0
  %v344 = vxor.u32 %v293, 2147483648
  %v345 = vxor.u32 %v295, 2147483648
  %v346 = vxor.u32 %v336, 2147483648
  %v347 = vxor.u32 %v338, 2147483648
  %v348 = vxor.u32 %v297, 2147483648
  %v349 = vxor.u32 %v299, 2147483648
  %v350 = vxor.u32 %v340, 2147483648
  %v351 = vxor.u32 %v342, 2147483648
  %v352 = vmul.f32 %v344, 1.442695
  %v353 = vpow.pop %v352
  %v354 = vmul.f32 %v345, 1.442695
  %v355 = vpow.pop %v354
  %v356 = vmul.f32 %v346, 1.442695
  %v357 = vpow.pop %v356
  %v358 = vmul.f32 %v347, 1.442695
  %v359 = vpow.pop %v358
  %v360 = vmul.f32 %v348, 1.442695
  %v361 = vpow.pop %v360
  %v362 = vmul.f32 %v349, 1.442695
  %v363 = vpow.pop %v362
  %v364 = vmul.f32 %v350, 1.442695
  %v365 = vpow.pop %v364
  %v366 = vmul.f32 %v351, 1.442695
  %v367 = vpow.pop %v366
  %v368 = vadd.f32 %v353, 1.0
  %v369 = vadd.f32 %v355, 1.0
  %v370 = vadd.f32 %v357, 1.0
  %v371 = vadd.f32 %v359, 1.0
  %v372 = vadd.f32 %v361, 1.0
  %v373 = vadd.f32 %v363, 1.0
  %v374 = vadd.f32 %v365, 1.0
  %v375 = vadd.f32 %v367, 1.0
  %v376 = vrcp.pop %v368
  %v377 = vmul.f32 1.0, %v376
  %v378 = vrcp.pop %v369
  %v379 = vmul.f32 1.0, %v378
  %v380 = vrcp.pop %v370
  %v381 = vmul.f32 1.0, %v380
  %v382 = vrcp.pop %v371
  %v383 = vmul.f32 1.0, %v382
  %v384 = vrcp.pop %v372
  %v385 = vmul.f32 1.0, %v384
  %v386 = vrcp.pop %v373
  %v387 = vmul.f32 1.0, %v386
  %v388 = vrcp.pop %v374
  %v389 = vmul.f32 1.0, %v388
  %v390 = vrcp.pop %v375
  %v391 = vmul.f32 1.0, %v390
  %v392 = vmul.f32 %v293, %v377
  %v393 = vmul.f32 %v295, %v379
  %v394 = vmul.f32 %v336, %v381
  %v395 = vmul.f32 %v338, %v383
  %v396 = vmul.f32 %v297, %v385
  %v397 = vmul.f32 %v299, %v387
  %v398 = vmul.f32 %v340, %v389
  %v399 = vmul.f32 %v342, %v391
  %v400 = vpack.c.bf16 %v396, %v392
  %v401 = vpack.c.bf16 %v397, %v393
  %v402 = vpack.c.bf16 %v398, %v394
  %v403 = vpack.c.bf16 %v399, %v395
  %v408 = vunpack.c.l.b16 %v400
  %v409 = vunpack.c.l.b16 %v401
  %v410 = vunpack.c.l.b16 %v402
  %v411 = vunpack.c.l.b16 %v403
  %v412 = vunpack.c.h.b16 %v400
  %v413 = vunpack.c.h.b16 %v401
  %v414 = vunpack.c.h.b16 %v402
  %v415 = vunpack.c.h.b16 %v403
  %v416 = vpack.c.b16 %v409, %v408
  %v417 = vpack.c.b16 %v411, %v410
  %v418 = vpack.c.b16 %v413, %v412
  %v419 = vpack.c.b16 %v415, %v414
  %424 = vst [vmem:[%s3] sm:$0xff] %v416
  %425 = vst [vmem:[%s3 + $0x8] sm:$0xff] %v417
  %426 = vst [vmem:[%s3 + $0x10] sm:$0xff] %v418
  %427 = vst [vmem:[%s3 + $0x18] sm:$0xff] %v419
  // Predicated region
  $region14: #{model_forward.20} parent=0 // pred_check
    _
  $region15: #{model_forward.20} parent=0 // pred_check_branch
    %429 = sbr.rel (0) target = $region17
  $region16: #{model_forward.20} parent=0 // pred_region
    _
  $region17: #{model_forward.20} parent=0 // pred_fallthru
    _
  // Predicated region
  $region18: #{model_forward.20} parent=0 // pred_check
    _
  $region19: #{model_forward.20} parent=0 // pred_check_branch
    %431 = sbr.rel (0) target = $region21
  $region20: #{model_forward.20} parent=0 // pred_region
    _
  $region21: #{model_forward.20} parent=0 // pred_fallthru
    _

// kernel: model_forward.21
$region0: #{model_forward.21}
  #allocation0 [shape = 'u32[]', space=smem, size = 0x4, offset = 0x4, fixed_abs, tag = 'smem constant byte address 0x4 - core index']
  #allocation1 [shape = 'u32[144,128]{1,0:T(1,128)}', space=vmem, size = 0x12000, scoped, tag = 'internal scratch']
  %s0 = inlined_call_operand.vmem [shape: bf16[24,144], index: 0, kind: input, shape index: {}]
  %s1 = inlined_call_operand.vmem [shape: f32[24,1], index: 1, kind: input, shape index: {}]
  %s2 = inlined_call_operand.vmem [shape: bf16[144,128], index: 2, kind: input, shape index: {}]
  %s3 = inlined_call_operand.vmem [shape: bf16[24,128], index: 3, kind: output, shape index: {}]
  %s4 = sld [smem:[#allocation0]]
  $region22: #{model_forward.21} parent=0
    _
  %s6 = ssub.s32 1, %s4
  %s7 = scalar_select 0, %s6, %s4
  // Predicated region
  $region2: #{model_forward.21} parent=0 // pred_check
    _
  $region3: #{model_forward.21} parent=0 // pred_check_branch
    %9 = sbr.rel (0) target = $region5
  $region4: #{model_forward.21} parent=0 // pred_region
    _
  $region5: #{model_forward.21} parent=0 // pred_fallthru
    _
  // Predicated region
  $region6: #{model_forward.21} parent=0 // pred_check
    _
  $region7: #{model_forward.21} parent=0 // pred_check_branch
    %11 = sbr.rel (0) target = $region9
  $region8: #{model_forward.21} parent=0 // pred_region
    _
  $region9: #{model_forward.21} parent=0 // pred_fallthru
    _
  // Predicated region
  $region10: #{model_forward.21} parent=0 // pred_check
    _
  $region11: #{model_forward.21} parent=0 // pred_check_branch
    %13 = sbr.rel (0) target = $region13
  $region12: #{model_forward.21} parent=0 // pred_region
    _
  $region13: #{model_forward.21} parent=0 // pred_fallthru
    _
  %v15 = vld [vmem:[%s0] sm:$0xff]
  %v16 = vld [vmem:[%s0 + $0x8] sm:$0xff]
  %v17 = vld [vmem:[%s0 + $0x10] sm:$0xff]
  %v18 = vld [vmem:[%s2] sm:$0xf]
  %v19 = vld [vmem:[%s2 + $0x4] sm:$0xf]
  %v20 = vld [vmem:[%s2 + $0x8] sm:$0xf]
  %v21 = vld [vmem:[%s2 + $0xc] sm:$0xf]
  %v22 = vld [vmem:[%s2 + $0x10] sm:$0xf]
  %v23 = vld [vmem:[%s2 + $0x14] sm:$0xf]
  %v24 = vld [vmem:[%s2 + $0x18] sm:$0xf]
  %v25 = vld [vmem:[%s2 + $0x1c] sm:$0xf]
  %v26 = vld [vmem:[%s2 + $0x20] sm:$0xf]
  %v27 = vld [vmem:[%s2 + $0x24] sm:$0xf]
  %v28 = vld [vmem:[%s2 + $0x28] sm:$0xf]
  %v29 = vld [vmem:[%s2 + $0x2c] sm:$0xf]
  %v30 = vld [vmem:[%s2 + $0x30] sm:$0xf]
  %v31 = vld [vmem:[%s2 + $0x34] sm:$0xf]
  %v32 = vld [vmem:[%s2 + $0x38] sm:$0xf]
  %v33 = vld [vmem:[%s2 + $0x3c] sm:$0xf]
  %v34 = vld [vmem:[%s2 + $0x40] sm:$0xf]
  %v35 = vld [vmem:[%s2 + $0x44] sm:$0xf]
  %v36 = vld [vmem:[%s1] sm:$0xff]
  %v37 = vld [vmem:[%s1 + $0x8] sm:$0xff]
  %v38 = vld [vmem:[%s1 + $0x10] sm:$0xff]
  %40 = vset.pattern.permute.xlu0 0
  %41 = vperm.xlu0 %40, %v36
  %v42 = vpop.permute.xlu0 %41
  %45 = vset.pattern.permute.xlu0 0
  %46 = vperm.xlu0 %45, %v37
  %v47 = vpop.permute.xlu0 %46
  %50 = vset.pattern.permute.xlu0 0
  %51 = vperm.xlu0 %50, %v38
  %v52 = vpop.permute.xlu0 %51
  %v57 = vunpack.c.l.b16 %v15
  %v58 = vunpack.c.h.b16 %v15
  %v59 = vunpack.c.l.b16 %v16
  %v60 = vunpack.c.h.b16 %v16
  %v61 = vunpack.c.l.b16 %v17
  %v62 = vunpack.c.h.b16 %v17
  %v63 = vpack.c.b16 %v59, %v57
  %v64 = vpack.c.b16 %v60, %v58
  %v65 = vpack.c.b16 %v61, %v61
  %v66 = vpack.c.b16 %v62, %v62
  %v87 = vunpack.c.l.b16 %v18
  %v88 = vunpack.c.l.b16 %v19
  %v89 = vunpack.c.l.b16 %v20
  %v90 = vunpack.c.l.b16 %v21
  %v91 = vunpack.c.l.b16 %v22
  %v92 = vunpack.c.l.b16 %v23
  %v93 = vunpack.c.l.b16 %v24
  %v94 = vunpack.c.l.b16 %v25
  %v95 = vunpack.c.l.b16 %v26
  %v96 = vunpack.c.l.b16 %v27
  %v97 = vunpack.c.l.b16 %v28
  %v98 = vunpack.c.l.b16 %v29
  %v99 = vunpack.c.l.b16 %v30
  %v100 = vunpack.c.l.b16 %v31
  %v101 = vunpack.c.l.b16 %v32
  %v102 = vunpack.c.l.b16 %v33
  %v103 = vunpack.c.l.b16 %v34
  %v104 = vunpack.c.l.b16 %v35
  %v105 = vpack.c.b16 %v88, %v87
  %v106 = vpack.c.b16 %v90, %v89
  %v107 = vpack.c.b16 %v92, %v91
  %v108 = vpack.c.b16 %v94, %v93
  %v109 = vpack.c.b16 %v96, %v95
  %v110 = vpack.c.b16 %v98, %v97
  %v111 = vpack.c.b16 %v100, %v99
  %v112 = vpack.c.b16 %v102, %v101
  %v113 = vpack.c.b16 %v104, %v103
  %vm123 = vcmask 130048
  %v125 = vsel %vm123, %v64, 0
  %v128 = vsel %vm123, %v66, 0
  %130 = vmatprep.subr.bf16.mxu0 0
  %131 = vmatpush1.bf16.msra.mxu0 %v112
  %132 = vmatprep.subr.bf16.mxu0 0
  %133 = vmatpush1.bf16.msra.mxu0 %v111
  %134 = vmatprep.subr.bf16.mxu0 0
  %135 = vmatpush1.bf16.msra.mxu0 %v110
  %136 = vmatprep.subr.bf16.mxu0 0
  %137 = vmatpush1.bf16.msra.mxu0 %v109
  %138 = vmatprep.subr.bf16.mxu0 0
  %139 = vmatpush1.bf16.msra.mxu0 %v108
  %140 = vmatprep.subr.bf16.mxu0 0
  %141 = vmatpush1.bf16.msra.mxu0 %v107
  %142 = vmatprep.subr.bf16.mxu0 0
  %143 = vmatpush1.bf16.msra.mxu0 %v106
  %144 = vmatprep.subr.bf16.mxu0 0
  %145 = vmatpush1.bf16.msra.mxu0 %v105
  %146 = vmatprep.subr.bf16.mxu0 0
  %147 = vmatpush2.bf16.msra.mxu0 0
  %148 = vmatprep.subr.bf16.mxu0 0
  %149 = vmatpush2.bf16.msra.mxu0 0
  %150 = vmatprep.subr.bf16.mxu0 0
  %151 = vmatpush2.bf16.msra.mxu0 0
  %152 = vmatprep.subr.bf16.mxu0 0
  %153 = vmatpush2.bf16.msra.mxu0 0
  %154 = vmatprep.subr.bf16.mxu0 0
  %155 = vmatpush2.bf16.msra.mxu0 0
  %156 = vmatprep.subr.bf16.mxu0 0
  %157 = vmatpush2.bf16.msra.mxu0 0
  %158 = vmatprep.subr.bf16.mxu0 0
  %159 = vmatpush2.bf16.msra.mxu0 0
  %160 = vmatprep.subr.bf16.mxu0 0
  %161 = vmatpush2.bf16.msra.mxu0 %v113
  %162 = vmatprep.mubr.bf16.mxu0 %v125
  %163 = vmatmul.mubr.bf16.gmra.mxu0 %v63
  %v164 = vpop.f32.mrf.mxu0
  %v165 = vadd.f32 %v42, %v164
  %v166 = vpop.f32.mrf.mxu0
  %v167 = vpop.f32.mrf.mxu0
  %v168 = vadd.f32 %v47, %v167
  %v169 = vpop.f32.mrf.mxu0
  %170 = vmatprep.mubr.bf16.mxu0 %v128
  %171 = vmatmul.mubr.bf16.gmra.mxu0 %v65
  %v172 = vpop.f32.mrf.mxu0
  %v173 = vadd.f32 %v52, %v172
  %v174 = vpop.f32.mrf.mxu0
  %v175 = vpop.f32.mrf.mxu0
  %v176 = vpop.f32.mrf.mxu0
  %177 = vdwg.mxu0
  %v178 = vxor.u32 %v165, 2147483648
  %v179 = vxor.u32 %v168, 2147483648
  %v180 = vxor.u32 %v173, 2147483648
  %v181 = vmul.f32 %v178, 1.442695
  %v182 = vpow.pop %v181
  %v183 = vmul.f32 %v179, 1.442695
  %v184 = vpow.pop %v183
  %v185 = vmul.f32 %v180, 1.442695
  %v186 = vpow.pop %v185
  %v187 = vadd.f32 %v182, 1.0
  %v188 = vadd.f32 %v184, 1.0
  %v189 = vadd.f32 %v186, 1.0
  %v190 = vrcp.pop %v187
  %v191 = vmul.f32 1.0, %v190
  %v192 = vrcp.pop %v188
  %v193 = vmul.f32 1.0, %v192
  %v194 = vrcp.pop %v189
  %v195 = vmul.f32 1.0, %v194
  %v196 = vmul.f32 %v165, %v191
  %v197 = vmul.f32 %v168, %v193
  %v198 = vmul.f32 %v173, %v195
  %v199 = vpack.c.bf16 %v197, %v196
  %v200 = vpack.c.bf16 %v198, %v198
  %v203 = vunpack.c.l.b16 %v199
  %v204 = vunpack.c.h.b16 %v199
  %v205 = vunpack.c.l.b16 %v200
  %v206 = vpack.c.b16 %v203, %v203
  %v207 = vpack.c.b16 %v204, %v204
  %v208 = vpack.c.b16 %v205, %v205
  %212 = vst [vmem:[%s3] sm:$0xf] %v206
  %213 = vst [vmem:[%s3 + $0x4] sm:$0xf] %v207
  %214 = vst [vmem:[%s3 + $0x8] sm:$0xf] %v208
  // Predicated region
  $region14: #{model_forward.21} parent=0 // pred_check
    _
  $region15: #{model_forward.21} parent=0 // pred_check_branch
    %216 = sbr.rel (0) target = $region17
  $region16: #{model_forward.21} parent=0 // pred_region
    _
  $region17: #{model_forward.21} parent=0 // pred_fallthru
    _
  // Predicated region
  $region18: #{model_forward.21} parent=0 // pred_check
    _
  $region19: #{model_forward.21} parent=0 // pred_check_branch
    %218 = sbr.rel (0) target = $region21
  $region20: #{model_forward.21} parent=0 // pred_region
    _
  $region21: #{model_forward.21} parent=0 // pred_fallthru
    _

// kernel: model_forward.22
$region0: #{model_forward.22}
  #allocation0 [shape = 'u32[]', space=smem, size = 0x4, offset = 0x4, fixed_abs, tag = 'smem constant byte address 0x4 - core index']
  #allocation1 [shape = 'u32[144,128]{1,0:T(1,128)}', space=vmem, size = 0x12000, scoped, tag = 'internal scratch']
  %s0 = inlined_call_operand.vmem [shape: bf16[24,216], index: 0, kind: input, shape index: {}]
  %s1 = inlined_call_operand.vmem [shape: f32[24,1], index: 1, kind: input, shape index: {}]
  %s2 = inlined_call_operand.vmem [shape: bf16[216,128], index: 2, kind: input, shape index: {}]
  %s3 = inlined_call_operand.vmem [shape: bf16[24,128], index: 3, kind: output, shape index: {}]
  %s4 = sld [smem:[#allocation0]]
  $region22: #{model_forward.22} parent=0
    _
  %s6 = ssub.s32 1, %s4
  %s7 = scalar_select 0, %s6, %s4
  // Predicated region
  $region2: #{model_forward.22} parent=0 // pred_check
    _
  $region3: #{model_forward.22} parent=0 // pred_check_branch
    %9 = sbr.rel (0) target = $region5
  $region4: #{model_forward.22} parent=0 // pred_region
    _
  $region5: #{model_forward.22} parent=0 // pred_fallthru
    _
  // Predicated region
  $region6: #{model_forward.22} parent=0 // pred_check
    _
  $region7: #{model_forward.22} parent=0 // pred_check_branch
    %11 = sbr.rel (0) target = $region9
  $region8: #{model_forward.22} parent=0 // pred_region
    _
  $region9: #{model_forward.22} parent=0 // pred_fallthru
    _
  // Predicated region
  $region10: #{model_forward.22} parent=0 // pred_check
    _
  $region11: #{model_forward.22} parent=0 // pred_check_branch
    %13 = sbr.rel (0) target = $region13
  $region12: #{model_forward.22} parent=0 // pred_region
    _
  $region13: #{model_forward.22} parent=0 // pred_fallthru
    _
  %v15 = vld [vmem:[%s0] sm:$0xff]
  %v16 = vld [vmem:[%s0 + $0x8] sm:$0xff]
  %v17 = vld [vmem:[%s0 + $0x10] sm:$0xff]
  %v18 = vld [vmem:[%s2] sm:$0xf]
  %v19 = vld [vmem:[%s2 + $0x4] sm:$0xf]
  %v20 = vld [vmem:[%s2 + $0x8] sm:$0xf]
  %v21 = vld [vmem:[%s2 + $0xc] sm:$0xf]
  %v22 = vld [vmem:[%s2 + $0x10] sm:$0xf]
  %v23 = vld [vmem:[%s2 + $0x14] sm:$0xf]
  %v24 = vld [vmem:[%s2 + $0x18] sm:$0xf]
  %v25 = vld [vmem:[%s2 + $0x1c] sm:$0xf]
  %v26 = vld [vmem:[%s2 + $0x20] sm:$0xf]
  %v27 = vld [vmem:[%s2 + $0x24] sm:$0xf]
  %v28 = vld [vmem:[%s2 + $0x28] sm:$0xf]
  %v29 = vld [vmem:[%s2 + $0x2c] sm:$0xf]
  %v30 = vld [vmem:[%s2 + $0x30] sm:$0xf]
  %v31 = vld [vmem:[%s2 + $0x34] sm:$0xf]
  %v32 = vld [vmem:[%s2 + $0x38] sm:$0xf]
  %v33 = vld [vmem:[%s2 + $0x3c] sm:$0xf]
  %v34 = vld [vmem:[%s2 + $0x40] sm:$0xf]
  %v35 = vld [vmem:[%s2 + $0x44] sm:$0xf]
  %v36 = vld [vmem:[%s2 + $0x48] sm:$0xf]
  %v37 = vld [vmem:[%s2 + $0x4c] sm:$0xf]
  %v38 = vld [vmem:[%s2 + $0x50] sm:$0xf]
  %v39 = vld [vmem:[%s2 + $0x54] sm:$0xf]
  %v40 = vld [vmem:[%s2 + $0x58] sm:$0xf]
  %v41 = vld [vmem:[%s2 + $0x5c] sm:$0xf]
  %v42 = vld [vmem:[%s2 + $0x60] sm:$0xf]
  %v43 = vld [vmem:[%s2 + $0x64] sm:$0xf]
  %v44 = vld [vmem:[%s2 + $0x68] sm:$0xf]
  %v45 = vld [vmem:[%s1] sm:$0xff]
  %v46 = vld [vmem:[%s1 + $0x8] sm:$0xff]
  %v47 = vld [vmem:[%s1 + $0x10] sm:$0xff]
  %49 = vset.pattern.permute.xlu0 0
  %50 = vperm.xlu0 %49, %v45
  %v51 = vpop.permute.xlu0 %50
  %54 = vset.pattern.permute.xlu0 0
  %55 = vperm.xlu0 %54, %v46
  %v56 = vpop.permute.xlu0 %55
  %59 = vset.pattern.permute.xlu0 0
  %60 = vperm.xlu0 %59, %v47
  %v61 = vpop.permute.xlu0 %60
  %v66 = vunpack.c.l.b16 %v15
  %v67 = vunpack.c.h.b16 %v15
  %v68 = vunpack.c.l.b16 %v16
  %v69 = vunpack.c.h.b16 %v16
  %v70 = vunpack.c.l.b16 %v17
  %v71 = vunpack.c.h.b16 %v17
  %v72 = vpack.c.b16 %v68, %v66
  %v73 = vpack.c.b16 %v69, %v67
  %v74 = vpack.c.b16 %v70, %v70
  %v75 = vpack.c.b16 %v71, %v71
  %v105 = vunpack.c.l.b16 %v18
  %v106 = vunpack.c.l.b16 %v19
  %v107 = vunpack.c.l.b16 %v20
  %v108 = vunpack.c.l.b16 %v21
  %v109 = vunpack.c.l.b16 %v22
  %v110 = vunpack.c.l.b16 %v23
  %v111 = vunpack.c.l.b16 %v24
  %v112 = vunpack.c.l.b16 %v25
  %v113 = vunpack.c.l.b16 %v26
  %v114 = vunpack.c.l.b16 %v27
  %v115 = vunpack.c.l.b16 %v28
  %v116 = vunpack.c.l.b16 %v29
  %v117 = vunpack.c.l.b16 %v30
  %v118 = vunpack.c.l.b16 %v31
  %v119 = vunpack.c.l.b16 %v32
  %v120 = vunpack.c.l.b16 %v33
  %v121 = vunpack.c.l.b16 %v34
  %v122 = vunpack.c.l.b16 %v35
  %v123 = vunpack.c.l.b16 %v36
  %v124 = vunpack.c.l.b16 %v37
  %v125 = vunpack.c.l.b16 %v38
  %v126 = vunpack.c.l.b16 %v39
  %v127 = vunpack.c.l.b16 %v40
  %v128 = vunpack.c.l.b16 %v41
  %v129 = vunpack.c.l.b16 %v42
  %v130 = vunpack.c.l.b16 %v43
  %v131 = vunpack.c.l.b16 %v44
  %v132 = vpack.c.b16 %v106, %v105
  %v133 = vpack.c.b16 %v108, %v107
  %v134 = vpack.c.b16 %v110, %v109
  %v135 = vpack.c.b16 %v112, %v111
  %v136 = vpack.c.b16 %v114, %v113
  %v137 = vpack.c.b16 %v116, %v115
  %v138 = vpack.c.b16 %v118, %v117
  %v139 = vpack.c.b16 %v120, %v119
  %v140 = vpack.c.b16 %v122, %v121
  %v141 = vpack.c.b16 %v124, %v123
  %v142 = vpack.c.b16 %v126, %v125
  %v143 = vpack.c.b16 %v128, %v127
  %v144 = vpack.c.b16 %v130, %v129
  %v145 = vpack.c.b16 %v131, %v131
  %vm159 = vcmask 719872
  %v161 = vsel %vm159, %v73, 0
  %v164 = vsel %vm159, %v75, 0
  %vm166 = vcmask 1043456
  %v168 = vsel %vm166, %v145, 0
  %170 = vmatprep.subr.bf16.mxu0 0
  %171 = vmatpush1.bf16.msra.mxu0 %v139
  %172 = vmatprep.subr.bf16.mxu0 0
  %173 = vmatpush1.bf16.msra.mxu0 %v138
  %174 = vmatprep.subr.bf16.mxu0 0
  %175 = vmatpush1.bf16.msra.mxu0 %v137
  %176 = vmatprep.subr.bf16.mxu0 0
  %177 = vmatpush1.bf16.msra.mxu0 %v136
  %178 = vmatprep.subr.bf16.mxu0 0
  %179 = vmatpush1.bf16.msra.mxu0 %v135
  %180 = vmatprep.subr.bf16.mxu0 0
  %181 = vmatpush1.bf16.msra.mxu0 %v134
  %182 = vmatprep.subr.bf16.mxu0 0
  %183 = vmatpush1.bf16.msra.mxu0 %v133
  %184 = vmatprep.subr.bf16.mxu0 0
  %185 = vmatpush1.bf16.msra.mxu0 %v132
  %186 = vmatprep.subr.bf16.mxu0 0
  %187 = vmatpush2.bf16.msra.mxu0 0
  %188 = vmatprep.subr.bf16.mxu0 0
  %189 = vmatpush2.bf16.msra.mxu0 0
  %190 = vmatprep.subr.bf16.mxu0 0
  %191 = vmatpush2.bf16.msra.mxu0 %v168
  %192 = vmatprep.subr.bf16.mxu0 0
  %193 = vmatpush2.bf16.msra.mxu0 %v144
  %194 = vmatprep.subr.bf16.mxu0 0
  %195 = vmatpush2.bf16.msra.mxu0 %v143
  %196 = vmatprep.subr.bf16.mxu0 0
  %197 = vmatpush2.bf16.msra.mxu0 %v142
  %198 = vmatprep.subr.bf16.mxu0 0
  %199 = vmatpush2.bf16.msra.mxu0 %v141
  %200 = vmatprep.subr.bf16.mxu0 0
  %201 = vmatpush2.bf16.msra.mxu0 %v140
  %202 = vmatprep.mubr.bf16.mxu0 %v161
  %203 = vmatmul.mubr.bf16.gmra.mxu0 %v72
  %v204 = vpop.f32.mrf.mxu0
  %v205 = vadd.f32 %v51, %v204
  %v206 = vpop.f32.mrf.mxu0
  %v207 = vpop.f32.mrf.mxu0
  %v208 = vadd.f32 %v56, %v207
  %v209 = vpop.f32.mrf.mxu0
  %210 = vmatprep.mubr.bf16.mxu0 %v164
  %211 = vmatmul.mubr.bf16.gmra.mxu0 %v74
  %v212 = vpop.f32.mrf.mxu0
  %v213 = vadd.f32 %v61, %v212
  %v214 = vpop.f32.mrf.mxu0
  %v215 = vpop.f32.mrf.mxu0
  %v216 = vpop.f32.mrf.mxu0
  %217 = vdwg.mxu0
  %v218 = vxor.u32 %v205, 2147483648
  %v219 = vxor.u32 %v208, 2147483648
  %v220 = vxor.u32 %v213, 2147483648
  %v221 = vmul.f32 %v218, 1.442695
  %v222 = vpow.pop %v221
  %v223 = vmul.f32 %v219, 1.442695
  %v224 = vpow.pop %v223
  %v225 = vmul.f32 %v220, 1.442695
  %v226 = vpow.pop %v225
  %v227 = vadd.f32 %v222, 1.0
  %v228 = vadd.f32 %v224, 1.0
  %v229 = vadd.f32 %v226, 1.0
  %v230 = vrcp.pop %v227
  %v231 = vmul.f32 1.0, %v230
  %v232 = vrcp.pop %v228
  %v233 = vmul.f32 1.0, %v232
  %v234 = vrcp.pop %v229
  %v235 = vmul.f32 1.0, %v234
  %v236 = vmul.f32 %v205, %v231
  %v237 = vmul.f32 %v208, %v233
  %v238 = vmul.f32 %v213, %v235
  %v239 = vpack.c.bf16 %v237, %v236
  %v240 = vpack.c.bf16 %v238, %v238
  %v243 = vunpack.c.l.b16 %v239
  %v244 = vunpack.c.h.b16 %v239
  %v245 = vunpack.c.l.b16 %v240
  %v246 = vpack.c.b16 %v243, %v243
  %v247 = vpack.c.b16 %v244, %v244
  %v248 = vpack.c.b16 %v245, %v245
  %252 = vst [vmem:[%s3] sm:$0xf] %v246
  %253 = vst [vmem:[%s3 + $0x4] sm:$0xf] %v247
  %254 = vst [vmem:[%s3 + $0x8] sm:$0xf] %v248
  // Predicated region
  $region14: #{model_forward.22} parent=0 // pred_check
    _
  $region15: #{model_forward.22} parent=0 // pred_check_branch
    %256 = sbr.rel (0) target = $region17
  $region16: #{model_forward.22} parent=0 // pred_region
    _
  $region17: #{model_forward.22} parent=0 // pred_fallthru
    _
  // Predicated region
  $region18: #{model_forward.22} parent=0 // pred_check
    _
  $region19: #{model_forward.22} parent=0 // pred_check_branch
    %258 = sbr.rel (0) target = $region21
  $region20: #{model_forward.22} parent=0 // pred_region
    _
  $region21: #{model_forward.22} parent=0 // pred_fallthru
    _

// kernel: model_forward.23
$region0: #{model_forward.23}
  #allocation0 [shape = 'u32[]', space=smem, size = 0x4, offset = 0x4, fixed_abs, tag = 'smem constant byte address 0x4 - core index']
  #allocation1 [shape = 'u32[144,128]{1,0:T(1,128)}', space=vmem, size = 0x12000, scoped, tag = 'internal scratch']
  %s0 = inlined_call_operand.vmem [shape: bf16[32,216], index: 0, kind: input, shape index: {}]
  %s1 = inlined_call_operand.vmem [shape: f32[32,1], index: 1, kind: input, shape index: {}]
  %s2 = inlined_call_operand.vmem [shape: bf16[216,32], index: 2, kind: input, shape index: {}]
  %s3 = inlined_call_operand.vmem [shape: bf16[32,32], index: 3, kind: output, shape index: {}]
  %s4 = sld [smem:[#allocation0]]
  $region22: #{model_forward.23} parent=0
    _
  %s6 = ssub.s32 1, %s4
  %s7 = scalar_select 0, %s6, %s4
  // Predicated region
  $region2: #{model_forward.23} parent=0 // pred_check
    _
  $region3: #{model_forward.23} parent=0 // pred_check_branch
    %9 = sbr.rel (0) target = $region5
  $region4: #{model_forward.23} parent=0 // pred_region
    _
  $region5: #{model_forward.23} parent=0 // pred_fallthru
    _
  // Predicated region
  $region6: #{model_forward.23} parent=0 // pred_check
    _
  $region7: #{model_forward.23} parent=0 // pred_check_branch
    %11 = sbr.rel (0) target = $region9
  $region8: #{model_forward.23} parent=0 // pred_region
    _
  $region9: #{model_forward.23} parent=0 // pred_fallthru
    _
  // Predicated region
  $region10: #{model_forward.23} parent=0 // pred_check
    _
  $region11: #{model_forward.23} parent=0 // pred_check_branch
    %13 = sbr.rel (0) target = $region13
  $region12: #{model_forward.23} parent=0 // pred_region
    _
  $region13: #{model_forward.23} parent=0 // pred_fallthru
    _
  %v15 = vld [vmem:[%s0] sm:$0xff]
  %v16 = vld [vmem:[%s0 + $0x8] sm:$0xff]
  %v17 = vld [vmem:[%s0 + $0x10] sm:$0xff]
  %v18 = vld [vmem:[%s0 + $0x18] sm:$0xff]
  %v19 = vld [vmem:[%s2] sm:$0xf]
  %v20 = vld [vmem:[%s2 + $0x4] sm:$0xf]
  %v21 = vld [vmem:[%s2 + $0x8] sm:$0xf]
  %v22 = vld [vmem:[%s2 + $0xc] sm:$0xf]
  %v23 = vld [vmem:[%s2 + $0x10] sm:$0xf]
  %v24 = vld [vmem:[%s2 + $0x14] sm:$0xf]
  %v25 = vld [vmem:[%s2 + $0x18] sm:$0xf]
  %v26 = vld [vmem:[%s2 + $0x1c] sm:$0xf]
  %v27 = vld [vmem:[%s2 + $0x20] sm:$0xf]
  %v28 = vld [vmem:[%s2 + $0x24] sm:$0xf]
  %v29 = vld [vmem:[%s2 + $0x28] sm:$0xf]
  %v30 = vld [vmem:[%s2 + $0x2c] sm:$0xf]
  %v31 = vld [vmem:[%s2 + $0x30] sm:$0xf]
  %v32 = vld [vmem:[%s2 + $0x34] sm:$0xf]
  %v33 = vld [vmem:[%s2 + $0x38] sm:$0xf]
  %v34 = vld [vmem:[%s2 + $0x3c] sm:$0xf]
  %v35 = vld [vmem:[%s2 + $0x40] sm:$0xf]
  %v36 = vld [vmem:[%s2 + $0x44] sm:$0xf]
  %v37 = vld [vmem:[%s2 + $0x48] sm:$0xf]
  %v38 = vld [vmem:[%s2 + $0x4c] sm:$0xf]
  %v39 = vld [vmem:[%s2 + $0x50] sm:$0xf]
  %v40 = vld [vmem:[%s2 + $0x54] sm:$0xf]
  %v41 = vld [vmem:[%s2 + $0x58] sm:$0xf]
  %v42 = vld [vmem:[%s2 + $0x5c] sm:$0xf]
  %v43 = vld [vmem:[%s2 + $0x60] sm:$0xf]
  %v44 = vld [vmem:[%s2 + $0x64] sm:$0xf]
  %v45 = vld [vmem:[%s2 + $0x68] sm:$0xf]
  %v46 = vld [vmem:[%s1] sm:$0xff]
  %v47 = vld [vmem:[%s1 + $0x8] sm:$0xff]
  %v48 = vld [vmem:[%s1 + $0x10] sm:$0xff]
  %v49 = vld [vmem:[%s1 + $0x18] sm:$0xff]
  %51 = vset.pattern.permute.xlu0 0
  %52 = vperm.xlu0 %51, %v46
  %v53 = vpop.permute.xlu0 %52
  %56 = vset.pattern.permute.xlu0 0
  %57 = vperm.xlu0 %56, %v47
  %v58 = vpop.permute.xlu0 %57
  %61 = vset.pattern.permute.xlu0 0
  %62 = vperm.xlu0 %61, %v48
  %v63 = vpop.permute.xlu0 %62
  %66 = vset.pattern.permute.xlu0 0
  %67 = vperm.xlu0 %66, %v49
  %v68 = vpop.permute.xlu0 %67
  %v74 = vunpack.c.l.b16 %v15
  %v75 = vunpack.c.h.b16 %v15
  %v76 = vunpack.c.l.b16 %v16
  %v77 = vunpack.c.h.b16 %v16
  %v78 = vunpack.c.l.b16 %v17
  %v79 = vunpack.c.h.b16 %v17
  %v80 = vunpack.c.l.b16 %v18
  %v81 = vunpack.c.h.b16 %v18
  %v82 = vpack.c.b16 %v76, %v74
  %v83 = vpack.c.b16 %v77, %v75
  %v84 = vpack.c.b16 %v80, %v78
  %v85 = vpack.c.b16 %v81, %v79
  %v115 = vunpack.c.l.b16 %v19
  %v116 = vunpack.c.l.b16 %v20
  %v117 = vunpack.c.l.b16 %v21
  %v118 = vunpack.c.l.b16 %v22
  %v119 = vunpack.c.l.b16 %v23
  %v120 = vunpack.c.l.b16 %v24
  %v121 = vunpack.c.l.b16 %v25
  %v122 = vunpack.c.l.b16 %v26
  %v123 = vunpack.c.l.b16 %v27
  %v124 = vunpack.c.l.b16 %v28
  %v125 = vunpack.c.l.b16 %v29
  %v126 = vunpack.c.l.b16 %v30
  %v127 = vunpack.c.l.b16 %v31
  %v128 = vunpack.c.l.b16 %v32
  %v129 = vunpack.c.l.b16 %v33
  %v130 = vunpack.c.l.b16 %v34
  %v131 = vunpack.c.l.b16 %v35
  %v132 = vunpack.c.l.b16 %v36
  %v133 = vunpack.c.l.b16 %v37
  %v134 = vunpack.c.l.b16 %v38
  %v135 = vunpack.c.l.b16 %v39
  %v136 = vunpack.c.l.b16 %v40
  %v137 = vunpack.c.l.b16 %v41
  %v138 = vunpack.c.l.b16 %v42
  %v139 = vunpack.c.l.b16 %v43
  %v140 = vunpack.c.l.b16 %v44
  %v141 = vunpack.c.l.b16 %v45
  %v142 = vpack.c.b16 %v116, %v115
  %v143 = vpack.c.b16 %v118, %v117
  %v144 = vpack.c.b16 %v120, %v119
  %v145 = vpack.c.b16 %v122, %v121
  %v146 = vpack.c.b16 %v124, %v123
  %v147 = vpack.c.b16 %v126, %v125
  %v148 = vpack.c.b16 %v128, %v127
  %v149 = vpack.c.b16 %v130, %v129
  %v150 = vpack.c.b16 %v132, %v131
  %v151 = vpack.c.b16 %v134, %v133
  %v152 = vpack.c.b16 %v136, %v135
  %v153 = vpack.c.b16 %v138, %v137
  %v154 = vpack.c.b16 %v140, %v139
  %v155 = vpack.c.b16 %v141, %v141
  %vm169 = vcmask 719872
  %v171 = vsel %vm169, %v83, 0
  %v174 = vsel %vm169, %v85, 0
  %vm176 = vcmask 1043456
  %v178 = vsel %vm176, %v155, 0
  %180 = vmatprep.subr.bf16.mxu0 0
  %181 = vmatpush1.bf16.msra.mxu0 %v149
  %182 = vmatprep.subr.bf16.mxu0 0
  %183 = vmatpush1.bf16.msra.mxu0 %v148
  %184 = vmatprep.subr.bf16.mxu0 0
  %185 = vmatpush1.bf16.msra.mxu0 %v147
  %186 = vmatprep.subr.bf16.mxu0 0
  %187 = vmatpush1.bf16.msra.mxu0 %v146
  %188 = vmatprep.subr.bf16.mxu0 0
  %189 = vmatpush1.bf16.msra.mxu0 %v145
  %190 = vmatprep.subr.bf16.mxu0 0
  %191 = vmatpush1.bf16.msra.mxu0 %v144
  %192 = vmatprep.subr.bf16.mxu0 0
  %193 = vmatpush1.bf16.msra.mxu0 %v143
  %194 = vmatprep.subr.bf16.mxu0 0
  %195 = vmatpush1.bf16.msra.mxu0 %v142
  %196 = vmatprep.subr.bf16.mxu0 0
  %197 = vmatpush2.bf16.msra.mxu0 0
  %198 = vmatprep.subr.bf16.mxu0 0
  %199 = vmatpush2.bf16.msra.mxu0 0
  %200 = vmatprep.subr.bf16.mxu0 0
  %201 = vmatpush2.bf16.msra.mxu0 %v178
  %202 = vmatprep.subr.bf16.mxu0 0
  %203 = vmatpush2.bf16.msra.mxu0 %v154
  %204 = vmatprep.subr.bf16.mxu0 0
  %205 = vmatpush2.bf16.msra.mxu0 %v153
  %206 = vmatprep.subr.bf16.mxu0 0
  %207 = vmatpush2.bf16.msra.mxu0 %v152
  %208 = vmatprep.subr.bf16.mxu0 0
  %209 = vmatpush2.bf16.msra.mxu0 %v151
  %210 = vmatprep.subr.bf16.mxu0 0
  %211 = vmatpush2.bf16.msra.mxu0 %v150
  %212 = vmatprep.mubr.bf16.mxu0 %v171
  %213 = vmatmul.mubr.bf16.gmra.mxu0 %v82
  %v214 = vpop.f32.mrf.mxu0
  %v215 = vadd.f32 %v53, %v214
  %v216 = vpop.f32.mrf.mxu0
  %v217 = vpop.f32.mrf.mxu0
  %v218 = vadd.f32 %v58, %v217
  %v219 = vpop.f32.mrf.mxu0
  %220 = vmatprep.mubr.bf16.mxu0 %v174
  %221 = vmatmul.mubr.bf16.gmra.mxu0 %v84
  %v222 = vpop.f32.mrf.mxu0
  %v223 = vadd.f32 %v63, %v222
  %v224 = vpop.f32.mrf.mxu0
  %v225 = vpop.f32.mrf.mxu0
  %v226 = vadd.f32 %v68, %v225
  %v227 = vpop.f32.mrf.mxu0
  %228 = vdwg.mxu0
  %v229 = vxor.u32 %v215, 2147483648
  %v230 = vxor.u32 %v218, 2147483648
  %v231 = vxor.u32 %v223, 2147483648
  %v232 = vxor.u32 %v226, 2147483648
  %v233 = vmul.f32 %v229, 1.442695
  %v234 = vpow.pop %v233
  %v235 = vmul.f32 %v230, 1.442695
  %v236 = vpow.pop %v235
  %v237 = vmul.f32 %v231, 1.442695
  %v238 = vpow.pop %v237
  %v239 = vmul.f32 %v232, 1.442695
  %v240 = vpow.pop %v239
  %v241 = vadd.f32 %v234, 1.0
  %v242 = vadd.f32 %v236, 1.0
  %v243 = vadd.f32 %v238, 1.0
  %v244 = vadd.f32 %v240, 1.0
  %v245 = vrcp.pop %v241
  %v246 = vmul.f32 1.0, %v245
  %v247 = vrcp.pop %v242
  %v248 = vmul.f32 1.0, %v247
  %v249 = vrcp.pop %v243
  %v250 = vmul.f32 1.0, %v249
  %v251 = vrcp.pop %v244
  %v252 = vmul.f32 1.0, %v251
  %v253 = vmul.f32 %v215, %v246
  %v254 = vmul.f32 %v218, %v248
  %v255 = vmul.f32 %v223, %v250
  %v256 = vmul.f32 %v226, %v252
  %v257 = vpack.c.bf16 %v254, %v253
  %v258 = vpack.c.bf16 %v256, %v255
  %v261 = vunpack.c.l.b16 %v257
  %v262 = vunpack.c.h.b16 %v257
  %v263 = vunpack.c.l.b16 %v258
  %v264 = vunpack.c.h.b16 %v258
  %v265 = vpack.c.b16 %v261, %v261
  %v266 = vpack.c.b16 %v262, %v262
  %v267 = vpack.c.b16 %v263, %v263
  %v268 = vpack.c.b16 %v264, %v264
  %vm273 = vcmask 257024
  %274 = vst.msk [vmem:[%s3] sm:$0xf] %vm273, %v265
  %275 = vst.msk [vmem:[%s3 + $0x4] sm:$0xf] %vm273, %v266
  %276 = vst.msk [vmem:[%s3 + $0x8] sm:$0xf] %vm273, %v267
  %277 = vst.msk [vmem:[%s3 + $0xc] sm:$0xf] %vm273, %v268
  // Predicated region
  $region14: #{model_forward.23} parent=0 // pred_check
    _
  $region15: #{model_forward.23} parent=0 // pred_check_branch
    %279 = sbr.rel (0) target = $region17
  $region16: #{model_forward.23} parent=0 // pred_region
    _
  $region17: #{model_forward.23} parent=0 // pred_fallthru
    _
  // Predicated region
  $region18: #{model_forward.23} parent=0 // pred_check
    _
  $region19: #{model_forward.23} parent=0 // pred_check_branch
    %281 = sbr.rel (0) target = $region21
  $region20: #{model_forward.23} parent=0 // pred_region
    _
  $region21: #{model_forward.23} parent=0 // pred_fallthru
    _

// kernel: model_forward.24
$region0: #{model_forward.24}
  #allocation0 [shape = 'u32[]', space=smem, size = 0x4, offset = 0x4, fixed_abs, tag = 'smem constant byte address 0x4 - core index']
  #allocation1 [shape = 'u32[144,128]{1,0:T(1,128)}', space=vmem, size = 0x12000, scoped, tag = 'internal scratch']
  %s0 = inlined_call_operand.vmem [shape: bf16[32,288], index: 0, kind: input, shape index: {}]
  %s1 = inlined_call_operand.vmem [shape: f32[32,1], index: 1, kind: input, shape index: {}]
  %s2 = inlined_call_operand.vmem [shape: bf16[288,32], index: 2, kind: input, shape index: {}]
  %s3 = inlined_call_operand.vmem [shape: bf16[32,32], index: 3, kind: output, shape index: {}]
  %s4 = sld [smem:[#allocation0]]
  $region22: #{model_forward.24} parent=0
    _
  %s6 = ssub.s32 1, %s4
  %s7 = scalar_select 0, %s6, %s4
  // Predicated region
  $region2: #{model_forward.24} parent=0 // pred_check
    _
  $region3: #{model_forward.24} parent=0 // pred_check_branch
    %9 = sbr.rel (0) target = $region5
  $region4: #{model_forward.24} parent=0 // pred_region
    _
  $region5: #{model_forward.24} parent=0 // pred_fallthru
    _
  // Predicated region
  $region6: #{model_forward.24} parent=0 // pred_check
    _
  $region7: #{model_forward.24} parent=0 // pred_check_branch
    %11 = sbr.rel (0) target = $region9
  $region8: #{model_forward.24} parent=0 // pred_region
    _
  $region9: #{model_forward.24} parent=0 // pred_fallthru
    _
  // Predicated region
  $region10: #{model_forward.24} parent=0 // pred_check
    _
  $region11: #{model_forward.24} parent=0 // pred_check_branch
    %13 = sbr.rel (0) target = $region13
  $region12: #{model_forward.24} parent=0 // pred_region
    _
  $region13: #{model_forward.24} parent=0 // pred_fallthru
    _
  %v15 = vld [vmem:[%s0] sm:$0xff]
  %v16 = vld [vmem:[%s0 + $0x8] sm:$0xf]
  %v17 = vld [vmem:[%s0 + $0xc] sm:$0xff]
  %v18 = vld [vmem:[%s0 + $0x14] sm:$0xf]
  %v19 = vld [vmem:[%s0 + $0x18] sm:$0xff]
  %v20 = vld [vmem:[%s0 + $0x20] sm:$0xf]
  %v21 = vld [vmem:[%s0 + $0x24] sm:$0xff]
  %v22 = vld [vmem:[%s0 + $0x2c] sm:$0xf]
  %v23 = vld [vmem:[%s2] sm:$0xf]
  %v24 = vld [vmem:[%s2 + $0x4] sm:$0xf]
  %v25 = vld [vmem:[%s2 + $0x8] sm:$0xf]
  %v26 = vld [vmem:[%s2 + $0xc] sm:$0xf]
  %v27 = vld [vmem:[%s2 + $0x10] sm:$0xf]
  %v28 = vld [vmem:[%s2 + $0x14] sm:$0xf]
  %v29 = vld [vmem:[%s2 + $0x18] sm:$0xf]
  %v30 = vld [vmem:[%s2 + $0x1c] sm:$0xf]
  %v31 = vld [vmem:[%s2 + $0x20] sm:$0xf]
  %v32 = vld [vmem:[%s2 + $0x24] sm:$0xf]
  %v33 = vld [vmem:[%s2 + $0x28] sm:$0xf]
  %v34 = vld [vmem:[%s2 + $0x2c] sm:$0xf]
  %v35 = vld [vmem:[%s2 + $0x30] sm:$0xf]
  %v36 = vld [vmem:[%s2 + $0x34] sm:$0xf]
  %v37 = vld [vmem:[%s2 + $0x38] sm:$0xf]
  %v38 = vld [vmem:[%s2 + $0x3c] sm:$0xf]
  %v39 = vld [vmem:[%s2 + $0x40] sm:$0xf]
  %v40 = vld [vmem:[%s2 + $0x44] sm:$0xf]
  %v41 = vld [vmem:[%s2 + $0x48] sm:$0xf]
  %v42 = vld [vmem:[%s2 + $0x4c] sm:$0xf]
  %v43 = vld [vmem:[%s2 + $0x50] sm:$0xf]
  %v44 = vld [vmem:[%s2 + $0x54] sm:$0xf]
  %v45 = vld [vmem:[%s2 + $0x58] sm:$0xf]
  %v46 = vld [vmem:[%s2 + $0x5c] sm:$0xf]
  %v47 = vld [vmem:[%s2 + $0x60] sm:$0xf]
  %v48 = vld [vmem:[%s2 + $0x64] sm:$0xf]
  %v49 = vld [vmem:[%s2 + $0x68] sm:$0xf]
  %v50 = vld [vmem:[%s2 + $0x6c] sm:$0xf]
  %v51 = vld [vmem:[%s2 + $0x70] sm:$0xf]
  %v52 = vld [vmem:[%s2 + $0x74] sm:$0xf]
  %v53 = vld [vmem:[%s2 + $0x78] sm:$0xf]
  %v54 = vld [vmem:[%s2 + $0x7c] sm:$0xf]
  %v55 = vld [vmem:[%s2 + $0x80] sm:$0xf]
  %v56 = vld [vmem:[%s2 + $0x84] sm:$0xf]
  %v57 = vld [vmem:[%s2 + $0x88] sm:$0xf]
  %v58 = vld [vmem:[%s2 + $0x8c] sm:$0xf]
  %v59 = vld [vmem:[%s1] sm:$0xff]
  %v60 = vld [vmem:[%s1 + $0x8] sm:$0xff]
  %v61 = vld [vmem:[%s1 + $0x10] sm:$0xff]
  %v62 = vld [vmem:[%s1 + $0x18] sm:$0xff]
  %64 = vset.pattern.permute.xlu0 0
  %65 = vperm.xlu0 %64, %v59
  %v66 = vpop.permute.xlu0 %65
  %69 = vset.pattern.permute.xlu0 0
  %70 = vperm.xlu0 %69, %v60
  %v71 = vpop.permute.xlu0 %70
  %74 = vset.pattern.permute.xlu0 0
  %75 = vperm.xlu0 %74, %v61
  %v76 = vpop.permute.xlu0 %75
  %79 = vset.pattern.permute.xlu0 0
  %80 = vperm.xlu0 %79, %v62
  %v81 = vpop.permute.xlu0 %80
  %v91 = vunpack.c.l.b16 %v15
  %v92 = vunpack.c.h.b16 %v15
  %v93 = vunpack.c.l.b16 %v16
  %v94 = vunpack.c.l.b16 %v17
  %v95 = vunpack.c.h.b16 %v17
  %v96 = vunpack.c.l.b16 %v18
  %v97 = vunpack.c.l.b16 %v19
  %v98 = vunpack.c.h.b16 %v19
  %v99 = vunpack.c.l.b16 %v20
  %v100 = vunpack.c.l.b16 %v21
  %v101 = vunpack.c.h.b16 %v21
  %v102 = vunpack.c.l.b16 %v22
  %v103 = vpack.c.b16 %v94, %v91
  %v104 = vpack.c.b16 %v95, %v92
  %v105 = vpack.c.b16 %v96, %v93
  %v106 = vpack.c.b16 %v100, %v97
  %v107 = vpack.c.b16 %v101, %v98
  %v108 = vpack.c.b16 %v102, %v99
  %v149 = vunpack.c.l.b16 %v23
  %v150 = vunpack.c.l.b16 %v24
  %v151 = vunpack.c.l.b16 %v25
  %v152 = vunpack.c.l.b16 %v26
  %v153 = vunpack.c.l.b16 %v27
  %v154 = vunpack.c.l.b16 %v28
  %v155 = vunpack.c.l.b16 %v29
  %v156 = vunpack.c.l.b16 %v30
  %v157 = vunpack.c.l.b16 %v31
  %v158 = vunpack.c.l.b16 %v32
  %v159 = vunpack.c.l.b16 %v33
  %v160 = vunpack.c.l.b16 %v34
  %v161 = vunpack.c.l.b16 %v35
  %v162 = vunpack.c.l.b16 %v36
  %v163 = vunpack.c.l.b16 %v37
  %v164 = vunpack.c.l.b16 %v38
  %v165 = vunpack.c.l.b16 %v39
  %v166 = vunpack.c.l.b16 %v40
  %v167 = vunpack.c.l.b16 %v41
  %v168 = vunpack.c.l.b16 %v42
  %v169 = vunpack.c.l.b16 %v43
  %v170 = vunpack.c.l.b16 %v44
  %v171 = vunpack.c.l.b16 %v45
  %v172 = vunpack.c.l.b16 %v46
  %v173 = vunpack.c.l.b16 %v47
  %v174 = vunpack.c.l.b16 %v48
  %v175 = vunpack.c.l.b16 %v49
  %v176 = vunpack.c.l.b16 %v50
  %v177 = vunpack.c.l.b16 %v51
  %v178 = vunpack.c.l.b16 %v52
  %v179 = vunpack.c.l.b16 %v53
  %v180 = vunpack.c.l.b16 %v54
  %v181 = vunpack.c.l.b16 %v55
  %v182 = vunpack.c.l.b16 %v56
  %v183 = vunpack.c.l.b16 %v57
  %v184 = vunpack.c.l.b16 %v58
  %v185 = vpack.c.b16 %v150, %v149
  %v186 = vpack.c.b16 %v152, %v151
  %v187 = vpack.c.b16 %v154, %v153
  %v188 = vpack.c.b16 %v156, %v155
  %v189 = vpack.c.b16 %v158, %v157
  %v190 = vpack.c.b16 %v160, %v159
  %v191 = vpack.c.b16 %v162, %v161
  %v192 = vpack.c.b16 %v164, %v163
  %v193 = vpack.c.b16 %v166, %v165
  %v194 = vpack.c.b16 %v168, %v167
  %v195 = vpack.c.b16 %v170, %v169
  %v196 = vpack.c.b16 %v172, %v171
  %v197 = vpack.c.b16 %v174, %v173
  %v198 = vpack.c.b16 %v176, %v175
  %v199 = vpack.c.b16 %v178, %v177
  %v200 = vpack.c.b16 %v180, %v179
  %v201 = vpack.c.b16 %v182, %v181
  %v202 = vpack.c.b16 %v184, %v183
  %vm221 = vcmask 261120
  %v223 = vsel %vm221, %v105, 0
  %v226 = vsel %vm221, %v108, 0
  %228 = vmatprep.subr.bf16.mxu0 0
  %229 = vmatpush1.bf16.msra.mxu0 %v192
  %230 = vmatprep.subr.bf16.mxu0 0
  %231 = vmatpush1.bf16.msra.mxu0 %v191
  %232 = vmatprep.subr.bf16.mxu0 0
  %233 = vmatpush1.bf16.msra.mxu0 %v190
  %234 = vmatprep.subr.bf16.mxu0 0
  %235 = vmatpush1.bf16.msra.mxu0 %v189
  %236 = vmatprep.subr.bf16.mxu0 0
  %237 = vmatpush1.bf16.msra.mxu0 %v188
  %238 = vmatprep.subr.bf16.mxu0 0
  %239 = vmatpush1.bf16.msra.mxu0 %v187
  %240 = vmatprep.subr.bf16.mxu0 0
  %241 = vmatpush1.bf16.msra.mxu0 %v186
  %242 = vmatprep.subr.bf16.mxu0 0
  %243 = vmatpush1.bf16.msra.mxu0 %v185
  %244 = vmatprep.subr.bf16.mxu0 0
  %245 = vmatpush2.bf16.msra.mxu0 %v200
  %246 = vmatprep.subr.bf16.mxu0 0
  %247 = vmatpush2.bf16.msra.mxu0 %v199
  %248 = vmatprep.subr.bf16.mxu0 0
  %249 = vmatpush2.bf16.msra.mxu0 %v198
  %250 = vmatprep.subr.bf16.mxu0 0
  %251 = vmatpush2.bf16.msra.mxu0 %v197
  %252 = vmatprep.subr.bf16.mxu0 0
  %253 = vmatpush2.bf16.msra.mxu0 %v196
  %254 = vmatprep.subr.bf16.mxu0 0
  %255 = vmatpush2.bf16.msra.mxu0 %v195
  %256 = vmatprep.subr.bf16.mxu0 0
  %257 = vmatpush2.bf16.msra.mxu0 %v194
  %258 = vmatprep.subr.bf16.mxu0 0
  %259 = vmatpush2.bf16.msra.mxu0 %v193
  %260 = vmatprep.mubr.bf16.mxu0 %v104
  %261 = vmatmul.mubr.bf16.gmra.mxu0 %v103
  %v262 = vpop.f32.mrf.mxu0
  %v263 = vadd.f32 %v66, %v262
  %v264 = vpop.f32.mrf.mxu0
  %v265 = vpop.f32.mrf.mxu0
  %v266 = vadd.f32 %v71, %v265
  %v267 = vpop.f32.mrf.mxu0
  %268 = vmatprep.mubr.bf16.mxu0 %v107
  %269 = vmatmul.mubr.bf16.gmra.mxu0 %v106
  %v270 = vpop.f32.mrf.mxu0
  %v271 = vadd.f32 %v76, %v270
  %v272 = vpop.f32.mrf.mxu0
  %v273 = vpop.f32.mrf.mxu0
  %v274 = vadd.f32 %v81, %v273
  %v275 = vpop.f32.mrf.mxu0
  %276 = vdwg.mxu0
  %277 = vmatprep.subr.bf16.mxu0 0
  %278 = vmatpush1.bf16.msra.mxu0 0
  %279 = vmatprep.subr.bf16.mxu0 0
  %280 = vmatpush1.bf16.msra.mxu0 0
  %281 = vmatprep.subr.bf16.mxu0 0
  %282 = vmatpush1.bf16.msra.mxu0 0
  %283 = vmatprep.subr.bf16.mxu0 0
  %284 = vmatpush1.bf16.msra.mxu0 0
  %285 = vmatprep.subr.bf16.mxu0 0
  %286 = vmatpush1.bf16.msra.mxu0 0
  %287 = vmatprep.subr.bf16.mxu0 0
  %288 = vmatpush1.bf16.msra.mxu0 0
  %289 = vmatprep.subr.bf16.mxu0 0
  %290 = vmatpush1.bf16.msra.mxu0 %v202
  %291 = vmatprep.subr.bf16.mxu0 0
  %292 = vmatpush1.bf16.msra.mxu0 %v201
  %293 = vmatprep.subr.bf16.mxu0 0
  %294 = vmatpush2.bf16.msra.mxu0 0
  %295 = vmatprep.subr.bf16.mxu0 0
  %296 = vmatpush2.bf16.msra.mxu0 0
  %297 = vmatprep.subr.bf16.mxu0 0
  %298 = vmatpush2.bf16.msra.mxu0 0
  %299 = vmatprep.subr.bf16.mxu0 0
  %300 = vmatpush2.bf16.msra.mxu0 0
  %301 = vmatprep.subr.bf16.mxu0 0
  %302 = vmatpush2.bf16.msra.mxu0 0
  %303 = vmatprep.subr.bf16.mxu0 0
  %304 = vmatpush2.bf16.msra.mxu0 0
  %305 = vmatprep.subr.bf16.mxu0 0
  %306 = vmatpush2.bf16.msra.mxu0 0
  %307 = vmatprep.subr.bf16.mxu0 0
  %308 = vmatpush2.bf16.msra.mxu0 0
  %309 = vmatprep.mubr.bf16.mxu0 0
  %310 = vmatmul.mubr.bf16.gmra.mxu0 %v223
  %v311 = vpop.f32.mrf.mxu0
  %v312 = vadd.f32 %v263, %v311
  %v313 = vpop.f32.mrf.mxu0
  %v314 = vpop.f32.mrf.mxu0
  %v315 = vadd.f32 %v266, %v314
  %v316 = vpop.f32.mrf.mxu0
  %317 = vmatprep.mubr.bf16.mxu0 0
  %318 = vmatmul.mubr.bf16.gmra.mxu0 %v226
  %v319 = vpop.f32.mrf.mxu0
  %v320 = vadd.f32 %v271, %v319
  %v321 = vpop.f32.mrf.mxu0
  %v322 = vpop.f32.mrf.mxu0
  %v323 = vadd.f32 %v274, %v322
  %v324 = vpop.f32.mrf.mxu0
  %325 = vdwg.mxu0
  %v326 = vxor.u32 %v312, 2147483648
  %v327 = vxor.u32 %v315, 2147483648
  %v328 = vxor.u32 %v320, 2147483648
  %v329 = vxor.u32 %v323, 2147483648
  %v330 = vmul.f32 %v326, 1.442695
  %v331 = vpow.pop %v330
  %v332 = vmul.f32 %v327, 1.442695
  %v333 = vpow.pop %v332
  %v334 = vmul.f32 %v328, 1.442695
  %v335 = vpow.pop %v334
  %v336 = vmul.f32 %v329, 1.442695
  %v337 = vpow.pop %v336
  %v338 = vadd.f32 %v331, 1.0
  %v339 = vadd.f32 %v333, 1.0
  %v340 = vadd.f32 %v335, 1.0
  %v341 = vadd.f32 %v337, 1.0
  %v342 = vrcp.pop %v338
  %v343 = vmul.f32 1.0, %v342
  %v344 = vrcp.pop %v339
  %v345 = vmul.f32 1.0, %v344
  %v346 = vrcp.pop %v340
  %v347 = vmul.f32 1.0, %v346
  %v348 = vrcp.pop %v341
  %v349 = vmul.f32 1.0, %v348
  %v350 = vmul.f32 %v312, %v343
  %v351 = vmul.f32 %v315, %v345
  %v352 = vmul.f32 %v320, %v347
  %v353 = vmul.f32 %v323, %v349
  %v354 = vpack.c.bf16 %v351, %v350
  %v355 = vpack.c.bf16 %v353, %v352
  %v358 = vunpack.c.l.b16 %v354
  %v359 = vunpack.c.h.b16 %v354
  %v360 = vunpack.c.l.b16 %v355
  %v361 = vunpack.c.h.b16 %v355
  %v362 = vpack.c.b16 %v358, %v358
  %v363 = vpack.c.b16 %v359, %v359
  %v364 = vpack.c.b16 %v360, %v360
  %v365 = vpack.c.b16 %v361, %v361
  %vm370 = vcmask 257024
  %371 = vst.msk [vmem:[%s3] sm:$0xf] %vm370, %v362
  %372 = vst.msk [vmem:[%s3 + $0x4] sm:$0xf] %vm370, %v363
  %373 = vst.msk [vmem:[%s3 + $0x8] sm:$0xf] %vm370, %v364
  %374 = vst.msk [vmem:[%s3 + $0xc] sm:$0xf] %vm370, %v365
  // Predicated region
  $region14: #{model_forward.24} parent=0 // pred_check
    _
  $region15: #{model_forward.24} parent=0 // pred_check_branch
    %376 = sbr.rel (0) target = $region17
  $region16: #{model_forward.24} parent=0 // pred_region
    _
  $region17: #{model_forward.24} parent=0 // pred_fallthru
    _
  // Predicated region
  $region18: #{model_forward.24} parent=0 // pred_check
    _
  $region19: #{model_forward.24} parent=0 // pred_check_branch
    %378 = sbr.rel (0) target = $region21
  $region20: #{model_forward.24} parent=0 // pred_region
    _
  $region21: #{model_forward.24} parent=0 // pred_fallthru
    _

// kernel: model_forward.25
$region0: #{model_forward.25}
  #allocation0 [shape = 'u32[]', space=smem, size = 0x4, offset = 0x4, fixed_abs, tag = 'smem constant byte address 0x4 - core index']
  #allocation1 [shape = 'u32[144,128]{1,0:T(1,128)}', space=vmem, size = 0x12000, scoped, tag = 'internal scratch']
  %s0 = inlined_call_operand.vmem [shape: bf16[48,288], index: 0, kind: input, shape index: {}]
  %s1 = inlined_call_operand.vmem [shape: f32[48,1], index: 1, kind: input, shape index: {}]
  %s2 = inlined_call_operand.vmem [shape: bf16[288,8], index: 2, kind: input, shape index: {}]
  %s3 = inlined_call_operand.vmem [shape: bf16[48,8], index: 3, kind: output, shape index: {}]
  %s4 = sld [smem:[#allocation0]]
  $region22: #{model_forward.25} parent=0
    _
  %s6 = ssub.s32 1, %s4
  %s7 = scalar_select 0, %s6, %s4
  // Predicated region
  $region2: #{model_forward.25} parent=0 // pred_check
    _
  $region3: #{model_forward.25} parent=0 // pred_check_branch
    %9 = sbr.rel (0) target = $region5
  $region4: #{model_forward.25} parent=0 // pred_region
    _
  $region5: #{model_forward.25} parent=0 // pred_fallthru
    _
  // Predicated region
  $region6: #{model_forward.25} parent=0 // pred_check
    _
  $region7: #{model_forward.25} parent=0 // pred_check_branch
    %11 = sbr.rel (0) target = $region9
  $region8: #{model_forward.25} parent=0 // pred_region
    _
  $region9: #{model_forward.25} parent=0 // pred_fallthru
    _
  // Predicated region
  $region10: #{model_forward.25} parent=0 // pred_check
    _
  $region11: #{model_forward.25} parent=0 // pred_check_branch
    %13 = sbr.rel (0) target = $region13
  $region12: #{model_forward.25} parent=0 // pred_region
    _
  $region13: #{model_forward.25} parent=0 // pred_fallthru
    _
  %v15 = vld [vmem:[%s0] sm:$0xff]
  %v16 = vld [vmem:[%s0 + $0x8] sm:$0xf]
  %v17 = vld [vmem:[%s0 + $0xc] sm:$0xff]
  %v18 = vld [vmem:[%s0 + $0x14] sm:$0xf]
  %v19 = vld [vmem:[%s0 + $0x18] sm:$0xff]
  %v20 = vld [vmem:[%s0 + $0x20] sm:$0xf]
  %v21 = vld [vmem:[%s0 + $0x24] sm:$0xff]
  %v22 = vld [vmem:[%s0 + $0x2c] sm:$0xf]
  %v23 = vld [vmem:[%s0 + $0x30] sm:$0xff]
  %v24 = vld [vmem:[%s0 + $0x38] sm:$0xf]
  %v25 = vld [vmem:[%s0 + $0x3c] sm:$0xff]
  %v26 = vld [vmem:[%s0 + $0x44] sm:$0xf]
  %v27 = vld [vmem:[%s2] sm:$0xf]
  %v28 = vld [vmem:[%s2 + $0x4] sm:$0xf]
  %v29 = vld [vmem:[%s2 + $0x8] sm:$0xf]
  %v30 = vld [vmem:[%s2 + $0xc] sm:$0xf]
  %v31 = vld [vmem:[%s2 + $0x10] sm:$0xf]
  %v32 = vld [vmem:[%s2 + $0x14] sm:$0xf]
  %v33 = vld [vmem:[%s2 + $0x18] sm:$0xf]
  %v34 = vld [vmem:[%s2 + $0x1c] sm:$0xf]
  %v35 = vld [vmem:[%s2 + $0x20] sm:$0xf]
  %v36 = vld [vmem:[%s2 + $0x24] sm:$0xf]
  %v37 = vld [vmem:[%s2 + $0x28] sm:$0xf]
  %v38 = vld [vmem:[%s2 + $0x2c] sm:$0xf]
  %v39 = vld [vmem:[%s2 + $0x30] sm:$0xf]
  %v40 = vld [vmem:[%s2 + $0x34] sm:$0xf]
  %v41 = vld [vmem:[%s2 + $0x38] sm:$0xf]
  %v42 = vld [vmem:[%s2 + $0x3c] sm:$0xf]
  %v43 = vld [vmem:[%s2 + $0x40] sm:$0xf]
  %v44 = vld [vmem:[%s2 + $0x44] sm:$0xf]
  %v45 = vld [vmem:[%s2 + $0x48] sm:$0xf]
  %v46 = vld [vmem:[%s2 + $0x4c] sm:$0xf]
  %v47 = vld [vmem:[%s2 + $0x50] sm:$0xf]
  %v48 = vld [vmem:[%s2 + $0x54] sm:$0xf]
  %v49 = vld [vmem:[%s2 + $0x58] sm:$0xf]
  %v50 = vld [vmem:[%s2 + $0x5c] sm:$0xf]
  %v51 = vld [vmem:[%s2 + $0x60] sm:$0xf]
  %v52 = vld [vmem:[%s2 + $0x64] sm:$0xf]
  %v53 = vld [vmem:[%s2 + $0x68] sm:$0xf]
  %v54 = vld [vmem:[%s2 + $0x6c] sm:$0xf]
  %v55 = vld [vmem:[%s2 + $0x70] sm:$0xf]
  %v56 = vld [vmem:[%s2 + $0x74] sm:$0xf]
  %v57 = vld [vmem:[%s2 + $0x78] sm:$0xf]
  %v58 = vld [vmem:[%s2 + $0x7c] sm:$0xf]
  %v59 = vld [vmem:[%s2 + $0x80] sm:$0xf]
  %v60 = vld [vmem:[%s2 + $0x84] sm:$0xf]
  %v61 = vld [vmem:[%s2 + $0x88] sm:$0xf]
  %v62 = vld [vmem:[%s2 + $0x8c] sm:$0xf]
  %v63 = vld [vmem:[%s1] sm:$0xff]
  %v64 = vld [vmem:[%s1 + $0x8] sm:$0xff]
  %v65 = vld [vmem:[%s1 + $0x10] sm:$0xff]
  %v66 = vld [vmem:[%s1 + $0x18] sm:$0xff]
  %v67 = vld [vmem:[%s1 + $0x20] sm:$0xff]
  %v68 = vld [vmem:[%s1 + $0x28] sm:$0xff]
  %70 = vset.pattern.permute.xlu0 0
  %71 = vperm.xlu0 %70, %v63
  %v72 = vpop.permute.xlu0 %71
  %75 = vset.pattern.permute.xlu0 0
  %76 = vperm.xlu0 %75, %v64
  %v77 = vpop.permute.xlu0 %76
  %80 = vset.pattern.permute.xlu0 0
  %81 = vperm.xlu0 %80, %v65
  %v82 = vpop.permute.xlu0 %81
  %85 = vset.pattern.permute.xlu0 0
  %86 = vperm.xlu0 %85, %v66
  %v87 = vpop.permute.xlu0 %86
  %90 = vset.pattern.permute.xlu0 0
  %91 = vperm.xlu0 %90, %v67
  %v92 = vpop.permute.xlu0 %91
  %95 = vset.pattern.permute.xlu0 0
  %96 = vperm.xlu0 %95, %v68
  %v97 = vpop.permute.xlu0 %96
  %v111 = vunpack.c.l.b16 %v15
  %v112 = vunpack.c.h.b16 %v15
  %v113 = vunpack.c.l.b16 %v16
  %v114 = vunpack.c.l.b16 %v17
  %v115 = vunpack.c.h.b16 %v17
  %v116 = vunpack.c.l.b16 %v18
  %v117 = vunpack.c.l.b16 %v19
  %v118 = vunpack.c.h.b16 %v19
  %v119 = vunpack.c.l.b16 %v20
  %v120 = vunpack.c.l.b16 %v21
  %v121 = vunpack.c.h.b16 %v21
  %v122 = vunpack.c.l.b16 %v22
  %v123 = vunpack.c.l.b16 %v23
  %v124 = vunpack.c.h.b16 %v23
  %v125 = vunpack.c.l.b16 %v24
  %v126 = vunpack.c.l.b16 %v25
  %v127 = vunpack.c.h.b16 %v25
  %v128 = vunpack.c.l.b16 %v26
  %v129 = vpack.c.b16 %v114, %v111
  %v130 = vpack.c.b16 %v115, %v112
  %v131 = vpack.c.b16 %v116, %v113
  %v132 = vpack.c.b16 %v120, %v117
  %v133 = vpack.c.b16 %v121, %v118
  %v134 = vpack.c.b16 %v122, %v119
  %v135 = vpack.c.b16 %v126, %v123
  %v136 = vpack.c.b16 %v127, %v124
  %v137 = vpack.c.b16 %v128, %v125
  %v180 = vunpack.c.l.b16 %v27
  %v181 = vunpack.c.l.b16 %v28
  %v182 = vunpack.c.l.b16 %v29
  %v183 = vunpack.c.l.b16 %v30
  %v184 = vunpack.c.l.b16 %v31
  %v185 = vunpack.c.l.b16 %v32
  %v186 = vunpack.c.l.b16 %v33
  %v187 = vunpack.c.l.b16 %v34
  %v188 = vunpack.c.l.b16 %v35
  %v189 = vunpack.c.l.b16 %v36
  %v190 = vunpack.c.l.b16 %v37
  %v191 = vunpack.c.l.b16 %v38
  %v192 = vunpack.c.l.b16 %v39
  %v193 = vunpack.c.l.b16 %v40
  %v194 = vunpack.c.l.b16 %v41
  %v195 = vunpack.c.l.b16 %v42
  %v196 = vunpack.c.l.b16 %v43
  %v197 = vunpack.c.l.b16 %v44
  %v198 = vunpack.c.l.b16 %v45
  %v199 = vunpack.c.l.b16 %v46
  %v200 = vunpack.c.l.b16 %v47
  %v201 = vunpack.c.l.b16 %v48
  %v202 = vunpack.c.l.b16 %v49
  %v203 = vunpack.c.l.b16 %v50
  %v204 = vunpack.c.l.b16 %v51
  %v205 = vunpack.c.l.b16 %v52
  %v206 = vunpack.c.l.b16 %v53
  %v207 = vunpack.c.l.b16 %v54
  %v208 = vunpack.c.l.b16 %v55
  %v209 = vunpack.c.l.b16 %v56
  %v210 = vunpack.c.l.b16 %v57
  %v211 = vunpack.c.l.b16 %v58
  %v212 = vunpack.c.l.b16 %v59
  %v213 = vunpack.c.l.b16 %v60
  %v214 = vunpack.c.l.b16 %v61
  %v215 = vunpack.c.l.b16 %v62
  %v216 = vpack.c.b16 %v181, %v180
  %v217 = vpack.c.b16 %v183, %v182
  %v218 = vpack.c.b16 %v185, %v184
  %v219 = vpack.c.b16 %v187, %v186
  %v220 = vpack.c.b16 %v189, %v188
  %v221 = vpack.c.b16 %v191, %v190
  %v222 = vpack.c.b16 %v193, %v192
  %v223 = vpack.c.b16 %v195, %v194
  %v224 = vpack.c.b16 %v197, %v196
  %v225 = vpack.c.b16 %v199, %v198
  %v226 = vpack.c.b16 %v201, %v200
  %v227 = vpack.c.b16 %v203, %v202
  %v228 = vpack.c.b16 %v205, %v204
  %v229 = vpack.c.b16 %v207, %v206
  %v230 = vpack.c.b16 %v209, %v208
  %v231 = vpack.c.b16 %v211, %v210
  %v232 = vpack.c.b16 %v213, %v212
  %v233 = vpack.c.b16 %v215, %v214
  %vm252 = vcmask 261120
  %v254 = vsel %vm252, %v131, 0
  %v257 = vsel %vm252, %v134, 0
  %v260 = vsel %vm252, %v137, 0
  %262 = vmatprep.subr.bf16.mxu0 0
  %263 = vmatpush1.bf16.msra.mxu0 %v223
  %264 = vmatprep.subr.bf16.mxu0 0
  %265 = vmatpush1.bf16.msra.mxu0 %v222
  %266 = vmatprep.subr.bf16.mxu0 0
  %267 = vmatpush1.bf16.msra.mxu0 %v221
  %268 = vmatprep.subr.bf16.mxu0 0
  %269 = vmatpush1.bf16.msra.mxu0 %v220
  %270 = vmatprep.subr.bf16.mxu0 0
  %271 = vmatpush1.bf16.msra.mxu0 %v219
  %272 = vmatprep.subr.bf16.mxu0 0
  %273 = vmatpush1.bf16.msra.mxu0 %v218
  %274 = vmatprep.subr.bf16.mxu0 0
  %275 = vmatpush1.bf16.msra.mxu0 %v217
  %276 = vmatprep.subr.bf16.mxu0 0
  %277 = vmatpush1.bf16.msra.mxu0 %v216
  %278 = vmatprep.subr.bf16.mxu0 0
  %279 = vmatpush2.bf16.msra.mxu0 %v231
  %280 = vmatprep.subr.bf16.mxu0 0
  %281 = vmatpush2.bf16.msra.mxu0 %v230
  %282 = vmatprep.subr.bf16.mxu0 0
  %283 = vmatpush2.bf16.msra.mxu0 %v229
  %284 = vmatprep.subr.bf16.mxu0 0
  %285 = vmatpush2.bf16.msra.mxu0 %v228
  %286 = vmatprep.subr.bf16.mxu0 0
  %287 = vmatpush2.bf16.msra.mxu0 %v227
  %288 = vmatprep.subr.bf16.mxu0 0
  %289 = vmatpush2.bf16.msra.mxu0 %v226
  %290 = vmatprep.subr.bf16.mxu0 0
  %291 = vmatpush2.bf16.msra.mxu0 %v225
  %292 = vmatprep.subr.bf16.mxu0 0
  %293 = vmatpush2.bf16.msra.mxu0 %v224
  %294 = vmatprep.mubr.bf16.mxu0 %v130
  %295 = vmatmul.mubr.bf16.gmra.mxu0 %v129
  %v296 = vpop.f32.mrf.mxu0
  %v297 = vadd.f32 %v72, %v296
  %v298 = vpop.f32.mrf.mxu0
  %v299 = vpop.f32.mrf.mxu0
  %v300 = vadd.f32 %v77, %v299
  %v301 = vpop.f32.mrf.mxu0
  %302 = vmatprep.mubr.bf16.mxu0 %v133
  %303 = vmatmul.mubr.bf16.gmra.mxu0 %v132
  %v304 = vpop.f32.mrf.mxu0
  %v305 = vadd.f32 %v82, %v304
  %v306 = vpop.f32.mrf.mxu0
  %v307 = vpop.f32.mrf.mxu0
  %v308 = vadd.f32 %v87, %v307
  %v309 = vpop.f32.mrf.mxu0
  %310 = vmatprep.mubr.bf16.mxu0 %v136
  %311 = vmatmul.mubr.bf16.gmra.mxu0 %v135
  %v312 = vpop.f32.mrf.mxu0
  %v313 = vadd.f32 %v92, %v312
  %v314 = vpop.f32.mrf.mxu0
  %v315 = vpop.f32.mrf.mxu0
  %v316 = vadd.f32 %v97, %v315
  %v317 = vpop.f32.mrf.mxu0
  %318 = vdwg.mxu0
  %319 = vmatprep.subr.bf16.mxu0 0
  %320 = vmatpush1.bf16.msra.mxu0 0
  %321 = vmatprep.subr.bf16.mxu0 0
  %322 = vmatpush1.bf16.msra.mxu0 0
  %323 = vmatprep.subr.bf16.mxu0 0
  %324 = vmatpush1.bf16.msra.mxu0 0
  %325 = vmatprep.subr.bf16.mxu0 0
  %326 = vmatpush1.bf16.msra.mxu0 0
  %327 = vmatprep.subr.bf16.mxu0 0
  %328 = vmatpush1.bf16.msra.mxu0 0
  %329 = vmatprep.subr.bf16.mxu0 0
  %330 = vmatpush1.bf16.msra.mxu0 0
  %331 = vmatprep.subr.bf16.mxu0 0
  %332 = vmatpush1.bf16.msra.mxu0 %v233
  %333 = vmatprep.subr.bf16.mxu0 0
  %334 = vmatpush1.bf16.msra.mxu0 %v232
  %335 = vmatprep.subr.bf16.mxu0 0
  %336 = vmatpush2.bf16.msra.mxu0 0
  %337 = vmatprep.subr.bf16.mxu0 0
  %338 = vmatpush2.bf16.msra.mxu0 0
  %339 = vmatprep.subr.bf16.mxu0 0
  %340 = vmatpush2.bf16.msra.mxu0 0
  %341 = vmatprep.subr.bf16.mxu0 0
  %342 = vmatpush2.bf16.msra.mxu0 0
  %343 = vmatprep.subr.bf16.mxu0 0
  %344 = vmatpush2.bf16.msra.mxu0 0
  %345 = vmatprep.subr.bf16.mxu0 0
  %346 = vmatpush2.bf16.msra.mxu0 0
  %347 = vmatprep.subr.bf16.mxu0 0
  %348 = vmatpush2.bf16.msra.mxu0 0
  %349 = vmatprep.subr.bf16.mxu0 0
  %350 = vmatpush2.bf16.msra.mxu0 0
  %351 = vmatprep.mubr.bf16.mxu0 0
  %352 = vmatmul.mubr.bf16.gmra.mxu0 %v254
  %v353 = vpop.f32.mrf.mxu0
  %v354 = vadd.f32 %v297, %v353
  %v355 = vpop.f32.mrf.mxu0
  %v356 = vpop.f32.mrf.mxu0
  %v357 = vadd.f32 %v300, %v356
  %v358 = vpop.f32.mrf.mxu0
  %359 = vmatprep.mubr.bf16.mxu0 0
  %360 = vmatmul.mubr.bf16.gmra.mxu0 %v257
  %v361 = vpop.f32.mrf.mxu0
  %v362 = vadd.f32 %v305, %v361
  %v363 = vpop.f32.mrf.mxu0
  %v364 = vpop.f32.mrf.mxu0
  %v365 = vadd.f32 %v308, %v364
  %v366 = vpop.f32.mrf.mxu0
  %367 = vmatprep.mubr.bf16.mxu0 0
  %368 = vmatmul.mubr.bf16.gmra.mxu0 %v260
  %v369 = vpop.f32.mrf.mxu0
  %v370 = vadd.f32 %v313, %v369
  %v371 = vpop.f32.mrf.mxu0
  %v372 = vpop.f32.mrf.mxu0
  %v373 = vadd.f32 %v316, %v372
  %v374 = vpop.f32.mrf.mxu0
  %375 = vdwg.mxu0
  %v376 = vxor.u32 %v354, 2147483648
  %v377 = vxor.u32 %v357, 2147483648
  %v378 = vxor.u32 %v362, 2147483648
  %v379 = vxor.u32 %v365, 2147483648
  %v380 = vxor.u32 %v370, 2147483648
  %v381 = vxor.u32 %v373, 2147483648
  %v382 = vmul.f32 %v376, 1.442695
  %v383 = vpow.pop %v382
  %v384 = vmul.f32 %v377, 1.442695
  %v385 = vpow.pop %v384
  %v386 = vmul.f32 %v378, 1.442695
  %v387 = vpow.pop %v386
  %v388 = vmul.f32 %v379, 1.442695
  %v389 = vpow.pop %v388
  %v390 = vmul.f32 %v380, 1.442695
  %v391 = vpow.pop %v390
  %v392 = vmul.f32 %v381, 1.442695
  %v393 = vpow.pop %v392
  %v394 = vadd.f32 %v383, 1.0
  %v395 = vadd.f32 %v385, 1.0
  %v396 = vadd.f32 %v387, 1.0
  %v397 = vadd.f32 %v389, 1.0
  %v398 = vadd.f32 %v391, 1.0
  %v399 = vadd.f32 %v393, 1.0
  %v400 = vrcp.pop %v394
  %v401 = vmul.f32 1.0, %v400
  %v402 = vrcp.pop %v395
  %v403 = vmul.f32 1.0, %v402
  %v404 = vrcp.pop %v396
  %v405 = vmul.f32 1.0, %v404
  %v406 = vrcp.pop %v397
  %v407 = vmul.f32 1.0, %v406
  %v408 = vrcp.pop %v398
  %v409 = vmul.f32 1.0, %v408
  %v410 = vrcp.pop %v399
  %v411 = vmul.f32 1.0, %v410
  %v412 = vmul.f32 %v354, %v401
  %v413 = vmul.f32 %v357, %v403
  %v414 = vmul.f32 %v362, %v405
  %v415 = vmul.f32 %v365, %v407
  %v416 = vmul.f32 %v370, %v409
  %v417 = vmul.f32 %v373, %v411
  %v418 = vpack.c.bf16 %v413, %v412
  %v419 = vpack.c.bf16 %v415, %v414
  %v420 = vpack.c.bf16 %v417, %v416
  %v424 = vunpack.c.l.b16 %v418
  %v425 = vunpack.c.h.b16 %v418
  %v426 = vunpack.c.l.b16 %v419
  %v427 = vunpack.c.h.b16 %v419
  %v428 = vunpack.c.l.b16 %v420
  %v429 = vunpack.c.h.b16 %v420
  %v430 = vpack.c.b16 %v424, %v424
  %v431 = vpack.c.b16 %v425, %v425
  %v432 = vpack.c.b16 %v426, %v426
  %v433 = vpack.c.b16 %v427, %v427
  %v434 = vpack.c.b16 %v428, %v428
  %v435 = vpack.c.b16 %v429, %v429
  %vm442 = vcmask 60416
  %443 = vst.msk [vmem:[%s3] sm:$0xf] %vm442, %v430
  %444 = vst.msk [vmem:[%s3 + $0x4] sm:$0xf] %vm442, %v431
  %445 = vst.msk [vmem:[%s3 + $0x8] sm:$0xf] %vm442, %v432
  %446 = vst.msk [vmem:[%s3 + $0xc] sm:$0xf] %vm442, %v433
  %447 = vst.msk [vmem:[%s3 + $0x10] sm:$0xf] %vm442, %v434
  %448 = vst.msk [vmem:[%s3 + $0x14] sm:$0xf] %vm442, %v435
  // Predicated region
  $region14: #{model_forward.25} parent=0 // pred_check
    _
  $region15: #{model_forward.25} parent=0 // pred_check_branch
    %450 = sbr.rel (0) target = $region17
  $region16: #{model_forward.25} parent=0 // pred_region
    _
  $region17: #{model_forward.25} parent=0 // pred_fallthru
    _
  // Predicated region
  $region18: #{model_forward.25} parent=0 // pred_check
    _
  $region19: #{model_forward.25} parent=0 // pred_check_branch
    %452 = sbr.rel (0) target = $region21
  $region20: #{model_forward.25} parent=0 // pred_region
    _
  $region21: #{model_forward.25} parent=0 // pred_fallthru
    _

// kernel: model_forward.26
$region0: #{model_forward.26}
  #allocation0 [shape = 'u32[]', space=smem, size = 0x4, offset = 0x4, fixed_abs, tag = 'smem constant byte address 0x4 - core index']
  #allocation1 [shape = 'u32[144,128]{1,0:T(1,128)}', space=vmem, size = 0x12000, scoped, tag = 'internal scratch']
  %s0 = inlined_call_operand.vmem [shape: bf16[48,432], index: 0, kind: input, shape index: {}]
  %s1 = inlined_call_operand.vmem [shape: f32[48,1], index: 1, kind: input, shape index: {}]
  %s2 = inlined_call_operand.vmem [shape: bf16[32,48], index: 2, kind: input, shape index: {}]
  %s3 = inlined_call_operand.vmem [shape: f32[32,1], index: 3, kind: input, shape index: {}]
  %s4 = inlined_call_operand.vmem [shape: bf16[432,8], index: 4, kind: input, shape index: {}]
  %s5 = inlined_call_operand.vmem [shape: bf16[32,8], index: 5, kind: output, shape index: {}]
  %s6 = sld [smem:[#allocation0]]
  $region30: #{model_forward.26} parent=0
    _
  %s8 = ssub.s32 1, %s6
  %s9 = scalar_select 0, %s8, %s6
  // Predicated region
  $region2: #{model_forward.26} parent=0 // pred_check
    _
  $region3: #{model_forward.26} parent=0 // pred_check_branch
    %11 = sbr.rel (0) target = $region5
  $region4: #{model_forward.26} parent=0 // pred_region
    _
  $region5: #{model_forward.26} parent=0 // pred_fallthru
    _
  // Predicated region
  $region6: #{model_forward.26} parent=0 // pred_check
    _
  $region7: #{model_forward.26} parent=0 // pred_check_branch
    %13 = sbr.rel (0) target = $region9
  $region8: #{model_forward.26} parent=0 // pred_region
    _
  $region9: #{model_forward.26} parent=0 // pred_fallthru
    _
  // Predicated region
  $region10: #{model_forward.26} parent=0 // pred_check
    _
  $region11: #{model_forward.26} parent=0 // pred_check_branch
    %15 = sbr.rel (0) target = $region13
  $region12: #{model_forward.26} parent=0 // pred_region
    _
  $region13: #{model_forward.26} parent=0 // pred_fallthru
    _
  // Predicated region
  $region14: #{model_forward.26} parent=0 // pred_check
    _
  $region15: #{model_forward.26} parent=0 // pred_check_branch
    %17 = sbr.rel (0) target = $region17
  $region16: #{model_forward.26} parent=0 // pred_region
    _
  $region17: #{model_forward.26} parent=0 // pred_fallthru
    _
  // Predicated region
  $region18: #{model_forward.26} parent=0 // pred_check
    _
  $region19: #{model_forward.26} parent=0 // pred_check_branch
    %19 = sbr.rel (0) target = $region21
  $region20: #{model_forward.26} parent=0 // pred_region
    _
  $region21: #{model_forward.26} parent=0 // pred_fallthru
    _
  %v21 = vld [vmem:[%s0] sm:$0xff]
  %v22 = vld [vmem:[%s0 + $0x8] sm:$0xff]
  %v23 = vld [vmem:[%s0 + $0x10] sm:$0xff]
  %v24 = vld [vmem:[%s0 + $0x18] sm:$0xff]
  %v25 = vld [vmem:[%s0 + $0x20] sm:$0xff]
  %v26 = vld [vmem:[%s0 + $0x28] sm:$0xff]
  %v27 = vld [vmem:[%s0 + $0x30] sm:$0xff]
  %v28 = vld [vmem:[%s0 + $0x38] sm:$0xff]
  %v29 = vld [vmem:[%s0 + $0x40] sm:$0xff]
  %v30 = vld [vmem:[%s0 + $0x48] sm:$0xff]
  %v31 = vld [vmem:[%s0 + $0x50] sm:$0xff]
  %v32 = vld [vmem:[%s0 + $0x58] sm:$0xff]
  %v33 = vld [vmem:[%s4] sm:$0xf]
  %v34 = vld [vmem:[%s4 + $0x4] sm:$0xf]
  %v35 = vld [vmem:[%s4 + $0x8] sm:$0xf]
  %v36 = vld [vmem:[%s4 + $0xc] sm:$0xf]
  %v37 = vld [vmem:[%s4 + $0x10] sm:$0xf]
  %v38 = vld [vmem:[%s4 + $0x14] sm:$0xf]
  %v39 = vld [vmem:[%s4 + $0x18] sm:$0xf]
  %v40 = vld [vmem:[%s4 + $0x1c] sm:$0xf]
  %v41 = vld [vmem:[%s4 + $0x20] sm:$0xf]
  %v42 = vld [vmem:[%s4 + $0x24] sm:$0xf]
  %v43 = vld [vmem:[%s4 + $0x28] sm:$0xf]
  %v44 = vld [vmem:[%s4 + $0x2c] sm:$0xf]
  %v45 = vld [vmem:[%s4 + $0x30] sm:$0xf]
  %v46 = vld [vmem:[%s4 + $0x34] sm:$0xf]
  %v47 = vld [vmem:[%s4 + $0x38] sm:$0xf]
  %v48 = vld [vmem:[%s4 + $0x3c] sm:$0xf]
  %v49 = vld [vmem:[%s4 + $0x40] sm:$0xf]
  %v50 = vld [vmem:[%s4 + $0x44] sm:$0xf]
  %v51 = vld [vmem:[%s4 + $0x48] sm:$0xf]
  %v52 = vld [vmem:[%s4 + $0x4c] sm:$0xf]
  %v53 = vld [vmem:[%s4 + $0x50] sm:$0xf]
  %v54 = vld [vmem:[%s4 + $0x54] sm:$0xf]
  %v55 = vld [vmem:[%s4 + $0x58] sm:$0xf]
  %v56 = vld [vmem:[%s4 + $0x5c] sm:$0xf]
  %v57 = vld [vmem:[%s4 + $0x60] sm:$0xf]
  %v58 = vld [vmem:[%s4 + $0x64] sm:$0xf]
  %v59 = vld [vmem:[%s4 + $0x68] sm:$0xf]
  %v60 = vld [vmem:[%s4 + $0x6c] sm:$0xf]
  %v61 = vld [vmem:[%s4 + $0x70] sm:$0xf]
  %v62 = vld [vmem:[%s4 + $0x74] sm:$0xf]
  %v63 = vld [vmem:[%s4 + $0x78] sm:$0xf]
  %v64 = vld [vmem:[%s4 + $0x7c] sm:$0xf]
  %v65 = vld [vmem:[%s4 + $0x80] sm:$0xf]
  %v66 = vld [vmem:[%s4 + $0x84] sm:$0xf]
  %v67 = vld [vmem:[%s4 + $0x88] sm:$0xf]
  %v68 = vld [vmem:[%s4 + $0x8c] sm:$0xf]
  %v69 = vld [vmem:[%s4 + $0x90] sm:$0xf]
  %v70 = vld [vmem:[%s4 + $0x94] sm:$0xf]
  %v71 = vld [vmem:[%s4 + $0x98] sm:$0xf]
  %v72 = vld [vmem:[%s4 + $0x9c] sm:$0xf]
  %v73 = vld [vmem:[%s4 + $0xa0] sm:$0xf]
  %v74 = vld [vmem:[%s4 + $0xa4] sm:$0xf]
  %v75 = vld [vmem:[%s4 + $0xa8] sm:$0xf]
  %v76 = vld [vmem:[%s4 + $0xac] sm:$0xf]
  %v77 = vld [vmem:[%s4 + $0xb0] sm:$0xf]
  %v78 = vld [vmem:[%s4 + $0xb4] sm:$0xf]
  %v79 = vld [vmem:[%s4 + $0xb8] sm:$0xf]
  %v80 = vld [vmem:[%s4 + $0xbc] sm:$0xf]
  %v81 = vld [vmem:[%s4 + $0xc0] sm:$0xf]
  %v82 = vld [vmem:[%s4 + $0xc4] sm:$0xf]
  %v83 = vld [vmem:[%s4 + $0xc8] sm:$0xf]
  %v84 = vld [vmem:[%s4 + $0xcc] sm:$0xf]
  %v85 = vld [vmem:[%s4 + $0xd0] sm:$0xf]
  %v86 = vld [vmem:[%s4 + $0xd4] sm:$0xf]
  %v87 = vld [vmem:[%s1] sm:$0xff]
  %v88 = vld [vmem:[%s1 + $0x8] sm:$0xff]
  %v89 = vld [vmem:[%s1 + $0x10] sm:$0xff]
  %v90 = vld [vmem:[%s1 + $0x18] sm:$0xff]
  %v91 = vld [vmem:[%s1 + $0x20] sm:$0xff]
  %v92 = vld [vmem:[%s1 + $0x28] sm:$0xff]
  %94 = vset.pattern.permute.xlu0 0
  %95 = vperm.xlu0 %94, %v87
  %v96 = vpop.permute.xlu0 %95
  %99 = vset.pattern.permute.xlu0 0
  %100 = vperm.xlu0 %99, %v88
  %v101 = vpop.permute.xlu0 %100
  %104 = vset.pattern.permute.xlu0 0
  %105 = vperm.xlu0 %104, %v89
  %v106 = vpop.permute.xlu0 %105
  %109 = vset.pattern.permute.xlu0 0
  %110 = vperm.xlu0 %109, %v90
  %v111 = vpop.permute.xlu0 %110
  %114 = vset.pattern.permute.xlu0 0
  %115 = vperm.xlu0 %114, %v91
  %v116 = vpop.permute.xlu0 %115
  %119 = vset.pattern.permute.xlu0 0
  %120 = vperm.xlu0 %119, %v92
  %v121 = vpop.permute.xlu0 %120
  %v135 = vunpack.c.l.b16 %v21
  %v136 = vunpack.c.h.b16 %v21
  %v137 = vunpack.c.l.b16 %v22
  %v138 = vunpack.c.h.b16 %v22
  %v139 = vunpack.c.l.b16 %v23
  %v140 = vunpack.c.h.b16 %v23
  %v141 = vunpack.c.l.b16 %v24
  %v142 = vunpack.c.h.b16 %v24
  %v143 = vunpack.c.l.b16 %v25
  %v144 = vunpack.c.h.b16 %v25
  %v145 = vunpack.c.l.b16 %v26
  %v146 = vunpack.c.h.b16 %v26
  %v147 = vunpack.c.l.b16 %v27
  %v148 = vunpack.c.h.b16 %v27
  %v149 = vunpack.c.l.b16 %v28
  %v150 = vunpack.c.h.b16 %v28
  %v151 = vunpack.c.l.b16 %v29
  %v152 = vunpack.c.h.b16 %v29
  %v153 = vunpack.c.l.b16 %v30
  %v154 = vunpack.c.h.b16 %v30
  %v155 = vunpack.c.l.b16 %v31
  %v156 = vunpack.c.h.b16 %v31
  %v157 = vunpack.c.l.b16 %v32
  %v158 = vunpack.c.h.b16 %v32
  %v159 = vpack.c.b16 %v139, %v135
  %v160 = vpack.c.b16 %v140, %v136
  %v161 = vpack.c.b16 %v141, %v137
  %v162 = vpack.c.b16 %v142, %v138
  %v163 = vpack.c.b16 %v147, %v143
  %v164 = vpack.c.b16 %v148, %v144
  %v165 = vpack.c.b16 %v149, %v145
  %v166 = vpack.c.b16 %v150, %v146
  %v167 = vpack.c.b16 %v155, %v151
  %v168 = vpack.c.b16 %v156, %v152
  %v169 = vpack.c.b16 %v157, %v153
  %v170 = vpack.c.b16 %v158, %v154
  %v234 = vunpack.c.l.b16 %v33
  %v235 = vunpack.c.l.b16 %v34
  %v236 = vunpack.c.l.b16 %v35
  %v237 = vunpack.c.l.b16 %v36
  %v238 = vunpack.c.l.b16 %v37
  %v239 = vunpack.c.l.b16 %v38
  %v240 = vunpack.c.l.b16 %v39
  %v241 = vunpack.c.l.b16 %v40
  %v242 = vunpack.c.l.b16 %v41
  %v243 = vunpack.c.l.b16 %v42
  %v244 = vunpack.c.l.b16 %v43
  %v245 = vunpack.c.l.b16 %v44
  %v246 = vunpack.c.l.b16 %v45
  %v247 = vunpack.c.l.b16 %v46
  %v248 = vunpack.c.l.b16 %v47
  %v249 = vunpack.c.l.b16 %v48
  %v250 = vunpack.c.l.b16 %v49
  %v251 = vunpack.c.l.b16 %v50
  %v252 = vunpack.c.l.b16 %v51
  %v253 = vunpack.c.l.b16 %v52
  %v254 = vunpack.c.l.b16 %v53
  %v255 = vunpack.c.l.b16 %v54
  %v256 = vunpack.c.l.b16 %v55
  %v257 = vunpack.c.l.b16 %v56
  %v258 = vunpack.c.l.b16 %v57
  %v259 = vunpack.c.l.b16 %v58
  %v260 = vunpack.c.l.b16 %v59
  %v261 = vunpack.c.l.b16 %v60
  %v262 = vunpack.c.l.b16 %v61
  %v263 = vunpack.c.l.b16 %v62
  %v264 = vunpack.c.l.b16 %v63
  %v265 = vunpack.c.l.b16 %v64
  %v266 = vunpack.c.l.b16 %v65
  %v267 = vunpack.c.l.b16 %v66
  %v268 = vunpack.c.l.b16 %v67
  %v269 = vunpack.c.l.b16 %v68
  %v270 = vunpack.c.l.b16 %v69
  %v271 = vunpack.c.l.b16 %v70
  %v272 = vunpack.c.l.b16 %v71
  %v273 = vunpack.c.l.b16 %v72
  %v274 = vunpack.c.l.b16 %v73
  %v275 = vunpack.c.l.b16 %v74
  %v276 = vunpack.c.l.b16 %v75
  %v277 = vunpack.c.l.b16 %v76
  %v278 = vunpack.c.l.b16 %v77
  %v279 = vunpack.c.l.b16 %v78
  %v280 = vunpack.c.l.b16 %v79
  %v281 = vunpack.c.l.b16 %v80
  %v282 = vunpack.c.l.b16 %v81
  %v283 = vunpack.c.l.b16 %v82
  %v284 = vunpack.c.l.b16 %v83
  %v285 = vunpack.c.l.b16 %v84
  %v286 = vunpack.c.l.b16 %v85
  %v287 = vunpack.c.l.b16 %v86
  %v288 = vpack.c.b16 %v235, %v234
  %v289 = vpack.c.b16 %v237, %v236
  %v290 = vpack.c.b16 %v239, %v238
  %v291 = vpack.c.b16 %v241, %v240
  %v292 = vpack.c.b16 %v243, %v242
  %v293 = vpack.c.b16 %v245, %v244
  %v294 = vpack.c.b16 %v247, %v246
  %v295 = vpack.c.b16 %v249, %v248
  %v296 = vpack.c.b16 %v251, %v250
  %v297 = vpack.c.b16 %v253, %v252
  %v298 = vpack.c.b16 %v255, %v254
  %v299 = vpack.c.b16 %v257, %v256
  %v300 = vpack.c.b16 %v259, %v258
  %v301 = vpack.c.b16 %v261, %v260
  %v302 = vpack.c.b16 %v263, %v262
  %v303 = vpack.c.b16 %v265, %v264
  %v304 = vpack.c.b16 %v267, %v266
  %v305 = vpack.c.b16 %v269, %v268
  %v306 = vpack.c.b16 %v271, %v270
  %v307 = vpack.c.b16 %v273, %v272
  %v308 = vpack.c.b16 %v275, %v274
  %v309 = vpack.c.b16 %v277, %v276
  %v310 = vpack.c.b16 %v279, %v278
  %v311 = vpack.c.b16 %v281, %v280
  %v312 = vpack.c.b16 %v283, %v282
  %v313 = vpack.c.b16 %v285, %v284
  %v314 = vpack.c.b16 %v287, %v286
  %vm342 = vcmask 392192
  %v344 = vsel %vm342, %v162, 0
  %v347 = vsel %vm342, %v166, 0
  %v350 = vsel %vm342, %v170, 0
  %352 = vmatprep.subr.bf16.mxu0 0
  %353 = vmatpush1.bf16.msra.mxu0 %v295
  %354 = vmatprep.subr.bf16.mxu0 0
  %355 = vmatpush1.bf16.msra.mxu0 %v294
  %356 = vmatprep.subr.bf16.mxu0 0
  %357 = vmatpush1.bf16.msra.mxu0 %v293
  %358 = vmatprep.subr.bf16.mxu0 0
  %359 = vmatpush1.bf16.msra.mxu0 %v292
  %360 = vmatprep.subr.bf16.mxu0 0
  %361 = vmatpush1.bf16.msra.mxu0 %v291
  %362 = vmatprep.subr.bf16.mxu0 0
  %363 = vmatpush1.bf16.msra.mxu0 %v290
  %364 = vmatprep.subr.bf16.mxu0 0
  %365 = vmatpush1.bf16.msra.mxu0 %v289
  %366 = vmatprep.subr.bf16.mxu0 0
  %367 = vmatpush1.bf16.msra.mxu0 %v288
  %368 = vmatprep.subr.bf16.mxu0 0
  %369 = vmatpush2.bf16.msra.mxu0 %v303
  %370 = vmatprep.subr.bf16.mxu0 0
  %371 = vmatpush2.bf16.msra.mxu0 %v302
  %372 = vmatprep.subr.bf16.mxu0 0
  %373 = vmatpush2.bf16.msra.mxu0 %v301
  %374 = vmatprep.subr.bf16.mxu0 0
  %375 = vmatpush2.bf16.msra.mxu0 %v300
  %376 = vmatprep.subr.bf16.mxu0 0
  %377 = vmatpush2.bf16.msra.mxu0 %v299
  %378 = vmatprep.subr.bf16.mxu0 0
  %379 = vmatpush2.bf16.msra.mxu0 %v298
  %380 = vmatprep.subr.bf16.mxu0 0
  %381 = vmatpush2.bf16.msra.mxu0 %v297
  %382 = vmatprep.subr.bf16.mxu0 0
  %383 = vmatpush2.bf16.msra.mxu0 %v296
  %384 = vmatprep.mubr.bf16.mxu0 %v160
  %385 = vmatmul.mubr.bf16.gmra.mxu0 %v159
  %v386 = vpop.f32.mrf.mxu0
  %v387 = vadd.f32 %v96, %v386
  %v388 = vpop.f32.mrf.mxu0
  %v389 = vpop.f32.mrf.mxu0
  %v390 = vadd.f32 %v101, %v389
  %v391 = vpop.f32.mrf.mxu0
  %392 = vmatprep.mubr.bf16.mxu0 %v164
  %393 = vmatmul.mubr.bf16.gmra.mxu0 %v163
  %v394 = vpop.f32.mrf.mxu0
  %v395 = vadd.f32 %v106, %v394
  %v396 = vpop.f32.mrf.mxu0
  %v397 = vpop.f32.mrf.mxu0
  %v398 = vadd.f32 %v111, %v397
  %v399 = vpop.f32.mrf.mxu0
  %400 = vmatprep.mubr.bf16.mxu0 %v168
  %401 = vmatmul.mubr.bf16.gmra.mxu0 %v167
  %v402 = vpop.f32.mrf.mxu0
  %v403 = vadd.f32 %v116, %v402
  %v404 = vpop.f32.mrf.mxu0
  %v405 = vpop.f32.mrf.mxu0
  %v406 = vadd.f32 %v121, %v405
  %v407 = vpop.f32.mrf.mxu0
  %408 = vdwg.mxu0
  %409 = vmatprep.subr.bf16.mxu0 0
  %410 = vmatpush1.bf16.msra.mxu0 %v311
  %411 = vmatprep.subr.bf16.mxu0 0
  %412 = vmatpush1.bf16.msra.mxu0 %v310
  %413 = vmatprep.subr.bf16.mxu0 0
  %414 = vmatpush1.bf16.msra.mxu0 %v309
  %415 = vmatprep.subr.bf16.mxu0 0
  %416 = vmatpush1.bf16.msra.mxu0 %v308
  %417 = vmatprep.subr.bf16.mxu0 0
  %418 = vmatpush1.bf16.msra.mxu0 %v307
  %419 = vmatprep.subr.bf16.mxu0 0
  %420 = vmatpush1.bf16.msra.mxu0 %v306
  %421 = vmatprep.subr.bf16.mxu0 0
  %422 = vmatpush1.bf16.msra.mxu0 %v305
  %423 = vmatprep.subr.bf16.mxu0 0
  %424 = vmatpush1.bf16.msra.mxu0 %v304
  %425 = vmatprep.subr.bf16.mxu0 0
  %426 = vmatpush2.bf16.msra.mxu0 0
  %427 = vmatprep.subr.bf16.mxu0 0
  %428 = vmatpush2.bf16.msra.mxu0 0
  %429 = vmatprep.subr.bf16.mxu0 0
  %430 = vmatpush2.bf16.msra.mxu0 0
  %431 = vmatprep.subr.bf16.mxu0 0
  %432 = vmatpush2.bf16.msra.mxu0 0
  %433 = vmatprep.subr.bf16.mxu0 0
  %434 = vmatpush2.bf16.msra.mxu0 0
  %435 = vmatprep.subr.bf16.mxu0 0
  %436 = vmatpush2.bf16.msra.mxu0 %v314
  %437 = vmatprep.subr.bf16.mxu0 0
  %438 = vmatpush2.bf16.msra.mxu0 %v313
  %439 = vmatprep.subr.bf16.mxu0 0
  %440 = vmatpush2.bf16.msra.mxu0 %v312
  %441 = vmatprep.mubr.bf16.mxu0 %v344
  %442 = vmatmul.mubr.bf16.gmra.mxu0 %v161
  %v443 = vpop.f32.mrf.mxu0
  %v444 = vadd.f32 %v387, %v443
  %v445 = vpop.f32.mrf.mxu0
  %v446 = vpop.f32.mrf.mxu0
  %v447 = vadd.f32 %v390, %v446
  %v448 = vpop.f32.mrf.mxu0
  %449 = vmatprep.mubr.bf16.mxu0 %v347
  %450 = vmatmul.mubr.bf16.gmra.mxu0 %v165
  %v451 = vpop.f32.mrf.mxu0
  %v452 = vadd.f32 %v395, %v451
  %v453 = vpop.f32.mrf.mxu0
  %v454 = vpop.f32.mrf.mxu0
  %v455 = vadd.f32 %v398, %v454
  %v456 = vpop.f32.mrf.mxu0
  %457 = vmatprep.mubr.bf16.mxu0 %v350
  %458 = vmatmul.mubr.bf16.gmra.mxu0 %v169
  %v459 = vpop.f32.mrf.mxu0
  %v460 = vadd.f32 %v403, %v459
  %v461 = vpop.f32.mrf.mxu0
  %v462 = vpop.f32.mrf.mxu0
  %v463 = vadd.f32 %v406, %v462
  %v464 = vpop.f32.mrf.mxu0
  %465 = vdwg.mxu0
  %v466 = vxor.u32 %v444, 2147483648
  %v467 = vxor.u32 %v447, 2147483648
  %v468 = vxor.u32 %v452, 2147483648
  %v469 = vxor.u32 %v455, 2147483648
  %v470 = vxor.u32 %v460, 2147483648
  %v471 = vxor.u32 %v463, 2147483648
  %v472 = vmul.f32 %v466, 1.442695
  %v473 = vpow.pop %v472
  %v474 = vmul.f32 %v467, 1.442695
  %v475 = vpow.pop %v474
  %v476 = vmul.f32 %v468, 1.442695
  %v477 = vpow.pop %v476
  %v478 = vmul.f32 %v469, 1.442695
  %v479 = vpow.pop %v478
  %v480 = vmul.f32 %v470, 1.442695
  %v481 = vpow.pop %v480
  %v482 = vmul.f32 %v471, 1.442695
  %v483 = vpow.pop %v482
  %v484 = vadd.f32 %v473, 1.0
  %v485 = vadd.f32 %v475, 1.0
  %v486 = vadd.f32 %v477, 1.0
  %v487 = vadd.f32 %v479, 1.0
  %v488 = vadd.f32 %v481, 1.0
  %v489 = vadd.f32 %v483, 1.0
  %v490 = vrcp.pop %v484
  %v491 = vmul.f32 1.0, %v490
  %v492 = vrcp.pop %v485
  %v493 = vmul.f32 1.0, %v492
  %v494 = vrcp.pop %v486
  %v495 = vmul.f32 1.0, %v494
  %v496 = vrcp.pop %v487
  %v497 = vmul.f32 1.0, %v496
  %v498 = vrcp.pop %v488
  %v499 = vmul.f32 1.0, %v498
  %v500 = vrcp.pop %v489
  %v501 = vmul.f32 1.0, %v500
  %v502 = vmul.f32 %v444, %v491
  %v503 = vmul.f32 %v447, %v493
  %v504 = vmul.f32 %v452, %v495
  %v505 = vmul.f32 %v455, %v497
  %v506 = vmul.f32 %v460, %v499
  %v507 = vmul.f32 %v463, %v501
  %v508 = vpack.c.bf16 %v503, %v502
  %v509 = vpack.c.bf16 %v505, %v504
  %v510 = vpack.c.bf16 %v507, %v506
  %v511 = vld [vmem:[%s2] sm:$0xf]
  %v512 = vld [vmem:[%s2 + $0x4] sm:$0xf]
  %v513 = vld [vmem:[%s2 + $0x8] sm:$0xf]
  %v514 = vld [vmem:[%s2 + $0xc] sm:$0xf]
  %v515 = vld [vmem:[%s3] sm:$0xff]
  %v516 = vld [vmem:[%s3 + $0x8] sm:$0xff]
  %v517 = vld [vmem:[%s3 + $0x10] sm:$0xff]
  %v518 = vld [vmem:[%s3 + $0x18] sm:$0xff]
  %520 = vset.pattern.permute.xlu0 0
  %521 = vperm.xlu0 %520, %v515
  %v522 = vpop.permute.xlu0 %521
  %525 = vset.pattern.permute.xlu0 0
  %526 = vperm.xlu0 %525, %v516
  %v527 = vpop.permute.xlu0 %526
  %530 = vset.pattern.permute.xlu0 0
  %531 = vperm.xlu0 %530, %v517
  %v532 = vpop.permute.xlu0 %531
  %535 = vset.pattern.permute.xlu0 0
  %536 = vperm.xlu0 %535, %v518
  %v537 = vpop.permute.xlu0 %536
  %v543 = vunpack.c.l.b16 %v511
  %v544 = vunpack.c.l.b16 %v512
  %v545 = vunpack.c.l.b16 %v513
  %v546 = vunpack.c.l.b16 %v514
  %v547 = vpack.c.b16 %v544, %v543
  %v548 = vpack.c.b16 %v546, %v545
  %v550 = vsel %vm342, %v547, 0
  %v553 = vsel %vm342, %v548, 0
  %555 = vmatprep.subr.bf16.mxu0 0
  %556 = vmatpush1.bf16.msra.mxu0 0
  %557 = vmatprep.subr.bf16.mxu0 0
  %558 = vmatpush1.bf16.msra.mxu0 0
  %559 = vmatprep.subr.bf16.mxu0 0
  %560 = vmatpush1.bf16.msra.mxu0 0
  %561 = vmatprep.subr.bf16.mxu0 0
  %562 = vmatpush1.bf16.msra.mxu0 0
  %563 = vmatprep.subr.bf16.mxu0 0
  %564 = vmatpush1.bf16.msra.mxu0 0
  %565 = vmatprep.subr.bf16.mxu0 0
  %566 = vmatpush1.bf16.msra.mxu0 %v510
  %567 = vmatprep.subr.bf16.mxu0 0
  %568 = vmatpush1.bf16.msra.mxu0 %v509
  %569 = vmatprep.subr.bf16.mxu0 0
  %570 = vmatpush1.bf16.msra.mxu0 %v508
  %571 = vmatprep.subr.bf16.mxu0 0
  %572 = vmatpush2.bf16.msra.mxu0 0
  %573 = vmatprep.subr.bf16.mxu0 0
  %574 = vmatpush2.bf16.msra.mxu0 0
  %575 = vmatprep.subr.bf16.mxu0 0
  %576 = vmatpush2.bf16.msra.mxu0 0
  %577 = vmatprep.subr.bf16.mxu0 0
  %578 = vmatpush2.bf16.msra.mxu0 0
  %579 = vmatprep.subr.bf16.mxu0 0
  %580 = vmatpush2.bf16.msra.mxu0 0
  %581 = vmatprep.subr.bf16.mxu0 0
  %582 = vmatpush2.bf16.msra.mxu0 0
  %583 = vmatprep.subr.bf16.mxu0 0
  %584 = vmatpush2.bf16.msra.mxu0 0
  %585 = vmatprep.subr.bf16.mxu0 0
  %586 = vmatpush2.bf16.msra.mxu0 0
  %587 = vmatprep.mubr.bf16.mxu0 0
  %588 = vmatmul.mubr.bf16.gmra.mxu0 %v550
  %v589 = vpop.f32.mrf.mxu0
  %v590 = vadd.f32 %v522, %v589
  %v591 = vpop.f32.mrf.mxu0
  %v592 = vpop.f32.mrf.mxu0
  %v593 = vadd.f32 %v527, %v592
  %v594 = vpop.f32.mrf.mxu0
  %595 = vmatprep.mubr.bf16.mxu0 0
  %596 = vmatmul.mubr.bf16.gmra.mxu0 %v553
  %v597 = vpop.f32.mrf.mxu0
  %v598 = vadd.f32 %v532, %v597
  %v599 = vpop.f32.mrf.mxu0
  %v600 = vpop.f32.mrf.mxu0
  %v601 = vadd.f32 %v537, %v600
  %v602 = vpop.f32.mrf.mxu0
  %603 = vdwg.mxu0
  %v604 = vxor.u32 %v590, 2147483648
  %v605 = vxor.u32 %v593, 2147483648
  %v606 = vxor.u32 %v598, 2147483648
  %v607 = vxor.u32 %v601, 2147483648
  %v608 = vmul.f32 %v604, 1.442695
  %v609 = vpow.pop %v608
  %v610 = vmul.f32 %v605, 1.442695
  %v611 = vpow.pop %v610
  %v612 = vmul.f32 %v606, 1.442695
  %v613 = vpow.pop %v612
  %v614 = vmul.f32 %v607, 1.442695
  %v615 = vpow.pop %v614
  %v616 = vadd.f32 %v609, 1.0
  %v617 = vadd.f32 %v611, 1.0
  %v618 = vadd.f32 %v613, 1.0
  %v619 = vadd.f32 %v615, 1.0
  %v620 = vrcp.pop %v616
  %v621 = vmul.f32 1.0, %v620
  %v622 = vrcp.pop %v617
  %v623 = vmul.f32 1.0, %v622
  %v624 = vrcp.pop %v618
  %v625 = vmul.f32 1.0, %v624
  %v626 = vrcp.pop %v619
  %v627 = vmul.f32 1.0, %v626
  %v628 = vmul.f32 %v590, %v621
  %v629 = vmul.f32 %v593, %v623
  %v630 = vmul.f32 %v598, %v625
  %v631 = vmul.f32 %v601, %v627
  %v632 = vpack.c.bf16 %v629, %v628
  %v633 = vpack.c.bf16 %v631, %v630
  %v636 = vunpack.c.l.b16 %v632
  %v637 = vunpack.c.h.b16 %v632
  %v638 = vunpack.c.l.b16 %v633
  %v639 = vunpack.c.h.b16 %v633
  %v640 = vpack.c.b16 %v636, %v636
  %v641 = vpack.c.b16 %v637, %v637
  %v642 = vpack.c.b16 %v638, %v638
  %v643 = vpack.c.b16 %v639, %v639
  %vm648 = vcmask 60416
  %649 = vst.msk [vmem:[%s5] sm:$0xf] %vm648, %v640
  %650 = vst.msk [vmem:[%s5 + $0x4] sm:$0xf] %vm648, %v641
  %651 = vst.msk [vmem:[%s5 + $0x8] sm:$0xf] %vm648, %v642
  %652 = vst.msk [vmem:[%s5 + $0xc] sm:$0xf] %vm648, %v643
  // Predicated region
  $region22: #{model_forward.26} parent=0 // pred_check
    _
  $region23: #{model_forward.26} parent=0 // pred_check_branch
    %654 = sbr.rel (0) target = $region25
  $region24: #{model_forward.26} parent=0 // pred_region
    _
  $region25: #{model_forward.26} parent=0 // pred_fallthru
    _
  // Predicated region
  $region26: #{model_forward.26} parent=0 // pred_check
    _
  $region27: #{model_forward.26} parent=0 // pred_check_branch
    %656 = sbr.rel (0) target = $region29
  $region28: #{model_forward.26} parent=0 // pred_region
    _
  $region29: #{model_forward.26} parent=0 // pred_fallthru
    _

// kernel: model_forward.27
$region0: #{model_forward.27}
  #allocation0 [shape = 'u32[]', space=smem, size = 0x4, offset = 0x4, fixed_abs, tag = 'smem constant byte address 0x4 - core index']
  #allocation1 [shape = 'u32[144,128]{1,0:T(1,128)}', space=vmem, size = 0x12000, scoped, tag = 'internal scratch']
  %s0 = inlined_call_operand.vmem [shape: bf16[24,576], index: 0, kind: input, shape index: {}]
  %s1 = inlined_call_operand.vmem [shape: f32[24,1], index: 1, kind: input, shape index: {}]
  %s2 = inlined_call_operand.vmem [shape: bf16[16,24], index: 2, kind: input, shape index: {}]
  %s3 = inlined_call_operand.vmem [shape: f32[16,1], index: 3, kind: input, shape index: {}]
  %s4 = inlined_call_operand.vmem [shape: bf16[576,32], index: 4, kind: input, shape index: {}]
  %s5 = inlined_call_operand.vmem [shape: bf16[16,32], index: 5, kind: output, shape index: {}]
  %s6 = sld [smem:[#allocation0]]
  $region30: #{model_forward.27} parent=0
    _
  %s8 = ssub.s32 1, %s6
  %s9 = scalar_select 0, %s8, %s6
  // Predicated region
  $region2: #{model_forward.27} parent=0 // pred_check
    _
  $region3: #{model_forward.27} parent=0 // pred_check_branch
    %11 = sbr.rel (0) target = $region5
  $region4: #{model_forward.27} parent=0 // pred_region
    _
  $region5: #{model_forward.27} parent=0 // pred_fallthru
    _
  // Predicated region
  $region6: #{model_forward.27} parent=0 // pred_check
    _
  $region7: #{model_forward.27} parent=0 // pred_check_branch
    %13 = sbr.rel (0) target = $region9
  $region8: #{model_forward.27} parent=0 // pred_region
    _
  $region9: #{model_forward.27} parent=0 // pred_fallthru
    _
  // Predicated region
  $region10: #{model_forward.27} parent=0 // pred_check
    _
  $region11: #{model_forward.27} parent=0 // pred_check_branch
    %15 = sbr.rel (0) target = $region13
  $region12: #{model_forward.27} parent=0 // pred_region
    _
  $region13: #{model_forward.27} parent=0 // pred_fallthru
    _
  // Predicated region
  $region14: #{model_forward.27} parent=0 // pred_check
    _
  $region15: #{model_forward.27} parent=0 // pred_check_branch
    %17 = sbr.rel (0) target = $region17
  $region16: #{model_forward.27} parent=0 // pred_region
    _
  $region17: #{model_forward.27} parent=0 // pred_fallthru
    _
  // Predicated region
  $region18: #{model_forward.27} parent=0 // pred_check
    _
  $region19: #{model_forward.27} parent=0 // pred_check_branch
    %19 = sbr.rel (0) target = $region21
  $region20: #{model_forward.27} parent=0 // pred_region
    _
  $region21: #{model_forward.27} parent=0 // pred_fallthru
    _
  %v21 = vld [vmem:[%s0] sm:$0xff]
  %v22 = vld [vmem:[%s0 + $0x8] sm:$0xff]
  %v23 = vld [vmem:[%s0 + $0x10] sm:$0xf]
  %v24 = vld [vmem:[%s0 + $0x14] sm:$0xff]
  %v25 = vld [vmem:[%s0 + $0x1c] sm:$0xff]
  %v26 = vld [vmem:[%s0 + $0x24] sm:$0xf]
  %v27 = vld [vmem:[%s0 + $0x28] sm:$0xff]
  %v28 = vld [vmem:[%s0 + $0x30] sm:$0xff]
  %v29 = vld [vmem:[%s0 + $0x38] sm:$0xf]
  %v30 = vld [vmem:[%s4] sm:$0xf]
  %v31 = vld [vmem:[%s4 + $0x4] sm:$0xf]
  %v32 = vld [vmem:[%s4 + $0x8] sm:$0xf]
  %v33 = vld [vmem:[%s4 + $0xc] sm:$0xf]
  %v34 = vld [vmem:[%s4 + $0x10] sm:$0xf]
  %v35 = vld [vmem:[%s4 + $0x14] sm:$0xf]
  %v36 = vld [vmem:[%s4 + $0x18] sm:$0xf]
  %v37 = vld [vmem:[%s4 + $0x1c] sm:$0xf]
  %v38 = vld [vmem:[%s4 + $0x20] sm:$0xf]
  %v39 = vld [vmem:[%s4 + $0x24] sm:$0xf]
  %v40 = vld [vmem:[%s4 + $0x28] sm:$0xf]
  %v41 = vld [vmem:[%s4 + $0x2c] sm:$0xf]
  %v42 = vld [vmem:[%s4 + $0x30] sm:$0xf]
  %v43 = vld [vmem:[%s4 + $0x34] sm:$0xf]
  %v44 = vld [vmem:[%s4 + $0x38] sm:$0xf]
  %v45 = vld [vmem:[%s4 + $0x3c] sm:$0xf]
  %v46 = vld [vmem:[%s4 + $0x40] sm:$0xf]
  %v47 = vld [vmem:[%s4 + $0x44] sm:$0xf]
  %v48 = vld [vmem:[%s4 + $0x48] sm:$0xf]
  %v49 = vld [vmem:[%s4 + $0x4c] sm:$0xf]
  %v50 = vld [vmem:[%s4 + $0x50] sm:$0xf]
  %v51 = vld [vmem:[%s4 + $0x54] sm:$0xf]
  %v52 = vld [vmem:[%s4 + $0x58] sm:$0xf]
  %v53 = vld [vmem:[%s4 + $0x5c] sm:$0xf]
  %v54 = vld [vmem:[%s4 + $0x60] sm:$0xf]
  %v55 = vld [vmem:[%s4 + $0x64] sm:$0xf]
  %v56 = vld [vmem:[%s4 + $0x68] sm:$0xf]
  %v57 = vld [vmem:[%s4 + $0x6c] sm:$0xf]
  %v58 = vld [vmem:[%s4 + $0x70] sm:$0xf]
  %v59 = vld [vmem:[%s4 + $0x74] sm:$0xf]
  %v60 = vld [vmem:[%s4 + $0x78] sm:$0xf]
  %v61 = vld [vmem:[%s4 + $0x7c] sm:$0xf]
  %v62 = vld [vmem:[%s4 + $0x80] sm:$0xf]
  %v63 = vld [vmem:[%s4 + $0x84] sm:$0xf]
  %v64 = vld [vmem:[%s4 + $0x88] sm:$0xf]
  %v65 = vld [vmem:[%s4 + $0x8c] sm:$0xf]
  %v66 = vld [vmem:[%s4 + $0x90] sm:$0xf]
  %v67 = vld [vmem:[%s4 + $0x94] sm:$0xf]
  %v68 = vld [vmem:[%s4 + $0x98] sm:$0xf]
  %v69 = vld [vmem:[%s4 + $0x9c] sm:$0xf]
  %v70 = vld [vmem:[%s4 + $0xa0] sm:$0xf]
  %v71 = vld [vmem:[%s4 + $0xa4] sm:$0xf]
  %v72 = vld [vmem:[%s4 + $0xa8] sm:$0xf]
  %v73 = vld [vmem:[%s4 + $0xac] sm:$0xf]
  %v74 = vld [vmem:[%s4 + $0xb0] sm:$0xf]
  %v75 = vld [vmem:[%s4 + $0xb4] sm:$0xf]
  %v76 = vld [vmem:[%s4 + $0xb8] sm:$0xf]
  %v77 = vld [vmem:[%s4 + $0xbc] sm:$0xf]
  %v78 = vld [vmem:[%s4 + $0xc0] sm:$0xf]
  %v79 = vld [vmem:[%s4 + $0xc4] sm:$0xf]
  %v80 = vld [vmem:[%s4 + $0xc8] sm:$0xf]
  %v81 = vld [vmem:[%s4 + $0xcc] sm:$0xf]
  %v82 = vld [vmem:[%s4 + $0xd0] sm:$0xf]
  %v83 = vld [vmem:[%s4 + $0xd4] sm:$0xf]
  %v84 = vld [vmem:[%s4 + $0xd8] sm:$0xf]
  %v85 = vld [vmem:[%s4 + $0xdc] sm:$0xf]
  %v86 = vld [vmem:[%s4 + $0xe0] sm:$0xf]
  %v87 = vld [vmem:[%s4 + $0xe4] sm:$0xf]
  %v88 = vld [vmem:[%s4 + $0xe8] sm:$0xf]
  %v89 = vld [vmem:[%s4 + $0xec] sm:$0xf]
  %v90 = vld [vmem:[%s4 + $0xf0] sm:$0xf]
  %v91 = vld [vmem:[%s4 + $0xf4] sm:$0xf]
  %v92 = vld [vmem:[%s4 + $0xf8] sm:$0xf]
  %v93 = vld [vmem:[%s4 + $0xfc] sm:$0xf]
  %v94 = vld [vmem:[%s4 + $0x100] sm:$0xf]
  %v95 = vld [vmem:[%s4 + $0x104] sm:$0xf]
  %v96 = vld [vmem:[%s4 + $0x108] sm:$0xf]
  %v97 = vld [vmem:[%s4 + $0x10c] sm:$0xf]
  %v98 = vld [vmem:[%s4 + $0x110] sm:$0xf]
  %v99 = vld [vmem:[%s4 + $0x114] sm:$0xf]
  %v100 = vld [vmem:[%s4 + $0x118] sm:$0xf]
  %v101 = vld [vmem:[%s4 + $0x11c] sm:$0xf]
  %v102 = vld [vmem:[%s1] sm:$0xff]
  %v103 = vld [vmem:[%s1 + $0x8] sm:$0xff]
  %v104 = vld [vmem:[%s1 + $0x10] sm:$0xff]
  %106 = vset.pattern.permute.xlu0 0
  %107 = vperm.xlu0 %106, %v102
  %v108 = vpop.permute.xlu0 %107
  %111 = vset.pattern.permute.xlu0 0
  %112 = vperm.xlu0 %111, %v103
  %v113 = vpop.permute.xlu0 %112
  %116 = vset.pattern.permute.xlu0 0
  %117 = vperm.xlu0 %116, %v104
  %v118 = vpop.permute.xlu0 %117
  %v129 = vunpack.c.l.b16 %v21
  %v130 = vunpack.c.h.b16 %v21
  %v131 = vunpack.c.l.b16 %v22
  %v132 = vunpack.c.h.b16 %v22
  %v133 = vunpack.c.l.b16 %v23
  %v134 = vunpack.c.l.b16 %v24
  %v135 = vunpack.c.h.b16 %v24
  %v136 = vunpack.c.l.b16 %v25
  %v137 = vunpack.c.h.b16 %v25
  %v138 = vunpack.c.l.b16 %v26
  %v139 = vunpack.c.l.b16 %v27
  %v140 = vunpack.c.h.b16 %v27
  %v141 = vunpack.c.l.b16 %v28
  %v142 = vunpack.c.h.b16 %v28
  %v143 = vunpack.c.l.b16 %v29
  %v144 = vpack.c.b16 %v134, %v129
  %v145 = vpack.c.b16 %v135, %v130
  %v146 = vpack.c.b16 %v136, %v131
  %v147 = vpack.c.b16 %v137, %v132
  %v148 = vpack.c.b16 %v138, %v133
  %v149 = vpack.c.b16 %v139, %v139
  %v150 = vpack.c.b16 %v140, %v140
  %v151 = vpack.c.b16 %v141, %v141
  %v152 = vpack.c.b16 %v142, %v142
  %v153 = vpack.c.b16 %v143, %v143
  %v234 = vunpack.c.l.b16 %v30
  %v235 = vunpack.c.l.b16 %v31
  %v236 = vunpack.c.l.b16 %v32
  %v237 = vunpack.c.l.b16 %v33
  %v238 = vunpack.c.l.b16 %v34
  %v239 = vunpack.c.l.b16 %v35
  %v240 = vunpack.c.l.b16 %v36
  %v241 = vunpack.c.l.b16 %v37
  %v242 = vunpack.c.l.b16 %v38
  %v243 = vunpack.c.l.b16 %v39
  %v244 = vunpack.c.l.b16 %v40
  %v245 = vunpack.c.l.b16 %v41
  %v246 = vunpack.c.l.b16 %v42
  %v247 = vunpack.c.l.b16 %v43
  %v248 = vunpack.c.l.b16 %v44
  %v249 = vunpack.c.l.b16 %v45
  %v250 = vunpack.c.l.b16 %v46
  %v251 = vunpack.c.l.b16 %v47
  %v252 = vunpack.c.l.b16 %v48
  %v253 = vunpack.c.l.b16 %v49
  %v254 = vunpack.c.l.b16 %v50
  %v255 = vunpack.c.l.b16 %v51
  %v256 = vunpack.c.l.b16 %v52
  %v257 = vunpack.c.l.b16 %v53
  %v258 = vunpack.c.l.b16 %v54
  %v259 = vunpack.c.l.b16 %v55
  %v260 = vunpack.c.l.b16 %v56
  %v261 = vunpack.c.l.b16 %v57
  %v262 = vunpack.c.l.b16 %v58
  %v263 = vunpack.c.l.b16 %v59
  %v264 = vunpack.c.l.b16 %v60
  %v265 = vunpack.c.l.b16 %v61
  %v266 = vunpack.c.l.b16 %v62
  %v267 = vunpack.c.l.b16 %v63
  %v268 = vunpack.c.l.b16 %v64
  %v269 = vunpack.c.l.b16 %v65
  %v270 = vunpack.c.l.b16 %v66
  %v271 = vunpack.c.l.b16 %v67
  %v272 = vunpack.c.l.b16 %v68
  %v273 = vunpack.c.l.b16 %v69
  %v274 = vunpack.c.l.b16 %v70
  %v275 = vunpack.c.l.b16 %v71
  %v276 = vunpack.c.l.b16 %v72
  %v277 = vunpack.c.l.b16 %v73
  %v278 = vunpack.c.l.b16 %v74
  %v279 = vunpack.c.l.b16 %v75
  %v280 = vunpack.c.l.b16 %v76
  %v281 = vunpack.c.l.b16 %v77
  %v282 = vunpack.c.l.b16 %v78
  %v283 = vunpack.c.l.b16 %v79
  %v284 = vunpack.c.l.b16 %v80
  %v285 = vunpack.c.l.b16 %v81
  %v286 = vunpack.c.l.b16 %v82
  %v287 = vunpack.c.l.b16 %v83
  %v288 = vunpack.c.l.b16 %v84
  %v289 = vunpack.c.l.b16 %v85
  %v290 = vunpack.c.l.b16 %v86
  %v291 = vunpack.c.l.b16 %v87
  %v292 = vunpack.c.l.b16 %v88
  %v293 = vunpack.c.l.b16 %v89
  %v294 = vunpack.c.l.b16 %v90
  %v295 = vunpack.c.l.b16 %v91
  %v296 = vunpack.c.l.b16 %v92
  %v297 = vunpack.c.l.b16 %v93
  %v298 = vunpack.c.l.b16 %v94
  %v299 = vunpack.c.l.b16 %v95
  %v300 = vunpack.c.l.b16 %v96
  %v301 = vunpack.c.l.b16 %v97
  %v302 = vunpack.c.l.b16 %v98
  %v303 = vunpack.c.l.b16 %v99
  %v304 = vunpack.c.l.b16 %v100
  %v305 = vunpack.c.l.b16 %v101
  %v306 = vpack.c.b16 %v235, %v234
  %v307 = vpack.c.b16 %v237, %v236
  %v308 = vpack.c.b16 %v239, %v238
  %v309 = vpack.c.b16 %v241, %v240
  %v310 = vpack.c.b16 %v243, %v242
  %v311 = vpack.c.b16 %v245, %v244
  %v312 = vpack.c.b16 %v247, %v246
  %v313 = vpack.c.b16 %v249, %v248
  %v314 = vpack.c.b16 %v251, %v250
  %v315 = vpack.c.b16 %v253, %v252
  %v316 = vpack.c.b16 %v255, %v254
  %v317 = vpack.c.b16 %v257, %v256
  %v318 = vpack.c.b16 %v259, %v258
  %v319 = vpack.c.b16 %v261, %v260
  %v320 = vpack.c.b16 %v263, %v262
  %v321 = vpack.c.b16 %v265, %v264
  %v322 = vpack.c.b16 %v267, %v266
  %v323 = vpack.c.b16 %v269, %v268
  %v324 = vpack.c.b16 %v271, %v270
  %v325 = vpack.c.b16 %v273, %v272
  %v326 = vpack.c.b16 %v275, %v274
  %v327 = vpack.c.b16 %v277, %v276
  %v328 = vpack.c.b16 %v279, %v278
  %v329 = vpack.c.b16 %v281, %v280
  %v330 = vpack.c.b16 %v283, %v282
  %v331 = vpack.c.b16 %v285, %v284
  %v332 = vpack.c.b16 %v287, %v286
  %v333 = vpack.c.b16 %v289, %v288
  %v334 = vpack.c.b16 %v291, %v290
  %v335 = vpack.c.b16 %v293, %v292
  %v336 = vpack.c.b16 %v295, %v294
  %v337 = vpack.c.b16 %v297, %v296
  %v338 = vpack.c.b16 %v299, %v298
  %v339 = vpack.c.b16 %v301, %v300
  %v340 = vpack.c.b16 %v303, %v302
  %v341 = vpack.c.b16 %v305, %v304
  %vm378 = vcmask 523264
  %v380 = vsel %vm378, %v148, 0
  %v383 = vsel %vm378, %v153, 0
  %385 = vmatprep.subr.bf16.mxu0 0
  %386 = vmatpush1.bf16.msra.mxu0 %v313
  %387 = vmatprep.subr.bf16.mxu0 0
  %388 = vmatpush1.bf16.msra.mxu0 %v312
  %389 = vmatprep.subr.bf16.mxu0 0
  %390 = vmatpush1.bf16.msra.mxu0 %v311
  %391 = vmatprep.subr.bf16.mxu0 0
  %392 = vmatpush1.bf16.msra.mxu0 %v310
  %393 = vmatprep.subr.bf16.mxu0 0
  %394 = vmatpush1.bf16.msra.mxu0 %v309
  %395 = vmatprep.subr.bf16.mxu0 0
  %396 = vmatpush1.bf16.msra.mxu0 %v308
  %397 = vmatprep.subr.bf16.mxu0 0
  %398 = vmatpush1.bf16.msra.mxu0 %v307
  %399 = vmatprep.subr.bf16.mxu0 0
  %400 = vmatpush1.bf16.msra.mxu0 %v306
  %401 = vmatprep.subr.bf16.mxu0 0
  %402 = vmatpush2.bf16.msra.mxu0 %v321
  %403 = vmatprep.subr.bf16.mxu0 0
  %404 = vmatpush2.bf16.msra.mxu0 %v320
  %405 = vmatprep.subr.bf16.mxu0 0
  %406 = vmatpush2.bf16.msra.mxu0 %v319
  %407 = vmatprep.subr.bf16.mxu0 0
  %408 = vmatpush2.bf16.msra.mxu0 %v318
  %409 = vmatprep.subr.bf16.mxu0 0
  %410 = vmatpush2.bf16.msra.mxu0 %v317
  %411 = vmatprep.subr.bf16.mxu0 0
  %412 = vmatpush2.bf16.msra.mxu0 %v316
  %413 = vmatprep.subr.bf16.mxu0 0
  %414 = vmatpush2.bf16.msra.mxu0 %v315
  %415 = vmatprep.subr.bf16.mxu0 0
  %416 = vmatpush2.bf16.msra.mxu0 %v314
  %417 = vmatprep.mubr.bf16.mxu0 %v145
  %418 = vmatmul.mubr.bf16.gmra.mxu0 %v144
  %v419 = vpop.f32.mrf.mxu0
  %v420 = vadd.f32 %v108, %v419
  %v421 = vpop.f32.mrf.mxu0
  %v422 = vpop.f32.mrf.mxu0
  %v423 = vadd.f32 %v113, %v422
  %v424 = vpop.f32.mrf.mxu0
  %425 = vmatprep.mubr.bf16.mxu0 %v150
  %426 = vmatmul.mubr.bf16.gmra.mxu0 %v149
  %v427 = vpop.f32.mrf.mxu0
  %v428 = vadd.f32 %v118, %v427
  %v429 = vpop.f32.mrf.mxu0
  %v430 = vpop.f32.mrf.mxu0
  %v431 = vpop.f32.mrf.mxu0
  %432 = vdwg.mxu0
  %433 = vmatprep.subr.bf16.mxu0 0
  %434 = vmatpush1.bf16.msra.mxu0 %v329
  %435 = vmatprep.subr.bf16.mxu0 0
  %436 = vmatpush1.bf16.msra.mxu0 %v328
  %437 = vmatprep.subr.bf16.mxu0 0
  %438 = vmatpush1.bf16.msra.mxu0 %v327
  %439 = vmatprep.subr.bf16.mxu0 0
  %440 = vmatpush1.bf16.msra.mxu0 %v326
  %441 = vmatprep.subr.bf16.mxu0 0
  %442 = vmatpush1.bf16.msra.mxu0 %v325
  %443 = vmatprep.subr.bf16.mxu0 0
  %444 = vmatpush1.bf16.msra.mxu0 %v324
  %445 = vmatprep.subr.bf16.mxu0 0
  %446 = vmatpush1.bf16.msra.mxu0 %v323
  %447 = vmatprep.subr.bf16.mxu0 0
  %448 = vmatpush1.bf16.msra.mxu0 %v322
  %449 = vmatprep.subr.bf16.mxu0 0
  %450 = vmatpush2.bf16.msra.mxu0 %v337
  %451 = vmatprep.subr.bf16.mxu0 0
  %452 = vmatpush2.bf16.msra.mxu0 %v336
  %453 = vmatprep.subr.bf16.mxu0 0
  %454 = vmatpush2.bf16.msra.mxu0 %v335
  %455 = vmatprep.subr.bf16.mxu0 0
  %456 = vmatpush2.bf16.msra.mxu0 %v334
  %457 = vmatprep.subr.bf16.mxu0 0
  %458 = vmatpush2.bf16.msra.mxu0 %v333
  %459 = vmatprep.subr.bf16.mxu0 0
  %460 = vmatpush2.bf16.msra.mxu0 %v332
  %461 = vmatprep.subr.bf16.mxu0 0
  %462 = vmatpush2.bf16.msra.mxu0 %v331
  %463 = vmatprep.subr.bf16.mxu0 0
  %464 = vmatpush2.bf16.msra.mxu0 %v330
  %465 = vmatprep.mubr.bf16.mxu0 %v147
  %466 = vmatmul.mubr.bf16.gmra.mxu0 %v146
  %v467 = vpop.f32.mrf.mxu0
  %v468 = vadd.f32 %v420, %v467
  %v469 = vpop.f32.mrf.mxu0
  %v470 = vpop.f32.mrf.mxu0
  %v471 = vadd.f32 %v423, %v470
  %v472 = vpop.f32.mrf.mxu0
  %473 = vmatprep.mubr.bf16.mxu0 %v152
  %474 = vmatmul.mubr.bf16.gmra.mxu0 %v151
  %v475 = vpop.f32.mrf.mxu0
  %v476 = vadd.f32 %v428, %v475
  %v477 = vpop.f32.mrf.mxu0
  %v478 = vpop.f32.mrf.mxu0
  %v479 = vpop.f32.mrf.mxu0
  %480 = vdwg.mxu0
  %481 = vmatprep.subr.bf16.mxu0 0
  %482 = vmatpush1.bf16.msra.mxu0 0
  %483 = vmatprep.subr.bf16.mxu0 0
  %484 = vmatpush1.bf16.msra.mxu0 0
  %485 = vmatprep.subr.bf16.mxu0 0
  %486 = vmatpush1.bf16.msra.mxu0 0
  %487 = vmatprep.subr.bf16.mxu0 0
  %488 = vmatpush1.bf16.msra.mxu0 0
  %489 = vmatprep.subr.bf16.mxu0 0
  %490 = vmatpush1.bf16.msra.mxu0 %v341
  %491 = vmatprep.subr.bf16.mxu0 0
  %492 = vmatpush1.bf16.msra.mxu0 %v340
  %493 = vmatprep.subr.bf16.mxu0 0
  %494 = vmatpush1.bf16.msra.mxu0 %v339
  %495 = vmatprep.subr.bf16.mxu0 0
  %496 = vmatpush1.bf16.msra.mxu0 %v338
  %497 = vmatprep.subr.bf16.mxu0 0
  %498 = vmatpush2.bf16.msra.mxu0 0
  %499 = vmatprep.subr.bf16.mxu0 0
  %500 = vmatpush2.bf16.msra.mxu0 0
  %501 = vmatprep.subr.bf16.mxu0 0
  %502 = vmatpush2.bf16.msra.mxu0 0
  %503 = vmatprep.subr.bf16.mxu0 0
  %504 = vmatpush2.bf16.msra.mxu0 0
  %505 = vmatprep.subr.bf16.mxu0 0
  %506 = vmatpush2.bf16.msra.mxu0 0
  %507 = vmatprep.subr.bf16.mxu0 0
  %508 = vmatpush2.bf16.msra.mxu0 0
  %509 = vmatprep.subr.bf16.mxu0 0
  %510 = vmatpush2.bf16.msra.mxu0 0
  %511 = vmatprep.subr.bf16.mxu0 0
  %512 = vmatpush2.bf16.msra.mxu0 0
  %513 = vmatprep.mubr.bf16.mxu0 0
  %514 = vmatmul.mubr.bf16.gmra.mxu0 %v380
  %v515 = vpop.f32.mrf.mxu0
  %v516 = vadd.f32 %v468, %v515
  %v517 = vpop.f32.mrf.mxu0
  %v518 = vpop.f32.mrf.mxu0
  %v519 = vadd.f32 %v471, %v518
  %v520 = vpop.f32.mrf.mxu0
  %521 = vmatprep.mubr.bf16.mxu0 0
  %522 = vmatmul.mubr.bf16.gmra.mxu0 %v383
  %v523 = vpop.f32.mrf.mxu0
  %v524 = vadd.f32 %v476, %v523
  %v525 = vpop.f32.mrf.mxu0
  %v526 = vpop.f32.mrf.mxu0
  %v527 = vpop.f32.mrf.mxu0
  %528 = vdwg.mxu0
  %v529 = vxor.u32 %v516, 2147483648
  %v530 = vxor.u32 %v519, 2147483648
  %v531 = vxor.u32 %v524, 2147483648
  %v532 = vmul.f32 %v529, 1.442695
  %v533 = vpow.pop %v532
  %v534 = vmul.f32 %v530, 1.442695
  %v535 = vpow.pop %v534
  %v536 = vmul.f32 %v531, 1.442695
  %v537 = vpow.pop %v536
  %v538 = vadd.f32 %v533, 1.0
  %v539 = vadd.f32 %v535, 1.0
  %v540 = vadd.f32 %v537, 1.0
  %v541 = vrcp.pop %v538
  %v542 = vmul.f32 1.0, %v541
  %v543 = vrcp.pop %v539
  %v544 = vmul.f32 1.0, %v543
  %v545 = vrcp.pop %v540
  %v546 = vmul.f32 1.0, %v545
  %v547 = vmul.f32 %v516, %v542
  %v548 = vmul.f32 %v519, %v544
  %v549 = vmul.f32 %v524, %v546
  %v550 = vpack.c.bf16 %v548, %v547
  %v551 = vpack.c.bf16 %v549, %v549
  %v552 = vld [vmem:[%s2] sm:$0xf]
  %v553 = vld [vmem:[%s2 + $0x4] sm:$0xf]
  %v554 = vld [vmem:[%s3] sm:$0xff]
  %v555 = vld [vmem:[%s3 + $0x8] sm:$0xff]
  %557 = vset.pattern.permute.xlu0 0
  %558 = vperm.xlu0 %557, %v554
  %v559 = vpop.permute.xlu0 %558
  %562 = vset.pattern.permute.xlu0 0
  %563 = vperm.xlu0 %562, %v555
  %v564 = vpop.permute.xlu0 %563
  %v568 = vunpack.c.l.b16 %v552
  %v569 = vunpack.c.l.b16 %v553
  %v570 = vpack.c.b16 %v569, %v568
  %vm571 = vcmask 195584
  %v573 = vsel %vm571, %v570, 0
  %vm575 = vcmask 1043456
  %v577 = vsel %vm575, %v551, 0
  %579 = vmatprep.subr.bf16.mxu0 0
  %580 = vmatpush1.bf16.msra.mxu0 0
  %581 = vmatprep.subr.bf16.mxu0 0
  %582 = vmatpush1.bf16.msra.mxu0 0
  %583 = vmatprep.subr.bf16.mxu0 0
  %584 = vmatpush1.bf16.msra.mxu0 0
  %585 = vmatprep.subr.bf16.mxu0 0
  %586 = vmatpush1.bf16.msra.mxu0 0
  %587 = vmatprep.subr.bf16.mxu0 0
  %588 = vmatpush1.bf16.msra.mxu0 0
  %589 = vmatprep.subr.bf16.mxu0 0
  %590 = vmatpush1.bf16.msra.mxu0 0
  %591 = vmatprep.subr.bf16.mxu0 0
  %592 = vmatpush1.bf16.msra.mxu0 %v577
  %593 = vmatprep.subr.bf16.mxu0 0
  %594 = vmatpush1.bf16.msra.mxu0 %v550
  %595 = vmatprep.subr.bf16.mxu0 0
  %596 = vmatpush2.bf16.msra.mxu0 0
  %597 = vmatprep.subr.bf16.mxu0 0
  %598 = vmatpush2.bf16.msra.mxu0 0
  %599 = vmatprep.subr.bf16.mxu0 0
  %600 = vmatpush2.bf16.msra.mxu0 0
  %601 = vmatprep.subr.bf16.mxu0 0
  %602 = vmatpush2.bf16.msra.mxu0 0
  %603 = vmatprep.subr.bf16.mxu0 0
  %604 = vmatpush2.bf16.msra.mxu0 0
  %605 = vmatprep.subr.bf16.mxu0 0
  %606 = vmatpush2.bf16.msra.mxu0 0
  %607 = vmatprep.subr.bf16.mxu0 0
  %608 = vmatpush2.bf16.msra.mxu0 0
  %609 = vmatprep.subr.bf16.mxu0 0
  %610 = vmatpush2.bf16.msra.mxu0 0
  %611 = vmatprep.mubr.bf16.mxu0 0
  %612 = vmatmul.mubr.bf16.gmra.mxu0 %v573
  %v613 = vpop.f32.mrf.mxu0
  %v614 = vadd.f32 %v559, %v613
  %v615 = vpop.f32.mrf.mxu0
  %v616 = vpop.f32.mrf.mxu0
  %v617 = vadd.f32 %v564, %v616
  %v618 = vpop.f32.mrf.mxu0
  %619 = vdwg.mxu0
  %v620 = vxor.u32 %v614, 2147483648
  %v621 = vxor.u32 %v617, 2147483648
  %v622 = vmul.f32 %v620, 1.442695
  %v623 = vpow.pop %v622
  %v624 = vmul.f32 %v621, 1.442695
  %v625 = vpow.pop %v624
  %v626 = vadd.f32 %v623, 1.0
  %v627 = vadd.f32 %v625, 1.0
  %v628 = vrcp.pop %v626
  %v629 = vmul.f32 1.0, %v628
  %v630 = vrcp.pop %v627
  %v631 = vmul.f32 1.0, %v630
  %v632 = vmul.f32 %v614, %v629
  %v633 = vmul.f32 %v617, %v631
  %v634 = vpack.c.bf16 %v633, %v632
  %v636 = vunpack.c.l.b16 %v634
  %v637 = vunpack.c.h.b16 %v634
  %v638 = vpack.c.b16 %v636, %v636
  %v639 = vpack.c.b16 %v637, %v637
  %vm642 = vcmask 257024
  %643 = vst.msk [vmem:[%s5] sm:$0xf] %vm642, %v638
  %644 = vst.msk [vmem:[%s5 + $0x4] sm:$0xf] %vm642, %v639
  // Predicated region
  $region22: #{model_forward.27} parent=0 // pred_check
    _
  $region23: #{model_forward.27} parent=0 // pred_check_branch
    %646 = sbr.rel (0) target = $region25
  $region24: #{model_forward.27} parent=0 // pred_region
    _
  $region25: #{model_forward.27} parent=0 // pred_fallthru
    _
  // Predicated region
  $region26: #{model_forward.27} parent=0 // pred_check
    _
  $region27: #{model_forward.27} parent=0 // pred_check_branch
    %648 = sbr.rel (0) target = $region29
  $region28: #{model_forward.27} parent=0 // pred_region
    _
  $region29: #{model_forward.27} parent=0 // pred_fallthru
    _

// kernel: model_forward.28
$region0: #{model_forward.28}
  #allocation0 [shape = 'u32[]', space=smem, size = 0x4, offset = 0x4, fixed_abs, tag = 'smem constant byte address 0x4 - core index']
  #allocation1 [shape = 'u32[144,128]{1,0:T(1,128)}', space=vmem, size = 0x12000, scoped, tag = 'internal scratch']
  %s0 = inlined_call_operand.vmem [shape: bf16[16,360], index: 0, kind: input, shape index: {}]
  %s1 = inlined_call_operand.vmem [shape: f32[16,1], index: 1, kind: input, shape index: {}]
  %s2 = inlined_call_operand.vmem [shape: bf16[16,16], index: 2, kind: input, shape index: {}]
  %s3 = inlined_call_operand.vmem [shape: f32[16,1], index: 3, kind: input, shape index: {}]
  %s4 = inlined_call_operand.vmem [shape: bf16[360,128], index: 4, kind: input, shape index: {}]
  %s5 = inlined_call_operand.vmem [shape: bf16[16,128], index: 5, kind: output, shape index: {0}]
  %s6 = inlined_call_operand.vmem [shape: bf16[16,128], index: 6, kind: output, shape index: {1}]
  %7 = xla_tuple %s5, %s6
  %s8 = sld [smem:[#allocation0]]
  $region38: #{model_forward.28} parent=0
    _
  %s10 = ssub.s32 1, %s8
  %s11 = scalar_select 0, %s10, %s8
  // Predicated region
  $region2: #{model_forward.28} parent=0 // pred_check
    _
  $region3: #{model_forward.28} parent=0 // pred_check_branch
    %13 = sbr.rel (0) target = $region5
  $region4: #{model_forward.28} parent=0 // pred_region
    _
  $region5: #{model_forward.28} parent=0 // pred_fallthru
    _
  // Predicated region
  $region6: #{model_forward.28} parent=0 // pred_check
    _
  $region7: #{model_forward.28} parent=0 // pred_check_branch
    %15 = sbr.rel (0) target = $region9
  $region8: #{model_forward.28} parent=0 // pred_region
    _
  $region9: #{model_forward.28} parent=0 // pred_fallthru
    _
  // Predicated region
  $region10: #{model_forward.28} parent=0 // pred_check
    _
  $region11: #{model_forward.28} parent=0 // pred_check_branch
    %17 = sbr.rel (0) target = $region13
  $region12: #{model_forward.28} parent=0 // pred_region
    _
  $region13: #{model_forward.28} parent=0 // pred_fallthru
    _
  // Predicated region
  $region14: #{model_forward.28} parent=0 // pred_check
    _
  $region15: #{model_forward.28} parent=0 // pred_check_branch
    %19 = sbr.rel (0) target = $region17
  $region16: #{model_forward.28} parent=0 // pred_region
    _
  $region17: #{model_forward.28} parent=0 // pred_fallthru
    _
  // Predicated region
  $region18: #{model_forward.28} parent=0 // pred_check
    _
  $region19: #{model_forward.28} parent=0 // pred_check_branch
    %21 = sbr.rel (0) target = $region21
  $region20: #{model_forward.28} parent=0 // pred_region
    _
  $region21: #{model_forward.28} parent=0 // pred_fallthru
    _
  %v23 = vld [vmem:[%s0] sm:$0xff]
  %v24 = vld [vmem:[%s0 + $0x8] sm:$0xf]
  %v25 = vld [vmem:[%s0 + $0xc] sm:$0xff]
  %v26 = vld [vmem:[%s0 + $0x14] sm:$0xf]
  %v27 = vld [vmem:[%s4] sm:$0xf]
  %v28 = vld [vmem:[%s4 + $0x4] sm:$0xf]
  %v29 = vld [vmem:[%s4 + $0x8] sm:$0xf]
  %v30 = vld [vmem:[%s4 + $0xc] sm:$0xf]
  %v31 = vld [vmem:[%s4 + $0x10] sm:$0xf]
  %v32 = vld [vmem:[%s4 + $0x14] sm:$0xf]
  %v33 = vld [vmem:[%s4 + $0x18] sm:$0xf]
  %v34 = vld [vmem:[%s4 + $0x1c] sm:$0xf]
  %v35 = vld [vmem:[%s4 + $0x20] sm:$0xf]
  %v36 = vld [vmem:[%s4 + $0x24] sm:$0xf]
  %v37 = vld [vmem:[%s4 + $0x28] sm:$0xf]
  %v38 = vld [vmem:[%s4 + $0x2c] sm:$0xf]
  %v39 = vld [vmem:[%s4 + $0x30] sm:$0xf]
  %v40 = vld [vmem:[%s4 + $0x34] sm:$0xf]
  %v41 = vld [vmem:[%s4 + $0x38] sm:$0xf]
  %v42 = vld [vmem:[%s4 + $0x3c] sm:$0xf]
  %v43 = vld [vmem:[%s4 + $0x40] sm:$0xf]
  %v44 = vld [vmem:[%s4 + $0x44] sm:$0xf]
  %v45 = vld [vmem:[%s4 + $0x48] sm:$0xf]
  %v46 = vld [vmem:[%s4 + $0x4c] sm:$0xf]
  %v47 = vld [vmem:[%s4 + $0x50] sm:$0xf]
  %v48 = vld [vmem:[%s4 + $0x54] sm:$0xf]
  %v49 = vld [vmem:[%s4 + $0x58] sm:$0xf]
  %v50 = vld [vmem:[%s4 + $0x5c] sm:$0xf]
  %v51 = vld [vmem:[%s4 + $0x60] sm:$0xf]
  %v52 = vld [vmem:[%s4 + $0x64] sm:$0xf]
  %v53 = vld [vmem:[%s4 + $0x68] sm:$0xf]
  %v54 = vld [vmem:[%s4 + $0x6c] sm:$0xf]
  %v55 = vld [vmem:[%s4 + $0x70] sm:$0xf]
  %v56 = vld [vmem:[%s4 + $0x74] sm:$0xf]
  %v57 = vld [vmem:[%s4 + $0x78] sm:$0xf]
  %v58 = vld [vmem:[%s4 + $0x7c] sm:$0xf]
  %v59 = vld [vmem:[%s4 + $0x80] sm:$0xf]
  %v60 = vld [vmem:[%s4 + $0x84] sm:$0xf]
  %v61 = vld [vmem:[%s4 + $0x88] sm:$0xf]
  %v62 = vld [vmem:[%s4 + $0x8c] sm:$0xf]
  %v63 = vld [vmem:[%s4 + $0x90] sm:$0xf]
  %v64 = vld [vmem:[%s4 + $0x94] sm:$0xf]
  %v65 = vld [vmem:[%s4 + $0x98] sm:$0xf]
  %v66 = vld [vmem:[%s4 + $0x9c] sm:$0xf]
  %v67 = vld [vmem:[%s4 + $0xa0] sm:$0xf]
  %v68 = vld [vmem:[%s4 + $0xa4] sm:$0xf]
  %v69 = vld [vmem:[%s4 + $0xa8] sm:$0xf]
  %v70 = vld [vmem:[%s4 + $0xac] sm:$0xf]
  %v71 = vld [vmem:[%s4 + $0xb0] sm:$0xf]
  %v72 = vld [vmem:[%s1] sm:$0xff]
  %v73 = vld [vmem:[%s1 + $0x8] sm:$0xff]
  %75 = vset.pattern.permute.xlu0 0
  %76 = vperm.xlu0 %75, %v72
  %v77 = vpop.permute.xlu0 %76
  %80 = vset.pattern.permute.xlu0 0
  %81 = vperm.xlu0 %80, %v73
  %v82 = vpop.permute.xlu0 %81
  %v88 = vunpack.c.l.b16 %v23
  %v89 = vunpack.c.h.b16 %v23
  %v90 = vunpack.c.l.b16 %v24
  %v91 = vunpack.c.l.b16 %v25
  %v92 = vunpack.c.h.b16 %v25
  %v93 = vunpack.c.l.b16 %v26
  %v94 = vpack.c.b16 %v91, %v88
  %v95 = vpack.c.b16 %v92, %v89
  %v96 = vpack.c.b16 %v93, %v90
  %v144 = vunpack.c.l.b16 %v27
  %v145 = vunpack.c.l.b16 %v28
  %v146 = vunpack.c.l.b16 %v29
  %v147 = vunpack.c.l.b16 %v30
  %v148 = vunpack.c.l.b16 %v31
  %v149 = vunpack.c.l.b16 %v32
  %v150 = vunpack.c.l.b16 %v33
  %v151 = vunpack.c.l.b16 %v34
  %v152 = vunpack.c.l.b16 %v35
  %v153 = vunpack.c.l.b16 %v36
  %v154 = vunpack.c.l.b16 %v37
  %v155 = vunpack.c.l.b16 %v38
  %v156 = vunpack.c.l.b16 %v39
  %v157 = vunpack.c.l.b16 %v40
  %v158 = vunpack.c.l.b16 %v41
  %v159 = vunpack.c.l.b16 %v42
  %v160 = vunpack.c.l.b16 %v43
  %v161 = vunpack.c.l.b16 %v44
  %v162 = vunpack.c.l.b16 %v45
  %v163 = vunpack.c.l.b16 %v46
  %v164 = vunpack.c.l.b16 %v47
  %v165 = vunpack.c.l.b16 %v48
  %v166 = vunpack.c.l.b16 %v49
  %v167 = vunpack.c.l.b16 %v50
  %v168 = vunpack.c.l.b16 %v51
  %v169 = vunpack.c.l.b16 %v52
  %v170 = vunpack.c.l.b16 %v53
  %v171 = vunpack.c.l.b16 %v54
  %v172 = vunpack.c.l.b16 %v55
  %v173 = vunpack.c.l.b16 %v56
  %v174 = vunpack.c.l.b16 %v57
  %v175 = vunpack.c.l.b16 %v58
  %v176 = vunpack.c.l.b16 %v59
  %v177 = vunpack.c.l.b16 %v60
  %v178 = vunpack.c.l.b16 %v61
  %v179 = vunpack.c.l.b16 %v62
  %v180 = vunpack.c.l.b16 %v63
  %v181 = vunpack.c.l.b16 %v64
  %v182 = vunpack.c.l.b16 %v65
  %v183 = vunpack.c.l.b16 %v66
  %v184 = vunpack.c.l.b16 %v67
  %v185 = vunpack.c.l.b16 %v68
  %v186 = vunpack.c.l.b16 %v69
  %v187 = vunpack.c.l.b16 %v70
  %v188 = vunpack.c.l.b16 %v71
  %v189 = vpack.c.b16 %v145, %v144
  %v190 = vpack.c.b16 %v147, %v146
  %v191 = vpack.c.b16 %v149, %v148
  %v192 = vpack.c.b16 %v151, %v150
  %v193 = vpack.c.b16 %v153, %v152
  %v194 = vpack.c.b16 %v155, %v154
  %v195 = vpack.c.b16 %v157, %v156
  %v196 = vpack.c.b16 %v159, %v158
  %v197 = vpack.c.b16 %v161, %v160
  %v198 = vpack.c.b16 %v163, %v162
  %v199 = vpack.c.b16 %v165, %v164
  %v200 = vpack.c.b16 %v167, %v166
  %v201 = vpack.c.b16 %v169, %v168
  %v202 = vpack.c.b16 %v171, %v170
  %v203 = vpack.c.b16 %v173, %v172
  %v204 = vpack.c.b16 %v175, %v174
  %v205 = vpack.c.b16 %v177, %v176
  %v206 = vpack.c.b16 %v179, %v178
  %v207 = vpack.c.b16 %v181, %v180
  %v208 = vpack.c.b16 %v183, %v182
  %v209 = vpack.c.b16 %v185, %v184
  %v210 = vpack.c.b16 %v187, %v186
  %v211 = vpack.c.b16 %v188, %v188
  %vm234 = vcmask 850944
  %v236 = vsel %vm234, %v96, 0
  %vm238 = vcmask 1043456
  %v240 = vsel %vm238, %v211, 0
  %242 = vmatprep.subr.bf16.mxu0 0
  %243 = vmatpush1.bf16.msra.mxu0 %v196
  %244 = vmatprep.subr.bf16.mxu0 0
  %245 = vmatpush1.bf16.msra.mxu0 %v195
  %246 = vmatprep.subr.bf16.mxu0 0
  %247 = vmatpush1.bf16.msra.mxu0 %v194
  %248 = vmatprep.subr.bf16.mxu0 0
  %249 = vmatpush1.bf16.msra.mxu0 %v193
  %250 = vmatprep.subr.bf16.mxu0 0
  %251 = vmatpush1.bf16.msra.mxu0 %v192
  %252 = vmatprep.subr.bf16.mxu0 0
  %253 = vmatpush1.bf16.msra.mxu0 %v191
  %254 = vmatprep.subr.bf16.mxu0 0
  %255 = vmatpush1.bf16.msra.mxu0 %v190
  %256 = vmatprep.subr.bf16.mxu0 0
  %257 = vmatpush1.bf16.msra.mxu0 %v189
  %258 = vmatprep.subr.bf16.mxu0 0
  %259 = vmatpush2.bf16.msra.mxu0 %v204
  %260 = vmatprep.subr.bf16.mxu0 0
  %261 = vmatpush2.bf16.msra.mxu0 %v203
  %262 = vmatprep.subr.bf16.mxu0 0
  %263 = vmatpush2.bf16.msra.mxu0 %v202
  %264 = vmatprep.subr.bf16.mxu0 0
  %265 = vmatpush2.bf16.msra.mxu0 %v201
  %266 = vmatprep.subr.bf16.mxu0 0
  %267 = vmatpush2.bf16.msra.mxu0 %v200
  %268 = vmatprep.subr.bf16.mxu0 0
  %269 = vmatpush2.bf16.msra.mxu0 %v199
  %270 = vmatprep.subr.bf16.mxu0 0
  %271 = vmatpush2.bf16.msra.mxu0 %v198
  %272 = vmatprep.subr.bf16.mxu0 0
  %273 = vmatpush2.bf16.msra.mxu0 %v197
  %274 = vmatprep.mubr.bf16.mxu0 %v95
  %275 = vmatmul.mubr.bf16.gmra.mxu0 %v94
  %v276 = vpop.f32.mrf.mxu0
  %v277 = vadd.f32 %v77, %v276
  %v278 = vpop.f32.mrf.mxu0
  %v279 = vpop.f32.mrf.mxu0
  %v280 = vadd.f32 %v82, %v279
  %v281 = vpop.f32.mrf.mxu0
  %282 = vdwg.mxu0
  %283 = vmatprep.subr.bf16.mxu0 0
  %284 = vmatpush1.bf16.msra.mxu0 0
  %285 = vmatprep.subr.bf16.mxu0 0
  %286 = vmatpush1.bf16.msra.mxu0 %v240
  %287 = vmatprep.subr.bf16.mxu0 0
  %288 = vmatpush1.bf16.msra.mxu0 %v210
  %289 = vmatprep.subr.bf16.mxu0 0
  %290 = vmatpush1.bf16.msra.mxu0 %v209
  %291 = vmatprep.subr.bf16.mxu0 0
  %292 = vmatpush1.bf16.msra.mxu0 %v208
  %293 = vmatprep.subr.bf16.mxu0 0
  %294 = vmatpush1.bf16.msra.mxu0 %v207
  %295 = vmatprep.subr.bf16.mxu0 0
  %296 = vmatpush1.bf16.msra.mxu0 %v206
  %297 = vmatprep.subr.bf16.mxu0 0
  %298 = vmatpush1.bf16.msra.mxu0 %v205
  %299 = vmatprep.subr.bf16.mxu0 0
  %300 = vmatpush2.bf16.msra.mxu0 0
  %301 = vmatprep.subr.bf16.mxu0 0
  %302 = vmatpush2.bf16.msra.mxu0 0
  %303 = vmatprep.subr.bf16.mxu0 0
  %304 = vmatpush2.bf16.msra.mxu0 0
  %305 = vmatprep.subr.bf16.mxu0 0
  %306 = vmatpush2.bf16.msra.mxu0 0
  %307 = vmatprep.subr.bf16.mxu0 0
  %308 = vmatpush2.bf16.msra.mxu0 0
  %309 = vmatprep.subr.bf16.mxu0 0
  %310 = vmatpush2.bf16.msra.mxu0 0
  %311 = vmatprep.subr.bf16.mxu0 0
  %312 = vmatpush2.bf16.msra.mxu0 0
  %313 = vmatprep.subr.bf16.mxu0 0
  %314 = vmatpush2.bf16.msra.mxu0 0
  %315 = vmatprep.mubr.bf16.mxu0 0
  %316 = vmatmul.mubr.bf16.gmra.mxu0 %v236
  %v317 = vpop.f32.mrf.mxu0
  %v318 = vadd.f32 %v277, %v317
  %v319 = vpop.f32.mrf.mxu0
  %v320 = vpop.f32.mrf.mxu0
  %v321 = vadd.f32 %v280, %v320
  %v322 = vpop.f32.mrf.mxu0
  %323 = vdwg.mxu0
  %v324 = vxor.u32 %v318, 2147483648
  %v325 = vxor.u32 %v321, 2147483648
  %v326 = vmul.f32 %v324, 1.442695
  %v327 = vpow.pop %v326
  %v328 = vmul.f32 %v325, 1.442695
  %v329 = vpow.pop %v328
  %v330 = vadd.f32 %v327, 1.0
  %v331 = vadd.f32 %v329, 1.0
  %v332 = vrcp.pop %v330
  %v333 = vmul.f32 1.0, %v332
  %v334 = vrcp.pop %v331
  %v335 = vmul.f32 1.0, %v334
  %v336 = vmul.f32 %v318, %v333
  %v337 = vmul.f32 %v321, %v335
  %v338 = vpack.c.bf16 %v337, %v336
  %v339 = vld [vmem:[%s2] sm:$0xf]
  %v340 = vld [vmem:[%s2 + $0x4] sm:$0xf]
  %v341 = vld [vmem:[%s3] sm:$0xff]
  %v342 = vld [vmem:[%s3 + $0x8] sm:$0xff]
  %344 = vset.pattern.permute.xlu0 0
  %345 = vperm.xlu0 %344, %v341
  %v346 = vpop.permute.xlu0 %345
  %349 = vset.pattern.permute.xlu0 0
  %350 = vperm.xlu0 %349, %v342
  %v351 = vpop.permute.xlu0 %350
  %v355 = vunpack.c.l.b16 %v339
  %v356 = vunpack.c.l.b16 %v340
  %v357 = vpack.c.b16 %v356, %v355
  %vm358 = vcmask 130048
  %v360 = vsel %vm358, %v357, 0
  %362 = vmatprep.subr.bf16.mxu0 0
  %363 = vmatpush1.bf16.msra.mxu0 0
  %364 = vmatprep.subr.bf16.mxu0 0
  %365 = vmatpush1.bf16.msra.mxu0 0
  %366 = vmatprep.subr.bf16.mxu0 0
  %367 = vmatpush1.bf16.msra.mxu0 0
  %368 = vmatprep.subr.bf16.mxu0 0
  %369 = vmatpush1.bf16.msra.mxu0 0
  %370 = vmatprep.subr.bf16.mxu0 0
  %371 = vmatpush1.bf16.msra.mxu0 0
  %372 = vmatprep.subr.bf16.mxu0 0
  %373 = vmatpush1.bf16.msra.mxu0 0
  %374 = vmatprep.subr.bf16.mxu0 0
  %375 = vmatpush1.bf16.msra.mxu0 0
  %376 = vmatprep.subr.bf16.mxu0 0
  %377 = vmatpush1.bf16.msra.mxu0 %v338
  %378 = vmatprep.subr.bf16.mxu0 0
  %379 = vmatpush2.bf16.msra.mxu0 0
  %380 = vmatprep.subr.bf16.mxu0 0
  %381 = vmatpush2.bf16.msra.mxu0 0
  %382 = vmatprep.subr.bf16.mxu0 0
  %383 = vmatpush2.bf16.msra.mxu0 0
  %384 = vmatprep.subr.bf16.mxu0 0
  %385 = vmatpush2.bf16.msra.mxu0 0
  %386 = vmatprep.subr.bf16.mxu0 0
  %387 = vmatpush2.bf16.msra.mxu0 0
  %388 = vmatprep.subr.bf16.mxu0 0
  %389 = vmatpush2.bf16.msra.mxu0 0
  %390 = vmatprep.subr.bf16.mxu0 0
  %391 = vmatpush2.bf16.msra.mxu0 0
  %392 = vmatprep.subr.bf16.mxu0 0
  %393 = vmatpush2.bf16.msra.mxu0 0
  %394 = vmatprep.mubr.bf16.mxu0 0
  %395 = vmatmul.mubr.bf16.gmra.mxu0 %v360
  %v396 = vpop.f32.mrf.mxu0
  %v397 = vadd.f32 %v346, %v396
  %v398 = vpop.f32.mrf.mxu0
  %v399 = vpop.f32.mrf.mxu0
  %v400 = vadd.f32 %v351, %v399
  %v401 = vpop.f32.mrf.mxu0
  %402 = vdwg.mxu0
  %v403 = vxor.u32 %v397, 2147483648
  %v404 = vxor.u32 %v400, 2147483648
  %v405 = vmul.f32 %v403, 1.442695
  %v406 = vpow.pop %v405
  %v407 = vmul.f32 %v404, 1.442695
  %v408 = vpow.pop %v407
  %v409 = vadd.f32 %v406, 1.0
  %v410 = vadd.f32 %v408, 1.0
  %v411 = vrcp.pop %v409
  %v412 = vmul.f32 1.0, %v411
  %v413 = vrcp.pop %v410
  %v414 = vmul.f32 1.0, %v413
  %v415 = vmul.f32 %v397, %v412
  %v416 = vmul.f32 %v400, %v414
  %v418 = vunpack.c.l.b16 %v338
  %v419 = vunpack.c.h.b16 %v338
  %v420 = vpack.c.b16 %v418, %v418
  %v421 = vpack.c.b16 %v419, %v419
  %424 = vst [vmem:[%s5] sm:$0xf] %v420
  %425 = vst [vmem:[%s5 + $0x4] sm:$0xf] %v421
  %v426 = vpack.c.bf16 %v416, %v415
  %v428 = vunpack.c.l.b16 %v426
  %v429 = vunpack.c.h.b16 %v426
  %v430 = vpack.c.b16 %v428, %v428
  %v431 = vpack.c.b16 %v429, %v429
  %434 = vst [vmem:[%s6] sm:$0xf] %v430
  %435 = vst [vmem:[%s6 + $0x4] sm:$0xf] %v431
  // Predicated region
  $region22: #{model_forward.28} parent=0 // pred_check
    _
  $region23: #{model_forward.28} parent=0 // pred_check_branch
    %437 = sbr.rel (0) target = $region25
  $region24: #{model_forward.28} parent=0 // pred_region
    _
  $region25: #{model_forward.28} parent=0 // pred_fallthru
    _
  // Predicated region
  $region26: #{model_forward.28} parent=0 // pred_check
    _
  $region27: #{model_forward.28} parent=0 // pred_check_branch
    %439 = sbr.rel (0) target = $region29
  $region28: #{model_forward.28} parent=0 // pred_region
    _
  $region29: #{model_forward.28} parent=0 // pred_fallthru
    _
  // Predicated region
  $region30: #{model_forward.28} parent=0 // pred_check
    _
  $region31: #{model_forward.28} parent=0 // pred_check_branch
    %441 = sbr.rel (0) target = $region33
  $region32: #{model_forward.28} parent=0 // pred_region
    _
  $region33: #{model_forward.28} parent=0 // pred_fallthru
    _
  // Predicated region
  $region34: #{model_forward.28} parent=0 // pred_check
    _
  $region35: #{model_forward.28} parent=0 // pred_check_branch
    %443 = sbr.rel (0) target = $region37
  $region36: #{model_forward.28} parent=0 // pred_region
    _
  $region37: #{model_forward.28} parent=0 // pred_fallthru
    _

// kernel: model_forward.33
$region0: #{model_forward.33}
  #allocation0 [shape = 'u32[]', space=smem, size = 0x4, offset = 0x4, fixed_abs, tag = 'smem constant byte address 0x4 - core index']
  #allocation1 [shape = 'u32[144,128]{1,0:T(1,128)}', space=vmem, size = 0x12000, scoped, tag = 'internal scratch']
  %s0 = inlined_call_operand.vmem [shape: bf16[32,144], index: 0, kind: input, shape index: {}]
  %s1 = inlined_call_operand.vmem [shape: f32[32,1], index: 1, kind: input, shape index: {}]
  %s2 = inlined_call_operand.vmem [shape: bf16[8,32], index: 2, kind: input, shape index: {}]
  %s3 = inlined_call_operand.vmem [shape: f32[8,1], index: 3, kind: input, shape index: {}]
  %s4 = inlined_call_operand.vmem [shape: bf16[144,128], index: 4, kind: input, shape index: {}]
  %s5 = inlined_call_operand.vmem [shape: f32[8,128], index: 5, kind: output, shape index: {}]
  %s6 = sld [smem:[#allocation0]]
  $region30: #{model_forward.33} parent=0
    _
  %s8 = ssub.s32 1, %s6
  %s9 = scalar_select 0, %s8, %s6
  // Predicated region
  $region2: #{model_forward.33} parent=0 // pred_check
    _
  $region3: #{model_forward.33} parent=0 // pred_check_branch
    %11 = sbr.rel (0) target = $region5
  $region4: #{model_forward.33} parent=0 // pred_region
    _
  $region5: #{model_forward.33} parent=0 // pred_fallthru
    _
  // Predicated region
  $region6: #{model_forward.33} parent=0 // pred_check
    _
  $region7: #{model_forward.33} parent=0 // pred_check_branch
    %13 = sbr.rel (0) target = $region9
  $region8: #{model_forward.33} parent=0 // pred_region
    _
  $region9: #{model_forward.33} parent=0 // pred_fallthru
    _
  // Predicated region
  $region10: #{model_forward.33} parent=0 // pred_check
    _
  $region11: #{model_forward.33} parent=0 // pred_check_branch
    %15 = sbr.rel (0) target = $region13
  $region12: #{model_forward.33} parent=0 // pred_region
    _
  $region13: #{model_forward.33} parent=0 // pred_fallthru
    _
  // Predicated region
  $region14: #{model_forward.33} parent=0 // pred_check
    _
  $region15: #{model_forward.33} parent=0 // pred_check_branch
    %17 = sbr.rel (0) target = $region17
  $region16: #{model_forward.33} parent=0 // pred_region
    _
  $region17: #{model_forward.33} parent=0 // pred_fallthru
    _
  // Predicated region
  $region18: #{model_forward.33} parent=0 // pred_check
    _
  $region19: #{model_forward.33} parent=0 // pred_check_branch
    %19 = sbr.rel (0) target = $region21
  $region20: #{model_forward.33} parent=0 // pred_region
    _
  $region21: #{model_forward.33} parent=0 // pred_fallthru
    _
  %v21 = vld [vmem:[%s0] sm:$0xff]
  %v22 = vld [vmem:[%s0 + $0x8] sm:$0xff]
  %v23 = vld [vmem:[%s0 + $0x10] sm:$0xff]
  %v24 = vld [vmem:[%s0 + $0x18] sm:$0xff]
  %v25 = vld [vmem:[%s4] sm:$0xf]
  %v26 = vld [vmem:[%s4 + $0x4] sm:$0xf]
  %v27 = vld [vmem:[%s4 + $0x8] sm:$0xf]
  %v28 = vld [vmem:[%s4 + $0xc] sm:$0xf]
  %v29 = vld [vmem:[%s4 + $0x10] sm:$0xf]
  %v30 = vld [vmem:[%s4 + $0x14] sm:$0xf]
  %v31 = vld [vmem:[%s4 + $0x18] sm:$0xf]
  %v32 = vld [vmem:[%s4 + $0x1c] sm:$0xf]
  %v33 = vld [vmem:[%s4 + $0x20] sm:$0xf]
  %v34 = vld [vmem:[%s4 + $0x24] sm:$0xf]
  %v35 = vld [vmem:[%s4 + $0x28] sm:$0xf]
  %v36 = vld [vmem:[%s4 + $0x2c] sm:$0xf]
  %v37 = vld [vmem:[%s4 + $0x30] sm:$0xf]
  %v38 = vld [vmem:[%s4 + $0x34] sm:$0xf]
  %v39 = vld [vmem:[%s4 + $0x38] sm:$0xf]
  %v40 = vld [vmem:[%s4 + $0x3c] sm:$0xf]
  %v41 = vld [vmem:[%s4 + $0x40] sm:$0xf]
  %v42 = vld [vmem:[%s4 + $0x44] sm:$0xf]
  %v43 = vld [vmem:[%s1] sm:$0xff]
  %v44 = vld [vmem:[%s1 + $0x8] sm:$0xff]
  %v45 = vld [vmem:[%s1 + $0x10] sm:$0xff]
  %v46 = vld [vmem:[%s1 + $0x18] sm:$0xff]
  %48 = vset.pattern.permute.xlu0 0
  %49 = vperm.xlu0 %48, %v43
  %v50 = vpop.permute.xlu0 %49
  %53 = vset.pattern.permute.xlu0 0
  %54 = vperm.xlu0 %53, %v44
  %v55 = vpop.permute.xlu0 %54
  %58 = vset.pattern.permute.xlu0 0
  %59 = vperm.xlu0 %58, %v45
  %v60 = vpop.permute.xlu0 %59
  %63 = vset.pattern.permute.xlu0 0
  %64 = vperm.xlu0 %63, %v46
  %v65 = vpop.permute.xlu0 %64
  %v71 = vunpack.c.l.b16 %v21
  %v72 = vunpack.c.h.b16 %v21
  %v73 = vunpack.c.l.b16 %v22
  %v74 = vunpack.c.h.b16 %v22
  %v75 = vunpack.c.l.b16 %v23
  %v76 = vunpack.c.h.b16 %v23
  %v77 = vunpack.c.l.b16 %v24
  %v78 = vunpack.c.h.b16 %v24
  %v79 = vpack.c.b16 %v73, %v71
  %v80 = vpack.c.b16 %v74, %v72
  %v81 = vpack.c.b16 %v77, %v75
  %v82 = vpack.c.b16 %v78, %v76
  %v103 = vunpack.c.l.b16 %v25
  %v104 = vunpack.c.l.b16 %v26
  %v105 = vunpack.c.l.b16 %v27
  %v106 = vunpack.c.l.b16 %v28
  %v107 = vunpack.c.l.b16 %v29
  %v108 = vunpack.c.l.b16 %v30
  %v109 = vunpack.c.l.b16 %v31
  %v110 = vunpack.c.l.b16 %v32
  %v111 = vunpack.c.l.b16 %v33
  %v112 = vunpack.c.l.b16 %v34
  %v113 = vunpack.c.l.b16 %v35
  %v114 = vunpack.c.l.b16 %v36
  %v115 = vunpack.c.l.b16 %v37
  %v116 = vunpack.c.l.b16 %v38
  %v117 = vunpack.c.l.b16 %v39
  %v118 = vunpack.c.l.b16 %v40
  %v119 = vunpack.c.l.b16 %v41
  %v120 = vunpack.c.l.b16 %v42
  %v121 = vpack.c.b16 %v104, %v103
  %v122 = vpack.c.b16 %v106, %v105
  %v123 = vpack.c.b16 %v108, %v107
  %v124 = vpack.c.b16 %v110, %v109
  %v125 = vpack.c.b16 %v112, %v111
  %v126 = vpack.c.b16 %v114, %v113
  %v127 = vpack.c.b16 %v116, %v115
  %v128 = vpack.c.b16 %v118, %v117
  %v129 = vpack.c.b16 %v120, %v119
  %vm139 = vcmask 130048
  %v141 = vsel %vm139, %v80, 0
  %v144 = vsel %vm139, %v82, 0
  %146 = vmatprep.subr.bf16.mxu0 0
  %147 = vmatpush1.bf16.msra.mxu0 %v128
  %148 = vmatprep.subr.bf16.mxu0 0
  %149 = vmatpush1.bf16.msra.mxu0 %v127
  %150 = vmatprep.subr.bf16.mxu0 0
  %151 = vmatpush1.bf16.msra.mxu0 %v126
  %152 = vmatprep.subr.bf16.mxu0 0
  %153 = vmatpush1.bf16.msra.mxu0 %v125
  %154 = vmatprep.subr.bf16.mxu0 0
  %155 = vmatpush1.bf16.msra.mxu0 %v124
  %156 = vmatprep.subr.bf16.mxu0 0
  %157 = vmatpush1.bf16.msra.mxu0 %v123
  %158 = vmatprep.subr.bf16.mxu0 0
  %159 = vmatpush1.bf16.msra.mxu0 %v122
  %160 = vmatprep.subr.bf16.mxu0 0
  %161 = vmatpush1.bf16.msra.mxu0 %v121
  %162 = vmatprep.subr.bf16.mxu0 0
  %163 = vmatpush2.bf16.msra.mxu0 0
  %164 = vmatprep.subr.bf16.mxu0 0
  %165 = vmatpush2.bf16.msra.mxu0 0
  %166 = vmatprep.subr.bf16.mxu0 0
  %167 = vmatpush2.bf16.msra.mxu0 0
  %168 = vmatprep.subr.bf16.mxu0 0
  %169 = vmatpush2.bf16.msra.mxu0 0
  %170 = vmatprep.subr.bf16.mxu0 0
  %171 = vmatpush2.bf16.msra.mxu0 0
  %172 = vmatprep.subr.bf16.mxu0 0
  %173 = vmatpush2.bf16.msra.mxu0 0
  %174 = vmatprep.subr.bf16.mxu0 0
  %175 = vmatpush2.bf16.msra.mxu0 0
  %176 = vmatprep.subr.bf16.mxu0 0
  %177 = vmatpush2.bf16.msra.mxu0 %v129
  %178 = vmatprep.mubr.bf16.mxu0 %v141
  %179 = vmatmul.mubr.bf16.gmra.mxu0 %v79
  %v180 = vpop.f32.mrf.mxu0
  %v181 = vadd.f32 %v50, %v180
  %v182 = vpop.f32.mrf.mxu0
  %v183 = vpop.f32.mrf.mxu0
  %v184 = vadd.f32 %v55, %v183
  %v185 = vpop.f32.mrf.mxu0
  %186 = vmatprep.mubr.bf16.mxu0 %v144
  %187 = vmatmul.mubr.bf16.gmra.mxu0 %v81
  %v188 = vpop.f32.mrf.mxu0
  %v189 = vadd.f32 %v60, %v188
  %v190 = vpop.f32.mrf.mxu0
  %v191 = vpop.f32.mrf.mxu0
  %v192 = vadd.f32 %v65, %v191
  %v193 = vpop.f32.mrf.mxu0
  %194 = vdwg.mxu0
  %v195 = vxor.u32 %v181, 2147483648
  %v196 = vxor.u32 %v184, 2147483648
  %v197 = vxor.u32 %v189, 2147483648
  %v198 = vxor.u32 %v192, 2147483648
  %v199 = vmul.f32 %v195, 1.442695
  %v200 = vpow.pop %v199
  %v201 = vmul.f32 %v196, 1.442695
  %v202 = vpow.pop %v201
  %v203 = vmul.f32 %v197, 1.442695
  %v204 = vpow.pop %v203
  %v205 = vmul.f32 %v198, 1.442695
  %v206 = vpow.pop %v205
  %v207 = vadd.f32 %v200, 1.0
  %v208 = vadd.f32 %v202, 1.0
  %v209 = vadd.f32 %v204, 1.0
  %v210 = vadd.f32 %v206, 1.0
  %v211 = vrcp.pop %v207
  %v212 = vmul.f32 1.0, %v211
  %v213 = vrcp.pop %v208
  %v214 = vmul.f32 1.0, %v213
  %v215 = vrcp.pop %v209
  %v216 = vmul.f32 1.0, %v215
  %v217 = vrcp.pop %v210
  %v218 = vmul.f32 1.0, %v217
  %v219 = vmul.f32 %v181, %v212
  %v220 = vmul.f32 %v184, %v214
  %v221 = vmul.f32 %v189, %v216
  %v222 = vmul.f32 %v192, %v218
  %v223 = vpack.c.bf16 %v220, %v219
  %v224 = vpack.c.bf16 %v222, %v221
  %v225 = vld [vmem:[%s2] sm:$0xf]
  %v226 = vld [vmem:[%s3] sm:$0xff]
  %228 = vset.pattern.permute.xlu0 0
  %229 = vperm.xlu0 %228, %v226
  %v230 = vpop.permute.xlu0 %229
  %vm232 = vcmask 261120
  %v234 = vsel %vm232, %v225, 0
  %236 = vmatprep.subr.bf16.mxu0 0
  %237 = vmatpush1.bf16.msra.mxu0 0
  %238 = vmatprep.subr.bf16.mxu0 0
  %239 = vmatpush1.bf16.msra.mxu0 0
  %240 = vmatprep.subr.bf16.mxu0 0
  %241 = vmatpush1.bf16.msra.mxu0 0
  %242 = vmatprep.subr.bf16.mxu0 0
  %243 = vmatpush1.bf16.msra.mxu0 0
  %244 = vmatprep.subr.bf16.mxu0 0
  %245 = vmatpush1.bf16.msra.mxu0 0
  %246 = vmatprep.subr.bf16.mxu0 0
  %247 = vmatpush1.bf16.msra.mxu0 0
  %248 = vmatprep.subr.bf16.mxu0 0
  %249 = vmatpush1.bf16.msra.mxu0 %v224
  %250 = vmatprep.subr.bf16.mxu0 0
  %251 = vmatpush1.bf16.msra.mxu0 %v223
  %252 = vmatprep.subr.bf16.mxu0 0
  %253 = vmatpush2.bf16.msra.mxu0 0
  %254 = vmatprep.subr.bf16.mxu0 0
  %255 = vmatpush2.bf16.msra.mxu0 0
  %256 = vmatprep.subr.bf16.mxu0 0
  %257 = vmatpush2.bf16.msra.mxu0 0
  %258 = vmatprep.subr.bf16.mxu0 0
  %259 = vmatpush2.bf16.msra.mxu0 0
  %260 = vmatprep.subr.bf16.mxu0 0
  %261 = vmatpush2.bf16.msra.mxu0 0
  %262 = vmatprep.subr.bf16.mxu0 0
  %263 = vmatpush2.bf16.msra.mxu0 0
  %264 = vmatprep.subr.bf16.mxu0 0
  %265 = vmatpush2.bf16.msra.mxu0 0
  %266 = vmatprep.subr.bf16.mxu0 0
  %267 = vmatpush2.bf16.msra.mxu0 0
  %268 = vmatprep.mubr.bf16.mxu0 0
  %269 = vmatmul.mubr.bf16.gmra.mxu0 %v234
  %v270 = vpop.f32.mrf.mxu0
  %v271 = vadd.f32 %v230, %v270
  %v272 = vpop.f32.mrf.mxu0
  %v273 = vpop.f32.mrf.mxu0
  %v274 = vpop.f32.mrf.mxu0
  %275 = vdwg.mxu0
  %276 = vst [vmem:[%s5] sm:$0xff] %v271
  // Predicated region
  $region22: #{model_forward.33} parent=0 // pred_check
    _
  $region23: #{model_forward.33} parent=0 // pred_check_branch
    %278 = sbr.rel (0) target = $region25
  $region24: #{model_forward.33} parent=0 // pred_region
    _
  $region25: #{model_forward.33} parent=0 // pred_fallthru
    _
  // Predicated region
  $region26: #{model_forward.33} parent=0 // pred_check
    _
  $region27: #{model_forward.33} parent=0 // pred_check_branch
    %280 = sbr.rel (0) target = $region29
  $region28: #{model_forward.33} parent=0 // pred_region
    _
  $region29: #{model_forward.33} parent=0 // pred_fallthru
    _

// kernel: model_forward.29
$region0: #{model_forward.29}
  #allocation0 [shape = 'u32[]', space=smem, size = 0x4, offset = 0x4, fixed_abs, tag = 'smem constant byte address 0x4 - core index']
  #allocation1 [shape = 'u32[144,128]{1,0:T(1,128)}', space=vmem, size = 0x12000, scoped, tag = 'internal scratch']
  %s0 = inlined_call_operand.vmem [shape: bf16[16,144], index: 0, kind: input, shape index: {}]
  %s1 = inlined_call_operand.vmem [shape: f32[16,1], index: 1, kind: input, shape index: {}]
  %s2 = inlined_call_operand.vmem [shape: bf16[144,32], index: 2, kind: input, shape index: {}]
  %s3 = inlined_call_operand.vmem [shape: bf16[16,32], index: 3, kind: output, shape index: {}]
  %s4 = sld [smem:[#allocation0]]
  $region22: #{model_forward.29} parent=0
    _
  %s6 = ssub.s32 1, %s4
  %s7 = scalar_select 0, %s6, %s4
  // Predicated region
  $region2: #{model_forward.29} parent=0 // pred_check
    _
  $region3: #{model_forward.29} parent=0 // pred_check_branch
    %9 = sbr.rel (0) target = $region5
  $region4: #{model_forward.29} parent=0 // pred_region
    _
  $region5: #{model_forward.29} parent=0 // pred_fallthru
    _
  // Predicated region
  $region6: #{model_forward.29} parent=0 // pred_check
    _
  $region7: #{model_forward.29} parent=0 // pred_check_branch
    %11 = sbr.rel (0) target = $region9
  $region8: #{model_forward.29} parent=0 // pred_region
    _
  $region9: #{model_forward.29} parent=0 // pred_fallthru
    _
  // Predicated region
  $region10: #{model_forward.29} parent=0 // pred_check
    _
  $region11: #{model_forward.29} parent=0 // pred_check_branch
    %13 = sbr.rel (0) target = $region13
  $region12: #{model_forward.29} parent=0 // pred_region
    _
  $region13: #{model_forward.29} parent=0 // pred_fallthru
    _
  %v15 = vld [vmem:[%s0] sm:$0xff]
  %v16 = vld [vmem:[%s0 + $0x8] sm:$0xff]
  %v17 = vld [vmem:[%s2] sm:$0xf]
  %v18 = vld [vmem:[%s2 + $0x4] sm:$0xf]
  %v19 = vld [vmem:[%s2 + $0x8] sm:$0xf]
  %v20 = vld [vmem:[%s2 + $0xc] sm:$0xf]
  %v21 = vld [vmem:[%s2 + $0x10] sm:$0xf]
  %v22 = vld [vmem:[%s2 + $0x14] sm:$0xf]
  %v23 = vld [vmem:[%s2 + $0x18] sm:$0xf]
  %v24 = vld [vmem:[%s2 + $0x1c] sm:$0xf]
  %v25 = vld [vmem:[%s2 + $0x20] sm:$0xf]
  %v26 = vld [vmem:[%s2 + $0x24] sm:$0xf]
  %v27 = vld [vmem:[%s2 + $0x28] sm:$0xf]
  %v28 = vld [vmem:[%s2 + $0x2c] sm:$0xf]
  %v29 = vld [vmem:[%s2 + $0x30] sm:$0xf]
  %v30 = vld [vmem:[%s2 + $0x34] sm:$0xf]
  %v31 = vld [vmem:[%s2 + $0x38] sm:$0xf]
  %v32 = vld [vmem:[%s2 + $0x3c] sm:$0xf]
  %v33 = vld [vmem:[%s2 + $0x40] sm:$0xf]
  %v34 = vld [vmem:[%s2 + $0x44] sm:$0xf]
  %v35 = vld [vmem:[%s1] sm:$0xff]
  %v36 = vld [vmem:[%s1 + $0x8] sm:$0xff]
  %38 = vset.pattern.permute.xlu0 0
  %39 = vperm.xlu0 %38, %v35
  %v40 = vpop.permute.xlu0 %39
  %43 = vset.pattern.permute.xlu0 0
  %44 = vperm.xlu0 %43, %v36
  %v45 = vpop.permute.xlu0 %44
  %v49 = vunpack.c.l.b16 %v15
  %v50 = vunpack.c.h.b16 %v15
  %v51 = vunpack.c.l.b16 %v16
  %v52 = vunpack.c.h.b16 %v16
  %v53 = vpack.c.b16 %v51, %v49
  %v54 = vpack.c.b16 %v52, %v50
  %v74 = vunpack.c.l.b16 %v17
  %v75 = vunpack.c.l.b16 %v18
  %v76 = vunpack.c.l.b16 %v19
  %v77 = vunpack.c.l.b16 %v20
  %v78 = vunpack.c.l.b16 %v21
  %v79 = vunpack.c.l.b16 %v22
  %v80 = vunpack.c.l.b16 %v23
  %v81 = vunpack.c.l.b16 %v24
  %v82 = vunpack.c.l.b16 %v25
  %v83 = vunpack.c.l.b16 %v26
  %v84 = vunpack.c.l.b16 %v27
  %v85 = vunpack.c.l.b16 %v28
  %v86 = vunpack.c.l.b16 %v29
  %v87 = vunpack.c.l.b16 %v30
  %v88 = vunpack.c.l.b16 %v31
  %v89 = vunpack.c.l.b16 %v32
  %v90 = vunpack.c.l.b16 %v33
  %v91 = vunpack.c.l.b16 %v34
  %v92 = vpack.c.b16 %v75, %v74
  %v93 = vpack.c.b16 %v77, %v76
  %v94 = vpack.c.b16 %v79, %v78
  %v95 = vpack.c.b16 %v81, %v80
  %v96 = vpack.c.b16 %v83, %v82
  %v97 = vpack.c.b16 %v85, %v84
  %v98 = vpack.c.b16 %v87, %v86
  %v99 = vpack.c.b16 %v89, %v88
  %v100 = vpack.c.b16 %v91, %v90
  %vm110 = vcmask 130048
  %v112 = vsel %vm110, %v54, 0
  %114 = vmatprep.subr.bf16.mxu0 0
  %115 = vmatpush1.bf16.msra.mxu0 %v99
  %116 = vmatprep.subr.bf16.mxu0 0
  %117 = vmatpush1.bf16.msra.mxu0 %v98
  %118 = vmatprep.subr.bf16.mxu0 0
  %119 = vmatpush1.bf16.msra.mxu0 %v97
  %120 = vmatprep.subr.bf16.mxu0 0
  %121 = vmatpush1.bf16.msra.mxu0 %v96
  %122 = vmatprep.subr.bf16.mxu0 0
  %123 = vmatpush1.bf16.msra.mxu0 %v95
  %124 = vmatprep.subr.bf16.mxu0 0
  %125 = vmatpush1.bf16.msra.mxu0 %v94
  %126 = vmatprep.subr.bf16.mxu0 0
  %127 = vmatpush1.bf16.msra.mxu0 %v93
  %128 = vmatprep.subr.bf16.mxu0 0
  %129 = vmatpush1.bf16.msra.mxu0 %v92
  %130 = vmatprep.subr.bf16.mxu0 0
  %131 = vmatpush2.bf16.msra.mxu0 0
  %132 = vmatprep.subr.bf16.mxu0 0
  %133 = vmatpush2.bf16.msra.mxu0 0
  %134 = vmatprep.subr.bf16.mxu0 0
  %135 = vmatpush2.bf16.msra.mxu0 0
  %136 = vmatprep.subr.bf16.mxu0 0
  %137 = vmatpush2.bf16.msra.mxu0 0
  %138 = vmatprep.subr.bf16.mxu0 0
  %139 = vmatpush2.bf16.msra.mxu0 0
  %140 = vmatprep.subr.bf16.mxu0 0
  %141 = vmatpush2.bf16.msra.mxu0 0
  %142 = vmatprep.subr.bf16.mxu0 0
  %143 = vmatpush2.bf16.msra.mxu0 0
  %144 = vmatprep.subr.bf16.mxu0 0
  %145 = vmatpush2.bf16.msra.mxu0 %v100
  %146 = vmatprep.mubr.bf16.mxu0 %v112
  %147 = vmatmul.mubr.bf16.gmra.mxu0 %v53
  %v148 = vpop.f32.mrf.mxu0
  %v149 = vadd.f32 %v40, %v148
  %v150 = vpop.f32.mrf.mxu0
  %v151 = vpop.f32.mrf.mxu0
  %v152 = vadd.f32 %v45, %v151
  %v153 = vpop.f32.mrf.mxu0
  %154 = vdwg.mxu0
  %v155 = vxor.u32 %v149, 2147483648
  %v156 = vxor.u32 %v152, 2147483648
  %v157 = vmul.f32 %v155, 1.442695
  %v158 = vpow.pop %v157
  %v159 = vmul.f32 %v156, 1.442695
  %v160 = vpow.pop %v159
  %v161 = vadd.f32 %v158, 1.0
  %v162 = vadd.f32 %v160, 1.0
  %v163 = vrcp.pop %v161
  %v164 = vmul.f32 1.0, %v163
  %v165 = vrcp.pop %v162
  %v166 = vmul.f32 1.0, %v165
  %v167 = vmul.f32 %v149, %v164
  %v168 = vmul.f32 %v152, %v166
  %v169 = vpack.c.bf16 %v168, %v167
  %v171 = vunpack.c.l.b16 %v169
  %v172 = vunpack.c.h.b16 %v169
  %v173 = vpack.c.b16 %v171, %v171
  %v174 = vpack.c.b16 %v172, %v172
  %vm177 = vcmask 257024
  %178 = vst.msk [vmem:[%s3] sm:$0xf] %vm177, %v173
  %179 = vst.msk [vmem:[%s3 + $0x4] sm:$0xf] %vm177, %v174
  // Predicated region
  $region14: #{model_forward.29} parent=0 // pred_check
    _
  $region15: #{model_forward.29} parent=0 // pred_check_branch
    %181 = sbr.rel (0) target = $region17
  $region16: #{model_forward.29} parent=0 // pred_region
    _
  $region17: #{model_forward.29} parent=0 // pred_fallthru
    _
  // Predicated region
  $region18: #{model_forward.29} parent=0 // pred_check
    _
  $region19: #{model_forward.29} parent=0 // pred_check_branch
    %183 = sbr.rel (0) target = $region21
  $region20: #{model_forward.29} parent=0 // pred_region
    _
  $region21: #{model_forward.29} parent=0 // pred_fallthru
    _

// kernel: model_forward.34
$region0: #{model_forward.34}
  #allocation0 [shape = 'u32[]', space=smem, size = 0x4, offset = 0x4, fixed_abs, tag = 'smem constant byte address 0x4 - core index']
  #allocation1 [shape = 'u32[144,128]{1,0:T(1,128)}', space=vmem, size = 0x12000, scoped, tag = 'internal scratch']
  %s0 = inlined_call_operand.vmem [shape: bf16[48,216], index: 0, kind: input, shape index: {}]
  %s1 = inlined_call_operand.vmem [shape: f32[48,1], index: 1, kind: input, shape index: {}]
  %s2 = inlined_call_operand.vmem [shape: bf16[8,48], index: 2, kind: input, shape index: {}]
  %s3 = inlined_call_operand.vmem [shape: f32[8,1], index: 3, kind: input, shape index: {}]
  %s4 = inlined_call_operand.vmem [shape: bf16[216,32], index: 4, kind: input, shape index: {}]
  %s5 = inlined_call_operand.vmem [shape: f32[8,32], index: 5, kind: output, shape index: {}]
  %s6 = sld [smem:[#allocation0]]
  $region30: #{model_forward.34} parent=0
    _
  %s8 = ssub.s32 1, %s6
  %s9 = scalar_select 0, %s8, %s6
  // Predicated region
  $region2: #{model_forward.34} parent=0 // pred_check
    _
  $region3: #{model_forward.34} parent=0 // pred_check_branch
    %11 = sbr.rel (0) target = $region5
  $region4: #{model_forward.34} parent=0 // pred_region
    _
  $region5: #{model_forward.34} parent=0 // pred_fallthru
    _
  // Predicated region
  $region6: #{model_forward.34} parent=0 // pred_check
    _
  $region7: #{model_forward.34} parent=0 // pred_check_branch
    %13 = sbr.rel (0) target = $region9
  $region8: #{model_forward.34} parent=0 // pred_region
    _
  $region9: #{model_forward.34} parent=0 // pred_fallthru
    _
  // Predicated region
  $region10: #{model_forward.34} parent=0 // pred_check
    _
  $region11: #{model_forward.34} parent=0 // pred_check_branch
    %15 = sbr.rel (0) target = $region13
  $region12: #{model_forward.34} parent=0 // pred_region
    _
  $region13: #{model_forward.34} parent=0 // pred_fallthru
    _
  // Predicated region
  $region14: #{model_forward.34} parent=0 // pred_check
    _
  $region15: #{model_forward.34} parent=0 // pred_check_branch
    %17 = sbr.rel (0) target = $region17
  $region16: #{model_forward.34} parent=0 // pred_region
    _
  $region17: #{model_forward.34} parent=0 // pred_fallthru
    _
  // Predicated region
  $region18: #{model_forward.34} parent=0 // pred_check
    _
  $region19: #{model_forward.34} parent=0 // pred_check_branch
    %19 = sbr.rel (0) target = $region21
  $region20: #{model_forward.34} parent=0 // pred_region
    _
  $region21: #{model_forward.34} parent=0 // pred_fallthru
    _
  %v21 = vld [vmem:[%s0] sm:$0xff]
  %v22 = vld [vmem:[%s0 + $0x8] sm:$0xff]
  %v23 = vld [vmem:[%s0 + $0x10] sm:$0xff]
  %v24 = vld [vmem:[%s0 + $0x18] sm:$0xff]
  %v25 = vld [vmem:[%s0 + $0x20] sm:$0xff]
  %v26 = vld [vmem:[%s0 + $0x28] sm:$0xff]
  %v27 = vld [vmem:[%s4] sm:$0xf]
  %v28 = vld [vmem:[%s4 + $0x4] sm:$0xf]
  %v29 = vld [vmem:[%s4 + $0x8] sm:$0xf]
  %v30 = vld [vmem:[%s4 + $0xc] sm:$0xf]
  %v31 = vld [vmem:[%s4 + $0x10] sm:$0xf]
  %v32 = vld [vmem:[%s4 + $0x14] sm:$0xf]
  %v33 = vld [vmem:[%s4 + $0x18] sm:$0xf]
  %v34 = vld [vmem:[%s4 + $0x1c] sm:$0xf]
  %v35 = vld [vmem:[%s4 + $0x20] sm:$0xf]
  %v36 = vld [vmem:[%s4 + $0x24] sm:$0xf]
  %v37 = vld [vmem:[%s4 + $0x28] sm:$0xf]
  %v38 = vld [vmem:[%s4 + $0x2c] sm:$0xf]
  %v39 = vld [vmem:[%s4 + $0x30] sm:$0xf]
  %v40 = vld [vmem:[%s4 + $0x34] sm:$0xf]
  %v41 = vld [vmem:[%s4 + $0x38] sm:$0xf]
  %v42 = vld [vmem:[%s4 + $0x3c] sm:$0xf]
  %v43 = vld [vmem:[%s4 + $0x40] sm:$0xf]
  %v44 = vld [vmem:[%s4 + $0x44] sm:$0xf]
  %v45 = vld [vmem:[%s4 + $0x48] sm:$0xf]
  %v46 = vld [vmem:[%s4 + $0x4c] sm:$0xf]
  %v47 = vld [vmem:[%s4 + $0x50] sm:$0xf]
  %v48 = vld [vmem:[%s4 + $0x54] sm:$0xf]
  %v49 = vld [vmem:[%s4 + $0x58] sm:$0xf]
  %v50 = vld [vmem:[%s4 + $0x5c] sm:$0xf]
  %v51 = vld [vmem:[%s4 + $0x60] sm:$0xf]
  %v52 = vld [vmem:[%s4 + $0x64] sm:$0xf]
  %v53 = vld [vmem:[%s4 + $0x68] sm:$0xf]
  %v54 = vld [vmem:[%s1] sm:$0xff]
  %v55 = vld [vmem:[%s1 + $0x8] sm:$0xff]
  %v56 = vld [vmem:[%s1 + $0x10] sm:$0xff]
  %v57 = vld [vmem:[%s1 + $0x18] sm:$0xff]
  %v58 = vld [vmem:[%s1 + $0x20] sm:$0xff]
  %v59 = vld [vmem:[%s1 + $0x28] sm:$0xff]
  %61 = vset.pattern.permute.xlu0 0
  %62 = vperm.xlu0 %61, %v54
  %v63 = vpop.permute.xlu0 %62
  %66 = vset.pattern.permute.xlu0 0
  %67 = vperm.xlu0 %66, %v55
  %v68 = vpop.permute.xlu0 %67
  %71 = vset.pattern.permute.xlu0 0
  %72 = vperm.xlu0 %71, %v56
  %v73 = vpop.permute.xlu0 %72
  %76 = vset.pattern.permute.xlu0 0
  %77 = vperm.xlu0 %76, %v57
  %v78 = vpop.permute.xlu0 %77
  %81 = vset.pattern.permute.xlu0 0
  %82 = vperm.xlu0 %81, %v58
  %v83 = vpop.permute.xlu0 %82
  %86 = vset.pattern.permute.xlu0 0
  %87 = vperm.xlu0 %86, %v59
  %v88 = vpop.permute.xlu0 %87
  %v96 = vunpack.c.l.b16 %v21
  %v97 = vunpack.c.h.b16 %v21
  %v98 = vunpack.c.l.b16 %v22
  %v99 = vunpack.c.h.b16 %v22
  %v100 = vunpack.c.l.b16 %v23
  %v101 = vunpack.c.h.b16 %v23
  %v102 = vunpack.c.l.b16 %v24
  %v103 = vunpack.c.h.b16 %v24
  %v104 = vunpack.c.l.b16 %v25
  %v105 = vunpack.c.h.b16 %v25
  %v106 = vunpack.c.l.b16 %v26
  %v107 = vunpack.c.h.b16 %v26
  %v108 = vpack.c.b16 %v98, %v96
  %v109 = vpack.c.b16 %v99, %v97
  %v110 = vpack.c.b16 %v102, %v100
  %v111 = vpack.c.b16 %v103, %v101
  %v112 = vpack.c.b16 %v106, %v104
  %v113 = vpack.c.b16 %v107, %v105
  %v144 = vunpack.c.l.b16 %v27
  %v145 = vunpack.c.l.b16 %v28
  %v146 = vunpack.c.l.b16 %v29
  %v147 = vunpack.c.l.b16 %v30
  %v148 = vunpack.c.l.b16 %v31
  %v149 = vunpack.c.l.b16 %v32
  %v150 = vunpack.c.l.b16 %v33
  %v151 = vunpack.c.l.b16 %v34
  %v152 = vunpack.c.l.b16 %v35
  %v153 = vunpack.c.l.b16 %v36
  %v154 = vunpack.c.l.b16 %v37
  %v155 = vunpack.c.l.b16 %v38
  %v156 = vunpack.c.l.b16 %v39
  %v157 = vunpack.c.l.b16 %v40
  %v158 = vunpack.c.l.b16 %v41
  %v159 = vunpack.c.l.b16 %v42
  %v160 = vunpack.c.l.b16 %v43
  %v161 = vunpack.c.l.b16 %v44
  %v162 = vunpack.c.l.b16 %v45
  %v163 = vunpack.c.l.b16 %v46
  %v164 = vunpack.c.l.b16 %v47
  %v165 = vunpack.c.l.b16 %v48
  %v166 = vunpack.c.l.b16 %v49
  %v167 = vunpack.c.l.b16 %v50
  %v168 = vunpack.c.l.b16 %v51
  %v169 = vunpack.c.l.b16 %v52
  %v170 = vunpack.c.l.b16 %v53
  %v171 = vpack.c.b16 %v145, %v144
  %v172 = vpack.c.b16 %v147, %v146
  %v173 = vpack.c.b16 %v149, %v148
  %v174 = vpack.c.b16 %v151, %v150
  %v175 = vpack.c.b16 %v153, %v152
  %v176 = vpack.c.b16 %v155, %v154
  %v177 = vpack.c.b16 %v157, %v156
  %v178 = vpack.c.b16 %v159, %v158
  %v179 = vpack.c.b16 %v161, %v160
  %v180 = vpack.c.b16 %v163, %v162
  %v181 = vpack.c.b16 %v165, %v164
  %v182 = vpack.c.b16 %v167, %v166
  %v183 = vpack.c.b16 %v169, %v168
  %v184 = vpack.c.b16 %v170, %v170
  %vm198 = vcmask 719872
  %v200 = vsel %vm198, %v109, 0
  %v203 = vsel %vm198, %v111, 0
  %v206 = vsel %vm198, %v113, 0
  %vm208 = vcmask 1043456
  %v210 = vsel %vm208, %v184, 0
  %212 = vmatprep.subr.bf16.mxu0 0
  %213 = vmatpush1.bf16.msra.mxu0 %v178
  %214 = vmatprep.subr.bf16.mxu0 0
  %215 = vmatpush1.bf16.msra.mxu0 %v177
  %216 = vmatprep.subr.bf16.mxu0 0
  %217 = vmatpush1.bf16.msra.mxu0 %v176
  %218 = vmatprep.subr.bf16.mxu0 0
  %219 = vmatpush1.bf16.msra.mxu0 %v175
  %220 = vmatprep.subr.bf16.mxu0 0
  %221 = vmatpush1.bf16.msra.mxu0 %v174
  %222 = vmatprep.subr.bf16.mxu0 0
  %223 = vmatpush1.bf16.msra.mxu0 %v173
  %224 = vmatprep.subr.bf16.mxu0 0
  %225 = vmatpush1.bf16.msra.mxu0 %v172
  %226 = vmatprep.subr.bf16.mxu0 0
  %227 = vmatpush1.bf16.msra.mxu0 %v171
  %228 = vmatprep.subr.bf16.mxu0 0
  %229 = vmatpush2.bf16.msra.mxu0 0
  %230 = vmatprep.subr.bf16.mxu0 0
  %231 = vmatpush2.bf16.msra.mxu0 0
  %232 = vmatprep.subr.bf16.mxu0 0
  %233 = vmatpush2.bf16.msra.mxu0 %v210
  %234 = vmatprep.subr.bf16.mxu0 0
  %235 = vmatpush2.bf16.msra.mxu0 %v183
  %236 = vmatprep.subr.bf16.mxu0 0
  %237 = vmatpush2.bf16.msra.mxu0 %v182
  %238 = vmatprep.subr.bf16.mxu0 0
  %239 = vmatpush2.bf16.msra.mxu0 %v181
  %240 = vmatprep.subr.bf16.mxu0 0
  %241 = vmatpush2.bf16.msra.mxu0 %v180
  %242 = vmatprep.subr.bf16.mxu0 0
  %243 = vmatpush2.bf16.msra.mxu0 %v179
  %244 = vmatprep.mubr.bf16.mxu0 %v200
  %245 = vmatmul.mubr.bf16.gmra.mxu0 %v108
  %v246 = vpop.f32.mrf.mxu0
  %v247 = vadd.f32 %v63, %v246
  %v248 = vpop.f32.mrf.mxu0
  %v249 = vpop.f32.mrf.mxu0
  %v250 = vadd.f32 %v68, %v249
  %v251 = vpop.f32.mrf.mxu0
  %252 = vmatprep.mubr.bf16.mxu0 %v203
  %253 = vmatmul.mubr.bf16.gmra.mxu0 %v110
  %v254 = vpop.f32.mrf.mxu0
  %v255 = vadd.f32 %v73, %v254
  %v256 = vpop.f32.mrf.mxu0
  %v257 = vpop.f32.mrf.mxu0
  %v258 = vadd.f32 %v78, %v257
  %v259 = vpop.f32.mrf.mxu0
  %260 = vmatprep.mubr.bf16.mxu0 %v206
  %261 = vmatmul.mubr.bf16.gmra.mxu0 %v112
  %v262 = vpop.f32.mrf.mxu0
  %v263 = vadd.f32 %v83, %v262
  %v264 = vpop.f32.mrf.mxu0
  %v265 = vpop.f32.mrf.mxu0
  %v266 = vadd.f32 %v88, %v265
  %v267 = vpop.f32.mrf.mxu0
  %268 = vdwg.mxu0
  %v269 = vxor.u32 %v247, 2147483648
  %v270 = vxor.u32 %v250, 2147483648
  %v271 = vxor.u32 %v255, 2147483648
  %v272 = vxor.u32 %v258, 2147483648
  %v273 = vxor.u32 %v263, 2147483648
  %v274 = vxor.u32 %v266, 2147483648
  %v275 = vmul.f32 %v269, 1.442695
  %v276 = vpow.pop %v275
  %v277 = vmul.f32 %v270, 1.442695
  %v278 = vpow.pop %v277
  %v279 = vmul.f32 %v271, 1.442695
  %v280 = vpow.pop %v279
  %v281 = vmul.f32 %v272, 1.442695
  %v282 = vpow.pop %v281
  %v283 = vmul.f32 %v273, 1.442695
  %v284 = vpow.pop %v283
  %v285 = vmul.f32 %v274, 1.442695
  %v286 = vpow.pop %v285
  %v287 = vadd.f32 %v276, 1.0
  %v288 = vadd.f32 %v278, 1.0
  %v289 = vadd.f32 %v280, 1.0
  %v290 = vadd.f32 %v282, 1.0
  %v291 = vadd.f32 %v284, 1.0
  %v292 = vadd.f32 %v286, 1.0
  %v293 = vrcp.pop %v287
  %v294 = vmul.f32 1.0, %v293
  %v295 = vrcp.pop %v288
  %v296 = vmul.f32 1.0, %v295
  %v297 = vrcp.pop %v289
  %v298 = vmul.f32 1.0, %v297
  %v299 = vrcp.pop %v290
  %v300 = vmul.f32 1.0, %v299
  %v301 = vrcp.pop %v291
  %v302 = vmul.f32 1.0, %v301
  %v303 = vrcp.pop %v292
  %v304 = vmul.f32 1.0, %v303
  %v305 = vmul.f32 %v247, %v294
  %v306 = vmul.f32 %v250, %v296
  %v307 = vmul.f32 %v255, %v298
  %v308 = vmul.f32 %v258, %v300
  %v309 = vmul.f32 %v263, %v302
  %v310 = vmul.f32 %v266, %v304
  %v311 = vpack.c.bf16 %v306, %v305
  %v312 = vpack.c.bf16 %v308, %v307
  %v313 = vpack.c.bf16 %v310, %v309
  %v314 = vld [vmem:[%s2] sm:$0xf]
  %v315 = vld [vmem:[%s3] sm:$0xff]
  %317 = vset.pattern.permute.xlu0 0
  %318 = vperm.xlu0 %317, %v315
  %v319 = vpop.permute.xlu0 %318
  %vm321 = vcmask 392192
  %v323 = vsel %vm321, %v314, 0
  %325 = vmatprep.subr.bf16.mxu0 0
  %326 = vmatpush1.bf16.msra.mxu0 0
  %327 = vmatprep.subr.bf16.mxu0 0
  %328 = vmatpush1.bf16.msra.mxu0 0
  %329 = vmatprep.subr.bf16.mxu0 0
  %330 = vmatpush1.bf16.msra.mxu0 0
  %331 = vmatprep.subr.bf16.mxu0 0
  %332 = vmatpush1.bf16.msra.mxu0 0
  %333 = vmatprep.subr.bf16.mxu0 0
  %334 = vmatpush1.bf16.msra.mxu0 0
  %335 = vmatprep.subr.bf16.mxu0 0
  %336 = vmatpush1.bf16.msra.mxu0 %v313
  %337 = vmatprep.subr.bf16.mxu0 0
  %338 = vmatpush1.bf16.msra.mxu0 %v312
  %339 = vmatprep.subr.bf16.mxu0 0
  %340 = vmatpush1.bf16.msra.mxu0 %v311
  %341 = vmatprep.subr.bf16.mxu0 0
  %342 = vmatpush2.bf16.msra.mxu0 0
  %343 = vmatprep.subr.bf16.mxu0 0
  %344 = vmatpush2.bf16.msra.mxu0 0
  %345 = vmatprep.subr.bf16.mxu0 0
  %346 = vmatpush2.bf16.msra.mxu0 0
  %347 = vmatprep.subr.bf16.mxu0 0
  %348 = vmatpush2.bf16.msra.mxu0 0
  %349 = vmatprep.subr.bf16.mxu0 0
  %350 = vmatpush2.bf16.msra.mxu0 0
  %351 = vmatprep.subr.bf16.mxu0 0
  %352 = vmatpush2.bf16.msra.mxu0 0
  %353 = vmatprep.subr.bf16.mxu0 0
  %354 = vmatpush2.bf16.msra.mxu0 0
  %355 = vmatprep.subr.bf16.mxu0 0
  %356 = vmatpush2.bf16.msra.mxu0 0
  %357 = vmatprep.mubr.bf16.mxu0 0
  %358 = vmatmul.mubr.bf16.gmra.mxu0 %v323
  %v359 = vpop.f32.mrf.mxu0
  %v360 = vadd.f32 %v319, %v359
  %v361 = vpop.f32.mrf.mxu0
  %v362 = vpop.f32.mrf.mxu0
  %v363 = vpop.f32.mrf.mxu0
  %364 = vdwg.mxu0
  %vm365 = vcmask 261120
  %366 = vst.msk [vmem:[%s5] sm:$0xff] %vm365, %v360
  // Predicated region
  $region22: #{model_forward.34} parent=0 // pred_check
    _
  $region23: #{model_forward.34} parent=0 // pred_check_branch
    %368 = sbr.rel (0) target = $region25
  $region24: #{model_forward.34} parent=0 // pred_region
    _
  $region25: #{model_forward.34} parent=0 // pred_fallthru
    _
  // Predicated region
  $region26: #{model_forward.34} parent=0 // pred_check
    _
  $region27: #{model_forward.34} parent=0 // pred_check_branch
    %370 = sbr.rel (0) target = $region29
  $region28: #{model_forward.34} parent=0 // pred_region
    _
  $region29: #{model_forward.34} parent=0 // pred_fallthru
    _

// kernel: model_forward.30
$region0: #{model_forward.30}
  #allocation0 [shape = 'u32[]', space=smem, size = 0x4, offset = 0x4, fixed_abs, tag = 'smem constant byte address 0x4 - core index']
  #allocation1 [shape = 'u32[144,128]{1,0:T(1,128)}', space=vmem, size = 0x12000, scoped, tag = 'internal scratch']
  %s0 = inlined_call_operand.vmem [shape: bf16[24,288], index: 0, kind: input, shape index: {}]
  %s1 = inlined_call_operand.vmem [shape: f32[24,1], index: 1, kind: input, shape index: {}]
  %s2 = inlined_call_operand.vmem [shape: bf16[24,24], index: 2, kind: input, shape index: {}]
  %s3 = inlined_call_operand.vmem [shape: f32[24,1], index: 3, kind: input, shape index: {}]
  %s4 = inlined_call_operand.vmem [shape: bf16[288,32], index: 4, kind: input, shape index: {}]
  %s5 = inlined_call_operand.vmem [shape: bf16[24,32], index: 5, kind: output, shape index: {0}]
  %s6 = inlined_call_operand.vmem [shape: bf16[24,32], index: 6, kind: output, shape index: {1}]
  %7 = xla_tuple %s5, %s6
  %s8 = sld [smem:[#allocation0]]
  $region38: #{model_forward.30} parent=0
    _
  %s10 = ssub.s32 1, %s8
  %s11 = scalar_select 0, %s10, %s8
  // Predicated region
  $region2: #{model_forward.30} parent=0 // pred_check
    _
  $region3: #{model_forward.30} parent=0 // pred_check_branch
    %13 = sbr.rel (0) target = $region5
  $region4: #{model_forward.30} parent=0 // pred_region
    _
  $region5: #{model_forward.30} parent=0 // pred_fallthru
    _
  // Predicated region
  $region6: #{model_forward.30} parent=0 // pred_check
    _
  $region7: #{model_forward.30} parent=0 // pred_check_branch
    %15 = sbr.rel (0) target = $region9
  $region8: #{model_forward.30} parent=0 // pred_region
    _
  $region9: #{model_forward.30} parent=0 // pred_fallthru
    _
  // Predicated region
  $region10: #{model_forward.30} parent=0 // pred_check
    _
  $region11: #{model_forward.30} parent=0 // pred_check_branch
    %17 = sbr.rel (0) target = $region13
  $region12: #{model_forward.30} parent=0 // pred_region
    _
  $region13: #{model_forward.30} parent=0 // pred_fallthru
    _
  // Predicated region
  $region14: #{model_forward.30} parent=0 // pred_check
    _
  $region15: #{model_forward.30} parent=0 // pred_check_branch
    %19 = sbr.rel (0) target = $region17
  $region16: #{model_forward.30} parent=0 // pred_region
    _
  $region17: #{model_forward.30} parent=0 // pred_fallthru
    _
  // Predicated region
  $region18: #{model_forward.30} parent=0 // pred_check
    _
  $region19: #{model_forward.30} parent=0 // pred_check_branch
    %21 = sbr.rel (0) target = $region21
  $region20: #{model_forward.30} parent=0 // pred_region
    _
  $region21: #{model_forward.30} parent=0 // pred_fallthru
    _
  %v23 = vld [vmem:[%s0] sm:$0xff]
  %v24 = vld [vmem:[%s0 + $0x8] sm:$0xf]
  %v25 = vld [vmem:[%s0 + $0xc] sm:$0xff]
  %v26 = vld [vmem:[%s0 + $0x14] sm:$0xf]
  %v27 = vld [vmem:[%s0 + $0x18] sm:$0xff]
  %v28 = vld [vmem:[%s0 + $0x20] sm:$0xf]
  %v29 = vld [vmem:[%s4] sm:$0xf]
  %v30 = vld [vmem:[%s4 + $0x4] sm:$0xf]
  %v31 = vld [vmem:[%s4 + $0x8] sm:$0xf]
  %v32 = vld [vmem:[%s4 + $0xc] sm:$0xf]
  %v33 = vld [vmem:[%s4 + $0x10] sm:$0xf]
  %v34 = vld [vmem:[%s4 + $0x14] sm:$0xf]
  %v35 = vld [vmem:[%s4 + $0x18] sm:$0xf]
  %v36 = vld [vmem:[%s4 + $0x1c] sm:$0xf]
  %v37 = vld [vmem:[%s4 + $0x20] sm:$0xf]
  %v38 = vld [vmem:[%s4 + $0x24] sm:$0xf]
  %v39 = vld [vmem:[%s4 + $0x28] sm:$0xf]
  %v40 = vld [vmem:[%s4 + $0x2c] sm:$0xf]
  %v41 = vld [vmem:[%s4 + $0x30] sm:$0xf]
  %v42 = vld [vmem:[%s4 + $0x34] sm:$0xf]
  %v43 = vld [vmem:[%s4 + $0x38] sm:$0xf]
  %v44 = vld [vmem:[%s4 + $0x3c] sm:$0xf]
  %v45 = vld [vmem:[%s4 + $0x40] sm:$0xf]
  %v46 = vld [vmem:[%s4 + $0x44] sm:$0xf]
  %v47 = vld [vmem:[%s4 + $0x48] sm:$0xf]
  %v48 = vld [vmem:[%s4 + $0x4c] sm:$0xf]
  %v49 = vld [vmem:[%s4 + $0x50] sm:$0xf]
  %v50 = vld [vmem:[%s4 + $0x54] sm:$0xf]
  %v51 = vld [vmem:[%s4 + $0x58] sm:$0xf]
  %v52 = vld [vmem:[%s4 + $0x5c] sm:$0xf]
  %v53 = vld [vmem:[%s4 + $0x60] sm:$0xf]
  %v54 = vld [vmem:[%s4 + $0x64] sm:$0xf]
  %v55 = vld [vmem:[%s4 + $0x68] sm:$0xf]
  %v56 = vld [vmem:[%s4 + $0x6c] sm:$0xf]
  %v57 = vld [vmem:[%s4 + $0x70] sm:$0xf]
  %v58 = vld [vmem:[%s4 + $0x74] sm:$0xf]
  %v59 = vld [vmem:[%s4 + $0x78] sm:$0xf]
  %v60 = vld [vmem:[%s4 + $0x7c] sm:$0xf]
  %v61 = vld [vmem:[%s4 + $0x80] sm:$0xf]
  %v62 = vld [vmem:[%s4 + $0x84] sm:$0xf]
  %v63 = vld [vmem:[%s4 + $0x88] sm:$0xf]
  %v64 = vld [vmem:[%s4 + $0x8c] sm:$0xf]
  %v65 = vld [vmem:[%s1] sm:$0xff]
  %v66 = vld [vmem:[%s1 + $0x8] sm:$0xff]
  %v67 = vld [vmem:[%s1 + $0x10] sm:$0xff]
  %69 = vset.pattern.permute.xlu0 0
  %70 = vperm.xlu0 %69, %v65
  %v71 = vpop.permute.xlu0 %70
  %74 = vset.pattern.permute.xlu0 0
  %75 = vperm.xlu0 %74, %v66
  %v76 = vpop.permute.xlu0 %75
  %79 = vset.pattern.permute.xlu0 0
  %80 = vperm.xlu0 %79, %v67
  %v81 = vpop.permute.xlu0 %80
  %v89 = vunpack.c.l.b16 %v23
  %v90 = vunpack.c.h.b16 %v23
  %v91 = vunpack.c.l.b16 %v24
  %v92 = vunpack.c.l.b16 %v25
  %v93 = vunpack.c.h.b16 %v25
  %v94 = vunpack.c.l.b16 %v26
  %v95 = vunpack.c.l.b16 %v27
  %v96 = vunpack.c.h.b16 %v27
  %v97 = vunpack.c.l.b16 %v28
  %v98 = vpack.c.b16 %v92, %v89
  %v99 = vpack.c.b16 %v93, %v90
  %v100 = vpack.c.b16 %v94, %v91
  %v101 = vpack.c.b16 %v95, %v95
  %v102 = vpack.c.b16 %v96, %v96
  %v103 = vpack.c.b16 %v97, %v97
  %v144 = vunpack.c.l.b16 %v29
  %v145 = vunpack.c.l.b16 %v30
  %v146 = vunpack.c.l.b16 %v31
  %v147 = vunpack.c.l.b16 %v32
  %v148 = vunpack.c.l.b16 %v33
  %v149 = vunpack.c.l.b16 %v34
  %v150 = vunpack.c.l.b16 %v35
  %v151 = vunpack.c.l.b16 %v36
  %v152 = vunpack.c.l.b16 %v37
  %v153 = vunpack.c.l.b16 %v38
  %v154 = vunpack.c.l.b16 %v39
  %v155 = vunpack.c.l.b16 %v40
  %v156 = vunpack.c.l.b16 %v41
  %v157 = vunpack.c.l.b16 %v42
  %v158 = vunpack.c.l.b16 %v43
  %v159 = vunpack.c.l.b16 %v44
  %v160 = vunpack.c.l.b16 %v45
  %v161 = vunpack.c.l.b16 %v46
  %v162 = vunpack.c.l.b16 %v47
  %v163 = vunpack.c.l.b16 %v48
  %v164 = vunpack.c.l.b16 %v49
  %v165 = vunpack.c.l.b16 %v50
  %v166 = vunpack.c.l.b16 %v51
  %v167 = vunpack.c.l.b16 %v52
  %v168 = vunpack.c.l.b16 %v53
  %v169 = vunpack.c.l.b16 %v54
  %v170 = vunpack.c.l.b16 %v55
  %v171 = vunpack.c.l.b16 %v56
  %v172 = vunpack.c.l.b16 %v57
  %v173 = vunpack.c.l.b16 %v58
  %v174 = vunpack.c.l.b16 %v59
  %v175 = vunpack.c.l.b16 %v60
  %v176 = vunpack.c.l.b16 %v61
  %v177 = vunpack.c.l.b16 %v62
  %v178 = vunpack.c.l.b16 %v63
  %v179 = vunpack.c.l.b16 %v64
  %v180 = vpack.c.b16 %v145, %v144
  %v181 = vpack.c.b16 %v147, %v146
  %v182 = vpack.c.b16 %v149, %v148
  %v183 = vpack.c.b16 %v151, %v150
  %v184 = vpack.c.b16 %v153, %v152
  %v185 = vpack.c.b16 %v155, %v154
  %v186 = vpack.c.b16 %v157, %v156
  %v187 = vpack.c.b16 %v159, %v158
  %v188 = vpack.c.b16 %v161, %v160
  %v189 = vpack.c.b16 %v163, %v162
  %v190 = vpack.c.b16 %v165, %v164
  %v191 = vpack.c.b16 %v167, %v166
  %v192 = vpack.c.b16 %v169, %v168
  %v193 = vpack.c.b16 %v171, %v170
  %v194 = vpack.c.b16 %v173, %v172
  %v195 = vpack.c.b16 %v175, %v174
  %v196 = vpack.c.b16 %v177, %v176
  %v197 = vpack.c.b16 %v179, %v178
  %vm216 = vcmask 261120
  %v218 = vsel %vm216, %v100, 0
  %v221 = vsel %vm216, %v103, 0
  %223 = vmatprep.subr.bf16.mxu0 0
  %224 = vmatpush1.bf16.msra.mxu0 %v187
  %225 = vmatprep.subr.bf16.mxu0 0
  %226 = vmatpush1.bf16.msra.mxu0 %v186
  %227 = vmatprep.subr.bf16.mxu0 0
  %228 = vmatpush1.bf16.msra.mxu0 %v185
  %229 = vmatprep.subr.bf16.mxu0 0
  %230 = vmatpush1.bf16.msra.mxu0 %v184
  %231 = vmatprep.subr.bf16.mxu0 0
  %232 = vmatpush1.bf16.msra.mxu0 %v183
  %233 = vmatprep.subr.bf16.mxu0 0
  %234 = vmatpush1.bf16.msra.mxu0 %v182
  %235 = vmatprep.subr.bf16.mxu0 0
  %236 = vmatpush1.bf16.msra.mxu0 %v181
  %237 = vmatprep.subr.bf16.mxu0 0
  %238 = vmatpush1.bf16.msra.mxu0 %v180
  %239 = vmatprep.subr.bf16.mxu0 0
  %240 = vmatpush2.bf16.msra.mxu0 %v195
  %241 = vmatprep.subr.bf16.mxu0 0
  %242 = vmatpush2.bf16.msra.mxu0 %v194
  %243 = vmatprep.subr.bf16.mxu0 0
  %244 = vmatpush2.bf16.msra.mxu0 %v193
  %245 = vmatprep.subr.bf16.mxu0 0
  %246 = vmatpush2.bf16.msra.mxu0 %v192
  %247 = vmatprep.subr.bf16.mxu0 0
  %248 = vmatpush2.bf16.msra.mxu0 %v191
  %249 = vmatprep.subr.bf16.mxu0 0
  %250 = vmatpush2.bf16.msra.mxu0 %v190
  %251 = vmatprep.subr.bf16.mxu0 0
  %252 = vmatpush2.bf16.msra.mxu0 %v189
  %253 = vmatprep.subr.bf16.mxu0 0
  %254 = vmatpush2.bf16.msra.mxu0 %v188
  %255 = vmatprep.mubr.bf16.mxu0 %v99
  %256 = vmatmul.mubr.bf16.gmra.mxu0 %v98
  %v257 = vpop.f32.mrf.mxu0
  %v258 = vadd.f32 %v71, %v257
  %v259 = vpop.f32.mrf.mxu0
  %v260 = vpop.f32.mrf.mxu0
  %v261 = vadd.f32 %v76, %v260
  %v262 = vpop.f32.mrf.mxu0
  %263 = vmatprep.mubr.bf16.mxu0 %v102
  %264 = vmatmul.mubr.bf16.gmra.mxu0 %v101
  %v265 = vpop.f32.mrf.mxu0
  %v266 = vadd.f32 %v81, %v265
  %v267 = vpop.f32.mrf.mxu0
  %v268 = vpop.f32.mrf.mxu0
  %v269 = vpop.f32.mrf.mxu0
  %270 = vdwg.mxu0
  %271 = vmatprep.subr.bf16.mxu0 0
  %272 = vmatpush1.bf16.msra.mxu0 0
  %273 = vmatprep.subr.bf16.mxu0 0
  %274 = vmatpush1.bf16.msra.mxu0 0
  %275 = vmatprep.subr.bf16.mxu0 0
  %276 = vmatpush1.bf16.msra.mxu0 0
  %277 = vmatprep.subr.bf16.mxu0 0
  %278 = vmatpush1.bf16.msra.mxu0 0
  %279 = vmatprep.subr.bf16.mxu0 0
  %280 = vmatpush1.bf16.msra.mxu0 0
  %281 = vmatprep.subr.bf16.mxu0 0
  %282 = vmatpush1.bf16.msra.mxu0 0
  %283 = vmatprep.subr.bf16.mxu0 0
  %284 = vmatpush1.bf16.msra.mxu0 %v197
  %285 = vmatprep.subr.bf16.mxu0 0
  %286 = vmatpush1.bf16.msra.mxu0 %v196
  %287 = vmatprep.subr.bf16.mxu0 0
  %288 = vmatpush2.bf16.msra.mxu0 0
  %289 = vmatprep.subr.bf16.mxu0 0
  %290 = vmatpush2.bf16.msra.mxu0 0
  %291 = vmatprep.subr.bf16.mxu0 0
  %292 = vmatpush2.bf16.msra.mxu0 0
  %293 = vmatprep.subr.bf16.mxu0 0
  %294 = vmatpush2.bf16.msra.mxu0 0
  %295 = vmatprep.subr.bf16.mxu0 0
  %296 = vmatpush2.bf16.msra.mxu0 0
  %297 = vmatprep.subr.bf16.mxu0 0
  %298 = vmatpush2.bf16.msra.mxu0 0
  %299 = vmatprep.subr.bf16.mxu0 0
  %300 = vmatpush2.bf16.msra.mxu0 0
  %301 = vmatprep.subr.bf16.mxu0 0
  %302 = vmatpush2.bf16.msra.mxu0 0
  %303 = vmatprep.mubr.bf16.mxu0 0
  %304 = vmatmul.mubr.bf16.gmra.mxu0 %v218
  %v305 = vpop.f32.mrf.mxu0
  %v306 = vadd.f32 %v258, %v305
  %v307 = vpop.f32.mrf.mxu0
  %v308 = vpop.f32.mrf.mxu0
  %v309 = vadd.f32 %v261, %v308
  %v310 = vpop.f32.mrf.mxu0
  %311 = vmatprep.mubr.bf16.mxu0 0
  %312 = vmatmul.mubr.bf16.gmra.mxu0 %v221
  %v313 = vpop.f32.mrf.mxu0
  %v314 = vadd.f32 %v266, %v313
  %v315 = vpop.f32.mrf.mxu0
  %v316 = vpop.f32.mrf.mxu0
  %v317 = vpop.f32.mrf.mxu0
  %318 = vdwg.mxu0
  %v319 = vxor.u32 %v306, 2147483648
  %v320 = vxor.u32 %v309, 2147483648
  %v321 = vxor.u32 %v314, 2147483648
  %v322 = vmul.f32 %v319, 1.442695
  %v323 = vpow.pop %v322
  %v324 = vmul.f32 %v320, 1.442695
  %v325 = vpow.pop %v324
  %v326 = vmul.f32 %v321, 1.442695
  %v327 = vpow.pop %v326
  %v328 = vadd.f32 %v323, 1.0
  %v329 = vadd.f32 %v325, 1.0
  %v330 = vadd.f32 %v327, 1.0
  %v331 = vrcp.pop %v328
  %v332 = vmul.f32 1.0, %v331
  %v333 = vrcp.pop %v329
  %v334 = vmul.f32 1.0, %v333
  %v335 = vrcp.pop %v330
  %v336 = vmul.f32 1.0, %v335
  %v337 = vmul.f32 %v306, %v332
  %v338 = vmul.f32 %v309, %v334
  %v339 = vmul.f32 %v314, %v336
  %v340 = vpack.c.bf16 %v338, %v337
  %v341 = vpack.c.bf16 %v339, %v339
  %v342 = vld [vmem:[%s2] sm:$0xf]
  %v343 = vld [vmem:[%s2 + $0x4] sm:$0xf]
  %v344 = vld [vmem:[%s2 + $0x8] sm:$0xf]
  %v345 = vld [vmem:[%s3] sm:$0xff]
  %v346 = vld [vmem:[%s3 + $0x8] sm:$0xff]
  %v347 = vld [vmem:[%s3 + $0x10] sm:$0xff]
  %349 = vset.pattern.permute.xlu0 0
  %350 = vperm.xlu0 %349, %v345
  %v351 = vpop.permute.xlu0 %350
  %354 = vset.pattern.permute.xlu0 0
  %355 = vperm.xlu0 %354, %v346
  %v356 = vpop.permute.xlu0 %355
  %359 = vset.pattern.permute.xlu0 0
  %360 = vperm.xlu0 %359, %v347
  %v361 = vpop.permute.xlu0 %360
  %v366 = vunpack.c.l.b16 %v342
  %v367 = vunpack.c.l.b16 %v343
  %v368 = vunpack.c.l.b16 %v344
  %v369 = vpack.c.b16 %v367, %v366
  %v370 = vpack.c.b16 %v368, %v368
  %vm371 = vcmask 195584
  %v373 = vsel %vm371, %v369, 0
  %v376 = vsel %vm371, %v370, 0
  %vm378 = vcmask 1043456
  %v380 = vsel %vm378, %v341, 0
  %382 = vmatprep.subr.bf16.mxu0 0
  %383 = vmatpush1.bf16.msra.mxu0 0
  %384 = vmatprep.subr.bf16.mxu0 0
  %385 = vmatpush1.bf16.msra.mxu0 0
  %386 = vmatprep.subr.bf16.mxu0 0
  %387 = vmatpush1.bf16.msra.mxu0 0
  %388 = vmatprep.subr.bf16.mxu0 0
  %389 = vmatpush1.bf16.msra.mxu0 0
  %390 = vmatprep.subr.bf16.mxu0 0
  %391 = vmatpush1.bf16.msra.mxu0 0
  %392 = vmatprep.subr.bf16.mxu0 0
  %393 = vmatpush1.bf16.msra.mxu0 0
  %394 = vmatprep.subr.bf16.mxu0 0
  %395 = vmatpush1.bf16.msra.mxu0 %v380
  %396 = vmatprep.subr.bf16.mxu0 0
  %397 = vmatpush1.bf16.msra.mxu0 %v340
  %398 = vmatprep.subr.bf16.mxu0 0
  %399 = vmatpush2.bf16.msra.mxu0 0
  %400 = vmatprep.subr.bf16.mxu0 0
  %401 = vmatpush2.bf16.msra.mxu0 0
  %402 = vmatprep.subr.bf16.mxu0 0
  %403 = vmatpush2.bf16.msra.mxu0 0
  %404 = vmatprep.subr.bf16.mxu0 0
  %405 = vmatpush2.bf16.msra.mxu0 0
  %406 = vmatprep.subr.bf16.mxu0 0
  %407 = vmatpush2.bf16.msra.mxu0 0
  %408 = vmatprep.subr.bf16.mxu0 0
  %409 = vmatpush2.bf16.msra.mxu0 0
  %410 = vmatprep.subr.bf16.mxu0 0
  %411 = vmatpush2.bf16.msra.mxu0 0
  %412 = vmatprep.subr.bf16.mxu0 0
  %413 = vmatpush2.bf16.msra.mxu0 0
  %414 = vmatprep.mubr.bf16.mxu0 0
  %415 = vmatmul.mubr.bf16.gmra.mxu0 %v373
  %v416 = vpop.f32.mrf.mxu0
  %v417 = vadd.f32 %v351, %v416
  %v418 = vpop.f32.mrf.mxu0
  %v419 = vpop.f32.mrf.mxu0
  %v420 = vadd.f32 %v356, %v419
  %v421 = vpop.f32.mrf.mxu0
  %422 = vmatprep.mubr.bf16.mxu0 0
  %423 = vmatmul.mubr.bf16.gmra.mxu0 %v376
  %v424 = vpop.f32.mrf.mxu0
  %v425 = vadd.f32 %v361, %v424
  %v426 = vpop.f32.mrf.mxu0
  %v427 = vpop.f32.mrf.mxu0
  %v428 = vpop.f32.mrf.mxu0
  %429 = vdwg.mxu0
  %v430 = vxor.u32 %v417, 2147483648
  %v431 = vxor.u32 %v420, 2147483648
  %v432 = vxor.u32 %v425, 2147483648
  %v433 = vmul.f32 %v430, 1.442695
  %v434 = vpow.pop %v433
  %v435 = vmul.f32 %v431, 1.442695
  %v436 = vpow.pop %v435
  %v437 = vmul.f32 %v432, 1.442695
  %v438 = vpow.pop %v437
  %v439 = vadd.f32 %v434, 1.0
  %v440 = vadd.f32 %v436, 1.0
  %v441 = vadd.f32 %v438, 1.0
  %v442 = vrcp.pop %v439
  %v443 = vmul.f32 1.0, %v442
  %v444 = vrcp.pop %v440
  %v445 = vmul.f32 1.0, %v444
  %v446 = vrcp.pop %v441
  %v447 = vmul.f32 1.0, %v446
  %v448 = vmul.f32 %v417, %v443
  %v449 = vmul.f32 %v420, %v445
  %v450 = vmul.f32 %v425, %v447
  %v453 = vunpack.c.l.b16 %v340
  %v454 = vunpack.c.h.b16 %v340
  %v455 = vunpack.c.l.b16 %v341
  %v456 = vpack.c.b16 %v453, %v453
  %v457 = vpack.c.b16 %v454, %v454
  %v458 = vpack.c.b16 %v455, %v455
  %vm462 = vcmask 257024
  %463 = vst.msk [vmem:[%s5] sm:$0xf] %vm462, %v456
  %464 = vst.msk [vmem:[%s5 + $0x4] sm:$0xf] %vm462, %v457
  %465 = vst.msk [vmem:[%s5 + $0x8] sm:$0xf] %vm462, %v458
  %v466 = vpack.c.bf16 %v449, %v448
  %v467 = vpack.c.bf16 %v450, %v450
  %v470 = vunpack.c.l.b16 %v466
  %v471 = vunpack.c.h.b16 %v466
  %v472 = vunpack.c.l.b16 %v467
  %v473 = vpack.c.b16 %v470, %v470
  %v474 = vpack.c.b16 %v471, %v471
  %v475 = vpack.c.b16 %v472, %v472
  %479 = vst.msk [vmem:[%s6] sm:$0xf] %vm462, %v473
  %480 = vst.msk [vmem:[%s6 + $0x4] sm:$0xf] %vm462, %v474
  %481 = vst.msk [vmem:[%s6 + $0x8] sm:$0xf] %vm462, %v475
  // Predicated region
  $region22: #{model_forward.30} parent=0 // pred_check
    _
  $region23: #{model_forward.30} parent=0 // pred_check_branch
    %483 = sbr.rel (0) target = $region25
  $region24: #{model_forward.30} parent=0 // pred_region
    _
  $region25: #{model_forward.30} parent=0 // pred_fallthru
    _
  // Predicated region
  $region26: #{model_forward.30} parent=0 // pred_check
    _
  $region27: #{model_forward.30} parent=0 // pred_check_branch
    %485 = sbr.rel (0) target = $region29
  $region28: #{model_forward.30} parent=0 // pred_region
    _
  $region29: #{model_forward.30} parent=0 // pred_fallthru
    _
  // Predicated region
  $region30: #{model_forward.30} parent=0 // pred_check
    _
  $region31: #{model_forward.30} parent=0 // pred_check_branch
    %487 = sbr.rel (0) target = $region33
  $region32: #{model_forward.30} parent=0 // pred_region
    _
  $region33: #{model_forward.30} parent=0 // pred_fallthru
    _
  // Predicated region
  $region34: #{model_forward.30} parent=0 // pred_check
    _
  $region35: #{model_forward.30} parent=0 // pred_check_branch
    %489 = sbr.rel (0) target = $region37
  $region36: #{model_forward.30} parent=0 // pred_region
    _
  $region37: #{model_forward.30} parent=0 // pred_fallthru
    _

// kernel: model_forward.31
$region0: #{model_forward.31}
  #allocation0 [shape = 'u32[]', space=smem, size = 0x4, offset = 0x4, fixed_abs, tag = 'smem constant byte address 0x4 - core index']
  #allocation1 [shape = 'u32[144,128]{1,0:T(1,128)}', space=vmem, size = 0x12000, scoped, tag = 'internal scratch']
  %s0 = inlined_call_operand.vmem [shape: bf16[32,216], index: 0, kind: input, shape index: {}]
  %s1 = inlined_call_operand.vmem [shape: f32[32,1], index: 1, kind: input, shape index: {}]
  %s2 = inlined_call_operand.vmem [shape: bf16[216,8], index: 2, kind: input, shape index: {}]
  %s3 = inlined_call_operand.vmem [shape: bf16[32,8], index: 3, kind: output, shape index: {}]
  %s4 = sld [smem:[#allocation0]]
  $region22: #{model_forward.31} parent=0
    _
  %s6 = ssub.s32 1, %s4
  %s7 = scalar_select 0, %s6, %s4
  // Predicated region
  $region2: #{model_forward.31} parent=0 // pred_check
    _
  $region3: #{model_forward.31} parent=0 // pred_check_branch
    %9 = sbr.rel (0) target = $region5
  $region4: #{model_forward.31} parent=0 // pred_region
    _
  $region5: #{model_forward.31} parent=0 // pred_fallthru
    _
  // Predicated region
  $region6: #{model_forward.31} parent=0 // pred_check
    _
  $region7: #{model_forward.31} parent=0 // pred_check_branch
    %11 = sbr.rel (0) target = $region9
  $region8: #{model_forward.31} parent=0 // pred_region
    _
  $region9: #{model_forward.31} parent=0 // pred_fallthru
    _
  // Predicated region
  $region10: #{model_forward.31} parent=0 // pred_check
    _
  $region11: #{model_forward.31} parent=0 // pred_check_branch
    %13 = sbr.rel (0) target = $region13
  $region12: #{model_forward.31} parent=0 // pred_region
    _
  $region13: #{model_forward.31} parent=0 // pred_fallthru
    _
  %v15 = vld [vmem:[%s0] sm:$0xff]
  %v16 = vld [vmem:[%s0 + $0x8] sm:$0xff]
  %v17 = vld [vmem:[%s0 + $0x10] sm:$0xff]
  %v18 = vld [vmem:[%s0 + $0x18] sm:$0xff]
  %v19 = vld [vmem:[%s2] sm:$0xf]
  %v20 = vld [vmem:[%s2 + $0x4] sm:$0xf]
  %v21 = vld [vmem:[%s2 + $0x8] sm:$0xf]
  %v22 = vld [vmem:[%s2 + $0xc] sm:$0xf]
  %v23 = vld [vmem:[%s2 + $0x10] sm:$0xf]
  %v24 = vld [vmem:[%s2 + $0x14] sm:$0xf]
  %v25 = vld [vmem:[%s2 + $0x18] sm:$0xf]
  %v26 = vld [vmem:[%s2 + $0x1c] sm:$0xf]
  %v27 = vld [vmem:[%s2 + $0x20] sm:$0xf]
  %v28 = vld [vmem:[%s2 + $0x24] sm:$0xf]
  %v29 = vld [vmem:[%s2 + $0x28] sm:$0xf]
  %v30 = vld [vmem:[%s2 + $0x2c] sm:$0xf]
  %v31 = vld [vmem:[%s2 + $0x30] sm:$0xf]
  %v32 = vld [vmem:[%s2 + $0x34] sm:$0xf]
  %v33 = vld [vmem:[%s2 + $0x38] sm:$0xf]
  %v34 = vld [vmem:[%s2 + $0x3c] sm:$0xf]
  %v35 = vld [vmem:[%s2 + $0x40] sm:$0xf]
  %v36 = vld [vmem:[%s2 + $0x44] sm:$0xf]
  %v37 = vld [vmem:[%s2 + $0x48] sm:$0xf]
  %v38 = vld [vmem:[%s2 + $0x4c] sm:$0xf]
  %v39 = vld [vmem:[%s2 + $0x50] sm:$0xf]
  %v40 = vld [vmem:[%s2 + $0x54] sm:$0xf]
  %v41 = vld [vmem:[%s2 + $0x58] sm:$0xf]
  %v42 = vld [vmem:[%s2 + $0x5c] sm:$0xf]
  %v43 = vld [vmem:[%s2 + $0x60] sm:$0xf]
  %v44 = vld [vmem:[%s2 + $0x64] sm:$0xf]
  %v45 = vld [vmem:[%s2 + $0x68] sm:$0xf]
  %v46 = vld [vmem:[%s1] sm:$0xff]
  %v47 = vld [vmem:[%s1 + $0x8] sm:$0xff]
  %v48 = vld [vmem:[%s1 + $0x10] sm:$0xff]
  %v49 = vld [vmem:[%s1 + $0x18] sm:$0xff]
  %51 = vset.pattern.permute.xlu0 0
  %52 = vperm.xlu0 %51, %v46
  %v53 = vpop.permute.xlu0 %52
  %56 = vset.pattern.permute.xlu0 0
  %57 = vperm.xlu0 %56, %v47
  %v58 = vpop.permute.xlu0 %57
  %61 = vset.pattern.permute.xlu0 0
  %62 = vperm.xlu0 %61, %v48
  %v63 = vpop.permute.xlu0 %62
  %66 = vset.pattern.permute.xlu0 0
  %67 = vperm.xlu0 %66, %v49
  %v68 = vpop.permute.xlu0 %67
  %v74 = vunpack.c.l.b16 %v15
  %v75 = vunpack.c.h.b16 %v15
  %v76 = vunpack.c.l.b16 %v16
  %v77 = vunpack.c.h.b16 %v16
  %v78 = vunpack.c.l.b16 %v17
  %v79 = vunpack.c.h.b16 %v17
  %v80 = vunpack.c.l.b16 %v18
  %v81 = vunpack.c.h.b16 %v18
  %v82 = vpack.c.b16 %v76, %v74
  %v83 = vpack.c.b16 %v77, %v75
  %v84 = vpack.c.b16 %v80, %v78
  %v85 = vpack.c.b16 %v81, %v79
  %v115 = vunpack.c.l.b16 %v19
  %v116 = vunpack.c.l.b16 %v20
  %v117 = vunpack.c.l.b16 %v21
  %v118 = vunpack.c.l.b16 %v22
  %v119 = vunpack.c.l.b16 %v23
  %v120 = vunpack.c.l.b16 %v24
  %v121 = vunpack.c.l.b16 %v25
  %v122 = vunpack.c.l.b16 %v26
  %v123 = vunpack.c.l.b16 %v27
  %v124 = vunpack.c.l.b16 %v28
  %v125 = vunpack.c.l.b16 %v29
  %v126 = vunpack.c.l.b16 %v30
  %v127 = vunpack.c.l.b16 %v31
  %v128 = vunpack.c.l.b16 %v32
  %v129 = vunpack.c.l.b16 %v33
  %v130 = vunpack.c.l.b16 %v34
  %v131 = vunpack.c.l.b16 %v35
  %v132 = vunpack.c.l.b16 %v36
  %v133 = vunpack.c.l.b16 %v37
  %v134 = vunpack.c.l.b16 %v38
  %v135 = vunpack.c.l.b16 %v39
  %v136 = vunpack.c.l.b16 %v40
  %v137 = vunpack.c.l.b16 %v41
  %v138 = vunpack.c.l.b16 %v42
  %v139 = vunpack.c.l.b16 %v43
  %v140 = vunpack.c.l.b16 %v44
  %v141 = vunpack.c.l.b16 %v45
  %v142 = vpack.c.b16 %v116, %v115
  %v143 = vpack.c.b16 %v118, %v117
  %v144 = vpack.c.b16 %v120, %v119
  %v145 = vpack.c.b16 %v122, %v121
  %v146 = vpack.c.b16 %v124, %v123
  %v147 = vpack.c.b16 %v126, %v125
  %v148 = vpack.c.b16 %v128, %v127
  %v149 = vpack.c.b16 %v130, %v129
  %v150 = vpack.c.b16 %v132, %v131
  %v151 = vpack.c.b16 %v134, %v133
  %v152 = vpack.c.b16 %v136, %v135
  %v153 = vpack.c.b16 %v138, %v137
  %v154 = vpack.c.b16 %v140, %v139
  %v155 = vpack.c.b16 %v141, %v141
  %vm169 = vcmask 719872
  %v171 = vsel %vm169, %v83, 0
  %v174 = vsel %vm169, %v85, 0
  %vm176 = vcmask 1043456
  %v178 = vsel %vm176, %v155, 0
  %180 = vmatprep.subr.bf16.mxu0 0
  %181 = vmatpush1.bf16.msra.mxu0 %v149
  %182 = vmatprep.subr.bf16.mxu0 0
  %183 = vmatpush1.bf16.msra.mxu0 %v148
  %184 = vmatprep.subr.bf16.mxu0 0
  %185 = vmatpush1.bf16.msra.mxu0 %v147
  %186 = vmatprep.subr.bf16.mxu0 0
  %187 = vmatpush1.bf16.msra.mxu0 %v146
  %188 = vmatprep.subr.bf16.mxu0 0
  %189 = vmatpush1.bf16.msra.mxu0 %v145
  %190 = vmatprep.subr.bf16.mxu0 0
  %191 = vmatpush1.bf16.msra.mxu0 %v144
  %192 = vmatprep.subr.bf16.mxu0 0
  %193 = vmatpush1.bf16.msra.mxu0 %v143
  %194 = vmatprep.subr.bf16.mxu0 0
  %195 = vmatpush1.bf16.msra.mxu0 %v142
  %196 = vmatprep.subr.bf16.mxu0 0
  %197 = vmatpush2.bf16.msra.mxu0 0
  %198 = vmatprep.subr.bf16.mxu0 0
  %199 = vmatpush2.bf16.msra.mxu0 0
  %200 = vmatprep.subr.bf16.mxu0 0
  %201 = vmatpush2.bf16.msra.mxu0 %v178
  %202 = vmatprep.subr.bf16.mxu0 0
  %203 = vmatpush2.bf16.msra.mxu0 %v154
  %204 = vmatprep.subr.bf16.mxu0 0
  %205 = vmatpush2.bf16.msra.mxu0 %v153
  %206 = vmatprep.subr.bf16.mxu0 0
  %207 = vmatpush2.bf16.msra.mxu0 %v152
  %208 = vmatprep.subr.bf16.mxu0 0
  %209 = vmatpush2.bf16.msra.mxu0 %v151
  %210 = vmatprep.subr.bf16.mxu0 0
  %211 = vmatpush2.bf16.msra.mxu0 %v150
  %212 = vmatprep.mubr.bf16.mxu0 %v171
  %213 = vmatmul.mubr.bf16.gmra.mxu0 %v82
  %v214 = vpop.f32.mrf.mxu0
  %v215 = vadd.f32 %v53, %v214
  %v216 = vpop.f32.mrf.mxu0
  %v217 = vpop.f32.mrf.mxu0
  %v218 = vadd.f32 %v58, %v217
  %v219 = vpop.f32.mrf.mxu0
  %220 = vmatprep.mubr.bf16.mxu0 %v174
  %221 = vmatmul.mubr.bf16.gmra.mxu0 %v84
  %v222 = vpop.f32.mrf.mxu0
  %v223 = vadd.f32 %v63, %v222
  %v224 = vpop.f32.mrf.mxu0
  %v225 = vpop.f32.mrf.mxu0
  %v226 = vadd.f32 %v68, %v225
  %v227 = vpop.f32.mrf.mxu0
  %228 = vdwg.mxu0
  %v229 = vxor.u32 %v215, 2147483648
  %v230 = vxor.u32 %v218, 2147483648
  %v231 = vxor.u32 %v223, 2147483648
  %v232 = vxor.u32 %v226, 2147483648
  %v233 = vmul.f32 %v229, 1.442695
  %v234 = vpow.pop %v233
  %v235 = vmul.f32 %v230, 1.442695
  %v236 = vpow.pop %v235
  %v237 = vmul.f32 %v231, 1.442695
  %v238 = vpow.pop %v237
  %v239 = vmul.f32 %v232, 1.442695
  %v240 = vpow.pop %v239
  %v241 = vadd.f32 %v234, 1.0
  %v242 = vadd.f32 %v236, 1.0
  %v243 = vadd.f32 %v238, 1.0
  %v244 = vadd.f32 %v240, 1.0
  %v245 = vrcp.pop %v241
  %v246 = vmul.f32 1.0, %v245
  %v247 = vrcp.pop %v242
  %v248 = vmul.f32 1.0, %v247
  %v249 = vrcp.pop %v243
  %v250 = vmul.f32 1.0, %v249
  %v251 = vrcp.pop %v244
  %v252 = vmul.f32 1.0, %v251
  %v253 = vmul.f32 %v215, %v246
  %v254 = vmul.f32 %v218, %v248
  %v255 = vmul.f32 %v223, %v250
  %v256 = vmul.f32 %v226, %v252
  %v257 = vpack.c.bf16 %v254, %v253
  %v258 = vpack.c.bf16 %v256, %v255
  %v261 = vunpack.c.l.b16 %v257
  %v262 = vunpack.c.h.b16 %v257
  %v263 = vunpack.c.l.b16 %v258
  %v264 = vunpack.c.h.b16 %v258
  %v265 = vpack.c.b16 %v261, %v261
  %v266 = vpack.c.b16 %v262, %v262
  %v267 = vpack.c.b16 %v263, %v263
  %v268 = vpack.c.b16 %v264, %v264
  %vm273 = vcmask 60416
  %274 = vst.msk [vmem:[%s3] sm:$0xf] %vm273, %v265
  %275 = vst.msk [vmem:[%s3 + $0x4] sm:$0xf] %vm273, %v266
  %276 = vst.msk [vmem:[%s3 + $0x8] sm:$0xf] %vm273, %v267
  %277 = vst.msk [vmem:[%s3 + $0xc] sm:$0xf] %vm273, %v268
  // Predicated region
  $region14: #{model_forward.31} parent=0 // pred_check
    _
  $region15: #{model_forward.31} parent=0 // pred_check_branch
    %279 = sbr.rel (0) target = $region17
  $region16: #{model_forward.31} parent=0 // pred_region
    _
  $region17: #{model_forward.31} parent=0 // pred_fallthru
    _
  // Predicated region
  $region18: #{model_forward.31} parent=0 // pred_check
    _
  $region19: #{model_forward.31} parent=0 // pred_check_branch
    %281 = sbr.rel (0) target = $region21
  $region20: #{model_forward.31} parent=0 // pred_region
    _
  $region21: #{model_forward.31} parent=0 // pred_fallthru
    _

// kernel: model_forward.32
$region0: #{model_forward.32}
  #allocation0 [shape = 'u32[]', space=smem, size = 0x4, offset = 0x4, fixed_abs, tag = 'smem constant byte address 0x4 - core index']
  #allocation1 [shape = 'u32[144,128]{1,0:T(1,128)}', space=vmem, size = 0x12000, scoped, tag = 'internal scratch']
  %s0 = inlined_call_operand.vmem [shape: bf16[32,576], index: 0, kind: input, shape index: {}]
  %s1 = inlined_call_operand.vmem [shape: f32[32,1], index: 1, kind: input, shape index: {}]
  %s2 = inlined_call_operand.vmem [shape: bf16[32,32], index: 2, kind: input, shape index: {}]
  %s3 = inlined_call_operand.vmem [shape: f32[32,1], index: 3, kind: input, shape index: {}]
  %s4 = inlined_call_operand.vmem [shape: bf16[576,8], index: 4, kind: input, shape index: {}]
  %s5 = inlined_call_operand.vmem [shape: bf16[32,8], index: 5, kind: output, shape index: {0}]
  %s6 = inlined_call_operand.vmem [shape: bf16[32,8], index: 6, kind: output, shape index: {1}]
  %7 = xla_tuple %s5, %s6
  %s8 = sld [smem:[#allocation0]]
  $region38: #{model_forward.32} parent=0
    _
  %s10 = ssub.s32 1, %s8
  %s11 = scalar_select 0, %s10, %s8
  // Predicated region
  $region2: #{model_forward.32} parent=0 // pred_check
    _
  $region3: #{model_forward.32} parent=0 // pred_check_branch
    %13 = sbr.rel (0) target = $region5
  $region4: #{model_forward.32} parent=0 // pred_region
    _
  $region5: #{model_forward.32} parent=0 // pred_fallthru
    _
  // Predicated region
  $region6: #{model_forward.32} parent=0 // pred_check
    _
  $region7: #{model_forward.32} parent=0 // pred_check_branch
    %15 = sbr.rel (0) target = $region9
  $region8: #{model_forward.32} parent=0 // pred_region
    _
  $region9: #{model_forward.32} parent=0 // pred_fallthru
    _
  // Predicated region
  $region10: #{model_forward.32} parent=0 // pred_check
    _
  $region11: #{model_forward.32} parent=0 // pred_check_branch
    %17 = sbr.rel (0) target = $region13
  $region12: #{model_forward.32} parent=0 // pred_region
    _
  $region13: #{model_forward.32} parent=0 // pred_fallthru
    _
  // Predicated region
  $region14: #{model_forward.32} parent=0 // pred_check
    _
  $region15: #{model_forward.32} parent=0 // pred_check_branch
    %19 = sbr.rel (0) target = $region17
  $region16: #{model_forward.32} parent=0 // pred_region
    _
  $region17: #{model_forward.32} parent=0 // pred_fallthru
    _
  // Predicated region
  $region18: #{model_forward.32} parent=0 // pred_check
    _
  $region19: #{model_forward.32} parent=0 // pred_check_branch
    %21 = sbr.rel (0) target = $region21
  $region20: #{model_forward.32} parent=0 // pred_region
    _
  $region21: #{model_forward.32} parent=0 // pred_fallthru
    _
  %v23 = vld [vmem:[%s0] sm:$0xff]
  %v24 = vld [vmem:[%s0 + $0x8] sm:$0xff]
  %v25 = vld [vmem:[%s0 + $0x10] sm:$0xf]
  %v26 = vld [vmem:[%s0 + $0x14] sm:$0xff]
  %v27 = vld [vmem:[%s0 + $0x1c] sm:$0xff]
  %v28 = vld [vmem:[%s0 + $0x24] sm:$0xf]
  %v29 = vld [vmem:[%s0 + $0x28] sm:$0xff]
  %v30 = vld [vmem:[%s0 + $0x30] sm:$0xff]
  %v31 = vld [vmem:[%s0 + $0x38] sm:$0xf]
  %v32 = vld [vmem:[%s0 + $0x3c] sm:$0xff]
  %v33 = vld [vmem:[%s0 + $0x44] sm:$0xff]
  %v34 = vld [vmem:[%s0 + $0x4c] sm:$0xf]
  %v35 = vld [vmem:[%s4] sm:$0xf]
  %v36 = vld [vmem:[%s4 + $0x4] sm:$0xf]
  %v37 = vld [vmem:[%s4 + $0x8] sm:$0xf]
  %v38 = vld [vmem:[%s4 + $0xc] sm:$0xf]
  %v39 = vld [vmem:[%s4 + $0x10] sm:$0xf]
  %v40 = vld [vmem:[%s4 + $0x14] sm:$0xf]
  %v41 = vld [vmem:[%s4 + $0x18] sm:$0xf]
  %v42 = vld [vmem:[%s4 + $0x1c] sm:$0xf]
  %v43 = vld [vmem:[%s4 + $0x20] sm:$0xf]
  %v44 = vld [vmem:[%s4 + $0x24] sm:$0xf]
  %v45 = vld [vmem:[%s4 + $0x28] sm:$0xf]
  %v46 = vld [vmem:[%s4 + $0x2c] sm:$0xf]
  %v47 = vld [vmem:[%s4 + $0x30] sm:$0xf]
  %v48 = vld [vmem:[%s4 + $0x34] sm:$0xf]
  %v49 = vld [vmem:[%s4 + $0x38] sm:$0xf]
  %v50 = vld [vmem:[%s4 + $0x3c] sm:$0xf]
  %v51 = vld [vmem:[%s4 + $0x40] sm:$0xf]
  %v52 = vld [vmem:[%s4 + $0x44] sm:$0xf]
  %v53 = vld [vmem:[%s4 + $0x48] sm:$0xf]
  %v54 = vld [vmem:[%s4 + $0x4c] sm:$0xf]
  %v55 = vld [vmem:[%s4 + $0x50] sm:$0xf]
  %v56 = vld [vmem:[%s4 + $0x54] sm:$0xf]
  %v57 = vld [vmem:[%s4 + $0x58] sm:$0xf]
  %v58 = vld [vmem:[%s4 + $0x5c] sm:$0xf]
  %v59 = vld [vmem:[%s4 + $0x60] sm:$0xf]
  %v60 = vld [vmem:[%s4 + $0x64] sm:$0xf]
  %v61 = vld [vmem:[%s4 + $0x68] sm:$0xf]
  %v62 = vld [vmem:[%s4 + $0x6c] sm:$0xf]
  %v63 = vld [vmem:[%s4 + $0x70] sm:$0xf]
  %v64 = vld [vmem:[%s4 + $0x74] sm:$0xf]
  %v65 = vld [vmem:[%s4 + $0x78] sm:$0xf]
  %v66 = vld [vmem:[%s4 + $0x7c] sm:$0xf]
  %v67 = vld [vmem:[%s4 + $0x80] sm:$0xf]
  %v68 = vld [vmem:[%s4 + $0x84] sm:$0xf]
  %v69 = vld [vmem:[%s4 + $0x88] sm:$0xf]
  %v70 = vld [vmem:[%s4 + $0x8c] sm:$0xf]
  %v71 = vld [vmem:[%s4 + $0x90] sm:$0xf]
  %v72 = vld [vmem:[%s4 + $0x94] sm:$0xf]
  %v73 = vld [vmem:[%s4 + $0x98] sm:$0xf]
  %v74 = vld [vmem:[%s4 + $0x9c] sm:$0xf]
  %v75 = vld [vmem:[%s4 + $0xa0] sm:$0xf]
  %v76 = vld [vmem:[%s4 + $0xa4] sm:$0xf]
  %v77 = vld [vmem:[%s4 + $0xa8] sm:$0xf]
  %v78 = vld [vmem:[%s4 + $0xac] sm:$0xf]
  %v79 = vld [vmem:[%s4 + $0xb0] sm:$0xf]
  %v80 = vld [vmem:[%s4 + $0xb4] sm:$0xf]
  %v81 = vld [vmem:[%s4 + $0xb8] sm:$0xf]
  %v82 = vld [vmem:[%s4 + $0xbc] sm:$0xf]
  %v83 = vld [vmem:[%s4 + $0xc0] sm:$0xf]
  %v84 = vld [vmem:[%s4 + $0xc4] sm:$0xf]
  %v85 = vld [vmem:[%s4 + $0xc8] sm:$0xf]
  %v86 = vld [vmem:[%s4 + $0xcc] sm:$0xf]
  %v87 = vld [vmem:[%s4 + $0xd0] sm:$0xf]
  %v88 = vld [vmem:[%s4 + $0xd4] sm:$0xf]
  %v89 = vld [vmem:[%s4 + $0xd8] sm:$0xf]
  %v90 = vld [vmem:[%s4 + $0xdc] sm:$0xf]
  %v91 = vld [vmem:[%s4 + $0xe0] sm:$0xf]
  %v92 = vld [vmem:[%s4 + $0xe4] sm:$0xf]
  %v93 = vld [vmem:[%s4 + $0xe8] sm:$0xf]
  %v94 = vld [vmem:[%s4 + $0xec] sm:$0xf]
  %v95 = vld [vmem:[%s4 + $0xf0] sm:$0xf]
  %v96 = vld [vmem:[%s4 + $0xf4] sm:$0xf]
  %v97 = vld [vmem:[%s4 + $0xf8] sm:$0xf]
  %v98 = vld [vmem:[%s4 + $0xfc] sm:$0xf]
  %v99 = vld [vmem:[%s4 + $0x100] sm:$0xf]
  %v100 = vld [vmem:[%s4 + $0x104] sm:$0xf]
  %v101 = vld [vmem:[%s4 + $0x108] sm:$0xf]
  %v102 = vld [vmem:[%s4 + $0x10c] sm:$0xf]
  %v103 = vld [vmem:[%s4 + $0x110] sm:$0xf]
  %v104 = vld [vmem:[%s4 + $0x114] sm:$0xf]
  %v105 = vld [vmem:[%s4 + $0x118] sm:$0xf]
  %v106 = vld [vmem:[%s4 + $0x11c] sm:$0xf]
  %v107 = vld [vmem:[%s1] sm:$0xff]
  %v108 = vld [vmem:[%s1 + $0x8] sm:$0xff]
  %v109 = vld [vmem:[%s1 + $0x10] sm:$0xff]
  %v110 = vld [vmem:[%s1 + $0x18] sm:$0xff]
  %112 = vset.pattern.permute.xlu0 0
  %113 = vperm.xlu0 %112, %v107
  %v114 = vpop.permute.xlu0 %113
  %117 = vset.pattern.permute.xlu0 0
  %118 = vperm.xlu0 %117, %v108
  %v119 = vpop.permute.xlu0 %118
  %122 = vset.pattern.permute.xlu0 0
  %123 = vperm.xlu0 %122, %v109
  %v124 = vpop.permute.xlu0 %123
  %127 = vset.pattern.permute.xlu0 0
  %128 = vperm.xlu0 %127, %v110
  %v129 = vpop.permute.xlu0 %128
  %v143 = vunpack.c.l.b16 %v23
  %v144 = vunpack.c.h.b16 %v23
  %v145 = vunpack.c.l.b16 %v24
  %v146 = vunpack.c.h.b16 %v24
  %v147 = vunpack.c.l.b16 %v25
  %v148 = vunpack.c.l.b16 %v26
  %v149 = vunpack.c.h.b16 %v26
  %v150 = vunpack.c.l.b16 %v27
  %v151 = vunpack.c.h.b16 %v27
  %v152 = vunpack.c.l.b16 %v28
  %v153 = vunpack.c.l.b16 %v29
  %v154 = vunpack.c.h.b16 %v29
  %v155 = vunpack.c.l.b16 %v30
  %v156 = vunpack.c.h.b16 %v30
  %v157 = vunpack.c.l.b16 %v31
  %v158 = vunpack.c.l.b16 %v32
  %v159 = vunpack.c.h.b16 %v32
  %v160 = vunpack.c.l.b16 %v33
  %v161 = vunpack.c.h.b16 %v33
  %v162 = vunpack.c.l.b16 %v34
  %v163 = vpack.c.b16 %v148, %v143
  %v164 = vpack.c.b16 %v149, %v144
  %v165 = vpack.c.b16 %v150, %v145
  %v166 = vpack.c.b16 %v151, %v146
  %v167 = vpack.c.b16 %v152, %v147
  %v168 = vpack.c.b16 %v158, %v153
  %v169 = vpack.c.b16 %v159, %v154
  %v170 = vpack.c.b16 %v160, %v155
  %v171 = vpack.c.b16 %v161, %v156
  %v172 = vpack.c.b16 %v162, %v157
  %v253 = vunpack.c.l.b16 %v35
  %v254 = vunpack.c.l.b16 %v36
  %v255 = vunpack.c.l.b16 %v37
  %v256 = vunpack.c.l.b16 %v38
  %v257 = vunpack.c.l.b16 %v39
  %v258 = vunpack.c.l.b16 %v40
  %v259 = vunpack.c.l.b16 %v41
  %v260 = vunpack.c.l.b16 %v42
  %v261 = vunpack.c.l.b16 %v43
  %v262 = vunpack.c.l.b16 %v44
  %v263 = vunpack.c.l.b16 %v45
  %v264 = vunpack.c.l.b16 %v46
  %v265 = vunpack.c.l.b16 %v47
  %v266 = vunpack.c.l.b16 %v48
  %v267 = vunpack.c.l.b16 %v49
  %v268 = vunpack.c.l.b16 %v50
  %v269 = vunpack.c.l.b16 %v51
  %v270 = vunpack.c.l.b16 %v52
  %v271 = vunpack.c.l.b16 %v53
  %v272 = vunpack.c.l.b16 %v54
  %v273 = vunpack.c.l.b16 %v55
  %v274 = vunpack.c.l.b16 %v56
  %v275 = vunpack.c.l.b16 %v57
  %v276 = vunpack.c.l.b16 %v58
  %v277 = vunpack.c.l.b16 %v59
  %v278 = vunpack.c.l.b16 %v60
  %v279 = vunpack.c.l.b16 %v61
  %v280 = vunpack.c.l.b16 %v62
  %v281 = vunpack.c.l.b16 %v63
  %v282 = vunpack.c.l.b16 %v64
  %v283 = vunpack.c.l.b16 %v65
  %v284 = vunpack.c.l.b16 %v66
  %v285 = vunpack.c.l.b16 %v67
  %v286 = vunpack.c.l.b16 %v68
  %v287 = vunpack.c.l.b16 %v69
  %v288 = vunpack.c.l.b16 %v70
  %v289 = vunpack.c.l.b16 %v71
  %v290 = vunpack.c.l.b16 %v72
  %v291 = vunpack.c.l.b16 %v73
  %v292 = vunpack.c.l.b16 %v74
  %v293 = vunpack.c.l.b16 %v75
  %v294 = vunpack.c.l.b16 %v76
  %v295 = vunpack.c.l.b16 %v77
  %v296 = vunpack.c.l.b16 %v78
  %v297 = vunpack.c.l.b16 %v79
  %v298 = vunpack.c.l.b16 %v80
  %v299 = vunpack.c.l.b16 %v81
  %v300 = vunpack.c.l.b16 %v82
  %v301 = vunpack.c.l.b16 %v83
  %v302 = vunpack.c.l.b16 %v84
  %v303 = vunpack.c.l.b16 %v85
  %v304 = vunpack.c.l.b16 %v86
  %v305 = vunpack.c.l.b16 %v87
  %v306 = vunpack.c.l.b16 %v88
  %v307 = vunpack.c.l.b16 %v89
  %v308 = vunpack.c.l.b16 %v90
  %v309 = vunpack.c.l.b16 %v91
  %v310 = vunpack.c.l.b16 %v92
  %v311 = vunpack.c.l.b16 %v93
  %v312 = vunpack.c.l.b16 %v94
  %v313 = vunpack.c.l.b16 %v95
  %v314 = vunpack.c.l.b16 %v96
  %v315 = vunpack.c.l.b16 %v97
  %v316 = vunpack.c.l.b16 %v98
  %v317 = vunpack.c.l.b16 %v99
  %v318 = vunpack.c.l.b16 %v100
  %v319 = vunpack.c.l.b16 %v101
  %v320 = vunpack.c.l.b16 %v102
  %v321 = vunpack.c.l.b16 %v103
  %v322 = vunpack.c.l.b16 %v104
  %v323 = vunpack.c.l.b16 %v105
  %v324 = vunpack.c.l.b16 %v106
  %v325 = vpack.c.b16 %v254, %v253
  %v326 = vpack.c.b16 %v256, %v255
  %v327 = vpack.c.b16 %v258, %v257
  %v328 = vpack.c.b16 %v260, %v259
  %v329 = vpack.c.b16 %v262, %v261
  %v330 = vpack.c.b16 %v264, %v263
  %v331 = vpack.c.b16 %v266, %v265
  %v332 = vpack.c.b16 %v268, %v267
  %v333 = vpack.c.b16 %v270, %v269
  %v334 = vpack.c.b16 %v272, %v271
  %v335 = vpack.c.b16 %v274, %v273
  %v336 = vpack.c.b16 %v276, %v275
  %v337 = vpack.c.b16 %v278, %v277
  %v338 = vpack.c.b16 %v280, %v279
  %v339 = vpack.c.b16 %v282, %v281
  %v340 = vpack.c.b16 %v284, %v283
  %v341 = vpack.c.b16 %v286, %v285
  %v342 = vpack.c.b16 %v288, %v287
  %v343 = vpack.c.b16 %v290, %v289
  %v344 = vpack.c.b16 %v292, %v291
  %v345 = vpack.c.b16 %v294, %v293
  %v346 = vpack.c.b16 %v296, %v295
  %v347 = vpack.c.b16 %v298, %v297
  %v348 = vpack.c.b16 %v300, %v299
  %v349 = vpack.c.b16 %v302, %v301
  %v350 = vpack.c.b16 %v304, %v303
  %v351 = vpack.c.b16 %v306, %v305
  %v352 = vpack.c.b16 %v308, %v307
  %v353 = vpack.c.b16 %v310, %v309
  %v354 = vpack.c.b16 %v312, %v311
  %v355 = vpack.c.b16 %v314, %v313
  %v356 = vpack.c.b16 %v316, %v315
  %v357 = vpack.c.b16 %v318, %v317
  %v358 = vpack.c.b16 %v320, %v319
  %v359 = vpack.c.b16 %v322, %v321
  %v360 = vpack.c.b16 %v324, %v323
  %vm397 = vcmask 523264
  %v399 = vsel %vm397, %v167, 0
  %v402 = vsel %vm397, %v172, 0
  %404 = vmatprep.subr.bf16.mxu0 0
  %405 = vmatpush1.bf16.msra.mxu0 %v332
  %406 = vmatprep.subr.bf16.mxu0 0
  %407 = vmatpush1.bf16.msra.mxu0 %v331
  %408 = vmatprep.subr.bf16.mxu0 0
  %409 = vmatpush1.bf16.msra.mxu0 %v330
  %410 = vmatprep.subr.bf16.mxu0 0
  %411 = vmatpush1.bf16.msra.mxu0 %v329
  %412 = vmatprep.subr.bf16.mxu0 0
  %413 = vmatpush1.bf16.msra.mxu0 %v328
  %414 = vmatprep.subr.bf16.mxu0 0
  %415 = vmatpush1.bf16.msra.mxu0 %v327
  %416 = vmatprep.subr.bf16.mxu0 0
  %417 = vmatpush1.bf16.msra.mxu0 %v326
  %418 = vmatprep.subr.bf16.mxu0 0
  %419 = vmatpush1.bf16.msra.mxu0 %v325
  %420 = vmatprep.subr.bf16.mxu0 0
  %421 = vmatpush2.bf16.msra.mxu0 %v340
  %422 = vmatprep.subr.bf16.mxu0 0
  %423 = vmatpush2.bf16.msra.mxu0 %v339
  %424 = vmatprep.subr.bf16.mxu0 0
  %425 = vmatpush2.bf16.msra.mxu0 %v338
  %426 = vmatprep.subr.bf16.mxu0 0
  %427 = vmatpush2.bf16.msra.mxu0 %v337
  %428 = vmatprep.subr.bf16.mxu0 0
  %429 = vmatpush2.bf16.msra.mxu0 %v336
  %430 = vmatprep.subr.bf16.mxu0 0
  %431 = vmatpush2.bf16.msra.mxu0 %v335
  %432 = vmatprep.subr.bf16.mxu0 0
  %433 = vmatpush2.bf16.msra.mxu0 %v334
  %434 = vmatprep.subr.bf16.mxu0 0
  %435 = vmatpush2.bf16.msra.mxu0 %v333
  %436 = vmatprep.mubr.bf16.mxu0 %v164
  %437 = vmatmul.mubr.bf16.gmra.mxu0 %v163
  %v438 = vpop.f32.mrf.mxu0
  %v439 = vadd.f32 %v114, %v438
  %v440 = vpop.f32.mrf.mxu0
  %v441 = vpop.f32.mrf.mxu0
  %v442 = vadd.f32 %v119, %v441
  %v443 = vpop.f32.mrf.mxu0
  %444 = vmatprep.mubr.bf16.mxu0 %v169
  %445 = vmatmul.mubr.bf16.gmra.mxu0 %v168
  %v446 = vpop.f32.mrf.mxu0
  %v447 = vadd.f32 %v124, %v446
  %v448 = vpop.f32.mrf.mxu0
  %v449 = vpop.f32.mrf.mxu0
  %v450 = vadd.f32 %v129, %v449
  %v451 = vpop.f32.mrf.mxu0
  %452 = vdwg.mxu0
  %453 = vmatprep.subr.bf16.mxu0 0
  %454 = vmatpush1.bf16.msra.mxu0 %v348
  %455 = vmatprep.subr.bf16.mxu0 0
  %456 = vmatpush1.bf16.msra.mxu0 %v347
  %457 = vmatprep.subr.bf16.mxu0 0
  %458 = vmatpush1.bf16.msra.mxu0 %v346
  %459 = vmatprep.subr.bf16.mxu0 0
  %460 = vmatpush1.bf16.msra.mxu0 %v345
  %461 = vmatprep.subr.bf16.mxu0 0
  %462 = vmatpush1.bf16.msra.mxu0 %v344
  %463 = vmatprep.subr.bf16.mxu0 0
  %464 = vmatpush1.bf16.msra.mxu0 %v343
  %465 = vmatprep.subr.bf16.mxu0 0
  %466 = vmatpush1.bf16.msra.mxu0 %v342
  %467 = vmatprep.subr.bf16.mxu0 0
  %468 = vmatpush1.bf16.msra.mxu0 %v341
  %469 = vmatprep.subr.bf16.mxu0 0
  %470 = vmatpush2.bf16.msra.mxu0 %v356
  %471 = vmatprep.subr.bf16.mxu0 0
  %472 = vmatpush2.bf16.msra.mxu0 %v355
  %473 = vmatprep.subr.bf16.mxu0 0
  %474 = vmatpush2.bf16.msra.mxu0 %v354
  %475 = vmatprep.subr.bf16.mxu0 0
  %476 = vmatpush2.bf16.msra.mxu0 %v353
  %477 = vmatprep.subr.bf16.mxu0 0
  %478 = vmatpush2.bf16.msra.mxu0 %v352
  %479 = vmatprep.subr.bf16.mxu0 0
  %480 = vmatpush2.bf16.msra.mxu0 %v351
  %481 = vmatprep.subr.bf16.mxu0 0
  %482 = vmatpush2.bf16.msra.mxu0 %v350
  %483 = vmatprep.subr.bf16.mxu0 0
  %484 = vmatpush2.bf16.msra.mxu0 %v349
  %485 = vmatprep.mubr.bf16.mxu0 %v166
  %486 = vmatmul.mubr.bf16.gmra.mxu0 %v165
  %v487 = vpop.f32.mrf.mxu0
  %v488 = vadd.f32 %v439, %v487
  %v489 = vpop.f32.mrf.mxu0
  %v490 = vpop.f32.mrf.mxu0
  %v491 = vadd.f32 %v442, %v490
  %v492 = vpop.f32.mrf.mxu0
  %493 = vmatprep.mubr.bf16.mxu0 %v171
  %494 = vmatmul.mubr.bf16.gmra.mxu0 %v170
  %v495 = vpop.f32.mrf.mxu0
  %v496 = vadd.f32 %v447, %v495
  %v497 = vpop.f32.mrf.mxu0
  %v498 = vpop.f32.mrf.mxu0
  %v499 = vadd.f32 %v450, %v498
  %v500 = vpop.f32.mrf.mxu0
  %501 = vdwg.mxu0
  %502 = vmatprep.subr.bf16.mxu0 0
  %503 = vmatpush1.bf16.msra.mxu0 0
  %504 = vmatprep.subr.bf16.mxu0 0
  %505 = vmatpush1.bf16.msra.mxu0 0
  %506 = vmatprep.subr.bf16.mxu0 0
  %507 = vmatpush1.bf16.msra.mxu0 0
  %508 = vmatprep.subr.bf16.mxu0 0
  %509 = vmatpush1.bf16.msra.mxu0 0
  %510 = vmatprep.subr.bf16.mxu0 0
  %511 = vmatpush1.bf16.msra.mxu0 %v360
  %512 = vmatprep.subr.bf16.mxu0 0
  %513 = vmatpush1.bf16.msra.mxu0 %v359
  %514 = vmatprep.subr.bf16.mxu0 0
  %515 = vmatpush1.bf16.msra.mxu0 %v358
  %516 = vmatprep.subr.bf16.mxu0 0
  %517 = vmatpush1.bf16.msra.mxu0 %v357
  %518 = vmatprep.subr.bf16.mxu0 0
  %519 = vmatpush2.bf16.msra.mxu0 0
  %520 = vmatprep.subr.bf16.mxu0 0
  %521 = vmatpush2.bf16.msra.mxu0 0
  %522 = vmatprep.subr.bf16.mxu0 0
  %523 = vmatpush2.bf16.msra.mxu0 0
  %524 = vmatprep.subr.bf16.mxu0 0
  %525 = vmatpush2.bf16.msra.mxu0 0
  %526 = vmatprep.subr.bf16.mxu0 0
  %527 = vmatpush2.bf16.msra.mxu0 0
  %528 = vmatprep.subr.bf16.mxu0 0
  %529 = vmatpush2.bf16.msra.mxu0 0
  %530 = vmatprep.subr.bf16.mxu0 0
  %531 = vmatpush2.bf16.msra.mxu0 0
  %532 = vmatprep.subr.bf16.mxu0 0
  %533 = vmatpush2.bf16.msra.mxu0 0
  %534 = vmatprep.mubr.bf16.mxu0 0
  %535 = vmatmul.mubr.bf16.gmra.mxu0 %v399
  %v536 = vpop.f32.mrf.mxu0
  %v537 = vadd.f32 %v488, %v536
  %v538 = vpop.f32.mrf.mxu0
  %v539 = vpop.f32.mrf.mxu0
  %v540 = vadd.f32 %v491, %v539
  %v541 = vpop.f32.mrf.mxu0
  %542 = vmatprep.mubr.bf16.mxu0 0
  %543 = vmatmul.mubr.bf16.gmra.mxu0 %v402
  %v544 = vpop.f32.mrf.mxu0
  %v545 = vadd.f32 %v496, %v544
  %v546 = vpop.f32.mrf.mxu0
  %v547 = vpop.f32.mrf.mxu0
  %v548 = vadd.f32 %v499, %v547
  %v549 = vpop.f32.mrf.mxu0
  %550 = vdwg.mxu0
  %v551 = vxor.u32 %v537, 2147483648
  %v552 = vxor.u32 %v540, 2147483648
  %v553 = vxor.u32 %v545, 2147483648
  %v554 = vxor.u32 %v548, 2147483648
  %v555 = vmul.f32 %v551, 1.442695
  %v556 = vpow.pop %v555
  %v557 = vmul.f32 %v552, 1.442695
  %v558 = vpow.pop %v557
  %v559 = vmul.f32 %v553, 1.442695
  %v560 = vpow.pop %v559
  %v561 = vmul.f32 %v554, 1.442695
  %v562 = vpow.pop %v561
  %v563 = vadd.f32 %v556, 1.0
  %v564 = vadd.f32 %v558, 1.0
  %v565 = vadd.f32 %v560, 1.0
  %v566 = vadd.f32 %v562, 1.0
  %v567 = vrcp.pop %v563
  %v568 = vmul.f32 1.0, %v567
  %v569 = vrcp.pop %v564
  %v570 = vmul.f32 1.0, %v569
  %v571 = vrcp.pop %v565
  %v572 = vmul.f32 1.0, %v571
  %v573 = vrcp.pop %v566
  %v574 = vmul.f32 1.0, %v573
  %v575 = vmul.f32 %v537, %v568
  %v576 = vmul.f32 %v540, %v570
  %v577 = vmul.f32 %v545, %v572
  %v578 = vmul.f32 %v548, %v574
  %v579 = vpack.c.bf16 %v576, %v575
  %v580 = vpack.c.bf16 %v578, %v577
  %v581 = vld [vmem:[%s2] sm:$0xf]
  %v582 = vld [vmem:[%s2 + $0x4] sm:$0xf]
  %v583 = vld [vmem:[%s2 + $0x8] sm:$0xf]
  %v584 = vld [vmem:[%s2 + $0xc] sm:$0xf]
  %v585 = vld [vmem:[%s3] sm:$0xff]
  %v586 = vld [vmem:[%s3 + $0x8] sm:$0xff]
  %v587 = vld [vmem:[%s3 + $0x10] sm:$0xff]
  %v588 = vld [vmem:[%s3 + $0x18] sm:$0xff]
  %590 = vset.pattern.permute.xlu0 0
  %591 = vperm.xlu0 %590, %v585
  %v592 = vpop.permute.xlu0 %591
  %595 = vset.pattern.permute.xlu0 0
  %596 = vperm.xlu0 %595, %v586
  %v597 = vpop.permute.xlu0 %596
  %600 = vset.pattern.permute.xlu0 0
  %601 = vperm.xlu0 %600, %v587
  %v602 = vpop.permute.xlu0 %601
  %605 = vset.pattern.permute.xlu0 0
  %606 = vperm.xlu0 %605, %v588
  %v607 = vpop.permute.xlu0 %606
  %v613 = vunpack.c.l.b16 %v581
  %v614 = vunpack.c.l.b16 %v582
  %v615 = vunpack.c.l.b16 %v583
  %v616 = vunpack.c.l.b16 %v584
  %v617 = vpack.c.b16 %v614, %v613
  %v618 = vpack.c.b16 %v616, %v615
  %vm619 = vcmask 261120
  %v621 = vsel %vm619, %v617, 0
  %v624 = vsel %vm619, %v618, 0
  %626 = vmatprep.subr.bf16.mxu0 0
  %627 = vmatpush1.bf16.msra.mxu0 0
  %628 = vmatprep.subr.bf16.mxu0 0
  %629 = vmatpush1.bf16.msra.mxu0 0
  %630 = vmatprep.subr.bf16.mxu0 0
  %631 = vmatpush1.bf16.msra.mxu0 0
  %632 = vmatprep.subr.bf16.mxu0 0
  %633 = vmatpush1.bf16.msra.mxu0 0
  %634 = vmatprep.subr.bf16.mxu0 0
  %635 = vmatpush1.bf16.msra.mxu0 0
  %636 = vmatprep.subr.bf16.mxu0 0
  %637 = vmatpush1.bf16.msra.mxu0 0
  %638 = vmatprep.subr.bf16.mxu0 0
  %639 = vmatpush1.bf16.msra.mxu0 %v580
  %640 = vmatprep.subr.bf16.mxu0 0
  %641 = vmatpush1.bf16.msra.mxu0 %v579
  %642 = vmatprep.subr.bf16.mxu0 0
  %643 = vmatpush2.bf16.msra.mxu0 0
  %644 = vmatprep.subr.bf16.mxu0 0
  %645 = vmatpush2.bf16.msra.mxu0 0
  %646 = vmatprep.subr.bf16.mxu0 0
  %647 = vmatpush2.bf16.msra.mxu0 0
  %648 = vmatprep.subr.bf16.mxu0 0
  %649 = vmatpush2.bf16.msra.mxu0 0
  %650 = vmatprep.subr.bf16.mxu0 0
  %651 = vmatpush2.bf16.msra.mxu0 0
  %652 = vmatprep.subr.bf16.mxu0 0
  %653 = vmatpush2.bf16.msra.mxu0 0
  %654 = vmatprep.subr.bf16.mxu0 0
  %655 = vmatpush2.bf16.msra.mxu0 0
  %656 = vmatprep.subr.bf16.mxu0 0
  %657 = vmatpush2.bf16.msra.mxu0 0
  %658 = vmatprep.mubr.bf16.mxu0 0
  %659 = vmatmul.mubr.bf16.gmra.mxu0 %v621
  %v660 = vpop.f32.mrf.mxu0
  %v661 = vadd.f32 %v592, %v660
  %v662 = vpop.f32.mrf.mxu0
  %v663 = vpop.f32.mrf.mxu0
  %v664 = vadd.f32 %v597, %v663
  %v665 = vpop.f32.mrf.mxu0
  %666 = vmatprep.mubr.bf16.mxu0 0
  %667 = vmatmul.mubr.bf16.gmra.mxu0 %v624
  %v668 = vpop.f32.mrf.mxu0
  %v669 = vadd.f32 %v602, %v668
  %v670 = vpop.f32.mrf.mxu0
  %v671 = vpop.f32.mrf.mxu0
  %v672 = vadd.f32 %v607, %v671
  %v673 = vpop.f32.mrf.mxu0
  %674 = vdwg.mxu0
  %v675 = vxor.u32 %v661, 2147483648
  %v676 = vxor.u32 %v664, 2147483648
  %v677 = vxor.u32 %v669, 2147483648
  %v678 = vxor.u32 %v672, 2147483648
  %v679 = vmul.f32 %v675, 1.442695
  %v680 = vpow.pop %v679
  %v681 = vmul.f32 %v676, 1.442695
  %v682 = vpow.pop %v681
  %v683 = vmul.f32 %v677, 1.442695
  %v684 = vpow.pop %v683
  %v685 = vmul.f32 %v678, 1.442695
  %v686 = vpow.pop %v685
  %v687 = vadd.f32 %v680, 1.0
  %v688 = vadd.f32 %v682, 1.0
  %v689 = vadd.f32 %v684, 1.0
  %v690 = vadd.f32 %v686, 1.0
  %v691 = vrcp.pop %v687
  %v692 = vmul.f32 1.0, %v691
  %v693 = vrcp.pop %v688
  %v694 = vmul.f32 1.0, %v693
  %v695 = vrcp.pop %v689
  %v696 = vmul.f32 1.0, %v695
  %v697 = vrcp.pop %v690
  %v698 = vmul.f32 1.0, %v697
  %v699 = vmul.f32 %v661, %v692
  %v700 = vmul.f32 %v664, %v694
  %v701 = vmul.f32 %v669, %v696
  %v702 = vmul.f32 %v672, %v698
  %v705 = vunpack.c.l.b16 %v579
  %v706 = vunpack.c.h.b16 %v579
  %v707 = vunpack.c.l.b16 %v580
  %v708 = vunpack.c.h.b16 %v580
  %v709 = vpack.c.b16 %v705, %v705
  %v710 = vpack.c.b16 %v706, %v706
  %v711 = vpack.c.b16 %v707, %v707
  %v712 = vpack.c.b16 %v708, %v708
  %vm717 = vcmask 60416
  %718 = vst.msk [vmem:[%s5] sm:$0xf] %vm717, %v709
  %719 = vst.msk [vmem:[%s5 + $0x4] sm:$0xf] %vm717, %v710
  %720 = vst.msk [vmem:[%s5 + $0x8] sm:$0xf] %vm717, %v711
  %721 = vst.msk [vmem:[%s5 + $0xc] sm:$0xf] %vm717, %v712
  %v722 = vpack.c.bf16 %v700, %v699
  %v723 = vpack.c.bf16 %v702, %v701
  %v726 = vunpack.c.l.b16 %v722
  %v727 = vunpack.c.h.b16 %v722
  %v728 = vunpack.c.l.b16 %v723
  %v729 = vunpack.c.h.b16 %v723
  %v730 = vpack.c.b16 %v726, %v726
  %v731 = vpack.c.b16 %v727, %v727
  %v732 = vpack.c.b16 %v728, %v728
  %v733 = vpack.c.b16 %v729, %v729
  %738 = vst.msk [vmem:[%s6] sm:$0xf] %vm717, %v730
  %739 = vst.msk [vmem:[%s6 + $0x4] sm:$0xf] %vm717, %v731
  %740 = vst.msk [vmem:[%s6 + $0x8] sm:$0xf] %vm717, %v732
  %741 = vst.msk [vmem:[%s6 + $0xc] sm:$0xf] %vm717, %v733
  // Predicated region
  $region22: #{model_forward.32} parent=0 // pred_check
    _
  $region23: #{model_forward.32} parent=0 // pred_check_branch
    %743 = sbr.rel (0) target = $region25
  $region24: #{model_forward.32} parent=0 // pred_region
    _
  $region25: #{model_forward.32} parent=0 // pred_fallthru
    _
  // Predicated region
  $region26: #{model_forward.32} parent=0 // pred_check
    _
  $region27: #{model_forward.32} parent=0 // pred_check_branch
    %745 = sbr.rel (0) target = $region29
  $region28: #{model_forward.32} parent=0 // pred_region
    _
  $region29: #{model_forward.32} parent=0 // pred_fallthru
    _
  // Predicated region
  $region30: #{model_forward.32} parent=0 // pred_check
    _
  $region31: #{model_forward.32} parent=0 // pred_check_branch
    %747 = sbr.rel (0) target = $region33
  $region32: #{model_forward.32} parent=0 // pred_region
    _
  $region33: #{model_forward.32} parent=0 // pred_fallthru
    _
  // Predicated region
  $region34: #{model_forward.32} parent=0 // pred_check
    _
  $region35: #{model_forward.32} parent=0 // pred_check_branch
    %749 = sbr.rel (0) target = $region37
  $region36: #{model_forward.32} parent=0 // pred_region
    _
  $region37: #{model_forward.32} parent=0 // pred_fallthru
    _

// kernel: model_forward.35
$region0: #{model_forward.35}
  #allocation0 [shape = 'u32[]', space=smem, size = 0x4, offset = 0x4, fixed_abs, tag = 'smem constant byte address 0x4 - core index']
  #allocation1 [shape = 'u32[144,128]{1,0:T(1,128)}', space=vmem, size = 0x12000, scoped, tag = 'internal scratch']
  %s0 = inlined_call_operand.vmem [shape: bf16[64,288], index: 0, kind: input, shape index: {}]
  %s1 = inlined_call_operand.vmem [shape: f32[64,1], index: 1, kind: input, shape index: {}]
  %s2 = inlined_call_operand.vmem [shape: bf16[8,64], index: 2, kind: input, shape index: {}]
  %s3 = inlined_call_operand.vmem [shape: f32[8,1], index: 3, kind: input, shape index: {}]
  %s4 = inlined_call_operand.vmem [shape: bf16[288,8], index: 4, kind: input, shape index: {}]
  %s5 = inlined_call_operand.vmem [shape: f32[8,8], index: 5, kind: output, shape index: {}]
  %s6 = sld [smem:[#allocation0]]
  $region30: #{model_forward.35} parent=0
    _
  %s8 = ssub.s32 1, %s6
  %s9 = scalar_select 0, %s8, %s6
  // Predicated region
  $region2: #{model_forward.35} parent=0 // pred_check
    _
  $region3: #{model_forward.35} parent=0 // pred_check_branch
    %11 = sbr.rel (0) target = $region5
  $region4: #{model_forward.35} parent=0 // pred_region
    _
  $region5: #{model_forward.35} parent=0 // pred_fallthru
    _
  // Predicated region
  $region6: #{model_forward.35} parent=0 // pred_check
    _
  $region7: #{model_forward.35} parent=0 // pred_check_branch
    %13 = sbr.rel (0) target = $region9
  $region8: #{model_forward.35} parent=0 // pred_region
    _
  $region9: #{model_forward.35} parent=0 // pred_fallthru
    _
  // Predicated region
  $region10: #{model_forward.35} parent=0 // pred_check
    _
  $region11: #{model_forward.35} parent=0 // pred_check_branch
    %15 = sbr.rel (0) target = $region13
  $region12: #{model_forward.35} parent=0 // pred_region
    _
  $region13: #{model_forward.35} parent=0 // pred_fallthru
    _
  // Predicated region
  $region14: #{model_forward.35} parent=0 // pred_check
    _
  $region15: #{model_forward.35} parent=0 // pred_check_branch
    %17 = sbr.rel (0) target = $region17
  $region16: #{model_forward.35} parent=0 // pred_region
    _
  $region17: #{model_forward.35} parent=0 // pred_fallthru
    _
  // Predicated region
  $region18: #{model_forward.35} parent=0 // pred_check
    _
  $region19: #{model_forward.35} parent=0 // pred_check_branch
    %19 = sbr.rel (0) target = $region21
  $region20: #{model_forward.35} parent=0 // pred_region
    _
  $region21: #{model_forward.35} parent=0 // pred_fallthru
    _
  %v21 = vld [vmem:[%s0] sm:$0xff]
  %v22 = vld [vmem:[%s0 + $0x8] sm:$0xf]
  %v23 = vld [vmem:[%s0 + $0xc] sm:$0xff]
  %v24 = vld [vmem:[%s0 + $0x14] sm:$0xf]
  %v25 = vld [vmem:[%s0 + $0x18] sm:$0xff]
  %v26 = vld [vmem:[%s0 + $0x20] sm:$0xf]
  %v27 = vld [vmem:[%s0 + $0x24] sm:$0xff]
  %v28 = vld [vmem:[%s0 + $0x2c] sm:$0xf]
  %v29 = vld [vmem:[%s0 + $0x30] sm:$0xff]
  %v30 = vld [vmem:[%s0 + $0x38] sm:$0xf]
  %v31 = vld [vmem:[%s0 + $0x3c] sm:$0xff]
  %v32 = vld [vmem:[%s0 + $0x44] sm:$0xf]
  %v33 = vld [vmem:[%s0 + $0x48] sm:$0xff]
  %v34 = vld [vmem:[%s0 + $0x50] sm:$0xf]
  %v35 = vld [vmem:[%s0 + $0x54] sm:$0xff]
  %v36 = vld [vmem:[%s0 + $0x5c] sm:$0xf]
  %v37 = vld [vmem:[%s4] sm:$0xf]
  %v38 = vld [vmem:[%s4 + $0x4] sm:$0xf]
  %v39 = vld [vmem:[%s4 + $0x8] sm:$0xf]
  %v40 = vld [vmem:[%s4 + $0xc] sm:$0xf]
  %v41 = vld [vmem:[%s4 + $0x10] sm:$0xf]
  %v42 = vld [vmem:[%s4 + $0x14] sm:$0xf]
  %v43 = vld [vmem:[%s4 + $0x18] sm:$0xf]
  %v44 = vld [vmem:[%s4 + $0x1c] sm:$0xf]
  %v45 = vld [vmem:[%s4 + $0x20] sm:$0xf]
  %v46 = vld [vmem:[%s4 + $0x24] sm:$0xf]
  %v47 = vld [vmem:[%s4 + $0x28] sm:$0xf]
  %v48 = vld [vmem:[%s4 + $0x2c] sm:$0xf]
  %v49 = vld [vmem:[%s4 + $0x30] sm:$0xf]
  %v50 = vld [vmem:[%s4 + $0x34] sm:$0xf]
  %v51 = vld [vmem:[%s4 + $0x38] sm:$0xf]
  %v52 = vld [vmem:[%s4 + $0x3c] sm:$0xf]
  %v53 = vld [vmem:[%s4 + $0x40] sm:$0xf]
  %v54 = vld [vmem:[%s4 + $0x44] sm:$0xf]
  %v55 = vld [vmem:[%s4 + $0x48] sm:$0xf]
  %v56 = vld [vmem:[%s4 + $0x4c] sm:$0xf]
  %v57 = vld [vmem:[%s4 + $0x50] sm:$0xf]
  %v58 = vld [vmem:[%s4 + $0x54] sm:$0xf]
  %v59 = vld [vmem:[%s4 + $0x58] sm:$0xf]
  %v60 = vld [vmem:[%s4 + $0x5c] sm:$0xf]
  %v61 = vld [vmem:[%s4 + $0x60] sm:$0xf]
  %v62 = vld [vmem:[%s4 + $0x64] sm:$0xf]
  %v63 = vld [vmem:[%s4 + $0x68] sm:$0xf]
  %v64 = vld [vmem:[%s4 + $0x6c] sm:$0xf]
  %v65 = vld [vmem:[%s4 + $0x70] sm:$0xf]
  %v66 = vld [vmem:[%s4 + $0x74] sm:$0xf]
  %v67 = vld [vmem:[%s4 + $0x78] sm:$0xf]
  %v68 = vld [vmem:[%s4 + $0x7c] sm:$0xf]
  %v69 = vld [vmem:[%s4 + $0x80] sm:$0xf]
  %v70 = vld [vmem:[%s4 + $0x84] sm:$0xf]
  %v71 = vld [vmem:[%s4 + $0x88] sm:$0xf]
  %v72 = vld [vmem:[%s4 + $0x8c] sm:$0xf]
  %v73 = vld [vmem:[%s1] sm:$0xff]
  %v74 = vld [vmem:[%s1 + $0x8] sm:$0xff]
  %v75 = vld [vmem:[%s1 + $0x10] sm:$0xff]
  %v76 = vld [vmem:[%s1 + $0x18] sm:$0xff]
  %v77 = vld [vmem:[%s1 + $0x20] sm:$0xff]
  %v78 = vld [vmem:[%s1 + $0x28] sm:$0xff]
  %v79 = vld [vmem:[%s1 + $0x30] sm:$0xff]
  %v80 = vld [vmem:[%s1 + $0x38] sm:$0xff]
  %82 = vset.pattern.permute.xlu0 0
  %83 = vperm.xlu0 %82, %v73
  %v84 = vpop.permute.xlu0 %83
  %87 = vset.pattern.permute.xlu0 0
  %88 = vperm.xlu0 %87, %v74
  %v89 = vpop.permute.xlu0 %88
  %92 = vset.pattern.permute.xlu0 0
  %93 = vperm.xlu0 %92, %v75
  %v94 = vpop.permute.xlu0 %93
  %97 = vset.pattern.permute.xlu0 0
  %98 = vperm.xlu0 %97, %v76
  %v99 = vpop.permute.xlu0 %98
  %102 = vset.pattern.permute.xlu0 0
  %103 = vperm.xlu0 %102, %v77
  %v104 = vpop.permute.xlu0 %103
  %107 = vset.pattern.permute.xlu0 0
  %108 = vperm.xlu0 %107, %v78
  %v109 = vpop.permute.xlu0 %108
  %112 = vset.pattern.permute.xlu0 0
  %113 = vperm.xlu0 %112, %v79
  %v114 = vpop.permute.xlu0 %113
  %117 = vset.pattern.permute.xlu0 0
  %118 = vperm.xlu0 %117, %v80
  %v119 = vpop.permute.xlu0 %118
  %v137 = vunpack.c.l.b16 %v21
  %v138 = vunpack.c.h.b16 %v21
  %v139 = vunpack.c.l.b16 %v22
  %v140 = vunpack.c.l.b16 %v23
  %v141 = vunpack.c.h.b16 %v23
  %v142 = vunpack.c.l.b16 %v24
  %v143 = vunpack.c.l.b16 %v25
  %v144 = vunpack.c.h.b16 %v25
  %v145 = vunpack.c.l.b16 %v26
  %v146 = vunpack.c.l.b16 %v27
  %v147 = vunpack.c.h.b16 %v27
  %v148 = vunpack.c.l.b16 %v28
  %v149 = vunpack.c.l.b16 %v29
  %v150 = vunpack.c.h.b16 %v29
  %v151 = vunpack.c.l.b16 %v30
  %v152 = vunpack.c.l.b16 %v31
  %v153 = vunpack.c.h.b16 %v31
  %v154 = vunpack.c.l.b16 %v32
  %v155 = vunpack.c.l.b16 %v33
  %v156 = vunpack.c.h.b16 %v33
  %v157 = vunpack.c.l.b16 %v34
  %v158 = vunpack.c.l.b16 %v35
  %v159 = vunpack.c.h.b16 %v35
  %v160 = vunpack.c.l.b16 %v36
  %v161 = vpack.c.b16 %v140, %v137
  %v162 = vpack.c.b16 %v141, %v138
  %v163 = vpack.c.b16 %v142, %v139
  %v164 = vpack.c.b16 %v146, %v143
  %v165 = vpack.c.b16 %v147, %v144
  %v166 = vpack.c.b16 %v148, %v145
  %v167 = vpack.c.b16 %v152, %v149
  %v168 = vpack.c.b16 %v153, %v150
  %v169 = vpack.c.b16 %v154, %v151
  %v170 = vpack.c.b16 %v158, %v155
  %v171 = vpack.c.b16 %v159, %v156
  %v172 = vpack.c.b16 %v160, %v157
  %v217 = vunpack.c.l.b16 %v37
  %v218 = vunpack.c.l.b16 %v38
  %v219 = vunpack.c.l.b16 %v39
  %v220 = vunpack.c.l.b16 %v40
  %v221 = vunpack.c.l.b16 %v41
  %v222 = vunpack.c.l.b16 %v42
  %v223 = vunpack.c.l.b16 %v43
  %v224 = vunpack.c.l.b16 %v44
  %v225 = vunpack.c.l.b16 %v45
  %v226 = vunpack.c.l.b16 %v46
  %v227 = vunpack.c.l.b16 %v47
  %v228 = vunpack.c.l.b16 %v48
  %v229 = vunpack.c.l.b16 %v49
  %v230 = vunpack.c.l.b16 %v50
  %v231 = vunpack.c.l.b16 %v51
  %v232 = vunpack.c.l.b16 %v52
  %v233 = vunpack.c.l.b16 %v53
  %v234 = vunpack.c.l.b16 %v54
  %v235 = vunpack.c.l.b16 %v55
  %v236 = vunpack.c.l.b16 %v56
  %v237 = vunpack.c.l.b16 %v57
  %v238 = vunpack.c.l.b16 %v58
  %v239 = vunpack.c.l.b16 %v59
  %v240 = vunpack.c.l.b16 %v60
  %v241 = vunpack.c.l.b16 %v61
  %v242 = vunpack.c.l.b16 %v62
  %v243 = vunpack.c.l.b16 %v63
  %v244 = vunpack.c.l.b16 %v64
  %v245 = vunpack.c.l.b16 %v65
  %v246 = vunpack.c.l.b16 %v66
  %v247 = vunpack.c.l.b16 %v67
  %v248 = vunpack.c.l.b16 %v68
  %v249 = vunpack.c.l.b16 %v69
  %v250 = vunpack.c.l.b16 %v70
  %v251 = vunpack.c.l.b16 %v71
  %v252 = vunpack.c.l.b16 %v72
  %v253 = vpack.c.b16 %v218, %v217
  %v254 = vpack.c.b16 %v220, %v219
  %v255 = vpack.c.b16 %v222, %v221
  %v256 = vpack.c.b16 %v224, %v223
  %v257 = vpack.c.b16 %v226, %v225
  %v258 = vpack.c.b16 %v228, %v227
  %v259 = vpack.c.b16 %v230, %v229
  %v260 = vpack.c.b16 %v232, %v231
  %v261 = vpack.c.b16 %v234, %v233
  %v262 = vpack.c.b16 %v236, %v235
  %v263 = vpack.c.b16 %v238, %v237
  %v264 = vpack.c.b16 %v240, %v239
  %v265 = vpack.c.b16 %v242, %v241
  %v266 = vpack.c.b16 %v244, %v243
  %v267 = vpack.c.b16 %v246, %v245
  %v268 = vpack.c.b16 %v248, %v247
  %v269 = vpack.c.b16 %v250, %v249
  %v270 = vpack.c.b16 %v252, %v251
  %vm289 = vcmask 261120
  %v291 = vsel %vm289, %v163, 0
  %v294 = vsel %vm289, %v166, 0
  %v297 = vsel %vm289, %v169, 0
  %v300 = vsel %vm289, %v172, 0
  %302 = vmatprep.subr.bf16.mxu0 0
  %303 = vmatpush1.bf16.msra.mxu0 %v260
  %304 = vmatprep.subr.bf16.mxu0 0
  %305 = vmatpush1.bf16.msra.mxu0 %v259
  %306 = vmatprep.subr.bf16.mxu0 0
  %307 = vmatpush1.bf16.msra.mxu0 %v258
  %308 = vmatprep.subr.bf16.mxu0 0
  %309 = vmatpush1.bf16.msra.mxu0 %v257
  %310 = vmatprep.subr.bf16.mxu0 0
  %311 = vmatpush1.bf16.msra.mxu0 %v256
  %312 = vmatprep.subr.bf16.mxu0 0
  %313 = vmatpush1.bf16.msra.mxu0 %v255
  %314 = vmatprep.subr.bf16.mxu0 0
  %315 = vmatpush1.bf16.msra.mxu0 %v254
  %316 = vmatprep.subr.bf16.mxu0 0
  %317 = vmatpush1.bf16.msra.mxu0 %v253
  %318 = vmatprep.subr.bf16.mxu0 0
  %319 = vmatpush2.bf16.msra.mxu0 %v268
  %320 = vmatprep.subr.bf16.mxu0 0
  %321 = vmatpush2.bf16.msra.mxu0 %v267
  %322 = vmatprep.subr.bf16.mxu0 0
  %323 = vmatpush2.bf16.msra.mxu0 %v266
  %324 = vmatprep.subr.bf16.mxu0 0
  %325 = vmatpush2.bf16.msra.mxu0 %v265
  %326 = vmatprep.subr.bf16.mxu0 0
  %327 = vmatpush2.bf16.msra.mxu0 %v264
  %328 = vmatprep.subr.bf16.mxu0 0
  %329 = vmatpush2.bf16.msra.mxu0 %v263
  %330 = vmatprep.subr.bf16.mxu0 0
  %331 = vmatpush2.bf16.msra.mxu0 %v262
  %332 = vmatprep.subr.bf16.mxu0 0
  %333 = vmatpush2.bf16.msra.mxu0 %v261
  %334 = vmatprep.mubr.bf16.mxu0 %v162
  %335 = vmatmul.mubr.bf16.gmra.mxu0 %v161
  %v336 = vpop.f32.mrf.mxu0
  %v337 = vadd.f32 %v84, %v336
  %v338 = vpop.f32.mrf.mxu0
  %v339 = vpop.f32.mrf.mxu0
  %v340 = vadd.f32 %v89, %v339
  %v341 = vpop.f32.mrf.mxu0
  %342 = vmatprep.mubr.bf16.mxu0 %v165
  %343 = vmatmul.mubr.bf16.gmra.mxu0 %v164
  %v344 = vpop.f32.mrf.mxu0
  %v345 = vadd.f32 %v94, %v344
  %v346 = vpop.f32.mrf.mxu0
  %v347 = vpop.f32.mrf.mxu0
  %v348 = vadd.f32 %v99, %v347
  %v349 = vpop.f32.mrf.mxu0
  %350 = vmatprep.mubr.bf16.mxu0 %v168
  %351 = vmatmul.mubr.bf16.gmra.mxu0 %v167
  %v352 = vpop.f32.mrf.mxu0
  %v353 = vadd.f32 %v104, %v352
  %v354 = vpop.f32.mrf.mxu0
  %v355 = vpop.f32.mrf.mxu0
  %v356 = vadd.f32 %v109, %v355
  %v357 = vpop.f32.mrf.mxu0
  %358 = vmatprep.mubr.bf16.mxu0 %v171
  %359 = vmatmul.mubr.bf16.gmra.mxu0 %v170
  %v360 = vpop.f32.mrf.mxu0
  %v361 = vadd.f32 %v114, %v360
  %v362 = vpop.f32.mrf.mxu0
  %v363 = vpop.f32.mrf.mxu0
  %v364 = vadd.f32 %v119, %v363
  %v365 = vpop.f32.mrf.mxu0
  %366 = vdwg.mxu0
  %367 = vmatprep.subr.bf16.mxu0 0
  %368 = vmatpush1.bf16.msra.mxu0 0
  %369 = vmatprep.subr.bf16.mxu0 0
  %370 = vmatpush1.bf16.msra.mxu0 0
  %371 = vmatprep.subr.bf16.mxu0 0
  %372 = vmatpush1.bf16.msra.mxu0 0
  %373 = vmatprep.subr.bf16.mxu0 0
  %374 = vmatpush1.bf16.msra.mxu0 0
  %375 = vmatprep.subr.bf16.mxu0 0
  %376 = vmatpush1.bf16.msra.mxu0 0
  %377 = vmatprep.subr.bf16.mxu0 0
  %378 = vmatpush1.bf16.msra.mxu0 0
  %379 = vmatprep.subr.bf16.mxu0 0
  %380 = vmatpush1.bf16.msra.mxu0 %v270
  %381 = vmatprep.subr.bf16.mxu0 0
  %382 = vmatpush1.bf16.msra.mxu0 %v269
  %383 = vmatprep.subr.bf16.mxu0 0
  %384 = vmatpush2.bf16.msra.mxu0 0
  %385 = vmatprep.subr.bf16.mxu0 0
  %386 = vmatpush2.bf16.msra.mxu0 0
  %387 = vmatprep.subr.bf16.mxu0 0
  %388 = vmatpush2.bf16.msra.mxu0 0
  %389 = vmatprep.subr.bf16.mxu0 0
  %390 = vmatpush2.bf16.msra.mxu0 0
  %391 = vmatprep.subr.bf16.mxu0 0
  %392 = vmatpush2.bf16.msra.mxu0 0
  %393 = vmatprep.subr.bf16.mxu0 0
  %394 = vmatpush2.bf16.msra.mxu0 0
  %395 = vmatprep.subr.bf16.mxu0 0
  %396 = vmatpush2.bf16.msra.mxu0 0
  %397 = vmatprep.subr.bf16.mxu0 0
  %398 = vmatpush2.bf16.msra.mxu0 0
  %399 = vmatprep.mubr.bf16.mxu0 0
  %400 = vmatmul.mubr.bf16.gmra.mxu0 %v291
  %v401 = vpop.f32.mrf.mxu0
  %v402 = vadd.f32 %v337, %v401
  %v403 = vpop.f32.mrf.mxu0
  %v404 = vpop.f32.mrf.mxu0
  %v405 = vadd.f32 %v340, %v404
  %v406 = vpop.f32.mrf.mxu0
  %407 = vmatprep.mubr.bf16.mxu0 0
  %408 = vmatmul.mubr.bf16.gmra.mxu0 %v294
  %v409 = vpop.f32.mrf.mxu0
  %v410 = vadd.f32 %v345, %v409
  %v411 = vpop.f32.mrf.mxu0
  %v412 = vpop.f32.mrf.mxu0
  %v413 = vadd.f32 %v348, %v412
  %v414 = vpop.f32.mrf.mxu0
  %415 = vmatprep.mubr.bf16.mxu0 0
  %416 = vmatmul.mubr.bf16.gmra.mxu0 %v297
  %v417 = vpop.f32.mrf.mxu0
  %v418 = vadd.f32 %v353, %v417
  %v419 = vpop.f32.mrf.mxu0
  %v420 = vpop.f32.mrf.mxu0
  %v421 = vadd.f32 %v356, %v420
  %v422 = vpop.f32.mrf.mxu0
  %423 = vmatprep.mubr.bf16.mxu0 0
  %424 = vmatmul.mubr.bf16.gmra.mxu0 %v300
  %v425 = vpop.f32.mrf.mxu0
  %v426 = vadd.f32 %v361, %v425
  %v427 = vpop.f32.mrf.mxu0
  %v428 = vpop.f32.mrf.mxu0
  %v429 = vadd.f32 %v364, %v428
  %v430 = vpop.f32.mrf.mxu0
  %431 = vdwg.mxu0
  %v432 = vxor.u32 %v402, 2147483648
  %v433 = vxor.u32 %v405, 2147483648
  %v434 = vxor.u32 %v410, 2147483648
  %v435 = vxor.u32 %v413, 2147483648
  %v436 = vxor.u32 %v418, 2147483648
  %v437 = vxor.u32 %v421, 2147483648
  %v438 = vxor.u32 %v426, 2147483648
  %v439 = vxor.u32 %v429, 2147483648
  %v440 = vmul.f32 %v432, 1.442695
  %v441 = vpow.pop %v440
  %v442 = vmul.f32 %v433, 1.442695
  %v443 = vpow.pop %v442
  %v444 = vmul.f32 %v434, 1.442695
  %v445 = vpow.pop %v444
  %v446 = vmul.f32 %v435, 1.442695
  %v447 = vpow.pop %v446
  %v448 = vmul.f32 %v436, 1.442695
  %v449 = vpow.pop %v448
  %v450 = vmul.f32 %v437, 1.442695
  %v451 = vpow.pop %v450
  %v452 = vmul.f32 %v438, 1.442695
  %v453 = vpow.pop %v452
  %v454 = vmul.f32 %v439, 1.442695
  %v455 = vpow.pop %v454
  %v456 = vadd.f32 %v441, 1.0
  %v457 = vadd.f32 %v443, 1.0
  %v458 = vadd.f32 %v445, 1.0
  %v459 = vadd.f32 %v447, 1.0
  %v460 = vadd.f32 %v449, 1.0
  %v461 = vadd.f32 %v451, 1.0
  %v462 = vadd.f32 %v453, 1.0
  %v463 = vadd.f32 %v455, 1.0
  %v464 = vrcp.pop %v456
  %v465 = vmul.f32 1.0, %v464
  %v466 = vrcp.pop %v457
  %v467 = vmul.f32 1.0, %v466
  %v468 = vrcp.pop %v458
  %v469 = vmul.f32 1.0, %v468
  %v470 = vrcp.pop %v459
  %v471 = vmul.f32 1.0, %v470
  %v472 = vrcp.pop %v460
  %v473 = vmul.f32 1.0, %v472
  %v474 = vrcp.pop %v461
  %v475 = vmul.f32 1.0, %v474
  %v476 = vrcp.pop %v462
  %v477 = vmul.f32 1.0, %v476
  %v478 = vrcp.pop %v463
  %v479 = vmul.f32 1.0, %v478
  %v480 = vmul.f32 %v402, %v465
  %v481 = vmul.f32 %v405, %v467
  %v482 = vmul.f32 %v410, %v469
  %v483 = vmul.f32 %v413, %v471
  %v484 = vmul.f32 %v418, %v473
  %v485 = vmul.f32 %v421, %v475
  %v486 = vmul.f32 %v426, %v477
  %v487 = vmul.f32 %v429, %v479
  %v488 = vpack.c.bf16 %v481, %v480
  %v489 = vpack.c.bf16 %v483, %v482
  %v490 = vpack.c.bf16 %v485, %v484
  %v491 = vpack.c.bf16 %v487, %v486
  %v492 = vld [vmem:[%s2] sm:$0xf]
  %v493 = vld [vmem:[%s3] sm:$0xff]
  %495 = vset.pattern.permute.xlu0 0
  %496 = vperm.xlu0 %495, %v493
  %v497 = vpop.permute.xlu0 %496
  %vm499 = vcmask 523264
  %v501 = vsel %vm499, %v492, 0
  %503 = vmatprep.subr.bf16.mxu0 0
  %504 = vmatpush1.bf16.msra.mxu0 0
  %505 = vmatprep.subr.bf16.mxu0 0
  %506 = vmatpush1.bf16.msra.mxu0 0
  %507 = vmatprep.subr.bf16.mxu0 0
  %508 = vmatpush1.bf16.msra.mxu0 0
  %509 = vmatprep.subr.bf16.mxu0 0
  %510 = vmatpush1.bf16.msra.mxu0 0
  %511 = vmatprep.subr.bf16.mxu0 0
  %512 = vmatpush1.bf16.msra.mxu0 %v491
  %513 = vmatprep.subr.bf16.mxu0 0
  %514 = vmatpush1.bf16.msra.mxu0 %v490
  %515 = vmatprep.subr.bf16.mxu0 0
  %516 = vmatpush1.bf16.msra.mxu0 %v489
  %517 = vmatprep.subr.bf16.mxu0 0
  %518 = vmatpush1.bf16.msra.mxu0 %v488
  %519 = vmatprep.subr.bf16.mxu0 0
  %520 = vmatpush2.bf16.msra.mxu0 0
  %521 = vmatprep.subr.bf16.mxu0 0
  %522 = vmatpush2.bf16.msra.mxu0 0
  %523 = vmatprep.subr.bf16.mxu0 0
  %524 = vmatpush2.bf16.msra.mxu0 0
  %525 = vmatprep.subr.bf16.mxu0 0
  %526 = vmatpush2.bf16.msra.mxu0 0
  %527 = vmatprep.subr.bf16.mxu0 0
  %528 = vmatpush2.bf16.msra.mxu0 0
  %529 = vmatprep.subr.bf16.mxu0 0
  %530 = vmatpush2.bf16.msra.mxu0 0
  %531 = vmatprep.subr.bf16.mxu0 0
  %532 = vmatpush2.bf16.msra.mxu0 0
  %533 = vmatprep.subr.bf16.mxu0 0
  %534 = vmatpush2.bf16.msra.mxu0 0
  %535 = vmatprep.mubr.bf16.mxu0 0
  %536 = vmatmul.mubr.bf16.gmra.mxu0 %v501
  %v537 = vpop.f32.mrf.mxu0
  %v538 = vadd.f32 %v497, %v537
  %v539 = vpop.f32.mrf.mxu0
  %v540 = vpop.f32.mrf.mxu0
  %v541 = vpop.f32.mrf.mxu0
  %542 = vdwg.mxu0
  %vm543 = vcmask 64512
  %544 = vst.msk [vmem:[%s5] sm:$0xff] %vm543, %v538
  // Predicated region
  $region22: #{model_forward.35} parent=0 // pred_check
    _
  $region23: #{model_forward.35} parent=0 // pred_check_branch
    %546 = sbr.rel (0) target = $region25
  $region24: #{model_forward.35} parent=0 // pred_region
    _
  $region25: #{model_forward.35} parent=0 // pred_fallthru
    _
  // Predicated region
  $region26: #{model_forward.35} parent=0 // pred_check
    _
  $region27: #{model_forward.35} parent=0 // pred_check_branch
    %548 = sbr.rel (0) target = $region29
  $region28: #{model_forward.35} parent=0 // pred_region
    _
  $region29: #{model_forward.35} parent=0 // pred_fallthru
    _

</llo_original>
